<compile_context>
chip_gen: v7x
topology: tpu7x:2x2x1
jax: 0.10.0
libtpu: 0.0.40
codegen_flags: <defaults>
</compile_context>

<pallas_src>
import math

import jax
import jax.numpy as jnp
from jax import lax
from jax.experimental import pallas as pl
from jax.experimental.pallas import tpu as pltpu


# ----------------------------------------------------------------------------
# Fused Pallas kernel
# ----------------------------------------------------------------------------
def _make_kernel(d_model, d_k, d_v, h, m, nq, nk, b_tile):
    scale = 1.0 / math.sqrt(d_k)
    mq = b_tile * nq          # query rows per grid step

    def kernel(q_ref, k_ref, v_ref,
               wq_ref, bq_ref, wk_ref, bk_ref, wv_ref, bv_ref,
               wo_ref, bo_ref, mk_ref, mv_ref,
               o_ref, o_scr):
        xq = q_ref[...]       # (b_tile*nq, d_model)
        xk = k_ref[...]       # (b_tile*nk, d_model)
        xv = v_ref[...]       # (b_tile*nk, d_model)

        # TODO(synk): attention_mask / attention_weights (default None in the
        #             reference forward) are not implemented.
        # TODO(synk): for long nk, stream K/V tiles with a flash-style online
        #             softmax accumulator and tile nq (v7x 64 MiB VMEM budget);
        #             unnecessary at these shapes.
        for hh in range(h):   # h is small -> statically unrolled at trace time
            # Per-head projections: head-major weights via leading-axis ref
            # indexing (no lane slicing); contraction K = d_model (MXU depth).
            qh = jnp.dot(xq, wq_ref[hh],
                         preferred_element_type=jnp.float32) + bq_ref[hh]   # (mq, d_k)
            kh = jnp.dot(xk, wk_ref[hh],
                         preferred_element_type=jnp.float32) + bk_ref[hh]   # (b*nk, d_k)
            vh = jnp.dot(xv, wv_ref[hh],
                         preferred_element_type=jnp.float32) + bv_ref[hh]   # (b*nk, d_v)

            q3 = qh.reshape(b_tile, nq, d_k)
            k3 = kh.reshape(b_tile, nk, d_k)
            v3 = vh.reshape(b_tile, nk, d_v)

            # Scores vs. real keys (batched) and vs. shared memory slots.
            # sqrt(d_k)*m_k scaled by 1/sqrt(d_k) == m_k (scale cancels).
            s_k = jnp.einsum('bqd,bkd->bqk', q3, k3,
                             preferred_element_type=jnp.float32) * scale     # (b,nq,nk)
            s_m = lax.dot_general(qh, mk_ref[hh],
                                  (((1,), (1,)), ((), ())),
                                  preferred_element_type=jnp.float32)        # (mq, m)

            # One softmax over the (virtual) concatenation [s_k | s_m].
            row_max = jnp.maximum(
                jnp.max(s_k, axis=-1, keepdims=True),
                jnp.max(s_m, axis=-1, keepdims=True).reshape(b_tile, nq, 1))
            p_k = jnp.exp(s_k - row_max)
            p_m = jnp.exp(s_m - row_max.reshape(mq, 1))
            denom = (jnp.sum(p_k, axis=-1, keepdims=True).reshape(mq, 1)
                     + jnp.sum(p_m, axis=-1, keepdims=True))                 # (mq, 1)

            o_k = jnp.einsum('bqk,bkd->bqd', p_k, v3,
                             preferred_element_type=jnp.float32)             # (b,nq,d_v)
            o_m = jnp.dot(p_m, mv_ref[hh],
                          preferred_element_type=jnp.float32)                # (mq, d_v)
            # Normalize the small (mq, d_v) PV result, not the probabilities.
            # Exact reciprocal keeps the 1e-4 numerics check; flip approx=True
            # on real workloads to move it onto the EUP slot.
            o_h = (o_k.reshape(mq, d_v) + o_m) * pl.reciprocal(denom, approx=False)

            o_scr[:, hh * d_v:(hh + 1) * d_v] = o_h

        # Single fused output projection: one MXU op, contraction h*d_v.
        out = jnp.dot(o_scr[...], wo_ref[...],
                      preferred_element_type=jnp.float32) + bo_ref[...]
        o_ref[...] = out.astype(o_ref.dtype)

    return kernel


# ----------------------------------------------------------------------------
# pallas_call builder + wrapper
# ----------------------------------------------------------------------------
def _build_call(dtype, d_model, d_k, d_v, h, m, nq, nk, b_s, b_tile,
                single_buffer_weights):
    kernel = _make_kernel(d_model, d_k, d_v, h, m, nq, nk, b_tile)

    def wspec(shape):
        rank = len(shape)

        def index_map(b):
            return (0,) * rank

        if single_buffer_weights:
            # Grid-invariant operand -> single buffer (halves its VMEM use).
            return pl.BlockSpec(shape, index_map, pipeline_mode=pl.Buffered(1))
        return pl.BlockSpec(shape, index_map)

    return pl.pallas_call(
        kernel,
        out_shape=jax.ShapeDtypeStruct((b_s * nq, d_model), dtype),
        grid=(b_s // b_tile,),
        in_specs=[
            pl.BlockSpec((b_tile * nq, d_model), lambda b: (b, 0)),   # queries (flat)
            pl.BlockSpec((b_tile * nk, d_model), lambda b: (b, 0)),   # keys    (flat)
            pl.BlockSpec((b_tile * nk, d_model), lambda b: (b, 0)),   # values  (flat)
            wspec((h, d_model, d_k)),     # wq  (head-major)
            wspec((h, 1, d_k)),           # bq
            wspec((h, d_model, d_k)),     # wk
            wspec((h, 1, d_k)),           # bk
            wspec((h, d_model, d_v)),     # wv
            wspec((h, 1, d_v)),           # bv
            wspec((h * d_v, d_model)),    # wo
            wspec((1, d_model)),          # bo
            wspec((h, m, d_k)),           # m_k (head-major)
            wspec((h, m, d_v)),           # m_v (head-major, * sqrt(m))
        ],
        out_specs=pl.BlockSpec((b_tile * nq, d_model), lambda b: (b, 0)),
        scratch_shapes=[pltpu.VMEM((b_tile * nq, h * d_v), jnp.float32)],
        compiler_params=pltpu.CompilerParams(
            dimension_semantics=("parallel",),
            vmem_limit_bytes=32 * 1024 * 1024),
    )


def _pick_batch_tile(b_s, nq):
    # Aim for ~128 query rows per grid step (MXU M fill, fewer grid steps);
    # must evenly divide b_s.
    target = max(1, 128 // max(nq, 1))
    bt = min(b_s, target)
    while b_s % bt:
        bt -= 1
    return bt


def scaled_dot_product_attention_memory(params, queries, keys, values,
                                        d_model, d_k, d_v, h, m, b_tile=None):
    b_s, nq, _ = queries.shape
    nk = keys.shape[1]
    if b_tile is None:
        b_tile = _pick_batch_tile(b_s, nq)
    assert b_s % b_tile == 0

    # Batch-flattened activations: projection matmuls see M = b_tile*nseq.
    q2 = queries.reshape(b_s * nq, d_model)
    k2 = keys.reshape(b_s * nk, d_model)
    v2 = values.reshape(b_s * nk, d_model)

    # Head-major parameter layouts (tiny one-time reshapes outside the kernel).
    wq_h = params["wq"].reshape(d_model, h, d_k).transpose(1, 0, 2)
    wk_h = params["wk"].reshape(d_model, h, d_k).transpose(1, 0, 2)
    wv_h = params["wv"].reshape(d_model, h, d_v).transpose(1, 0, 2)
    bq_h = params["bq"].reshape(h, 1, d_k)
    bk_h = params["bk"].reshape(h, 1, d_k)
    bv_h = params["bv"].reshape(h, 1, d_v)
    mk_h = params["m_k"].reshape(m, h, d_k).transpose(1, 0, 2)
    mv_h = params["m_v"].reshape(m, h, d_v).transpose(1, 0, 2) * math.sqrt(m)

    args = (q2, k2, v2, wq_h, bq_h, wk_h, bk_h, wv_h, bv_h,
            params["wo"], params["bo"], mk_h, mv_h)

    try:
        out2 = _build_call(queries.dtype, d_model, d_k, d_v, h, m, nq, nk,
                           b_s, b_tile, single_buffer_weights=True)(*args)
        out2 = jax.block_until_ready(out2)
    except Exception:
        # pl.Buffered(1) unsupported on this JAX/Mosaic build -> default buffering.
        out2 = _build_call(queries.dtype, d_model, d_k, d_v, h, m, nq, nk,
                           b_s, b_tile, single_buffer_weights=False)(*args)
    return out2.reshape(b_s, nq, d_model)


# ----------------------------------------------------------------------------
# Parameter init (matches the PyTorch module's init_weights, deterministic)
# ----------------------------------------------------------------------------
def xavier_uniform(key, fan_in, fan_out, dtype=jnp.float32):
    limit = math.sqrt(6.0 / (fan_in + fan_out))
    # stored as (in, out) so forward is x @ w (equivalent to x @ W_pt.T)
    return jax.random.uniform(key, (fan_in, fan_out), dtype, -limit, limit)


def init_params(key, d_model, d_k, d_v, h, m):
    ks = jax.random.split(key, 6)
    return {
        "wq": xavier_uniform(ks[0], d_model, h * d_k),
        "bq": jnp.zeros((1, h * d_k), jnp.float32),
        "wk": xavier_uniform(ks[1], d_model, h * d_k),
        "bk": jnp.zeros((1, h * d_k), jnp.float32),
        "wv": xavier_uniform(ks[2], d_model, h * d_v),
        "bv": jnp.zeros((1, h * d_v), jnp.float32),
        "wo": xavier_uniform(ks[3], h * d_v, d_model),
        "bo": jnp.zeros((1, d_model), jnp.float32),
        "m_k": jax.random.normal(ks[4], (1, m, h * d_k), jnp.float32) * (1.0 / d_k),
        "m_v": jax.random.normal(ks[5], (1, m, h * d_v), jnp.float32) * (1.0 / m),
    }


# ----------------------------------------------------------------------------
# Main
# ----------------------------------------------------------------------------
if __name__ == "__main__":
    d_model, d_k, d_v, h, m = 32, 16, 16, 4, 8
    b_s, nq, nk = 2, 8, 8

    root = jax.random.PRNGKey(0)
    k_params, k_q, k_k, k_v = jax.random.split(root, 4)

    params = init_params(k_params, d_model, d_k, d_v, h, m)
    queries = jax.random.normal(k_q, (b_s, nq, d_model), jnp.float32)
    keys = jax.random.normal(k_k, (b_s, nk, d_model), jnp.float32)
    values = jax.random.normal(k_v, (b_s, nk, d_model), jnp.float32)

    out = scaled_dot_product_attention_memory(
        params, queries, keys, values, d_model, d_k, d_v, h, m
    )
    out = jax.block_until_ready(out)
    assert out.shape == (b_s, nq, d_model)

    # sanity check against a pure-JAX reference of the PyTorch math
    def ref_forward(p, q_in, k_in, v_in):
        q = q_in @ p["wq"] + p["bq"]
        kk = k_in @ p["wk"] + p["bk"]
        vv = v_in @ p["wv"] + p["bv"]
        mk = math.sqrt(d_k) * jnp.broadcast_to(p["m_k"], (b_s, m, h * d_k))
        mv = math.sqrt(m) * jnp.broadcast_to(p["m_v"], (b_s, m, h * d_v))
        q = q.reshape(b_s, nq, h, d_k).transpose(0, 2, 1, 3)
        kk = jnp.concatenate([kk, mk], 1).reshape(b_s, nk + m, h, d_k).transpose(0, 2, 3, 1)
        vv = jnp.concatenate([vv, mv], 1).reshape(b_s, nk + m, h, d_v).transpose(0, 2, 1, 3)
        att = jax.nn.softmax(q @ kk / math.sqrt(d_k), axis=-1)
        o = (att @ vv).transpose(0, 2, 1, 3).reshape(b_s, nq, h * d_v)
        return o @ p["wo"] + p["bo"]

    ref = ref_forward(params, queries, keys, values)
    assert jnp.allclose(out, ref, atol=1e-4, rtol=1e-4)

    print("KERNEL_OK")
</pallas_src>

<mosaic_0001>
module attributes {stable_mosaic.version = 11 : i64} {
  func.func @kernel(%arg0: i32, %arg1: memref<16x32xf32, #tpu.memory_space<vmem>>, %arg2: memref<16x32xf32, #tpu.memory_space<vmem>>, %arg3: memref<16x32xf32, #tpu.memory_space<vmem>>, %arg4: memref<4x32x16xf32, #tpu.memory_space<vmem>>, %arg5: memref<4x1x16xf32, #tpu.memory_space<vmem>>, %arg6: memref<4x32x16xf32, #tpu.memory_space<vmem>>, %arg7: memref<4x1x16xf32, #tpu.memory_space<vmem>>, %arg8: memref<4x32x16xf32, #tpu.memory_space<vmem>>, %arg9: memref<4x1x16xf32, #tpu.memory_space<vmem>>, %arg10: memref<64x32xf32, #tpu.memory_space<vmem>>, %arg11: memref<1x32xf32, #tpu.memory_space<vmem>>, %arg12: memref<4x8x16xf32, #tpu.memory_space<vmem>>, %arg13: memref<4x8x16xf32, #tpu.memory_space<vmem>>, %arg14: memref<16x32xf32, #tpu.memory_space<vmem>>, %arg15: memref<16x64xf32, #tpu.memory_space<vmem>>) attributes {dimension_semantics = [#tpu.dimension_semantics<parallel>], iteration_bounds = array<i64: 1>, scalar_prefetch = 0 : i64, scratch_operands = 1 : i64, tpu.core_type = #tpu.core_type<tc>, window_params = [{transform_indices = @transform_0, window_bounds = array<i64: 16, 32>}, {transform_indices = @transform_1, window_bounds = array<i64: 16, 32>}, {transform_indices = @transform_2, window_bounds = array<i64: 16, 32>}, {pipeline_mode = #tpu.pipeline_mode<synchronous>, transform_indices = @transform_3, window_bounds = array<i64: 4, 32, 16>}, {pipeline_mode = #tpu.pipeline_mode<synchronous>, transform_indices = @transform_4, window_bounds = array<i64: 4, 1, 16>}, {pipeline_mode = #tpu.pipeline_mode<synchronous>, transform_indices = @transform_5, window_bounds = array<i64: 4, 32, 16>}, {pipeline_mode = #tpu.pipeline_mode<synchronous>, transform_indices = @transform_6, window_bounds = array<i64: 4, 1, 16>}, {pipeline_mode = #tpu.pipeline_mode<synchronous>, transform_indices = @transform_7, window_bounds = array<i64: 4, 32, 16>}, {pipeline_mode = #tpu.pipeline_mode<synchronous>, transform_indices = @transform_8, window_bounds = array<i64: 4, 1, 16>}, {pipeline_mode = #tpu.pipeline_mode<synchronous>, transform_indices = @transform_9, window_bounds = array<i64: 64, 32>}, {pipeline_mode = #tpu.pipeline_mode<synchronous>, transform_indices = @transform_10, window_bounds = array<i64: 1, 32>}, {pipeline_mode = #tpu.pipeline_mode<synchronous>, transform_indices = @transform_11, window_bounds = array<i64: 4, 8, 16>}, {pipeline_mode = #tpu.pipeline_mode<synchronous>, transform_indices = @transform_12, window_bounds = array<i64: 4, 8, 16>}, {transform_indices = @transform_13, window_bounds = array<i64: 16, 32>}]} {
    %c0 = arith.constant 0 : index
    %c0_0 = arith.constant 0 : index
    %0 = vector.load %arg1[%c0, %c0_0] : memref<16x32xf32, #tpu.memory_space<vmem>>, vector<16x32xf32>
    %c0_1 = arith.constant 0 : index
    %c0_2 = arith.constant 0 : index
    %1 = vector.load %arg2[%c0_1, %c0_2] : memref<16x32xf32, #tpu.memory_space<vmem>>, vector<16x32xf32>
    %c0_3 = arith.constant 0 : index
    %c0_4 = arith.constant 0 : index
    %2 = vector.load %arg3[%c0_3, %c0_4] : memref<16x32xf32, #tpu.memory_space<vmem>>, vector<16x32xf32>
    %c0_5 = arith.constant 0 : index
    %c0_6 = arith.constant 0 : index
    %c0_7 = arith.constant 0 : index
    %3 = vector.load %arg4[%c0_5, %c0_6, %c0_7] : memref<4x32x16xf32, #tpu.memory_space<vmem>>, vector<1x32x16xf32>
    %4 = vector.shape_cast %3 : vector<1x32x16xf32> to vector<32x16xf32>
    %cst = arith.constant dense<0.000000e+00> : vector<16x16xf32>
    %5 = tpu.matmul %0, %4, %cst {dimension_numbers = #tpu.dot_dimension_numbers<[1], [0], [0], [1], [0, 0, 1, 1], [], []>} : vector<16x32xf32>, vector<32x16xf32>, vector<16x16xf32> -> vector<16x16xf32>
    %c0_8 = arith.constant 0 : index
    %c0_9 = arith.constant 0 : index
    %c0_10 = arith.constant 0 : index
    %6 = vector.load %arg5[%c0_8, %c0_9, %c0_10] : memref<4x1x16xf32, #tpu.memory_space<vmem>>, vector<1x1x16xf32>
    %7 = vector.shape_cast %6 : vector<1x1x16xf32> to vector<1x16xf32>
    %8 = vector.broadcast %7 : vector<1x16xf32> to vector<16x16xf32>
    %9 = arith.addf %5, %8 : vector<16x16xf32>
    %c0_11 = arith.constant 0 : index
    %c0_12 = arith.constant 0 : index
    %c0_13 = arith.constant 0 : index
    %10 = vector.load %arg6[%c0_11, %c0_12, %c0_13] : memref<4x32x16xf32, #tpu.memory_space<vmem>>, vector<1x32x16xf32>
    %11 = vector.shape_cast %10 : vector<1x32x16xf32> to vector<32x16xf32>
    %cst_14 = arith.constant dense<0.000000e+00> : vector<16x16xf32>
    %12 = tpu.matmul %1, %11, %cst_14 {dimension_numbers = #tpu.dot_dimension_numbers<[1], [0], [0], [1], [0, 0, 1, 1], [], []>} : vector<16x32xf32>, vector<32x16xf32>, vector<16x16xf32> -> vector<16x16xf32>
    %c0_15 = arith.constant 0 : index
    %c0_16 = arith.constant 0 : index
    %c0_17 = arith.constant 0 : index
    %13 = vector.load %arg7[%c0_15, %c0_16, %c0_17] : memref<4x1x16xf32, #tpu.memory_space<vmem>>, vector<1x1x16xf32>
    %14 = vector.shape_cast %13 : vector<1x1x16xf32> to vector<1x16xf32>
    %15 = vector.broadcast %14 : vector<1x16xf32> to vector<16x16xf32>
    %16 = arith.addf %12, %15 : vector<16x16xf32>
    %c0_18 = arith.constant 0 : index
    %c0_19 = arith.constant 0 : index
    %c0_20 = arith.constant 0 : index
    %17 = vector.load %arg8[%c0_18, %c0_19, %c0_20] : memref<4x32x16xf32, #tpu.memory_space<vmem>>, vector<1x32x16xf32>
    %18 = vector.shape_cast %17 : vector<1x32x16xf32> to vector<32x16xf32>
    %cst_21 = arith.constant dense<0.000000e+00> : vector<16x16xf32>
    %19 = tpu.matmul %2, %18, %cst_21 {dimension_numbers = #tpu.dot_dimension_numbers<[1], [0], [0], [1], [0, 0, 1, 1], [], []>} : vector<16x32xf32>, vector<32x16xf32>, vector<16x16xf32> -> vector<16x16xf32>
    %c0_22 = arith.constant 0 : index
    %c0_23 = arith.constant 0 : index
    %c0_24 = arith.constant 0 : index
    %20 = vector.load %arg9[%c0_22, %c0_23, %c0_24] : memref<4x1x16xf32, #tpu.memory_space<vmem>>, vector<1x1x16xf32>
    %21 = vector.shape_cast %20 : vector<1x1x16xf32> to vector<1x16xf32>
    %22 = vector.broadcast %21 : vector<1x16xf32> to vector<16x16xf32>
    %23 = arith.addf %19, %22 : vector<16x16xf32>
    %24 = vector.shape_cast %9 : vector<16x16xf32> to vector<2x8x16xf32>
    %25 = vector.shape_cast %16 : vector<16x16xf32> to vector<2x8x16xf32>
    %26 = vector.shape_cast %23 : vector<16x16xf32> to vector<2x8x16xf32>
    "tpu.trace_start"() <{level = 10 : i32, message = "bqd,bkd->bqk"}> : () -> ()
    %cst_25 = arith.constant dense<0.000000e+00> : vector<2x8x8xf32>
    %27 = tpu.matmul %24, %25, %cst_25 {dimension_numbers = #tpu.dot_dimension_numbers<[2], [2], [1], [1], [0, 0, 0, 1, 1, 1], [0], [0]>} : vector<2x8x16xf32>, vector<2x8x16xf32>, vector<2x8x8xf32> -> vector<2x8x8xf32>
    "tpu.trace_stop"() : () -> ()
    %cst_26 = arith.constant 2.500000e-01 : f32
    %28 = vector.broadcast %cst_26 : f32 to vector<2x8x8xf32>
    %29 = arith.mulf %27, %28 : vector<2x8x8xf32>
    %c0_27 = arith.constant 0 : index
    %c0_28 = arith.constant 0 : index
    %c0_29 = arith.constant 0 : index
    %30 = vector.load %arg12[%c0_27, %c0_28, %c0_29] : memref<4x8x16xf32, #tpu.memory_space<vmem>>, vector<1x8x16xf32>
    %31 = vector.shape_cast %30 : vector<1x8x16xf32> to vector<8x16xf32>
    %cst_30 = arith.constant dense<0.000000e+00> : vector<16x8xf32>
    %32 = tpu.matmul %9, %31, %cst_30 {dimension_numbers = #tpu.dot_dimension_numbers<[1], [1], [0], [0], [0, 0, 1, 0], [], []>} : vector<16x16xf32>, vector<8x16xf32>, vector<16x8xf32> -> vector<16x8xf32>
    %cst_31 = arith.constant dense<0xFF800000> : vector<2x8xf32>
    %33 = vector.multi_reduction <maximumf>, %29, %cst_31 [2] : vector<2x8x8xf32> to vector<2x8xf32>
    %34 = vector.shape_cast %33 : vector<2x8xf32> to vector<2x8x1xf32>
    %cst_32 = arith.constant dense<0xFF800000> : vector<16xf32>
    %35 = vector.multi_reduction <maximumf>, %32, %cst_32 [1] : vector<16x8xf32> to vector<16xf32>
    %36 = vector.shape_cast %35 : vector<16xf32> to vector<16x1xf32>
    %37 = vector.shape_cast %36 : vector<16x1xf32> to vector<2x8x1xf32>
    %38 = arith.maximumf %34, %37 : vector<2x8x1xf32>
    %39 = vector.broadcast %38 : vector<2x8x1xf32> to vector<2x8x8xf32>
    %40 = arith.subf %29, %39 : vector<2x8x8xf32>
    %41 = math.exp %40 : vector<2x8x8xf32>
    %42 = vector.shape_cast %38 : vector<2x8x1xf32> to vector<16x1xf32>
    %43 = vector.broadcast %42 : vector<16x1xf32> to vector<16x8xf32>
    %44 = arith.subf %32, %43 : vector<16x8xf32>
    %45 = math.exp %44 : vector<16x8xf32>
    %cst_33 = arith.constant dense<0.000000e+00> : vector<2x8xf32>
    %46 = vector.multi_reduction <add>, %41, %cst_33 [2] : vector<2x8x8xf32> to vector<2x8xf32>
    %47 = vector.shape_cast %46 : vector<2x8xf32> to vector<2x8x1xf32>
    %48 = vector.shape_cast %47 : vector<2x8x1xf32> to vector<16x1xf32>
    %cst_34 = arith.constant dense<0.000000e+00> : vector<16xf32>
    %49 = vector.multi_reduction <add>, %45, %cst_34 [1] : vector<16x8xf32> to vector<16xf32>
    %50 = vector.shape_cast %49 : vector<16xf32> to vector<16x1xf32>
    %51 = arith.addf %48, %50 : vector<16x1xf32>
    "tpu.trace_start"() <{level = 10 : i32, message = "bqk,bkd->bqd"}> : () -> ()
    %cst_35 = arith.constant dense<0.000000e+00> : vector<2x8x16xf32>
    %52 = tpu.matmul %41, %26, %cst_35 {dimension_numbers = #tpu.dot_dimension_numbers<[2], [1], [1], [2], [0, 0, 0, 1, 1, 2], [0], [0]>} : vector<2x8x8xf32>, vector<2x8x16xf32>, vector<2x8x16xf32> -> vector<2x8x16xf32>
    "tpu.trace_stop"() : () -> ()
    %c0_36 = arith.constant 0 : index
    %c0_37 = arith.constant 0 : index
    %c0_38 = arith.constant 0 : index
    %53 = vector.load %arg13[%c0_36, %c0_37, %c0_38] : memref<4x8x16xf32, #tpu.memory_space<vmem>>, vector<1x8x16xf32>
    %54 = vector.shape_cast %53 : vector<1x8x16xf32> to vector<8x16xf32>
    %cst_39 = arith.constant dense<0.000000e+00> : vector<16x16xf32>
    %55 = tpu.matmul %45, %54, %cst_39 {dimension_numbers = #tpu.dot_dimension_numbers<[1], [0], [0], [1], [0, 0, 1, 1], [], []>} : vector<16x8xf32>, vector<8x16xf32>, vector<16x16xf32> -> vector<16x16xf32>
    %56 = vector.shape_cast %52 : vector<2x8x16xf32> to vector<16x16xf32>
    %57 = arith.addf %56, %55 : vector<16x16xf32>
    %58 = tpu.reciprocal %51 : vector<16x1xf32> -> vector<16x1xf32>
    %59 = vector.broadcast %58 : vector<16x1xf32> to vector<16x16xf32>
    %60 = arith.mulf %57, %59 : vector<16x16xf32>
    %c0_40 = arith.constant 0 : index
    %c0_41 = arith.constant 0 : index
    %61 = vector.load %arg15[%c0_40, %c0_41] : memref<16x64xf32, #tpu.memory_space<vmem>>, vector<16x16xf32>
    tpu.vector_store %arg15[%c0_40, %c0_41], %60 {strides = array<i32>} : memref<16x64xf32, #tpu.memory_space<vmem>>, vector<16x16xf32>,
    %c1 = arith.constant 1 : index
    %c0_42 = arith.constant 0 : index
    %c0_43 = arith.constant 0 : index
    %62 = vector.load %arg4[%c1, %c0_42, %c0_43] : memref<4x32x16xf32, #tpu.memory_space<vmem>>, vector<1x32x16xf32>
    %63 = vector.shape_cast %62 : vector<1x32x16xf32> to vector<32x16xf32>
    %cst_44 = arith.constant dense<0.000000e+00> : vector<16x16xf32>
    %64 = tpu.matmul %0, %63, %cst_44 {dimension_numbers = #tpu.dot_dimension_numbers<[1], [0], [0], [1], [0, 0, 1, 1], [], []>} : vector<16x32xf32>, vector<32x16xf32>, vector<16x16xf32> -> vector<16x16xf32>
    %c1_45 = arith.constant 1 : index
    %c0_46 = arith.constant 0 : index
    %c0_47 = arith.constant 0 : index
    %65 = vector.load %arg5[%c1_45, %c0_46, %c0_47] : memref<4x1x16xf32, #tpu.memory_space<vmem>>, vector<1x1x16xf32>
    %66 = vector.shape_cast %65 : vector<1x1x16xf32> to vector<1x16xf32>
    %67 = vector.broadcast %66 : vector<1x16xf32> to vector<16x16xf32>
    %68 = arith.addf %64, %67 : vector<16x16xf32>
    %c1_48 = arith.constant 1 : index
    %c0_49 = arith.constant 0 : index
    %c0_50 = arith.constant 0 : index
    %69 = vector.load %arg6[%c1_48, %c0_49, %c0_50] : memref<4x32x16xf32, #tpu.memory_space<vmem>>, vector<1x32x16xf32>
    %70 = vector.shape_cast %69 : vector<1x32x16xf32> to vector<32x16xf32>
    %cst_51 = arith.constant dense<0.000000e+00> : vector<16x16xf32>
    %71 = tpu.matmul %1, %70, %cst_51 {dimension_numbers = #tpu.dot_dimension_numbers<[1], [0], [0], [1], [0, 0, 1, 1], [], []>} : vector<16x32xf32>, vector<32x16xf32>, vector<16x16xf32> -> vector<16x16xf32>
    %c1_52 = arith.constant 1 : index
    %c0_53 = arith.constant 0 : index
    %c0_54 = arith.constant 0 : index
    %72 = vector.load %arg7[%c1_52, %c0_53, %c0_54] : memref<4x1x16xf32, #tpu.memory_space<vmem>>, vector<1x1x16xf32>
    %73 = vector.shape_cast %72 : vector<1x1x16xf32> to vector<1x16xf32>
    %74 = vector.broadcast %73 : vector<1x16xf32> to vector<16x16xf32>
    %75 = arith.addf %71, %74 : vector<16x16xf32>
    %c1_55 = arith.constant 1 : index
    %c0_56 = arith.constant 0 : index
    %c0_57 = arith.constant 0 : index
    %76 = vector.load %arg8[%c1_55, %c0_56, %c0_57] : memref<4x32x16xf32, #tpu.memory_space<vmem>>, vector<1x32x16xf32>
    %77 = vector.shape_cast %76 : vector<1x32x16xf32> to vector<32x16xf32>
    %cst_58 = arith.constant dense<0.000000e+00> : vector<16x16xf32>
    %78 = tpu.matmul %2, %77, %cst_58 {dimension_numbers = #tpu.dot_dimension_numbers<[1], [0], [0], [1], [0, 0, 1, 1], [], []>} : vector<16x32xf32>, vector<32x16xf32>, vector<16x16xf32> -> vector<16x16xf32>
    %c1_59 = arith.constant 1 : index
    %c0_60 = arith.constant 0 : index
    %c0_61 = arith.constant 0 : index
    %79 = vector.load %arg9[%c1_59, %c0_60, %c0_61] : memref<4x1x16xf32, #tpu.memory_space<vmem>>, vector<1x1x16xf32>
    %80 = vector.shape_cast %79 : vector<1x1x16xf32> to vector<1x16xf32>
    %81 = vector.broadcast %80 : vector<1x16xf32> to vector<16x16xf32>
    %82 = arith.addf %78, %81 : vector<16x16xf32>
    %83 = vector.shape_cast %68 : vector<16x16xf32> to vector<2x8x16xf32>
    %84 = vector.shape_cast %75 : vector<16x16xf32> to vector<2x8x16xf32>
    %85 = vector.shape_cast %82 : vector<16x16xf32> to vector<2x8x16xf32>
    "tpu.trace_start"() <{level = 10 : i32, message = "bqd,bkd->bqk"}> : () -> ()
    %cst_62 = arith.constant dense<0.000000e+00> : vector<2x8x8xf32>
    %86 = tpu.matmul %83, %84, %cst_62 {dimension_numbers = #tpu.dot_dimension_numbers<[2], [2], [1], [1], [0, 0, 0, 1, 1, 1], [0], [0]>} : vector<2x8x16xf32>, vector<2x8x16xf32>, vector<2x8x8xf32> -> vector<2x8x8xf32>
    "tpu.trace_stop"() : () -> ()
    %cst_63 = arith.constant 2.500000e-01 : f32
    %87 = vector.broadcast %cst_63 : f32 to vector<2x8x8xf32>
    %88 = arith.mulf %86, %87 : vector<2x8x8xf32>
    %c1_64 = arith.constant 1 : index
    %c0_65 = arith.constant 0 : index
    %c0_66 = arith.constant 0 : index
    %89 = vector.load %arg12[%c1_64, %c0_65, %c0_66] : memref<4x8x16xf32, #tpu.memory_space<vmem>>, vector<1x8x16xf32>
    %90 = vector.shape_cast %89 : vector<1x8x16xf32> to vector<8x16xf32>
    %cst_67 = arith.constant dense<0.000000e+00> : vector<16x8xf32>
    %91 = tpu.matmul %68, %90, %cst_67 {dimension_numbers = #tpu.dot_dimension_numbers<[1], [1], [0], [0], [0, 0, 1, 0], [], []>} : vector<16x16xf32>, vector<8x16xf32>, vector<16x8xf32> -> vector<16x8xf32>
    %cst_68 = arith.constant dense<0xFF800000> : vector<2x8xf32>
    %92 = vector.multi_reduction <maximumf>, %88, %cst_68 [2] : vector<2x8x8xf32> to vector<2x8xf32>
    %93 = vector.shape_cast %92 : vector<2x8xf32> to vector<2x8x1xf32>
    %cst_69 = arith.constant dense<0xFF800000> : vector<16xf32>
    %94 = vector.multi_reduction <maximumf>, %91, %cst_69 [1] : vector<16x8xf32> to vector<16xf32>
    %95 = vector.shape_cast %94 : vector<16xf32> to vector<16x1xf32>
    %96 = vector.shape_cast %95 : vector<16x1xf32> to vector<2x8x1xf32>
    %97 = arith.maximumf %93, %96 : vector<2x8x1xf32>
    %98 = vector.broadcast %97 : vector<2x8x1xf32> to vector<2x8x8xf32>
    %99 = arith.subf %88, %98 : vector<2x8x8xf32>
    %100 = math.exp %99 : vector<2x8x8xf32>
    %101 = vector.shape_cast %97 : vector<2x8x1xf32> to vector<16x1xf32>
    %102 = vector.broadcast %101 : vector<16x1xf32> to vector<16x8xf32>
    %103 = arith.subf %91, %102 : vector<16x8xf32>
    %104 = math.exp %103 : vector<16x8xf32>
    %cst_70 = arith.constant dense<0.000000e+00> : vector<2x8xf32>
    %105 = vector.multi_reduction <add>, %100, %cst_70 [2] : vector<2x8x8xf32> to vector<2x8xf32>
    %106 = vector.shape_cast %105 : vector<2x8xf32> to vector<2x8x1xf32>
    %107 = vector.shape_cast %106 : vector<2x8x1xf32> to vector<16x1xf32>
    %cst_71 = arith.constant dense<0.000000e+00> : vector<16xf32>
    %108 = vector.multi_reduction <add>, %104, %cst_71 [1] : vector<16x8xf32> to vector<16xf32>
    %109 = vector.shape_cast %108 : vector<16xf32> to vector<16x1xf32>
    %110 = arith.addf %107, %109 : vector<16x1xf32>
    "tpu.trace_start"() <{level = 10 : i32, message = "bqk,bkd->bqd"}> : () -> ()
    %cst_72 = arith.constant dense<0.000000e+00> : vector<2x8x16xf32>
    %111 = tpu.matmul %100, %85, %cst_72 {dimension_numbers = #tpu.dot_dimension_numbers<[2], [1], [1], [2], [0, 0, 0, 1, 1, 2], [0], [0]>} : vector<2x8x8xf32>, vector<2x8x16xf32>, vector<2x8x16xf32> -> vector<2x8x16xf32>
    "tpu.trace_stop"() : () -> ()
    %c1_73 = arith.constant 1 : index
    %c0_74 = arith.constant 0 : index
    %c0_75 = arith.constant 0 : index
    %112 = vector.load %arg13[%c1_73, %c0_74, %c0_75] : memref<4x8x16xf32, #tpu.memory_space<vmem>>, vector<1x8x16xf32>
    %113 = vector.shape_cast %112 : vector<1x8x16xf32> to vector<8x16xf32>
    %cst_76 = arith.constant dense<0.000000e+00> : vector<16x16xf32>
    %114 = tpu.matmul %104, %113, %cst_76 {dimension_numbers = #tpu.dot_dimension_numbers<[1], [0], [0], [1], [0, 0, 1, 1], [], []>} : vector<16x8xf32>, vector<8x16xf32>, vector<16x16xf32> -> vector<16x16xf32>
    %115 = vector.shape_cast %111 : vector<2x8x16xf32> to vector<16x16xf32>
    %116 = arith.addf %115, %114 : vector<16x16xf32>
    %117 = tpu.reciprocal %110 : vector<16x1xf32> -> vector<16x1xf32>
    %118 = vector.broadcast %117 : vector<16x1xf32> to vector<16x16xf32>
    %119 = arith.mulf %116, %118 : vector<16x16xf32>
    %c0_77 = arith.constant 0 : index
    %c16 = arith.constant 16 : index
    %120 = vector.load %arg15[%c0_77, %c16] : memref<16x64xf32, #tpu.memory_space<vmem>>, vector<16x16xf32>
    tpu.vector_store %arg15[%c0_77, %c16], %119 {strides = array<i32>} : memref<16x64xf32, #tpu.memory_space<vmem>>, vector<16x16xf32>,
    %c2 = arith.constant 2 : index
    %c0_78 = arith.constant 0 : index
    %c0_79 = arith.constant 0 : index
    %121 = vector.load %arg4[%c2, %c0_78, %c0_79] : memref<4x32x16xf32, #tpu.memory_space<vmem>>, vector<1x32x16xf32>
    %122 = vector.shape_cast %121 : vector<1x32x16xf32> to vector<32x16xf32>
    %cst_80 = arith.constant dense<0.000000e+00> : vector<16x16xf32>
    %123 = tpu.matmul %0, %122, %cst_80 {dimension_numbers = #tpu.dot_dimension_numbers<[1], [0], [0], [1], [0, 0, 1, 1], [], []>} : vector<16x32xf32>, vector<32x16xf32>, vector<16x16xf32> -> vector<16x16xf32>
    %c2_81 = arith.constant 2 : index
    %c0_82 = arith.constant 0 : index
    %c0_83 = arith.constant 0 : index
    %124 = vector.load %arg5[%c2_81, %c0_82, %c0_83] : memref<4x1x16xf32, #tpu.memory_space<vmem>>, vector<1x1x16xf32>
    %125 = vector.shape_cast %124 : vector<1x1x16xf32> to vector<1x16xf32>
    %126 = vector.broadcast %125 : vector<1x16xf32> to vector<16x16xf32>
    %127 = arith.addf %123, %126 : vector<16x16xf32>
    %c2_84 = arith.constant 2 : index
    %c0_85 = arith.constant 0 : index
    %c0_86 = arith.constant 0 : index
    %128 = vector.load %arg6[%c2_84, %c0_85, %c0_86] : memref<4x32x16xf32, #tpu.memory_space<vmem>>, vector<1x32x16xf32>
    %129 = vector.shape_cast %128 : vector<1x32x16xf32> to vector<32x16xf32>
    %cst_87 = arith.constant dense<0.000000e+00> : vector<16x16xf32>
    %130 = tpu.matmul %1, %129, %cst_87 {dimension_numbers = #tpu.dot_dimension_numbers<[1], [0], [0], [1], [0, 0, 1, 1], [], []>} : vector<16x32xf32>, vector<32x16xf32>, vector<16x16xf32> -> vector<16x16xf32>
    %c2_88 = arith.constant 2 : index
    %c0_89 = arith.constant 0 : index
    %c0_90 = arith.constant 0 : index
    %131 = vector.load %arg7[%c2_88, %c0_89, %c0_90] : memref<4x1x16xf32, #tpu.memory_space<vmem>>, vector<1x1x16xf32>
    %132 = vector.shape_cast %131 : vector<1x1x16xf32> to vector<1x16xf32>
    %133 = vector.broadcast %132 : vector<1x16xf32> to vector<16x16xf32>
    %134 = arith.addf %130, %133 : vector<16x16xf32>
    %c2_91 = arith.constant 2 : index
    %c0_92 = arith.constant 0 : index
    %c0_93 = arith.constant 0 : index
    %135 = vector.load %arg8[%c2_91, %c0_92, %c0_93] : memref<4x32x16xf32, #tpu.memory_space<vmem>>, vector<1x32x16xf32>
    %136 = vector.shape_cast %135 : vector<1x32x16xf32> to vector<32x16xf32>
    %cst_94 = arith.constant dense<0.000000e+00> : vector<16x16xf32>
    %137 = tpu.matmul %2, %136, %cst_94 {dimension_numbers = #tpu.dot_dimension_numbers<[1], [0], [0], [1], [0, 0, 1, 1], [], []>} : vector<16x32xf32>, vector<32x16xf32>, vector<16x16xf32> -> vector<16x16xf32>
    %c2_95 = arith.constant 2 : index
    %c0_96 = arith.constant 0 : index
    %c0_97 = arith.constant 0 : index
    %138 = vector.load %arg9[%c2_95, %c0_96, %c0_97] : memref<4x1x16xf32, #tpu.memory_space<vmem>>, vector<1x1x16xf32>
    %139 = vector.shape_cast %138 : vector<1x1x16xf32> to vector<1x16xf32>
    %140 = vector.broadcast %139 : vector<1x16xf32> to vector<16x16xf32>
    %141 = arith.addf %137, %140 : vector<16x16xf32>
    %142 = vector.shape_cast %127 : vector<16x16xf32> to vector<2x8x16xf32>
    %143 = vector.shape_cast %134 : vector<16x16xf32> to vector<2x8x16xf32>
    %144 = vector.shape_cast %141 : vector<16x16xf32> to vector<2x8x16xf32>
    "tpu.trace_start"() <{level = 10 : i32, message = "bqd,bkd->bqk"}> : () -> ()
    %cst_98 = arith.constant dense<0.000000e+00> : vector<2x8x8xf32>
    %145 = tpu.matmul %142, %143, %cst_98 {dimension_numbers = #tpu.dot_dimension_numbers<[2], [2], [1], [1], [0, 0, 0, 1, 1, 1], [0], [0]>} : vector<2x8x16xf32>, vector<2x8x16xf32>, vector<2x8x8xf32> -> vector<2x8x8xf32>
    "tpu.trace_stop"() : () -> ()
    %cst_99 = arith.constant 2.500000e-01 : f32
    %146 = vector.broadcast %cst_99 : f32 to vector<2x8x8xf32>
    %147 = arith.mulf %145, %146 : vector<2x8x8xf32>
    %c2_100 = arith.constant 2 : index
    %c0_101 = arith.constant 0 : index
    %c0_102 = arith.constant 0 : index
    %148 = vector.load %arg12[%c2_100, %c0_101, %c0_102] : memref<4x8x16xf32, #tpu.memory_space<vmem>>, vector<1x8x16xf32>
    %149 = vector.shape_cast %148 : vector<1x8x16xf32> to vector<8x16xf32>
    %cst_103 = arith.constant dense<0.000000e+00> : vector<16x8xf32>
    %150 = tpu.matmul %127, %149, %cst_103 {dimension_numbers = #tpu.dot_dimension_numbers<[1], [1], [0], [0], [0, 0, 1, 0], [], []>} : vector<16x16xf32>, vector<8x16xf32>, vector<16x8xf32> -> vector<16x8xf32>
    %cst_104 = arith.constant dense<0xFF800000> : vector<2x8xf32>
    %151 = vector.multi_reduction <maximumf>, %147, %cst_104 [2] : vector<2x8x8xf32> to vector<2x8xf32>
    %152 = vector.shape_cast %151 : vector<2x8xf32> to vector<2x8x1xf32>
    %cst_105 = arith.constant dense<0xFF800000> : vector<16xf32>
    %153 = vector.multi_reduction <maximumf>, %150, %cst_105 [1] : vector<16x8xf32> to vector<16xf32>
    %154 = vector.shape_cast %153 : vector<16xf32> to vector<16x1xf32>
    %155 = vector.shape_cast %154 : vector<16x1xf32> to vector<2x8x1xf32>
    %156 = arith.maximumf %152, %155 : vector<2x8x1xf32>
    %157 = vector.broadcast %156 : vector<2x8x1xf32> to vector<2x8x8xf32>
    %158 = arith.subf %147, %157 : vector<2x8x8xf32>
    %159 = math.exp %158 : vector<2x8x8xf32>
    %160 = vector.shape_cast %156 : vector<2x8x1xf32> to vector<16x1xf32>
    %161 = vector.broadcast %160 : vector<16x1xf32> to vector<16x8xf32>
    %162 = arith.subf %150, %161 : vector<16x8xf32>
    %163 = math.exp %162 : vector<16x8xf32>
    %cst_106 = arith.constant dense<0.000000e+00> : vector<2x8xf32>
    %164 = vector.multi_reduction <add>, %159, %cst_106 [2] : vector<2x8x8xf32> to vector<2x8xf32>
    %165 = vector.shape_cast %164 : vector<2x8xf32> to vector<2x8x1xf32>
    %166 = vector.shape_cast %165 : vector<2x8x1xf32> to vector<16x1xf32>
    %cst_107 = arith.constant dense<0.000000e+00> : vector<16xf32>
    %167 = vector.multi_reduction <add>, %163, %cst_107 [1] : vector<16x8xf32> to vector<16xf32>
    %168 = vector.shape_cast %167 : vector<16xf32> to vector<16x1xf32>
    %169 = arith.addf %166, %168 : vector<16x1xf32>
    "tpu.trace_start"() <{level = 10 : i32, message = "bqk,bkd->bqd"}> : () -> ()
    %cst_108 = arith.constant dense<0.000000e+00> : vector<2x8x16xf32>
    %170 = tpu.matmul %159, %144, %cst_108 {dimension_numbers = #tpu.dot_dimension_numbers<[2], [1], [1], [2], [0, 0, 0, 1, 1, 2], [0], [0]>} : vector<2x8x8xf32>, vector<2x8x16xf32>, vector<2x8x16xf32> -> vector<2x8x16xf32>
    "tpu.trace_stop"() : () -> ()
    %c2_109 = arith.constant 2 : index
    %c0_110 = arith.constant 0 : index
    %c0_111 = arith.constant 0 : index
    %171 = vector.load %arg13[%c2_109, %c0_110, %c0_111] : memref<4x8x16xf32, #tpu.memory_space<vmem>>, vector<1x8x16xf32>
    %172 = vector.shape_cast %171 : vector<1x8x16xf32> to vector<8x16xf32>
    %cst_112 = arith.constant dense<0.000000e+00> : vector<16x16xf32>
    %173 = tpu.matmul %163, %172, %cst_112 {dimension_numbers = #tpu.dot_dimension_numbers<[1], [0], [0], [1], [0, 0, 1, 1], [], []>} : vector<16x8xf32>, vector<8x16xf32>, vector<16x16xf32> -> vector<16x16xf32>
    %174 = vector.shape_cast %170 : vector<2x8x16xf32> to vector<16x16xf32>
    %175 = arith.addf %174, %173 : vector<16x16xf32>
    %176 = tpu.reciprocal %169 : vector<16x1xf32> -> vector<16x1xf32>
    %177 = vector.broadcast %176 : vector<16x1xf32> to vector<16x16xf32>
    %178 = arith.mulf %175, %177 : vector<16x16xf32>
    %c0_113 = arith.constant 0 : index
    %c32 = arith.constant 32 : index
    %179 = vector.load %arg15[%c0_113, %c32] : memref<16x64xf32, #tpu.memory_space<vmem>>, vector<16x16xf32>
    tpu.vector_store %arg15[%c0_113, %c32], %178 {strides = array<i32>} : memref<16x64xf32, #tpu.memory_space<vmem>>, vector<16x16xf32>,
    %c3 = arith.constant 3 : index
    %c0_114 = arith.constant 0 : index
    %c0_115 = arith.constant 0 : index
    %180 = vector.load %arg4[%c3, %c0_114, %c0_115] : memref<4x32x16xf32, #tpu.memory_space<vmem>>, vector<1x32x16xf32>
    %181 = vector.shape_cast %180 : vector<1x32x16xf32> to vector<32x16xf32>
    %cst_116 = arith.constant dense<0.000000e+00> : vector<16x16xf32>
    %182 = tpu.matmul %0, %181, %cst_116 {dimension_numbers = #tpu.dot_dimension_numbers<[1], [0], [0], [1], [0, 0, 1, 1], [], []>} : vector<16x32xf32>, vector<32x16xf32>, vector<16x16xf32> -> vector<16x16xf32>
    %c3_117 = arith.constant 3 : index
    %c0_118 = arith.constant 0 : index
    %c0_119 = arith.constant 0 : index
    %183 = vector.load %arg5[%c3_117, %c0_118, %c0_119] : memref<4x1x16xf32, #tpu.memory_space<vmem>>, vector<1x1x16xf32>
    %184 = vector.shape_cast %183 : vector<1x1x16xf32> to vector<1x16xf32>
    %185 = vector.broadcast %184 : vector<1x16xf32> to vector<16x16xf32>
    %186 = arith.addf %182, %185 : vector<16x16xf32>
    %c3_120 = arith.constant 3 : index
    %c0_121 = arith.constant 0 : index
    %c0_122 = arith.constant 0 : index
    %187 = vector.load %arg6[%c3_120, %c0_121, %c0_122] : memref<4x32x16xf32, #tpu.memory_space<vmem>>, vector<1x32x16xf32>
    %188 = vector.shape_cast %187 : vector<1x32x16xf32> to vector<32x16xf32>
    %cst_123 = arith.constant dense<0.000000e+00> : vector<16x16xf32>
    %189 = tpu.matmul %1, %188, %cst_123 {dimension_numbers = #tpu.dot_dimension_numbers<[1], [0], [0], [1], [0, 0, 1, 1], [], []>} : vector<16x32xf32>, vector<32x16xf32>, vector<16x16xf32> -> vector<16x16xf32>
    %c3_124 = arith.constant 3 : index
    %c0_125 = arith.constant 0 : index
    %c0_126 = arith.constant 0 : index
    %190 = vector.load %arg7[%c3_124, %c0_125, %c0_126] : memref<4x1x16xf32, #tpu.memory_space<vmem>>, vector<1x1x16xf32>
    %191 = vector.shape_cast %190 : vector<1x1x16xf32> to vector<1x16xf32>
    %192 = vector.broadcast %191 : vector<1x16xf32> to vector<16x16xf32>
    %193 = arith.addf %189, %192 : vector<16x16xf32>
    %c3_127 = arith.constant 3 : index
    %c0_128 = arith.constant 0 : index
    %c0_129 = arith.constant 0 : index
    %194 = vector.load %arg8[%c3_127, %c0_128, %c0_129] : memref<4x32x16xf32, #tpu.memory_space<vmem>>, vector<1x32x16xf32>
    %195 = vector.shape_cast %194 : vector<1x32x16xf32> to vector<32x16xf32>
    %cst_130 = arith.constant dense<0.000000e+00> : vector<16x16xf32>
    %196 = tpu.matmul %2, %195, %cst_130 {dimension_numbers = #tpu.dot_dimension_numbers<[1], [0], [0], [1], [0, 0, 1, 1], [], []>} : vector<16x32xf32>, vector<32x16xf32>, vector<16x16xf32> -> vector<16x16xf32>
    %c3_131 = arith.constant 3 : index
    %c0_132 = arith.constant 0 : index
    %c0_133 = arith.constant 0 : index
    %197 = vector.load %arg9[%c3_131, %c0_132, %c0_133] : memref<4x1x16xf32, #tpu.memory_space<vmem>>, vector<1x1x16xf32>
    %198 = vector.shape_cast %197 : vector<1x1x16xf32> to vector<1x16xf32>
    %199 = vector.broadcast %198 : vector<1x16xf32> to vector<16x16xf32>
    %200 = arith.addf %196, %199 : vector<16x16xf32>
    %201 = vector.shape_cast %186 : vector<16x16xf32> to vector<2x8x16xf32>
    %202 = vector.shape_cast %193 : vector<16x16xf32> to vector<2x8x16xf32>
    %203 = vector.shape_cast %200 : vector<16x16xf32> to vector<2x8x16xf32>
    "tpu.trace_start"() <{level = 10 : i32, message = "bqd,bkd->bqk"}> : () -> ()
    %cst_134 = arith.constant dense<0.000000e+00> : vector<2x8x8xf32>
    %204 = tpu.matmul %201, %202, %cst_134 {dimension_numbers = #tpu.dot_dimension_numbers<[2], [2], [1], [1], [0, 0, 0, 1, 1, 1], [0], [0]>} : vector<2x8x16xf32>, vector<2x8x16xf32>, vector<2x8x8xf32> -> vector<2x8x8xf32>
    "tpu.trace_stop"() : () -> ()
    %cst_135 = arith.constant 2.500000e-01 : f32
    %205 = vector.broadcast %cst_135 : f32 to vector<2x8x8xf32>
    %206 = arith.mulf %204, %205 : vector<2x8x8xf32>
    %c3_136 = arith.constant 3 : index
    %c0_137 = arith.constant 0 : index
    %c0_138 = arith.constant 0 : index
    %207 = vector.load %arg12[%c3_136, %c0_137, %c0_138] : memref<4x8x16xf32, #tpu.memory_space<vmem>>, vector<1x8x16xf32>
    %208 = vector.shape_cast %207 : vector<1x8x16xf32> to vector<8x16xf32>
    %cst_139 = arith.constant dense<0.000000e+00> : vector<16x8xf32>
    %209 = tpu.matmul %186, %208, %cst_139 {dimension_numbers = #tpu.dot_dimension_numbers<[1], [1], [0], [0], [0, 0, 1, 0], [], []>} : vector<16x16xf32>, vector<8x16xf32>, vector<16x8xf32> -> vector<16x8xf32>
    %cst_140 = arith.constant dense<0xFF800000> : vector<2x8xf32>
    %210 = vector.multi_reduction <maximumf>, %206, %cst_140 [2] : vector<2x8x8xf32> to vector<2x8xf32>
    %211 = vector.shape_cast %210 : vector<2x8xf32> to vector<2x8x1xf32>
    %cst_141 = arith.constant dense<0xFF800000> : vector<16xf32>
    %212 = vector.multi_reduction <maximumf>, %209, %cst_141 [1] : vector<16x8xf32> to vector<16xf32>
    %213 = vector.shape_cast %212 : vector<16xf32> to vector<16x1xf32>
    %214 = vector.shape_cast %213 : vector<16x1xf32> to vector<2x8x1xf32>
    %215 = arith.maximumf %211, %214 : vector<2x8x1xf32>
    %216 = vector.broadcast %215 : vector<2x8x1xf32> to vector<2x8x8xf32>
    %217 = arith.subf %206, %216 : vector<2x8x8xf32>
    %218 = math.exp %217 : vector<2x8x8xf32>
    %219 = vector.shape_cast %215 : vector<2x8x1xf32> to vector<16x1xf32>
    %220 = vector.broadcast %219 : vector<16x1xf32> to vector<16x8xf32>
    %221 = arith.subf %209, %220 : vector<16x8xf32>
    %222 = math.exp %221 : vector<16x8xf32>
    %cst_142 = arith.constant dense<0.000000e+00> : vector<2x8xf32>
    %223 = vector.multi_reduction <add>, %218, %cst_142 [2] : vector<2x8x8xf32> to vector<2x8xf32>
    %224 = vector.shape_cast %223 : vector<2x8xf32> to vector<2x8x1xf32>
    %225 = vector.shape_cast %224 : vector<2x8x1xf32> to vector<16x1xf32>
    %cst_143 = arith.constant dense<0.000000e+00> : vector<16xf32>
    %226 = vector.multi_reduction <add>, %222, %cst_143 [1] : vector<16x8xf32> to vector<16xf32>
    %227 = vector.shape_cast %226 : vector<16xf32> to vector<16x1xf32>
    %228 = arith.addf %225, %227 : vector<16x1xf32>
    "tpu.trace_start"() <{level = 10 : i32, message = "bqk,bkd->bqd"}> : () -> ()
    %cst_144 = arith.constant dense<0.000000e+00> : vector<2x8x16xf32>
    %229 = tpu.matmul %218, %203, %cst_144 {dimension_numbers = #tpu.dot_dimension_numbers<[2], [1], [1], [2], [0, 0, 0, 1, 1, 2], [0], [0]>} : vector<2x8x8xf32>, vector<2x8x16xf32>, vector<2x8x16xf32> -> vector<2x8x16xf32>
    "tpu.trace_stop"() : () -> ()
    %c3_145 = arith.constant 3 : index
    %c0_146 = arith.constant 0 : index
    %c0_147 = arith.constant 0 : index
    %230 = vector.load %arg13[%c3_145, %c0_146, %c0_147] : memref<4x8x16xf32, #tpu.memory_space<vmem>>, vector<1x8x16xf32>
    %231 = vector.shape_cast %230 : vector<1x8x16xf32> to vector<8x16xf32>
    %cst_148 = arith.constant dense<0.000000e+00> : vector<16x16xf32>
    %232 = tpu.matmul %222, %231, %cst_148 {dimension_numbers = #tpu.dot_dimension_numbers<[1], [0], [0], [1], [0, 0, 1, 1], [], []>} : vector<16x8xf32>, vector<8x16xf32>, vector<16x16xf32> -> vector<16x16xf32>
    %233 = vector.shape_cast %229 : vector<2x8x16xf32> to vector<16x16xf32>
    %234 = arith.addf %233, %232 : vector<16x16xf32>
    %235 = tpu.reciprocal %228 : vector<16x1xf32> -> vector<16x1xf32>
    %236 = vector.broadcast %235 : vector<16x1xf32> to vector<16x16xf32>
    %237 = arith.mulf %234, %236 : vector<16x16xf32>
    %c0_149 = arith.constant 0 : index
    %c48 = arith.constant 48 : index
    %238 = vector.load %arg15[%c0_149, %c48] : memref<16x64xf32, #tpu.memory_space<vmem>>, vector<16x16xf32>
    tpu.vector_store %arg15[%c0_149, %c48], %237 {strides = array<i32>} : memref<16x64xf32, #tpu.memory_space<vmem>>, vector<16x16xf32>,
    %c0_150 = arith.constant 0 : index
    %c0_151 = arith.constant 0 : index
    %239 = vector.load %arg15[%c0_150, %c0_151] : memref<16x64xf32, #tpu.memory_space<vmem>>, vector<16x64xf32>
    %c0_152 = arith.constant 0 : index
    %c0_153 = arith.constant 0 : index
    %240 = vector.load %arg10[%c0_152, %c0_153] : memref<64x32xf32, #tpu.memory_space<vmem>>, vector<64x32xf32>
    %cst_154 = arith.constant dense<0.000000e+00> : vector<16x32xf32>
    %241 = tpu.matmul %239, %240, %cst_154 {dimension_numbers = #tpu.dot_dimension_numbers<[1], [0], [0], [1], [0, 0, 1, 1], [], []>} : vector<16x64xf32>, vector<64x32xf32>, vector<16x32xf32> -> vector<16x32xf32>
    %c0_155 = arith.constant 0 : index
    %c0_156 = arith.constant 0 : index
    %242 = vector.load %arg11[%c0_155, %c0_156] : memref<1x32xf32, #tpu.memory_space<vmem>>, vector<1x32xf32>
    %243 = vector.broadcast %242 : vector<1x32xf32> to vector<16x32xf32>
    %244 = arith.addf %241, %243 : vector<16x32xf32>
    %c0_157 = arith.constant 0 : index
    %c0_158 = arith.constant 0 : index
    %245 = vector.load %arg14[%c0_157, %c0_158] : memref<16x32xf32, #tpu.memory_space<vmem>>, vector<16x32xf32>
    tpu.vector_store %arg14[%c0_157, %c0_158], %244 {strides = array<i32>} : memref<16x32xf32, #tpu.memory_space<vmem>>, vector<16x32xf32>,
    return
  }
  func.func @transform_0(%arg0: i32) -> (i32, i32) {
    %c0_i32 = arith.constant 0 : i32
    %c0_i32_0 = arith.constant 0 : i32
    return %arg0, %c0_i32 : i32, i32
  }
  func.func @transform_1(%arg0: i32) -> (i32, i32) {
    %c0_i32 = arith.constant 0 : i32
    %c0_i32_0 = arith.constant 0 : i32
    return %arg0, %c0_i32 : i32, i32
  }
  func.func @transform_2(%arg0: i32) -> (i32, i32) {
    %c0_i32 = arith.constant 0 : i32
    %c0_i32_0 = arith.constant 0 : i32
    return %arg0, %c0_i32 : i32, i32
  }
  func.func @transform_3(%arg0: i32) -> (i32, i32, i32) {
    %c0_i32 = arith.constant 0 : i32
    %c0_i32_0 = arith.constant 0 : i32
    %c0_i32_1 = arith.constant 0 : i32
    %c0_i32_2 = arith.constant 0 : i32
    return %c0_i32, %c0_i32_0, %c0_i32_1 : i32, i32, i32
  }
  func.func @transform_4(%arg0: i32) -> (i32, i32, i32) {
    %c0_i32 = arith.constant 0 : i32
    %c0_i32_0 = arith.constant 0 : i32
    %c0_i32_1 = arith.constant 0 : i32
    %c0_i32_2 = arith.constant 0 : i32
    return %c0_i32, %c0_i32_0, %c0_i32_1 : i32, i32, i32
  }
  func.func @transform_5(%arg0: i32) -> (i32, i32, i32) {
    %c0_i32 = arith.constant 0 : i32
    %c0_i32_0 = arith.constant 0 : i32
    %c0_i32_1 = arith.constant 0 : i32
    %c0_i32_2 = arith.constant 0 : i32
    return %c0_i32, %c0_i32_0, %c0_i32_1 : i32, i32, i32
  }
  func.func @transform_6(%arg0: i32) -> (i32, i32, i32) {
    %c0_i32 = arith.constant 0 : i32
    %c0_i32_0 = arith.constant 0 : i32
    %c0_i32_1 = arith.constant 0 : i32
    %c0_i32_2 = arith.constant 0 : i32
    return %c0_i32, %c0_i32_0, %c0_i32_1 : i32, i32, i32
  }
  func.func @transform_7(%arg0: i32) -> (i32, i32, i32) {
    %c0_i32 = arith.constant 0 : i32
    %c0_i32_0 = arith.constant 0 : i32
    %c0_i32_1 = arith.constant 0 : i32
    %c0_i32_2 = arith.constant 0 : i32
    return %c0_i32, %c0_i32_0, %c0_i32_1 : i32, i32, i32
  }
  func.func @transform_8(%arg0: i32) -> (i32, i32, i32) {
    %c0_i32 = arith.constant 0 : i32
    %c0_i32_0 = arith.constant 0 : i32
    %c0_i32_1 = arith.constant 0 : i32
    %c0_i32_2 = arith.constant 0 : i32
    return %c0_i32, %c0_i32_0, %c0_i32_1 : i32, i32, i32
  }
  func.func @transform_9(%arg0: i32) -> (i32, i32) {
    %c0_i32 = arith.constant 0 : i32
    %c0_i32_0 = arith.constant 0 : i32
    %c0_i32_1 = arith.constant 0 : i32
    return %c0_i32, %c0_i32_0 : i32, i32
  }
  func.func @transform_10(%arg0: i32) -> (i32, i32) {
    %c0_i32 = arith.constant 0 : i32
    %c0_i32_0 = arith.constant 0 : i32
    %c0_i32_1 = arith.constant 0 : i32
    return %c0_i32, %c0_i32_0 : i32, i32
  }
  func.func @transform_11(%arg0: i32) -> (i32, i32, i32) {
    %c0_i32 = arith.constant 0 : i32
    %c0_i32_0 = arith.constant 0 : i32
    %c0_i32_1 = arith.constant 0 : i32
    %c0_i32_2 = arith.constant 0 : i32
    return %c0_i32, %c0_i32_0, %c0_i32_1 : i32, i32, i32
  }
  func.func @transform_12(%arg0: i32) -> (i32, i32, i32) {
    %c0_i32 = arith.constant 0 : i32
    %c0_i32_0 = arith.constant 0 : i32
    %c0_i32_1 = arith.constant 0 : i32
    %c0_i32_2 = arith.constant 0 : i32
    return %c0_i32, %c0_i32_0, %c0_i32_1 : i32, i32, i32
  }
  func.func @transform_13(%arg0: i32) -> (i32, i32) {
    %c0_i32 = arith.constant 0 : i32
    %c0_i32_0 = arith.constant 0 : i32
    return %arg0, %c0_i32 : i32, i32
  }
}

module attributes {stable_mosaic.version = 11 : i64} {
  func.func @kernel(%arg0: i32, %arg1: memref<16x32xf32, #tpu.memory_space<vmem>>, %arg2: memref<16x32xf32, #tpu.memory_space<vmem>>, %arg3: memref<16x32xf32, #tpu.memory_space<vmem>>, %arg4: memref<4x32x16xf32, #tpu.memory_space<vmem>>, %arg5: memref<4x1x16xf32, #tpu.memory_space<vmem>>, %arg6: memref<4x32x16xf32, #tpu.memory_space<vmem>>, %arg7: memref<4x1x16xf32, #tpu.memory_space<vmem>>, %arg8: memref<4x32x16xf32, #tpu.memory_space<vmem>>, %arg9: memref<4x1x16xf32, #tpu.memory_space<vmem>>, %arg10: memref<64x32xf32, #tpu.memory_space<vmem>>, %arg11: memref<1x32xf32, #tpu.memory_space<vmem>>, %arg12: memref<4x8x16xf32, #tpu.memory_space<vmem>>, %arg13: memref<4x8x16xf32, #tpu.memory_space<vmem>>, %arg14: memref<16x32xf32, #tpu.memory_space<vmem>>, %arg15: memref<16x64xf32, #tpu.memory_space<vmem>>) attributes {dimension_semantics = [#tpu.dimension_semantics<parallel>], iteration_bounds = array<i64: 1>, scalar_prefetch = 0 : i64, scratch_operands = 1 : i64, tpu.core_type = #tpu.core_type<tc>, window_params = [{transform_indices = @transform_0, window_bounds = array<i64: 16, 32>}, {transform_indices = @transform_1, window_bounds = array<i64: 16, 32>}, {transform_indices = @transform_2, window_bounds = array<i64: 16, 32>}, {pipeline_mode = #tpu.pipeline_mode<synchronous>, transform_indices = @transform_3, window_bounds = array<i64: 4, 32, 16>}, {pipeline_mode = #tpu.pipeline_mode<synchronous>, transform_indices = @transform_4, window_bounds = array<i64: 4, 1, 16>}, {pipeline_mode = #tpu.pipeline_mode<synchronous>, transform_indices = @transform_5, window_bounds = array<i64: 4, 32, 16>}, {pipeline_mode = #tpu.pipeline_mode<synchronous>, transform_indices = @transform_6, window_bounds = array<i64: 4, 1, 16>}, {pipeline_mode = #tpu.pipeline_mode<synchronous>, transform_indices = @transform_7, window_bounds = array<i64: 4, 32, 16>}, {pipeline_mode = #tpu.pipeline_mode<synchronous>, transform_indices = @transform_8, window_bounds = array<i64: 4, 1, 16>}, {pipeline_mode = #tpu.pipeline_mode<synchronous>, transform_indices = @transform_9, window_bounds = array<i64: 64, 32>}, {pipeline_mode = #tpu.pipeline_mode<synchronous>, transform_indices = @transform_10, window_bounds = array<i64: 1, 32>}, {pipeline_mode = #tpu.pipeline_mode<synchronous>, transform_indices = @transform_11, window_bounds = array<i64: 4, 8, 16>}, {pipeline_mode = #tpu.pipeline_mode<synchronous>, transform_indices = @transform_12, window_bounds = array<i64: 4, 8, 16>}, {transform_indices = @transform_13, window_bounds = array<i64: 16, 32>}]} {
    %c0 = arith.constant 0 : index
    %c0_0 = arith.constant 0 : index
    %0 = vector.load %arg1[%c0, %c0_0] : memref<16x32xf32, #tpu.memory_space<vmem>>, vector<16x32xf32>
    %c0_1 = arith.constant 0 : index
    %c0_2 = arith.constant 0 : index
    %1 = vector.load %arg2[%c0_1, %c0_2] : memref<16x32xf32, #tpu.memory_space<vmem>>, vector<16x32xf32>
    %c0_3 = arith.constant 0 : index
    %c0_4 = arith.constant 0 : index
    %2 = vector.load %arg3[%c0_3, %c0_4] : memref<16x32xf32, #tpu.memory_space<vmem>>, vector<16x32xf32>
    %c0_5 = arith.constant 0 : index
    %c0_6 = arith.constant 0 : index
    %c0_7 = arith.constant 0 : index
    %3 = vector.load %arg4[%c0_5, %c0_6, %c0_7] : memref<4x32x16xf32, #tpu.memory_space<vmem>>, vector<1x32x16xf32>
    %4 = vector.shape_cast %3 : vector<1x32x16xf32> to vector<32x16xf32>
    %cst = arith.constant dense<0.000000e+00> : vector<16x16xf32>
    %5 = tpu.matmul %0, %4, %cst {dimension_numbers = #tpu.dot_dimension_numbers<[1], [0], [0], [1], [0, 0, 1, 1], [], []>} : vector<16x32xf32>, vector<32x16xf32>, vector<16x16xf32> -> vector<16x16xf32>
    %c0_8 = arith.constant 0 : index
    %c0_9 = arith.constant 0 : index
    %c0_10 = arith.constant 0 : index
    %6 = vector.load %arg5[%c0_8, %c0_9, %c0_10] : memref<4x1x16xf32, #tpu.memory_space<vmem>>, vector<1x1x16xf32>
    %7 = vector.shape_cast %6 : vector<1x1x16xf32> to vector<1x16xf32>
    %8 = vector.broadcast %7 : vector<1x16xf32> to vector<16x16xf32>
    %9 = arith.addf %5, %8 : vector<16x16xf32>
    %c0_11 = arith.constant 0 : index
    %c0_12 = arith.constant 0 : index
    %c0_13 = arith.constant 0 : index
    %10 = vector.load %arg6[%c0_11, %c0_12, %c0_13] : memref<4x32x16xf32, #tpu.memory_space<vmem>>, vector<1x32x16xf32>
    %11 = vector.shape_cast %10 : vector<1x32x16xf32> to vector<32x16xf32>
    %cst_14 = arith.constant dense<0.000000e+00> : vector<16x16xf32>
    %12 = tpu.matmul %1, %11, %cst_14 {dimension_numbers = #tpu.dot_dimension_numbers<[1], [0], [0], [1], [0, 0, 1, 1], [], []>} : vector<16x32xf32>, vector<32x16xf32>, vector<16x16xf32> -> vector<16x16xf32>
    %c0_15 = arith.constant 0 : index
    %c0_16 = arith.constant 0 : index
    %c0_17 = arith.constant 0 : index
    %13 = vector.load %arg7[%c0_15, %c0_16, %c0_17] : memref<4x1x16xf32, #tpu.memory_space<vmem>>, vector<1x1x16xf32>
    %14 = vector.shape_cast %13 : vector<1x1x16xf32> to vector<1x16xf32>
    %15 = vector.broadcast %14 : vector<1x16xf32> to vector<16x16xf32>
    %16 = arith.addf %12, %15 : vector<16x16xf32>
    %c0_18 = arith.constant 0 : index
    %c0_19 = arith.constant 0 : index
    %c0_20 = arith.constant 0 : index
    %17 = vector.load %arg8[%c0_18, %c0_19, %c0_20] : memref<4x32x16xf32, #tpu.memory_space<vmem>>, vector<1x32x16xf32>
    %18 = vector.shape_cast %17 : vector<1x32x16xf32> to vector<32x16xf32>
    %cst_21 = arith.constant dense<0.000000e+00> : vector<16x16xf32>
    %19 = tpu.matmul %2, %18, %cst_21 {dimension_numbers = #tpu.dot_dimension_numbers<[1], [0], [0], [1], [0, 0, 1, 1], [], []>} : vector<16x32xf32>, vector<32x16xf32>, vector<16x16xf32> -> vector<16x16xf32>
    %c0_22 = arith.constant 0 : index
    %c0_23 = arith.constant 0 : index
    %c0_24 = arith.constant 0 : index
    %20 = vector.load %arg9[%c0_22, %c0_23, %c0_24] : memref<4x1x16xf32, #tpu.memory_space<vmem>>, vector<1x1x16xf32>
    %21 = vector.shape_cast %20 : vector<1x1x16xf32> to vector<1x16xf32>
    %22 = vector.broadcast %21 : vector<1x16xf32> to vector<16x16xf32>
    %23 = arith.addf %19, %22 : vector<16x16xf32>
    %24 = vector.shape_cast %9 : vector<16x16xf32> to vector<2x8x16xf32>
    %25 = vector.shape_cast %16 : vector<16x16xf32> to vector<2x8x16xf32>
    %26 = vector.shape_cast %23 : vector<16x16xf32> to vector<2x8x16xf32>
    "tpu.trace_start"() <{level = 10 : i32, message = "bqd,bkd->bqk"}> : () -> ()
    %cst_25 = arith.constant dense<0.000000e+00> : vector<2x8x8xf32>
    %27 = tpu.matmul %24, %25, %cst_25 {dimension_numbers = #tpu.dot_dimension_numbers<[2], [2], [1], [1], [0, 0, 0, 1, 1, 1], [0], [0]>} : vector<2x8x16xf32>, vector<2x8x16xf32>, vector<2x8x8xf32> -> vector<2x8x8xf32>
    "tpu.trace_stop"() : () -> ()
    %cst_26 = arith.constant 2.500000e-01 : f32
    %28 = vector.broadcast %cst_26 : f32 to vector<2x8x8xf32>
    %29 = arith.mulf %27, %28 : vector<2x8x8xf32>
    %c0_27 = arith.constant 0 : index
    %c0_28 = arith.constant 0 : index
    %c0_29 = arith.constant 0 : index
    %30 = vector.load %arg12[%c0_27, %c0_28, %c0_29] : memref<4x8x16xf32, #tpu.memory_space<vmem>>, vector<1x8x16xf32>
    %31 = vector.shape_cast %30 : vector<1x8x16xf32> to vector<8x16xf32>
    %cst_30 = arith.constant dense<0.000000e+00> : vector<16x8xf32>
    %32 = tpu.matmul %9, %31, %cst_30 {dimension_numbers = #tpu.dot_dimension_numbers<[1], [1], [0], [0], [0, 0, 1, 0], [], []>} : vector<16x16xf32>, vector<8x16xf32>, vector<16x8xf32> -> vector<16x8xf32>
    %cst_31 = arith.constant dense<0xFF800000> : vector<2x8xf32>
    %33 = vector.multi_reduction <maximumf>, %29, %cst_31 [2] : vector<2x8x8xf32> to vector<2x8xf32>
    %34 = vector.shape_cast %33 : vector<2x8xf32> to vector<2x8x1xf32>
    %cst_32 = arith.constant dense<0xFF800000> : vector<16xf32>
    %35 = vector.multi_reduction <maximumf>, %32, %cst_32 [1] : vector<16x8xf32> to vector<16xf32>
    %36 = vector.shape_cast %35 : vector<16xf32> to vector<16x1xf32>
    %37 = vector.shape_cast %36 : vector<16x1xf32> to vector<2x8x1xf32>
    %38 = arith.maximumf %34, %37 : vector<2x8x1xf32>
    %39 = vector.broadcast %38 : vector<2x8x1xf32> to vector<2x8x8xf32>
    %40 = arith.subf %29, %39 : vector<2x8x8xf32>
    %41 = math.exp %40 : vector<2x8x8xf32>
    %42 = vector.shape_cast %38 : vector<2x8x1xf32> to vector<16x1xf32>
    %43 = vector.broadcast %42 : vector<16x1xf32> to vector<16x8xf32>
    %44 = arith.subf %32, %43 : vector<16x8xf32>
    %45 = math.exp %44 : vector<16x8xf32>
    %cst_33 = arith.constant dense<0.000000e+00> : vector<2x8xf32>
    %46 = vector.multi_reduction <add>, %41, %cst_33 [2] : vector<2x8x8xf32> to vector<2x8xf32>
    %47 = vector.shape_cast %46 : vector<2x8xf32> to vector<2x8x1xf32>
    %48 = vector.shape_cast %47 : vector<2x8x1xf32> to vector<16x1xf32>
    %cst_34 = arith.constant dense<0.000000e+00> : vector<16xf32>
    %49 = vector.multi_reduction <add>, %45, %cst_34 [1] : vector<16x8xf32> to vector<16xf32>
    %50 = vector.shape_cast %49 : vector<16xf32> to vector<16x1xf32>
    %51 = arith.addf %48, %50 : vector<16x1xf32>
    "tpu.trace_start"() <{level = 10 : i32, message = "bqk,bkd->bqd"}> : () -> ()
    %cst_35 = arith.constant dense<0.000000e+00> : vector<2x8x16xf32>
    %52 = tpu.matmul %41, %26, %cst_35 {dimension_numbers = #tpu.dot_dimension_numbers<[2], [1], [1], [2], [0, 0, 0, 1, 1, 2], [0], [0]>} : vector<2x8x8xf32>, vector<2x8x16xf32>, vector<2x8x16xf32> -> vector<2x8x16xf32>
    "tpu.trace_stop"() : () -> ()
    %c0_36 = arith.constant 0 : index
    %c0_37 = arith.constant 0 : index
    %c0_38 = arith.constant 0 : index
    %53 = vector.load %arg13[%c0_36, %c0_37, %c0_38] : memref<4x8x16xf32, #tpu.memory_space<vmem>>, vector<1x8x16xf32>
    %54 = vector.shape_cast %53 : vector<1x8x16xf32> to vector<8x16xf32>
    %cst_39 = arith.constant dense<0.000000e+00> : vector<16x16xf32>
    %55 = tpu.matmul %45, %54, %cst_39 {dimension_numbers = #tpu.dot_dimension_numbers<[1], [0], [0], [1], [0, 0, 1, 1], [], []>} : vector<16x8xf32>, vector<8x16xf32>, vector<16x16xf32> -> vector<16x16xf32>
    %56 = vector.shape_cast %52 : vector<2x8x16xf32> to vector<16x16xf32>
    %57 = arith.addf %56, %55 : vector<16x16xf32>
    %58 = tpu.reciprocal %51 : vector<16x1xf32> -> vector<16x1xf32>
    %59 = vector.broadcast %58 : vector<16x1xf32> to vector<16x16xf32>
    %60 = arith.mulf %57, %59 : vector<16x16xf32>
    %c0_40 = arith.constant 0 : index
    %c0_41 = arith.constant 0 : index
    %61 = vector.load %arg15[%c0_40, %c0_41] : memref<16x64xf32, #tpu.memory_space<vmem>>, vector<16x16xf32>
    tpu.vector_store %arg15[%c0_40, %c0_41], %60 {strides = array<i32>} : memref<16x64xf32, #tpu.memory_space<vmem>>, vector<16x16xf32>,
    %c1 = arith.constant 1 : index
    %c0_42 = arith.constant 0 : index
    %c0_43 = arith.constant 0 : index
    %62 = vector.load %arg4[%c1, %c0_42, %c0_43] : memref<4x32x16xf32, #tpu.memory_space<vmem>>, vector<1x32x16xf32>
    %63 = vector.shape_cast %62 : vector<1x32x16xf32> to vector<32x16xf32>
    %cst_44 = arith.constant dense<0.000000e+00> : vector<16x16xf32>
    %64 = tpu.matmul %0, %63, %cst_44 {dimension_numbers = #tpu.dot_dimension_numbers<[1], [0], [0], [1], [0, 0, 1, 1], [], []>} : vector<16x32xf32>, vector<32x16xf32>, vector<16x16xf32> -> vector<16x16xf32>
    %c1_45 = arith.constant 1 : index
    %c0_46 = arith.constant 0 : index
    %c0_47 = arith.constant 0 : index
    %65 = vector.load %arg5[%c1_45, %c0_46, %c0_47] : memref<4x1x16xf32, #tpu.memory_space<vmem>>, vector<1x1x16xf32>
    %66 = vector.shape_cast %65 : vector<1x1x16xf32> to vector<1x16xf32>
    %67 = vector.broadcast %66 : vector<1x16xf32> to vector<16x16xf32>
    %68 = arith.addf %64, %67 : vector<16x16xf32>
    %c1_48 = arith.constant 1 : index
    %c0_49 = arith.constant 0 : index
    %c0_50 = arith.constant 0 : index
    %69 = vector.load %arg6[%c1_48, %c0_49, %c0_50] : memref<4x32x16xf32, #tpu.memory_space<vmem>>, vector<1x32x16xf32>
    %70 = vector.shape_cast %69 : vector<1x32x16xf32> to vector<32x16xf32>
    %cst_51 = arith.constant dense<0.000000e+00> : vector<16x16xf32>
    %71 = tpu.matmul %1, %70, %cst_51 {dimension_numbers = #tpu.dot_dimension_numbers<[1], [0], [0], [1], [0, 0, 1, 1], [], []>} : vector<16x32xf32>, vector<32x16xf32>, vector<16x16xf32> -> vector<16x16xf32>
    %c1_52 = arith.constant 1 : index
    %c0_53 = arith.constant 0 : index
    %c0_54 = arith.constant 0 : index
    %72 = vector.load %arg7[%c1_52, %c0_53, %c0_54] : memref<4x1x16xf32, #tpu.memory_space<vmem>>, vector<1x1x16xf32>
    %73 = vector.shape_cast %72 : vector<1x1x16xf32> to vector<1x16xf32>
    %74 = vector.broadcast %73 : vector<1x16xf32> to vector<16x16xf32>
    %75 = arith.addf %71, %74 : vector<16x16xf32>
    %c1_55 = arith.constant 1 : index
    %c0_56 = arith.constant 0 : index
    %c0_57 = arith.constant 0 : index
    %76 = vector.load %arg8[%c1_55, %c0_56, %c0_57] : memref<4x32x16xf32, #tpu.memory_space<vmem>>, vector<1x32x16xf32>
    %77 = vector.shape_cast %76 : vector<1x32x16xf32> to vector<32x16xf32>
    %cst_58 = arith.constant dense<0.000000e+00> : vector<16x16xf32>
    %78 = tpu.matmul %2, %77, %cst_58 {dimension_numbers = #tpu.dot_dimension_numbers<[1], [0], [0], [1], [0, 0, 1, 1], [], []>} : vector<16x32xf32>, vector<32x16xf32>, vector<16x16xf32> -> vector<16x16xf32>
    %c1_59 = arith.constant 1 : index
    %c0_60 = arith.constant 0 : index
    %c0_61 = arith.constant 0 : index
    %79 = vector.load %arg9[%c1_59, %c0_60, %c0_61] : memref<4x1x16xf32, #tpu.memory_space<vmem>>, vector<1x1x16xf32>
    %80 = vector.shape_cast %79 : vector<1x1x16xf32> to vector<1x16xf32>
    %81 = vector.broadcast %80 : vector<1x16xf32> to vector<16x16xf32>
    %82 = arith.addf %78, %81 : vector<16x16xf32>
    %83 = vector.shape_cast %68 : vector<16x16xf32> to vector<2x8x16xf32>
    %84 = vector.shape_cast %75 : vector<16x16xf32> to vector<2x8x16xf32>
    %85 = vector.shape_cast %82 : vector<16x16xf32> to vector<2x8x16xf32>
    "tpu.trace_start"() <{level = 10 : i32, message = "bqd,bkd->bqk"}> : () -> ()
    %cst_62 = arith.constant dense<0.000000e+00> : vector<2x8x8xf32>
    %86 = tpu.matmul %83, %84, %cst_62 {dimension_numbers = #tpu.dot_dimension_numbers<[2], [2], [1], [1], [0, 0, 0, 1, 1, 1], [0], [0]>} : vector<2x8x16xf32>, vector<2x8x16xf32>, vector<2x8x8xf32> -> vector<2x8x8xf32>
    "tpu.trace_stop"() : () -> ()
    %cst_63 = arith.constant 2.500000e-01 : f32
    %87 = vector.broadcast %cst_63 : f32 to vector<2x8x8xf32>
    %88 = arith.mulf %86, %87 : vector<2x8x8xf32>
    %c1_64 = arith.constant 1 : index
    %c0_65 = arith.constant 0 : index
    %c0_66 = arith.constant 0 : index
    %89 = vector.load %arg12[%c1_64, %c0_65, %c0_66] : memref<4x8x16xf32, #tpu.memory_space<vmem>>, vector<1x8x16xf32>
    %90 = vector.shape_cast %89 : vector<1x8x16xf32> to vector<8x16xf32>
    %cst_67 = arith.constant dense<0.000000e+00> : vector<16x8xf32>
    %91 = tpu.matmul %68, %90, %cst_67 {dimension_numbers = #tpu.dot_dimension_numbers<[1], [1], [0], [0], [0, 0, 1, 0], [], []>} : vector<16x16xf32>, vector<8x16xf32>, vector<16x8xf32> -> vector<16x8xf32>
    %cst_68 = arith.constant dense<0xFF800000> : vector<2x8xf32>
    %92 = vector.multi_reduction <maximumf>, %88, %cst_68 [2] : vector<2x8x8xf32> to vector<2x8xf32>
    %93 = vector.shape_cast %92 : vector<2x8xf32> to vector<2x8x1xf32>
    %cst_69 = arith.constant dense<0xFF800000> : vector<16xf32>
    %94 = vector.multi_reduction <maximumf>, %91, %cst_69 [1] : vector<16x8xf32> to vector<16xf32>
    %95 = vector.shape_cast %94 : vector<16xf32> to vector<16x1xf32>
    %96 = vector.shape_cast %95 : vector<16x1xf32> to vector<2x8x1xf32>
    %97 = arith.maximumf %93, %96 : vector<2x8x1xf32>
    %98 = vector.broadcast %97 : vector<2x8x1xf32> to vector<2x8x8xf32>
    %99 = arith.subf %88, %98 : vector<2x8x8xf32>
    %100 = math.exp %99 : vector<2x8x8xf32>
    %101 = vector.shape_cast %97 : vector<2x8x1xf32> to vector<16x1xf32>
    %102 = vector.broadcast %101 : vector<16x1xf32> to vector<16x8xf32>
    %103 = arith.subf %91, %102 : vector<16x8xf32>
    %104 = math.exp %103 : vector<16x8xf32>
    %cst_70 = arith.constant dense<0.000000e+00> : vector<2x8xf32>
    %105 = vector.multi_reduction <add>, %100, %cst_70 [2] : vector<2x8x8xf32> to vector<2x8xf32>
    %106 = vector.shape_cast %105 : vector<2x8xf32> to vector<2x8x1xf32>
    %107 = vector.shape_cast %106 : vector<2x8x1xf32> to vector<16x1xf32>
    %cst_71 = arith.constant dense<0.000000e+00> : vector<16xf32>
    %108 = vector.multi_reduction <add>, %104, %cst_71 [1] : vector<16x8xf32> to vector<16xf32>
    %109 = vector.shape_cast %108 : vector<16xf32> to vector<16x1xf32>
    %110 = arith.addf %107, %109 : vector<16x1xf32>
    "tpu.trace_start"() <{level = 10 : i32, message = "bqk,bkd->bqd"}> : () -> ()
    %cst_72 = arith.constant dense<0.000000e+00> : vector<2x8x16xf32>
    %111 = tpu.matmul %100, %85, %cst_72 {dimension_numbers = #tpu.dot_dimension_numbers<[2], [1], [1], [2], [0, 0, 0, 1, 1, 2], [0], [0]>} : vector<2x8x8xf32>, vector<2x8x16xf32>, vector<2x8x16xf32> -> vector<2x8x16xf32>
    "tpu.trace_stop"() : () -> ()
    %c1_73 = arith.constant 1 : index
    %c0_74 = arith.constant 0 : index
    %c0_75 = arith.constant 0 : index
    %112 = vector.load %arg13[%c1_73, %c0_74, %c0_75] : memref<4x8x16xf32, #tpu.memory_space<vmem>>, vector<1x8x16xf32>
    %113 = vector.shape_cast %112 : vector<1x8x16xf32> to vector<8x16xf32>
    %cst_76 = arith.constant dense<0.000000e+00> : vector<16x16xf32>
    %114 = tpu.matmul %104, %113, %cst_76 {dimension_numbers = #tpu.dot_dimension_numbers<[1], [0], [0], [1], [0, 0, 1, 1], [], []>} : vector<16x8xf32>, vector<8x16xf32>, vector<16x16xf32> -> vector<16x16xf32>
    %115 = vector.shape_cast %111 : vector<2x8x16xf32> to vector<16x16xf32>
    %116 = arith.addf %115, %114 : vector<16x16xf32>
    %117 = tpu.reciprocal %110 : vector<16x1xf32> -> vector<16x1xf32>
    %118 = vector.broadcast %117 : vector<16x1xf32> to vector<16x16xf32>
    %119 = arith.mulf %116, %118 : vector<16x16xf32>
    %c0_77 = arith.constant 0 : index
    %c16 = arith.constant 16 : index
    %120 = vector.load %arg15[%c0_77, %c16] : memref<16x64xf32, #tpu.memory_space<vmem>>, vector<16x16xf32>
    tpu.vector_store %arg15[%c0_77, %c16], %119 {strides = array<i32>} : memref<16x64xf32, #tpu.memory_space<vmem>>, vector<16x16xf32>,
    %c2 = arith.constant 2 : index
    %c0_78 = arith.constant 0 : index
    %c0_79 = arith.constant 0 : index
    %121 = vector.load %arg4[%c2, %c0_78, %c0_79] : memref<4x32x16xf32, #tpu.memory_space<vmem>>, vector<1x32x16xf32>
    %122 = vector.shape_cast %121 : vector<1x32x16xf32> to vector<32x16xf32>
    %cst_80 = arith.constant dense<0.000000e+00> : vector<16x16xf32>
    %123 = tpu.matmul %0, %122, %cst_80 {dimension_numbers = #tpu.dot_dimension_numbers<[1], [0], [0], [1], [0, 0, 1, 1], [], []>} : vector<16x32xf32>, vector<32x16xf32>, vector<16x16xf32> -> vector<16x16xf32>
    %c2_81 = arith.constant 2 : index
    %c0_82 = arith.constant 0 : index
    %c0_83 = arith.constant 0 : index
    %124 = vector.load %arg5[%c2_81, %c0_82, %c0_83] : memref<4x1x16xf32, #tpu.memory_space<vmem>>, vector<1x1x16xf32>
    %125 = vector.shape_cast %124 : vector<1x1x16xf32> to vector<1x16xf32>
    %126 = vector.broadcast %125 : vector<1x16xf32> to vector<16x16xf32>
    %127 = arith.addf %123, %126 : vector<16x16xf32>
    %c2_84 = arith.constant 2 : index
    %c0_85 = arith.constant 0 : index
    %c0_86 = arith.constant 0 : index
    %128 = vector.load %arg6[%c2_84, %c0_85, %c0_86] : memref<4x32x16xf32, #tpu.memory_space<vmem>>, vector<1x32x16xf32>
    %129 = vector.shape_cast %128 : vector<1x32x16xf32> to vector<32x16xf32>
    %cst_87 = arith.constant dense<0.000000e+00> : vector<16x16xf32>
    %130 = tpu.matmul %1, %129, %cst_87 {dimension_numbers = #tpu.dot_dimension_numbers<[1], [0], [0], [1], [0, 0, 1, 1], [], []>} : vector<16x32xf32>, vector<32x16xf32>, vector<16x16xf32> -> vector<16x16xf32>
    %c2_88 = arith.constant 2 : index
    %c0_89 = arith.constant 0 : index
    %c0_90 = arith.constant 0 : index
    %131 = vector.load %arg7[%c2_88, %c0_89, %c0_90] : memref<4x1x16xf32, #tpu.memory_space<vmem>>, vector<1x1x16xf32>
    %132 = vector.shape_cast %131 : vector<1x1x16xf32> to vector<1x16xf32>
    %133 = vector.broadcast %132 : vector<1x16xf32> to vector<16x16xf32>
    %134 = arith.addf %130, %133 : vector<16x16xf32>
    %c2_91 = arith.constant 2 : index
    %c0_92 = arith.constant 0 : index
    %c0_93 = arith.constant 0 : index
    %135 = vector.load %arg8[%c2_91, %c0_92, %c0_93] : memref<4x32x16xf32, #tpu.memory_space<vmem>>, vector<1x32x16xf32>
    %136 = vector.shape_cast %135 : vector<1x32x16xf32> to vector<32x16xf32>
    %cst_94 = arith.constant dense<0.000000e+00> : vector<16x16xf32>
    %137 = tpu.matmul %2, %136, %cst_94 {dimension_numbers = #tpu.dot_dimension_numbers<[1], [0], [0], [1], [0, 0, 1, 1], [], []>} : vector<16x32xf32>, vector<32x16xf32>, vector<16x16xf32> -> vector<16x16xf32>
    %c2_95 = arith.constant 2 : index
    %c0_96 = arith.constant 0 : index
    %c0_97 = arith.constant 0 : index
    %138 = vector.load %arg9[%c2_95, %c0_96, %c0_97] : memref<4x1x16xf32, #tpu.memory_space<vmem>>, vector<1x1x16xf32>
    %139 = vector.shape_cast %138 : vector<1x1x16xf32> to vector<1x16xf32>
    %140 = vector.broadcast %139 : vector<1x16xf32> to vector<16x16xf32>
    %141 = arith.addf %137, %140 : vector<16x16xf32>
    %142 = vector.shape_cast %127 : vector<16x16xf32> to vector<2x8x16xf32>
    %143 = vector.shape_cast %134 : vector<16x16xf32> to vector<2x8x16xf32>
    %144 = vector.shape_cast %141 : vector<16x16xf32> to vector<2x8x16xf32>
    "tpu.trace_start"() <{level = 10 : i32, message = "bqd,bkd->bqk"}> : () -> ()
    %cst_98 = arith.constant dense<0.000000e+00> : vector<2x8x8xf32>
    %145 = tpu.matmul %142, %143, %cst_98 {dimension_numbers = #tpu.dot_dimension_numbers<[2], [2], [1], [1], [0, 0, 0, 1, 1, 1], [0], [0]>} : vector<2x8x16xf32>, vector<2x8x16xf32>, vector<2x8x8xf32> -> vector<2x8x8xf32>
    "tpu.trace_stop"() : () -> ()
    %cst_99 = arith.constant 2.500000e-01 : f32
    %146 = vector.broadcast %cst_99 : f32 to vector<2x8x8xf32>
    %147 = arith.mulf %145, %146 : vector<2x8x8xf32>
    %c2_100 = arith.constant 2 : index
    %c0_101 = arith.constant 0 : index
    %c0_102 = arith.constant 0 : index
    %148 = vector.load %arg12[%c2_100, %c0_101, %c0_102] : memref<4x8x16xf32, #tpu.memory_space<vmem>>, vector<1x8x16xf32>
    %149 = vector.shape_cast %148 : vector<1x8x16xf32> to vector<8x16xf32>
    %cst_103 = arith.constant dense<0.000000e+00> : vector<16x8xf32>
    %150 = tpu.matmul %127, %149, %cst_103 {dimension_numbers = #tpu.dot_dimension_numbers<[1], [1], [0], [0], [0, 0, 1, 0], [], []>} : vector<16x16xf32>, vector<8x16xf32>, vector<16x8xf32> -> vector<16x8xf32>
    %cst_104 = arith.constant dense<0xFF800000> : vector<2x8xf32>
    %151 = vector.multi_reduction <maximumf>, %147, %cst_104 [2] : vector<2x8x8xf32> to vector<2x8xf32>
    %152 = vector.shape_cast %151 : vector<2x8xf32> to vector<2x8x1xf32>
    %cst_105 = arith.constant dense<0xFF800000> : vector<16xf32>
    %153 = vector.multi_reduction <maximumf>, %150, %cst_105 [1] : vector<16x8xf32> to vector<16xf32>
    %154 = vector.shape_cast %153 : vector<16xf32> to vector<16x1xf32>
    %155 = vector.shape_cast %154 : vector<16x1xf32> to vector<2x8x1xf32>
    %156 = arith.maximumf %152, %155 : vector<2x8x1xf32>
    %157 = vector.broadcast %156 : vector<2x8x1xf32> to vector<2x8x8xf32>
    %158 = arith.subf %147, %157 : vector<2x8x8xf32>
    %159 = math.exp %158 : vector<2x8x8xf32>
    %160 = vector.shape_cast %156 : vector<2x8x1xf32> to vector<16x1xf32>
    %161 = vector.broadcast %160 : vector<16x1xf32> to vector<16x8xf32>
    %162 = arith.subf %150, %161 : vector<16x8xf32>
    %163 = math.exp %162 : vector<16x8xf32>
    %cst_106 = arith.constant dense<0.000000e+00> : vector<2x8xf32>
    %164 = vector.multi_reduction <add>, %159, %cst_106 [2] : vector<2x8x8xf32> to vector<2x8xf32>
    %165 = vector.shape_cast %164 : vector<2x8xf32> to vector<2x8x1xf32>
    %166 = vector.shape_cast %165 : vector<2x8x1xf32> to vector<16x1xf32>
    %cst_107 = arith.constant dense<0.000000e+00> : vector<16xf32>
    %167 = vector.multi_reduction <add>, %163, %cst_107 [1] : vector<16x8xf32> to vector<16xf32>
    %168 = vector.shape_cast %167 : vector<16xf32> to vector<16x1xf32>
    %169 = arith.addf %166, %168 : vector<16x1xf32>
    "tpu.trace_start"() <{level = 10 : i32, message = "bqk,bkd->bqd"}> : () -> ()
    %cst_108 = arith.constant dense<0.000000e+00> : vector<2x8x16xf32>
    %170 = tpu.matmul %159, %144, %cst_108 {dimension_numbers = #tpu.dot_dimension_numbers<[2], [1], [1], [2], [0, 0, 0, 1, 1, 2], [0], [0]>} : vector<2x8x8xf32>, vector<2x8x16xf32>, vector<2x8x16xf32> -> vector<2x8x16xf32>
    "tpu.trace_stop"() : () -> ()
    %c2_109 = arith.constant 2 : index
    %c0_110 = arith.constant 0 : index
    %c0_111 = arith.constant 0 : index
    %171 = vector.load %arg13[%c2_109, %c0_110, %c0_111] : memref<4x8x16xf32, #tpu.memory_space<vmem>>, vector<1x8x16xf32>
    %172 = vector.shape_cast %171 : vector<1x8x16xf32> to vector<8x16xf32>
    %cst_112 = arith.constant dense<0.000000e+00> : vector<16x16xf32>
    %173 = tpu.matmul %163, %172, %cst_112 {dimension_numbers = #tpu.dot_dimension_numbers<[1], [0], [0], [1], [0, 0, 1, 1], [], []>} : vector<16x8xf32>, vector<8x16xf32>, vector<16x16xf32> -> vector<16x16xf32>
    %174 = vector.shape_cast %170 : vector<2x8x16xf32> to vector<16x16xf32>
    %175 = arith.addf %174, %173 : vector<16x16xf32>
    %176 = tpu.reciprocal %169 : vector<16x1xf32> -> vector<16x1xf32>
    %177 = vector.broadcast %176 : vector<16x1xf32> to vector<16x16xf32>
    %178 = arith.mulf %175, %177 : vector<16x16xf32>
    %c0_113 = arith.constant 0 : index
    %c32 = arith.constant 32 : index
    %179 = vector.load %arg15[%c0_113, %c32] : memref<16x64xf32, #tpu.memory_space<vmem>>, vector<16x16xf32>
    tpu.vector_store %arg15[%c0_113, %c32], %178 {strides = array<i32>} : memref<16x64xf32, #tpu.memory_space<vmem>>, vector<16x16xf32>,
    %c3 = arith.constant 3 : index
    %c0_114 = arith.constant 0 : index
    %c0_115 = arith.constant 0 : index
    %180 = vector.load %arg4[%c3, %c0_114, %c0_115] : memref<4x32x16xf32, #tpu.memory_space<vmem>>, vector<1x32x16xf32>
    %181 = vector.shape_cast %180 : vector<1x32x16xf32> to vector<32x16xf32>
    %cst_116 = arith.constant dense<0.000000e+00> : vector<16x16xf32>
    %182 = tpu.matmul %0, %181, %cst_116 {dimension_numbers = #tpu.dot_dimension_numbers<[1], [0], [0], [1], [0, 0, 1, 1], [], []>} : vector<16x32xf32>, vector<32x16xf32>, vector<16x16xf32> -> vector<16x16xf32>
    %c3_117 = arith.constant 3 : index
    %c0_118 = arith.constant 0 : index
    %c0_119 = arith.constant 0 : index
    %183 = vector.load %arg5[%c3_117, %c0_118, %c0_119] : memref<4x1x16xf32, #tpu.memory_space<vmem>>, vector<1x1x16xf32>
    %184 = vector.shape_cast %183 : vector<1x1x16xf32> to vector<1x16xf32>
    %185 = vector.broadcast %184 : vector<1x16xf32> to vector<16x16xf32>
    %186 = arith.addf %182, %185 : vector<16x16xf32>
    %c3_120 = arith.constant 3 : index
    %c0_121 = arith.constant 0 : index
    %c0_122 = arith.constant 0 : index
    %187 = vector.load %arg6[%c3_120, %c0_121, %c0_122] : memref<4x32x16xf32, #tpu.memory_space<vmem>>, vector<1x32x16xf32>
    %188 = vector.shape_cast %187 : vector<1x32x16xf32> to vector<32x16xf32>
    %cst_123 = arith.constant dense<0.000000e+00> : vector<16x16xf32>
    %189 = tpu.matmul %1, %188, %cst_123 {dimension_numbers = #tpu.dot_dimension_numbers<[1], [0], [0], [1], [0, 0, 1, 1], [], []>} : vector<16x32xf32>, vector<32x16xf32>, vector<16x16xf32> -> vector<16x16xf32>
    %c3_124 = arith.constant 3 : index
    %c0_125 = arith.constant 0 : index
    %c0_126 = arith.constant 0 : index
    %190 = vector.load %arg7[%c3_124, %c0_125, %c0_126] : memref<4x1x16xf32, #tpu.memory_space<vmem>>, vector<1x1x16xf32>
    %191 = vector.shape_cast %190 : vector<1x1x16xf32> to vector<1x16xf32>
    %192 = vector.broadcast %191 : vector<1x16xf32> to vector<16x16xf32>
    %193 = arith.addf %189, %192 : vector<16x16xf32>
    %c3_127 = arith.constant 3 : index
    %c0_128 = arith.constant 0 : index
    %c0_129 = arith.constant 0 : index
    %194 = vector.load %arg8[%c3_127, %c0_128, %c0_129] : memref<4x32x16xf32, #tpu.memory_space<vmem>>, vector<1x32x16xf32>
    %195 = vector.shape_cast %194 : vector<1x32x16xf32> to vector<32x16xf32>
    %cst_130 = arith.constant dense<0.000000e+00> : vector<16x16xf32>
    %196 = tpu.matmul %2, %195, %cst_130 {dimension_numbers = #tpu.dot_dimension_numbers<[1], [0], [0], [1], [0, 0, 1, 1], [], []>} : vector<16x32xf32>, vector<32x16xf32>, vector<16x16xf32> -> vector<16x16xf32>
    %c3_131 = arith.constant 3 : index
    %c0_132 = arith.constant 0 : index
    %c0_133 = arith.constant 0 : index
    %197 = vector.load %arg9[%c3_131, %c0_132, %c0_133] : memref<4x1x16xf32, #tpu.memory_space<vmem>>, vector<1x1x16xf32>
    %198 = vector.shape_cast %197 : vector<1x1x16xf32> to vector<1x16xf32>
    %199 = vector.broadcast %198 : vector<1x16xf32> to vector<16x16xf32>
    %200 = arith.addf %196, %199 : vector<16x16xf32>
    %201 = vector.shape_cast %186 : vector<16x16xf32> to vector<2x8x16xf32>
    %202 = vector.shape_cast %193 : vector<16x16xf32> to vector<2x8x16xf32>
    %203 = vector.shape_cast %200 : vector<16x16xf32> to vector<2x8x16xf32>
    "tpu.trace_start"() <{level = 10 : i32, message = "bqd,bkd->bqk"}> : () -> ()
    %cst_134 = arith.constant dense<0.000000e+00> : vector<2x8x8xf32>
    %204 = tpu.matmul %201, %202, %cst_134 {dimension_numbers = #tpu.dot_dimension_numbers<[2], [2], [1], [1], [0, 0, 0, 1, 1, 1], [0], [0]>} : vector<2x8x16xf32>, vector<2x8x16xf32>, vector<2x8x8xf32> -> vector<2x8x8xf32>
    "tpu.trace_stop"() : () -> ()
    %cst_135 = arith.constant 2.500000e-01 : f32
    %205 = vector.broadcast %cst_135 : f32 to vector<2x8x8xf32>
    %206 = arith.mulf %204, %205 : vector<2x8x8xf32>
    %c3_136 = arith.constant 3 : index
    %c0_137 = arith.constant 0 : index
    %c0_138 = arith.constant 0 : index
    %207 = vector.load %arg12[%c3_136, %c0_137, %c0_138] : memref<4x8x16xf32, #tpu.memory_space<vmem>>, vector<1x8x16xf32>
    %208 = vector.shape_cast %207 : vector<1x8x16xf32> to vector<8x16xf32>
    %cst_139 = arith.constant dense<0.000000e+00> : vector<16x8xf32>
    %209 = tpu.matmul %186, %208, %cst_139 {dimension_numbers = #tpu.dot_dimension_numbers<[1], [1], [0], [0], [0, 0, 1, 0], [], []>} : vector<16x16xf32>, vector<8x16xf32>, vector<16x8xf32> -> vector<16x8xf32>
    %cst_140 = arith.constant dense<0xFF800000> : vector<2x8xf32>
    %210 = vector.multi_reduction <maximumf>, %206, %cst_140 [2] : vector<2x8x8xf32> to vector<2x8xf32>
    %211 = vector.shape_cast %210 : vector<2x8xf32> to vector<2x8x1xf32>
    %cst_141 = arith.constant dense<0xFF800000> : vector<16xf32>
    %212 = vector.multi_reduction <maximumf>, %209, %cst_141 [1] : vector<16x8xf32> to vector<16xf32>
    %213 = vector.shape_cast %212 : vector<16xf32> to vector<16x1xf32>
    %214 = vector.shape_cast %213 : vector<16x1xf32> to vector<2x8x1xf32>
    %215 = arith.maximumf %211, %214 : vector<2x8x1xf32>
    %216 = vector.broadcast %215 : vector<2x8x1xf32> to vector<2x8x8xf32>
    %217 = arith.subf %206, %216 : vector<2x8x8xf32>
    %218 = math.exp %217 : vector<2x8x8xf32>
    %219 = vector.shape_cast %215 : vector<2x8x1xf32> to vector<16x1xf32>
    %220 = vector.broadcast %219 : vector<16x1xf32> to vector<16x8xf32>
    %221 = arith.subf %209, %220 : vector<16x8xf32>
    %222 = math.exp %221 : vector<16x8xf32>
    %cst_142 = arith.constant dense<0.000000e+00> : vector<2x8xf32>
    %223 = vector.multi_reduction <add>, %218, %cst_142 [2] : vector<2x8x8xf32> to vector<2x8xf32>
    %224 = vector.shape_cast %223 : vector<2x8xf32> to vector<2x8x1xf32>
    %225 = vector.shape_cast %224 : vector<2x8x1xf32> to vector<16x1xf32>
    %cst_143 = arith.constant dense<0.000000e+00> : vector<16xf32>
    %226 = vector.multi_reduction <add>, %222, %cst_143 [1] : vector<16x8xf32> to vector<16xf32>
    %227 = vector.shape_cast %226 : vector<16xf32> to vector<16x1xf32>
    %228 = arith.addf %225, %227 : vector<16x1xf32>
    "tpu.trace_start"() <{level = 10 : i32, message = "bqk,bkd->bqd"}> : () -> ()
    %cst_144 = arith.constant dense<0.000000e+00> : vector<2x8x16xf32>
    %229 = tpu.matmul %218, %203, %cst_144 {dimension_numbers = #tpu.dot_dimension_numbers<[2], [1], [1], [2], [0, 0, 0, 1, 1, 2], [0], [0]>} : vector<2x8x8xf32>, vector<2x8x16xf32>, vector<2x8x16xf32> -> vector<2x8x16xf32>
    "tpu.trace_stop"() : () -> ()
    %c3_145 = arith.constant 3 : index
    %c0_146 = arith.constant 0 : index
    %c0_147 = arith.constant 0 : index
    %230 = vector.load %arg13[%c3_145, %c0_146, %c0_147] : memref<4x8x16xf32, #tpu.memory_space<vmem>>, vector<1x8x16xf32>
    %231 = vector.shape_cast %230 : vector<1x8x16xf32> to vector<8x16xf32>
    %cst_148 = arith.constant dense<0.000000e+00> : vector<16x16xf32>
    %232 = tpu.matmul %222, %231, %cst_148 {dimension_numbers = #tpu.dot_dimension_numbers<[1], [0], [0], [1], [0, 0, 1, 1], [], []>} : vector<16x8xf32>, vector<8x16xf32>, vector<16x16xf32> -> vector<16x16xf32>
    %233 = vector.shape_cast %229 : vector<2x8x16xf32> to vector<16x16xf32>
    %234 = arith.addf %233, %232 : vector<16x16xf32>
    %235 = tpu.reciprocal %228 : vector<16x1xf32> -> vector<16x1xf32>
    %236 = vector.broadcast %235 : vector<16x1xf32> to vector<16x16xf32>
    %237 = arith.mulf %234, %236 : vector<16x16xf32>
    %c0_149 = arith.constant 0 : index
    %c48 = arith.constant 48 : index
    %238 = vector.load %arg15[%c0_149, %c48] : memref<16x64xf32, #tpu.memory_space<vmem>>, vector<16x16xf32>
    tpu.vector_store %arg15[%c0_149, %c48], %237 {strides = array<i32>} : memref<16x64xf32, #tpu.memory_space<vmem>>, vector<16x16xf32>,
    %c0_150 = arith.constant 0 : index
    %c0_151 = arith.constant 0 : index
    %239 = vector.load %arg15[%c0_150, %c0_151] : memref<16x64xf32, #tpu.memory_space<vmem>>, vector<16x64xf32>
    %c0_152 = arith.constant 0 : index
    %c0_153 = arith.constant 0 : index
    %240 = vector.load %arg10[%c0_152, %c0_153] : memref<64x32xf32, #tpu.memory_space<vmem>>, vector<64x32xf32>
    %cst_154 = arith.constant dense<0.000000e+00> : vector<16x32xf32>
    %241 = tpu.matmul %239, %240, %cst_154 {dimension_numbers = #tpu.dot_dimension_numbers<[1], [0], [0], [1], [0, 0, 1, 1], [], []>} : vector<16x64xf32>, vector<64x32xf32>, vector<16x32xf32> -> vector<16x32xf32>
    %c0_155 = arith.constant 0 : index
    %c0_156 = arith.constant 0 : index
    %242 = vector.load %arg11[%c0_155, %c0_156] : memref<1x32xf32, #tpu.memory_space<vmem>>, vector<1x32xf32>
    %243 = vector.broadcast %242 : vector<1x32xf32> to vector<16x32xf32>
    %244 = arith.addf %241, %243 : vector<16x32xf32>
    %c0_157 = arith.constant 0 : index
    %c0_158 = arith.constant 0 : index
    %245 = vector.load %arg14[%c0_157, %c0_158] : memref<16x32xf32, #tpu.memory_space<vmem>>, vector<16x32xf32>
    tpu.vector_store %arg14[%c0_157, %c0_158], %244 {strides = array<i32>} : memref<16x32xf32, #tpu.memory_space<vmem>>, vector<16x32xf32>,
    return
  }
  func.func @transform_0(%arg0: i32) -> (i32, i32) {
    %c0_i32 = arith.constant 0 : i32
    %c0_i32_0 = arith.constant 0 : i32
    return %arg0, %c0_i32 : i32, i32
  }
  func.func @transform_1(%arg0: i32) -> (i32, i32) {
    %c0_i32 = arith.constant 0 : i32
    %c0_i32_0 = arith.constant 0 : i32
    return %arg0, %c0_i32 : i32, i32
  }
  func.func @transform_2(%arg0: i32) -> (i32, i32) {
    %c0_i32 = arith.constant 0 : i32
    %c0_i32_0 = arith.constant 0 : i32
    return %arg0, %c0_i32 : i32, i32
  }
  func.func @transform_3(%arg0: i32) -> (i32, i32, i32) {
    %c0_i32 = arith.constant 0 : i32
    %c0_i32_0 = arith.constant 0 : i32
    %c0_i32_1 = arith.constant 0 : i32
    %c0_i32_2 = arith.constant 0 : i32
    return %c0_i32, %c0_i32_0, %c0_i32_1 : i32, i32, i32
  }
  func.func @transform_4(%arg0: i32) -> (i32, i32, i32) {
    %c0_i32 = arith.constant 0 : i32
    %c0_i32_0 = arith.constant 0 : i32
    %c0_i32_1 = arith.constant 0 : i32
    %c0_i32_2 = arith.constant 0 : i32
    return %c0_i32, %c0_i32_0, %c0_i32_1 : i32, i32, i32
  }
  func.func @transform_5(%arg0: i32) -> (i32, i32, i32) {
    %c0_i32 = arith.constant 0 : i32
    %c0_i32_0 = arith.constant 0 : i32
    %c0_i32_1 = arith.constant 0 : i32
    %c0_i32_2 = arith.constant 0 : i32
    return %c0_i32, %c0_i32_0, %c0_i32_1 : i32, i32, i32
  }
  func.func @transform_6(%arg0: i32) -> (i32, i32, i32) {
    %c0_i32 = arith.constant 0 : i32
    %c0_i32_0 = arith.constant 0 : i32
    %c0_i32_1 = arith.constant 0 : i32
    %c0_i32_2 = arith.constant 0 : i32
    return %c0_i32, %c0_i32_0, %c0_i32_1 : i32, i32, i32
  }
  func.func @transform_7(%arg0: i32) -> (i32, i32, i32) {
    %c0_i32 = arith.constant 0 : i32
    %c0_i32_0 = arith.constant 0 : i32
    %c0_i32_1 = arith.constant 0 : i32
    %c0_i32_2 = arith.constant 0 : i32
    return %c0_i32, %c0_i32_0, %c0_i32_1 : i32, i32, i32
  }
  func.func @transform_8(%arg0: i32) -> (i32, i32, i32) {
    %c0_i32 = arith.constant 0 : i32
    %c0_i32_0 = arith.constant 0 : i32
    %c0_i32_1 = arith.constant 0 : i32
    %c0_i32_2 = arith.constant 0 : i32
    return %c0_i32, %c0_i32_0, %c0_i32_1 : i32, i32, i32
  }
  func.func @transform_9(%arg0: i32) -> (i32, i32) {
    %c0_i32 = arith.constant 0 : i32
    %c0_i32_0 = arith.constant 0 : i32
    %c0_i32_1 = arith.constant 0 : i32
    return %c0_i32, %c0_i32_0 : i32, i32
  }
  func.func @transform_10(%arg0: i32) -> (i32, i32) {
    %c0_i32 = arith.constant 0 : i32
    %c0_i32_0 = arith.constant 0 : i32
    %c0_i32_1 = arith.constant 0 : i32
    return %c0_i32, %c0_i32_0 : i32, i32
  }
  func.func @transform_11(%arg0: i32) -> (i32, i32, i32) {
    %c0_i32 = arith.constant 0 : i32
    %c0_i32_0 = arith.constant 0 : i32
    %c0_i32_1 = arith.constant 0 : i32
    %c0_i32_2 = arith.constant 0 : i32
    return %c0_i32, %c0_i32_0, %c0_i32_1 : i32, i32, i32
  }
  func.func @transform_12(%arg0: i32) -> (i32, i32, i32) {
    %c0_i32 = arith.constant 0 : i32
    %c0_i32_0 = arith.constant 0 : i32
    %c0_i32_1 = arith.constant 0 : i32
    %c0_i32_2 = arith.constant 0 : i32
    return %c0_i32, %c0_i32_0, %c0_i32_1 : i32, i32, i32
  }
  func.func @transform_13(%arg0: i32) -> (i32, i32) {
    %c0_i32 = arith.constant 0 : i32
    %c0_i32_0 = arith.constant 0 : i32
    return %arg0, %c0_i32 : i32, i32
  }
}

</mosaic_0001>

<llo_original>
// kernel: tpu_custom_call.1
$region0: #{tpu_custom_call.1}
  #allocation0 [shape = 'u32[]', space=smem, size = 0x4, offset = 0x4, fixed_abs, tag = 'smem constant byte address 0x4 - core index']
  #allocation1 [shape = 'u32[144,128]{1,0:T(1,128)}', space=vmem, size = 0x12000, scoped, tag = 'internal scratch']
  #allocation2 [shape = 'f32[16,64]{1,0:T(8,128)}', space=vmem, size = 0x2000, scoped, tag = 'scratch operand']
  %s0 = inlined_call_operand.vmem [shape: f32[16,32], index: 0, kind: input, shape index: {}]
  %s1 = inlined_call_operand.vmem [shape: f32[16,32], index: 1, kind: input, shape index: {}]
  %s2 = inlined_call_operand.vmem [shape: f32[16,32], index: 2, kind: input, shape index: {}]
  %s3 = inlined_call_operand.vmem [shape: f32[4,32,16], index: 3, kind: input, shape index: {}]
  %s4 = inlined_call_operand.vmem [shape: f32[4,1,16], index: 4, kind: input, shape index: {}]
  %s5 = inlined_call_operand.vmem [shape: f32[4,32,16], index: 5, kind: input, shape index: {}]
  %s6 = inlined_call_operand.vmem [shape: f32[4,1,16], index: 6, kind: input, shape index: {}]
  %s7 = inlined_call_operand.vmem [shape: f32[4,32,16], index: 7, kind: input, shape index: {}]
  %s8 = inlined_call_operand.vmem [shape: f32[4,1,16], index: 8, kind: input, shape index: {}]
  %s9 = inlined_call_operand.vmem [shape: f32[64,32], index: 9, kind: input, shape index: {}]
  %s10 = inlined_call_operand.vmem [shape: f32[1,32], index: 10, kind: input, shape index: {}]
  %s11 = inlined_call_operand.vmem [shape: f32[4,8,16], index: 11, kind: input, shape index: {}]
  %s12 = inlined_call_operand.vmem [shape: f32[4,8,16], index: 12, kind: input, shape index: {}]
  %s13 = inlined_call_operand.hbm [shape: f32[16,32], index: 13, kind: output, shape index: {}]
  %s14 = sld [smem:[#allocation0]]
  $region62: #{tpu_custom_call.1} parent=0
    _
  %s16 = ssub.s32 1, %s14
  %s17 = scalar_select 0, %s16, %s14
  $region1: #{tpu_custom_call.1} parent=0
    #allocation3 [shape = 'u8[8192]{0}', space=vmem, size = 0x2000, scoped, tag = 'output window, operand 0, single buffered']
    #allocation4 [shape = 's32[1]{0}', space=sflag, size = 0x4, scoped, tag = 'scoped memory for tpu_custom_call.1']
    %18 = vsyncpa [#allocation4], 0
    // Predicated region
    $region2: #{tpu_custom_call.1} parent=1 // pred_check
      _
    $region3: #{tpu_custom_call.1} parent=1 // pred_check_branch
      %20 = sbr.rel (0) target = $region5
    $region4: #{tpu_custom_call.1} parent=1 // pred_region
      _
    $region5: #{tpu_custom_call.1} parent=1 // pred_fallthru
      _
    // Predicated region
    $region6: #{tpu_custom_call.1} parent=1 // pred_check
      _
    $region7: #{tpu_custom_call.1} parent=1 // pred_check_branch
      %22 = sbr.rel (0) target = $region9
    $region8: #{tpu_custom_call.1} parent=1 // pred_region
      _
    $region9: #{tpu_custom_call.1} parent=1 // pred_fallthru
      _
    // Predicated region
    $region10: #{tpu_custom_call.1} parent=1 // pred_check
      _
    $region11: #{tpu_custom_call.1} parent=1 // pred_check_branch
      %24 = sbr.rel (0) target = $region13
    $region12: #{tpu_custom_call.1} parent=1 // pred_region
      _
    $region13: #{tpu_custom_call.1} parent=1 // pred_fallthru
      _
    // Predicated region
    $region14: #{tpu_custom_call.1} parent=1 // pred_check
      _
    $region15: #{tpu_custom_call.1} parent=1 // pred_check_branch
      %26 = sbr.rel (0) target = $region17
    $region16: #{tpu_custom_call.1} parent=1 // pred_region
      _
    $region17: #{tpu_custom_call.1} parent=1 // pred_fallthru
      _
    // Predicated region
    $region18: #{tpu_custom_call.1} parent=1 // pred_check
      _
    $region19: #{tpu_custom_call.1} parent=1 // pred_check_branch
      %28 = sbr.rel (0) target = $region21
    $region20: #{tpu_custom_call.1} parent=1 // pred_region
      _
    $region21: #{tpu_custom_call.1} parent=1 // pred_fallthru
      _
    // Predicated region
    $region22: #{tpu_custom_call.1} parent=1 // pred_check
      _
    $region23: #{tpu_custom_call.1} parent=1 // pred_check_branch
      %30 = sbr.rel (0) target = $region25
    $region24: #{tpu_custom_call.1} parent=1 // pred_region
      _
    $region25: #{tpu_custom_call.1} parent=1 // pred_fallthru
      _
    // Predicated region
    $region26: #{tpu_custom_call.1} parent=1 // pred_check
      _
    $region27: #{tpu_custom_call.1} parent=1 // pred_check_branch
      %32 = sbr.rel (0) target = $region29
    $region28: #{tpu_custom_call.1} parent=1 // pred_region
      _
    $region29: #{tpu_custom_call.1} parent=1 // pred_fallthru
      _
    // Predicated region
    $region30: #{tpu_custom_call.1} parent=1 // pred_check
      _
    $region31: #{tpu_custom_call.1} parent=1 // pred_check_branch
      %34 = sbr.rel (0) target = $region33
    $region32: #{tpu_custom_call.1} parent=1 // pred_region
      _
    $region33: #{tpu_custom_call.1} parent=1 // pred_fallthru
      _
    // Predicated region
    $region34: #{tpu_custom_call.1} parent=1 // pred_check
      _
    $region35: #{tpu_custom_call.1} parent=1 // pred_check_branch
      %36 = sbr.rel (0) target = $region37
    $region36: #{tpu_custom_call.1} parent=1 // pred_region
      _
    $region37: #{tpu_custom_call.1} parent=1 // pred_fallthru
      _
    // Predicated region
    $region38: #{tpu_custom_call.1} parent=1 // pred_check
      _
    $region39: #{tpu_custom_call.1} parent=1 // pred_check_branch
      %38 = sbr.rel (0) target = $region41
    $region40: #{tpu_custom_call.1} parent=1 // pred_region
      _
    $region41: #{tpu_custom_call.1} parent=1 // pred_fallthru
      _
    // Predicated region
    $region42: #{tpu_custom_call.1} parent=1 // pred_check
      _
    $region43: #{tpu_custom_call.1} parent=1 // pred_check_branch
      %40 = sbr.rel (0) target = $region45
    $region44: #{tpu_custom_call.1} parent=1 // pred_region
      _
    $region45: #{tpu_custom_call.1} parent=1 // pred_fallthru
      _
    // Predicated region
    $region46: #{tpu_custom_call.1} parent=1 // pred_check
      _
    $region47: #{tpu_custom_call.1} parent=1 // pred_check_branch
      %42 = sbr.rel (0) target = $region49
    $region48: #{tpu_custom_call.1} parent=1 // pred_region
      _
    $region49: #{tpu_custom_call.1} parent=1 // pred_fallthru
      _
    // Predicated region
    $region50: #{tpu_custom_call.1} parent=1 // pred_check
      _
    $region51: #{tpu_custom_call.1} parent=1 // pred_check_branch
      %44 = sbr.rel (0) target = $region53
    $region52: #{tpu_custom_call.1} parent=1 // pred_region
      _
    $region53: #{tpu_custom_call.1} parent=1 // pred_fallthru
      _
    %v45 = vld [vmem:[%s0] sm:$0xff]
    %v46 = vld [vmem:[%s0 + $0x8] sm:$0xff]
    %v47 = vld [vmem:[%s1] sm:$0xff]
    %v48 = vld [vmem:[%s1 + $0x8] sm:$0xff]
    %v49 = vld [vmem:[%s2] sm:$0xff]
    %v50 = vld [vmem:[%s2 + $0x8] sm:$0xff]
    %v51 = vld [vmem:[%s3] sm:$0xff]
    %v52 = vld [vmem:[%s3 + $0x8] sm:$0xff]
    %v53 = vld [vmem:[%s3 + $0x10] sm:$0xff]
    %v54 = vld [vmem:[%s3 + $0x18] sm:$0xff]
    %v55 = vld [vmem:[%s4] sm:$0x1]
    %v57 = vlaneseq
    %v58 = vshrl.u32 %v57, 7
    %v59 = vsub.s32 0, %v58
    %v60 = vrot.slane %v55, %v59
    %vm62 = vcmask 261120
    %v64 = vsel %vm62, %v45, 0
    %v67 = vsel %vm62, %v46, 0
    %69 = vmatprep.subr.mxu0 0.0
    %70 = vmatpush1.msra.mxu0 %v51
    %71 = vmatprep.subr.mxu0 0.0
    %72 = vmatpush1.msra.mxu0 %v52
    %73 = vmatprep.subr.mxu0 0.0
    %74 = vmatpush1.msra.mxu0 %v53
    %75 = vmatprep.subr.mxu0 0.0
    %76 = vmatpush1.msra.mxu0 %v54
    %77 = vmatprep.subr.mxu0 0.0
    %78 = vmatpush1.msra.mxu0 0.0
    %79 = vmatprep.subr.mxu0 0.0
    %80 = vmatpush1.msra.mxu0 0.0
    %81 = vmatprep.subr.mxu0 0.0
    %82 = vmatpush1.msra.mxu0 0.0
    %83 = vmatprep.subr.mxu0 0.0
    %84 = vmatpush1.msra.mxu0 0.0
    %85 = vmatprep.subr.mxu0 0.0
    %86 = vmatpush1.msra.mxu0 0.0
    %87 = vmatprep.subr.mxu0 0.0
    %88 = vmatpush1.msra.mxu0 0.0
    %89 = vmatprep.subr.mxu0 0.0
    %90 = vmatpush1.msra.mxu0 0.0
    %91 = vmatprep.subr.mxu0 0.0
    %92 = vmatpush1.msra.mxu0 0.0
    %93 = vmatprep.subr.mxu0 0.0
    %94 = vmatpush1.msra.mxu0 0.0
    %95 = vmatprep.subr.mxu0 0.0
    %96 = vmatpush1.msra.mxu0 0.0
    %97 = vmatprep.subr.mxu0 0.0
    %98 = vmatpush1.msra.mxu0 0.0
    %99 = vmatprep.subr.mxu0 0.0
    %100 = vmatpush1.msra.mxu0 0.0
    %101 = vmatprep.subr.mxu0 0.0
    %102 = vmatpush1.msra.mxu0 0.0
    %103 = vmatprep.subr.mxu0 0.0
    %104 = vmatpush1.msra.mxu0 0.0
    %105 = vmatprep.subr.mxu0 0.0
    %106 = vmatpush1.msra.mxu0 0.0
    %107 = vmatprep.subr.mxu0 0.0
    %108 = vmatpush1.msra.mxu0 0.0
    %109 = vmatprep.subr.mxu0 0.0
    %110 = vmatpush1.msra.mxu0 0.0
    %111 = vmatprep.subr.mxu0 0.0
    %112 = vmatpush1.msra.mxu0 0.0
    %113 = vmatprep.subr.mxu0 0.0
    %114 = vmatpush1.msra.mxu0 0.0
    %115 = vmatprep.subr.mxu0 0.0
    %116 = vmatpush1.msra.mxu0 0.0
    %117 = vmatprep.subr.mxu0 0.0
    %118 = vmatpush1.msra.mxu0 0.0
    %119 = vmatprep.subr.mxu0 0.0
    %120 = vmatpush1.msra.mxu0 0.0
    %121 = vmatprep.subr.mxu0 0.0
    %122 = vmatpush1.msra.mxu0 0.0
    %123 = vmatprep.subr.mxu0 0.0
    %124 = vmatpush1.msra.mxu0 0.0
    %125 = vmatprep.subr.mxu0 0.0
    %126 = vmatpush1.msra.mxu0 0.0
    %127 = vmatprep.subr.mxu0 0.0
    %128 = vmatpush1.msra.mxu0 0.0
    %129 = vmatprep.subr.mxu0 0.0
    %130 = vmatpush1.msra.mxu0 0.0
    %131 = vmatprep.subr.mxu0 0.0
    %132 = vmatpush1.msra.mxu0 0.0
    %133 = vmatprep.mubr.f32.mxu0 0.0
    %134 = vmatmul.mubr.f32.gmra.mrb[0].mxu0 %v64
    %v135 = vpop.f32.mrb[0].mxu0
    %v136 = vadd.f32 %v60, %v135
    %v137 = vpop.f32.mrb[0].mxu0
    %138 = vmatprep.mubr.f32.mxu0 0.0
    %139 = vmatmul.mubr.f32.gmra.mrb[0].mxu0 %v67
    %v140 = vpop.f32.mrb[0].mxu0
    %v141 = vadd.f32 %v60, %v140
    %v142 = vpop.f32.mrb[0].mxu0
    %143 = vdwg.mxu0
    %v144 = vld [vmem:[%s5] sm:$0xff]
    %v145 = vld [vmem:[%s5 + $0x8] sm:$0xff]
    %v146 = vld [vmem:[%s5 + $0x10] sm:$0xff]
    %v147 = vld [vmem:[%s5 + $0x18] sm:$0xff]
    %v148 = vld [vmem:[%s6] sm:$0x1]
    %v150 = vlaneseq
    %v151 = vshrl.u32 %v150, 7
    %v152 = vsub.s32 0, %v151
    %v153 = vrot.slane %v148, %v152
    %v156 = vsel %vm62, %v47, 0
    %v159 = vsel %vm62, %v48, 0
    %161 = vmatprep.subr.mxu0 0.0
    %162 = vmatpush1.msra.mxu0 %v144
    %163 = vmatprep.subr.mxu0 0.0
    %164 = vmatpush1.msra.mxu0 %v145
    %165 = vmatprep.subr.mxu0 0.0
    %166 = vmatpush1.msra.mxu0 %v146
    %167 = vmatprep.subr.mxu0 0.0
    %168 = vmatpush1.msra.mxu0 %v147
    %169 = vmatprep.subr.mxu0 0.0
    %170 = vmatpush1.msra.mxu0 0.0
    %171 = vmatprep.subr.mxu0 0.0
    %172 = vmatpush1.msra.mxu0 0.0
    %173 = vmatprep.subr.mxu0 0.0
    %174 = vmatpush1.msra.mxu0 0.0
    %175 = vmatprep.subr.mxu0 0.0
    %176 = vmatpush1.msra.mxu0 0.0
    %177 = vmatprep.subr.mxu0 0.0
    %178 = vmatpush1.msra.mxu0 0.0
    %179 = vmatprep.subr.mxu0 0.0
    %180 = vmatpush1.msra.mxu0 0.0
    %181 = vmatprep.subr.mxu0 0.0
    %182 = vmatpush1.msra.mxu0 0.0
    %183 = vmatprep.subr.mxu0 0.0
    %184 = vmatpush1.msra.mxu0 0.0
    %185 = vmatprep.subr.mxu0 0.0
    %186 = vmatpush1.msra.mxu0 0.0
    %187 = vmatprep.subr.mxu0 0.0
    %188 = vmatpush1.msra.mxu0 0.0
    %189 = vmatprep.subr.mxu0 0.0
    %190 = vmatpush1.msra.mxu0 0.0
    %191 = vmatprep.subr.mxu0 0.0
    %192 = vmatpush1.msra.mxu0 0.0
    %193 = vmatprep.subr.mxu0 0.0
    %194 = vmatpush1.msra.mxu0 0.0
    %195 = vmatprep.subr.mxu0 0.0
    %196 = vmatpush1.msra.mxu0 0.0
    %197 = vmatprep.subr.mxu0 0.0
    %198 = vmatpush1.msra.mxu0 0.0
    %199 = vmatprep.subr.mxu0 0.0
    %200 = vmatpush1.msra.mxu0 0.0
    %201 = vmatprep.subr.mxu0 0.0
    %202 = vmatpush1.msra.mxu0 0.0
    %203 = vmatprep.subr.mxu0 0.0
    %204 = vmatpush1.msra.mxu0 0.0
    %205 = vmatprep.subr.mxu0 0.0
    %206 = vmatpush1.msra.mxu0 0.0
    %207 = vmatprep.subr.mxu0 0.0
    %208 = vmatpush1.msra.mxu0 0.0
    %209 = vmatprep.subr.mxu0 0.0
    %210 = vmatpush1.msra.mxu0 0.0
    %211 = vmatprep.subr.mxu0 0.0
    %212 = vmatpush1.msra.mxu0 0.0
    %213 = vmatprep.subr.mxu0 0.0
    %214 = vmatpush1.msra.mxu0 0.0
    %215 = vmatprep.subr.mxu0 0.0
    %216 = vmatpush1.msra.mxu0 0.0
    %217 = vmatprep.subr.mxu0 0.0
    %218 = vmatpush1.msra.mxu0 0.0
    %219 = vmatprep.subr.mxu0 0.0
    %220 = vmatpush1.msra.mxu0 0.0
    %221 = vmatprep.subr.mxu0 0.0
    %222 = vmatpush1.msra.mxu0 0.0
    %223 = vmatprep.subr.mxu0 0.0
    %224 = vmatpush1.msra.mxu0 0.0
    %225 = vmatprep.mubr.f32.mxu0 0.0
    %226 = vmatmul.mubr.f32.gmra.mrb[0].mxu0 %v156
    %v227 = vpop.f32.mrb[0].mxu0
    %v228 = vadd.f32 %v153, %v227
    %v229 = vpop.f32.mrb[0].mxu0
    %230 = vmatprep.mubr.f32.mxu0 0.0
    %231 = vmatmul.mubr.f32.gmra.mrb[0].mxu0 %v159
    %v232 = vpop.f32.mrb[0].mxu0
    %v233 = vadd.f32 %v153, %v232
    %v234 = vpop.f32.mrb[0].mxu0
    %235 = vdwg.mxu0
    %v236 = vld [vmem:[%s7] sm:$0xff]
    %v237 = vld [vmem:[%s7 + $0x8] sm:$0xff]
    %v238 = vld [vmem:[%s7 + $0x10] sm:$0xff]
    %v239 = vld [vmem:[%s7 + $0x18] sm:$0xff]
    %v240 = vld [vmem:[%s8] sm:$0x1]
    %v242 = vlaneseq
    %v243 = vshrl.u32 %v242, 7
    %v244 = vsub.s32 0, %v243
    %v245 = vrot.slane %v240, %v244
    %v248 = vsel %vm62, %v49, 0
    %v251 = vsel %vm62, %v50, 0
    %253 = vmatprep.subr.mxu0 0.0
    %254 = vmatpush1.msra.mxu0 %v236
    %255 = vmatprep.subr.mxu0 0.0
    %256 = vmatpush1.msra.mxu0 %v237
    %257 = vmatprep.subr.mxu0 0.0
    %258 = vmatpush1.msra.mxu0 %v238
    %259 = vmatprep.subr.mxu0 0.0
    %260 = vmatpush1.msra.mxu0 %v239
    %261 = vmatprep.subr.mxu0 0.0
    %262 = vmatpush1.msra.mxu0 0.0
    %263 = vmatprep.subr.mxu0 0.0
    %264 = vmatpush1.msra.mxu0 0.0
    %265 = vmatprep.subr.mxu0 0.0
    %266 = vmatpush1.msra.mxu0 0.0
    %267 = vmatprep.subr.mxu0 0.0
    %268 = vmatpush1.msra.mxu0 0.0
    %269 = vmatprep.subr.mxu0 0.0
    %270 = vmatpush1.msra.mxu0 0.0
    %271 = vmatprep.subr.mxu0 0.0
    %272 = vmatpush1.msra.mxu0 0.0
    %273 = vmatprep.subr.mxu0 0.0
    %274 = vmatpush1.msra.mxu0 0.0
    %275 = vmatprep.subr.mxu0 0.0
    %276 = vmatpush1.msra.mxu0 0.0
    %277 = vmatprep.subr.mxu0 0.0
    %278 = vmatpush1.msra.mxu0 0.0
    %279 = vmatprep.subr.mxu0 0.0
    %280 = vmatpush1.msra.mxu0 0.0
    %281 = vmatprep.subr.mxu0 0.0
    %282 = vmatpush1.msra.mxu0 0.0
    %283 = vmatprep.subr.mxu0 0.0
    %284 = vmatpush1.msra.mxu0 0.0
    %285 = vmatprep.subr.mxu0 0.0
    %286 = vmatpush1.msra.mxu0 0.0
    %287 = vmatprep.subr.mxu0 0.0
    %288 = vmatpush1.msra.mxu0 0.0
    %289 = vmatprep.subr.mxu0 0.0
    %290 = vmatpush1.msra.mxu0 0.0
    %291 = vmatprep.subr.mxu0 0.0
    %292 = vmatpush1.msra.mxu0 0.0
    %293 = vmatprep.subr.mxu0 0.0
    %294 = vmatpush1.msra.mxu0 0.0
    %295 = vmatprep.subr.mxu0 0.0
    %296 = vmatpush1.msra.mxu0 0.0
    %297 = vmatprep.subr.mxu0 0.0
    %298 = vmatpush1.msra.mxu0 0.0
    %299 = vmatprep.subr.mxu0 0.0
    %300 = vmatpush1.msra.mxu0 0.0
    %301 = vmatprep.subr.mxu0 0.0
    %302 = vmatpush1.msra.mxu0 0.0
    %303 = vmatprep.subr.mxu0 0.0
    %304 = vmatpush1.msra.mxu0 0.0
    %305 = vmatprep.subr.mxu0 0.0
    %306 = vmatpush1.msra.mxu0 0.0
    %307 = vmatprep.subr.mxu0 0.0
    %308 = vmatpush1.msra.mxu0 0.0
    %309 = vmatprep.subr.mxu0 0.0
    %310 = vmatpush1.msra.mxu0 0.0
    %311 = vmatprep.subr.mxu0 0.0
    %312 = vmatpush1.msra.mxu0 0.0
    %313 = vmatprep.subr.mxu0 0.0
    %314 = vmatpush1.msra.mxu0 0.0
    %315 = vmatprep.subr.mxu0 0.0
    %316 = vmatpush1.msra.mxu0 0.0
    %317 = vmatprep.mubr.f32.mxu0 0.0
    %318 = vmatmul.mubr.f32.gmra.mrb[0].mxu0 %v248
    %v319 = vpop.f32.mrb[0].mxu0
    %v320 = vadd.f32 %v245, %v319
    %v321 = vpop.f32.mrb[0].mxu0
    %322 = vmatprep.mubr.f32.mxu0 0.0
    %323 = vmatmul.mubr.f32.gmra.mrb[0].mxu0 %v251
    %v324 = vpop.f32.mrb[0].mxu0
    %v325 = vadd.f32 %v245, %v324
    %v326 = vpop.f32.mrb[0].mxu0
    %327 = vdwg.mxu0
    %vm328 = vcmask 130048
    %v330 = vsel %vm328, %v136, 0
    %v333 = vsel %vm328, %v228, 0
    %335 = vmatprep.subr.mxu0 0.0
    %336 = vmatpush1.xpose.msra.mxu0 %v333
    %337 = vmatprep.subr.mxu0 0.0
    %338 = vmatpush1.xpose.msra.mxu0 0.0
    %339 = vmatprep.subr.mxu0 0.0
    %340 = vmatpush1.xpose.msra.mxu0 0.0
    %341 = vmatprep.subr.mxu0 0.0
    %342 = vmatpush1.xpose.msra.mxu0 0.0
    %343 = vmatprep.subr.mxu0 0.0
    %344 = vmatpush1.xpose.msra.mxu0 0.0
    %345 = vmatprep.subr.mxu0 0.0
    %346 = vmatpush1.xpose.msra.mxu0 0.0
    %347 = vmatprep.subr.mxu0 0.0
    %348 = vmatpush1.xpose.msra.mxu0 0.0
    %349 = vmatprep.subr.mxu0 0.0
    %350 = vmatpush1.xpose.msra.mxu0 0.0
    %351 = vmatprep.subr.mxu0 0.0
    %352 = vmatpush1.xpose.msra.mxu0 0.0
    %353 = vmatprep.subr.mxu0 0.0
    %354 = vmatpush1.xpose.msra.mxu0 0.0
    %355 = vmatprep.subr.mxu0 0.0
    %356 = vmatpush1.xpose.msra.mxu0 0.0
    %357 = vmatprep.subr.mxu0 0.0
    %358 = vmatpush1.xpose.msra.mxu0 0.0
    %359 = vmatprep.subr.mxu0 0.0
    %360 = vmatpush1.xpose.msra.mxu0 0.0
    %361 = vmatprep.subr.mxu0 0.0
    %362 = vmatpush1.xpose.msra.mxu0 0.0
    %363 = vmatprep.subr.mxu0 0.0
    %364 = vmatpush1.xpose.msra.mxu0 0.0
    %365 = vmatprep.subr.mxu0 0.0
    %366 = vmatpush1.xpose.msra.mxu0 0.0
    %367 = vmatprep.subr.mxu0 0.0
    %368 = vmatpush1.xpose.msra.mxu0 0.0
    %369 = vmatprep.subr.mxu0 0.0
    %370 = vmatpush1.xpose.msra.mxu0 0.0
    %371 = vmatprep.subr.mxu0 0.0
    %372 = vmatpush1.xpose.msra.mxu0 0.0
    %373 = vmatprep.subr.mxu0 0.0
    %374 = vmatpush1.xpose.msra.mxu0 0.0
    %375 = vmatprep.subr.mxu0 0.0
    %376 = vmatpush1.xpose.msra.mxu0 0.0
    %377 = vmatprep.subr.mxu0 0.0
    %378 = vmatpush1.xpose.msra.mxu0 0.0
    %379 = vmatprep.subr.mxu0 0.0
    %380 = vmatpush1.xpose.msra.mxu0 0.0
    %381 = vmatprep.subr.mxu0 0.0
    %382 = vmatpush1.xpose.msra.mxu0 0.0
    %383 = vmatprep.subr.mxu0 0.0
    %384 = vmatpush1.xpose.msra.mxu0 0.0
    %385 = vmatprep.subr.mxu0 0.0
    %386 = vmatpush1.xpose.msra.mxu0 0.0
    %387 = vmatprep.subr.mxu0 0.0
    %388 = vmatpush1.xpose.msra.mxu0 0.0
    %389 = vmatprep.subr.mxu0 0.0
    %390 = vmatpush1.xpose.msra.mxu0 0.0
    %391 = vmatprep.subr.mxu0 0.0
    %392 = vmatpush1.xpose.msra.mxu0 0.0
    %393 = vmatprep.subr.mxu0 0.0
    %394 = vmatpush1.xpose.msra.mxu0 0.0
    %395 = vmatprep.subr.mxu0 0.0
    %396 = vmatpush1.xpose.msra.mxu0 0.0
    %397 = vmatprep.subr.mxu0 0.0
    %398 = vmatpush1.xpose.msra.mxu0 0.0
    %399 = vmatprep.mubr.f32.mxu0 0.0
    %400 = vmatmul.mubr.f32.gmra.mrb[0].mxu0 %v330
    %v401 = vpop.f32.mrb[0].mxu0
    %v402 = vadd.f32 0.0, %v401
    %v403 = vpop.f32.mrb[0].mxu0
    %404 = vdwg.mxu0
    %v406 = vsel %vm328, %v141, 0
    %v409 = vsel %vm328, %v233, 0
    %411 = vmatprep.subr.mxu0 0.0
    %412 = vmatpush1.xpose.msra.mxu0 %v409
    %413 = vmatprep.subr.mxu0 0.0
    %414 = vmatpush1.xpose.msra.mxu0 0.0
    %415 = vmatprep.subr.mxu0 0.0
    %416 = vmatpush1.xpose.msra.mxu0 0.0
    %417 = vmatprep.subr.mxu0 0.0
    %418 = vmatpush1.xpose.msra.mxu0 0.0
    %419 = vmatprep.subr.mxu0 0.0
    %420 = vmatpush1.xpose.msra.mxu0 0.0
    %421 = vmatprep.subr.mxu0 0.0
    %422 = vmatpush1.xpose.msra.mxu0 0.0
    %423 = vmatprep.subr.mxu0 0.0
    %424 = vmatpush1.xpose.msra.mxu0 0.0
    %425 = vmatprep.subr.mxu0 0.0
    %426 = vmatpush1.xpose.msra.mxu0 0.0
    %427 = vmatprep.subr.mxu0 0.0
    %428 = vmatpush1.xpose.msra.mxu0 0.0
    %429 = vmatprep.subr.mxu0 0.0
    %430 = vmatpush1.xpose.msra.mxu0 0.0
    %431 = vmatprep.subr.mxu0 0.0
    %432 = vmatpush1.xpose.msra.mxu0 0.0
    %433 = vmatprep.subr.mxu0 0.0
    %434 = vmatpush1.xpose.msra.mxu0 0.0
    %435 = vmatprep.subr.mxu0 0.0
    %436 = vmatpush1.xpose.msra.mxu0 0.0
    %437 = vmatprep.subr.mxu0 0.0
    %438 = vmatpush1.xpose.msra.mxu0 0.0
    %439 = vmatprep.subr.mxu0 0.0
    %440 = vmatpush1.xpose.msra.mxu0 0.0
    %441 = vmatprep.subr.mxu0 0.0
    %442 = vmatpush1.xpose.msra.mxu0 0.0
    %443 = vmatprep.subr.mxu0 0.0
    %444 = vmatpush1.xpose.msra.mxu0 0.0
    %445 = vmatprep.subr.mxu0 0.0
    %446 = vmatpush1.xpose.msra.mxu0 0.0
    %447 = vmatprep.subr.mxu0 0.0
    %448 = vmatpush1.xpose.msra.mxu0 0.0
    %449 = vmatprep.subr.mxu0 0.0
    %450 = vmatpush1.xpose.msra.mxu0 0.0
    %451 = vmatprep.subr.mxu0 0.0
    %452 = vmatpush1.xpose.msra.mxu0 0.0
    %453 = vmatprep.subr.mxu0 0.0
    %454 = vmatpush1.xpose.msra.mxu0 0.0
    %455 = vmatprep.subr.mxu0 0.0
    %456 = vmatpush1.xpose.msra.mxu0 0.0
    %457 = vmatprep.subr.mxu0 0.0
    %458 = vmatpush1.xpose.msra.mxu0 0.0
    %459 = vmatprep.subr.mxu0 0.0
    %460 = vmatpush1.xpose.msra.mxu0 0.0
    %461 = vmatprep.subr.mxu0 0.0
    %462 = vmatpush1.xpose.msra.mxu0 0.0
    %463 = vmatprep.subr.mxu0 0.0
    %464 = vmatpush1.xpose.msra.mxu0 0.0
    %465 = vmatprep.subr.mxu0 0.0
    %466 = vmatpush1.xpose.msra.mxu0 0.0
    %467 = vmatprep.subr.mxu0 0.0
    %468 = vmatpush1.xpose.msra.mxu0 0.0
    %469 = vmatprep.subr.mxu0 0.0
    %470 = vmatpush1.xpose.msra.mxu0 0.0
    %471 = vmatprep.subr.mxu0 0.0
    %472 = vmatpush1.xpose.msra.mxu0 0.0
    %473 = vmatprep.subr.mxu0 0.0
    %474 = vmatpush1.xpose.msra.mxu0 0.0
    %475 = vmatprep.mubr.f32.mxu0 0.0
    %476 = vmatmul.mubr.f32.gmra.mrb[0].mxu0 %v406
    %v477 = vpop.f32.mrb[0].mxu0
    %v478 = vadd.f32 0.0, %v477
    %v479 = vpop.f32.mrb[0].mxu0
    %480 = vdwg.mxu0
    %v481 = vmul.f32 %v402, 0.25
    %v482 = vmul.f32 %v478, 0.25
    %v483 = vld [vmem:[%s11] sm:$0xff]
    %v485 = vsel %vm328, %v483, 0
    %487 = vmatprep.subr.mxu0 0.0
    %488 = vmatpush1.xpose.msra.mxu0 %v485
    %489 = vmatprep.subr.mxu0 0.0
    %490 = vmatpush1.xpose.msra.mxu0 0.0
    %491 = vmatprep.subr.mxu0 0.0
    %492 = vmatpush1.xpose.msra.mxu0 0.0
    %493 = vmatprep.subr.mxu0 0.0
    %494 = vmatpush1.xpose.msra.mxu0 0.0
    %495 = vmatprep.subr.mxu0 0.0
    %496 = vmatpush1.xpose.msra.mxu0 0.0
    %497 = vmatprep.subr.mxu0 0.0
    %498 = vmatpush1.xpose.msra.mxu0 0.0
    %499 = vmatprep.subr.mxu0 0.0
    %500 = vmatpush1.xpose.msra.mxu0 0.0
    %501 = vmatprep.subr.mxu0 0.0
    %502 = vmatpush1.xpose.msra.mxu0 0.0
    %503 = vmatprep.subr.mxu0 0.0
    %504 = vmatpush1.xpose.msra.mxu0 0.0
    %505 = vmatprep.subr.mxu0 0.0
    %506 = vmatpush1.xpose.msra.mxu0 0.0
    %507 = vmatprep.subr.mxu0 0.0
    %508 = vmatpush1.xpose.msra.mxu0 0.0
    %509 = vmatprep.subr.mxu0 0.0
    %510 = vmatpush1.xpose.msra.mxu0 0.0
    %511 = vmatprep.subr.mxu0 0.0
    %512 = vmatpush1.xpose.msra.mxu0 0.0
    %513 = vmatprep.subr.mxu0 0.0
    %514 = vmatpush1.xpose.msra.mxu0 0.0
    %515 = vmatprep.subr.mxu0 0.0
    %516 = vmatpush1.xpose.msra.mxu0 0.0
    %517 = vmatprep.subr.mxu0 0.0
    %518 = vmatpush1.xpose.msra.mxu0 0.0
    %519 = vmatprep.subr.mxu0 0.0
    %520 = vmatpush1.xpose.msra.mxu0 0.0
    %521 = vmatprep.subr.mxu0 0.0
    %522 = vmatpush1.xpose.msra.mxu0 0.0
    %523 = vmatprep.subr.mxu0 0.0
    %524 = vmatpush1.xpose.msra.mxu0 0.0
    %525 = vmatprep.subr.mxu0 0.0
    %526 = vmatpush1.xpose.msra.mxu0 0.0
    %527 = vmatprep.subr.mxu0 0.0
    %528 = vmatpush1.xpose.msra.mxu0 0.0
    %529 = vmatprep.subr.mxu0 0.0
    %530 = vmatpush1.xpose.msra.mxu0 0.0
    %531 = vmatprep.subr.mxu0 0.0
    %532 = vmatpush1.xpose.msra.mxu0 0.0
    %533 = vmatprep.subr.mxu0 0.0
    %534 = vmatpush1.xpose.msra.mxu0 0.0
    %535 = vmatprep.subr.mxu0 0.0
    %536 = vmatpush1.xpose.msra.mxu0 0.0
    %537 = vmatprep.subr.mxu0 0.0
    %538 = vmatpush1.xpose.msra.mxu0 0.0
    %539 = vmatprep.subr.mxu0 0.0
    %540 = vmatpush1.xpose.msra.mxu0 0.0
    %541 = vmatprep.subr.mxu0 0.0
    %542 = vmatpush1.xpose.msra.mxu0 0.0
    %543 = vmatprep.subr.mxu0 0.0
    %544 = vmatpush1.xpose.msra.mxu0 0.0
    %545 = vmatprep.subr.mxu0 0.0
    %546 = vmatpush1.xpose.msra.mxu0 0.0
    %547 = vmatprep.subr.mxu0 0.0
    %548 = vmatpush1.xpose.msra.mxu0 0.0
    %549 = vmatprep.subr.mxu0 0.0
    %550 = vmatpush1.xpose.msra.mxu0 0.0
    %551 = vmatprep.mubr.f32.mxu0 0.0
    %552 = vmatmul.mubr.f32.gmra.mrb[0].mxu0 %v330
    %v553 = vpop.f32.mrb[0].mxu0
    %v554 = vadd.f32 0.0, %v553
    %v555 = vpop.f32.mrb[0].mxu0
    %556 = vmatprep.mubr.f32.mxu0 0.0
    %557 = vmatmul.mubr.f32.gmra.mrb[0].mxu0 %v406
    %v558 = vpop.f32.mrb[0].mxu0
    %v559 = vadd.f32 0.0, %v558
    %v560 = vpop.f32.mrb[0].mxu0
    %561 = vdwg.mxu0
    %vm562 = vcmask 64512
    %v563 = vsel %vm562, %v481, -inf
    %564 = vmax.xlane.f32.xlu0 %v563
    %v565 = vpop.xlane.xlu0 %564
    %v566 = vsel %vm562, %v482, -inf
    %567 = vmax.xlane.f32.xlu0 %v566
    %v568 = vpop.xlane.xlu0 %567
    %v569 = vsel %vm562, %v554, -inf
    %570 = vmax.xlane.f32.xlu0 %v569
    %v571 = vpop.xlane.xlu0 %570
    %v572 = vsel %vm562, %v559, -inf
    %573 = vmax.xlane.f32.xlu0 %v572
    %v574 = vpop.xlane.xlu0 %573
    %v575 = vmax.f32 %v565, %v571
    %v576 = vmax.f32 %v568, %v574
    %v577 = vsub.f32 %v481, %v575
    %v578 = vsub.f32 %v482, %v576
    %v579 = vmul.f32 %v577, 1.442695
    %v580 = vpow.pop %v579
    %v581 = vmul.f32 %v578, 1.442695
    %v582 = vpow.pop %v581
    %v583 = vsub.f32 %v554, %v575
    %v584 = vsub.f32 %v559, %v576
    %v585 = vmul.f32 %v583, 1.442695
    %v586 = vpow.pop %v585
    %v587 = vmul.f32 %v584, 1.442695
    %v588 = vpow.pop %v587
    %v589 = vsel %vm562, %v580, 0.0
    %590 = vadd.xlane.f32.xlu0 %v589
    %v591 = vpop.xlane.xlu0 %590
    %v592 = vsel %vm562, %v582, 0.0
    %593 = vadd.xlane.f32.xlu0 %v592
    %v594 = vpop.xlane.xlu0 %593
    %v595 = vsel %vm562, %v586, 0.0
    %596 = vadd.xlane.f32.xlu0 %v595
    %v597 = vpop.xlane.xlu0 %596
    %v598 = vsel %vm562, %v588, 0.0
    %599 = vadd.xlane.f32.xlu0 %v598
    %v600 = vpop.xlane.xlu0 %599
    %v601 = vadd.f32 %v591, %v597
    %v602 = vadd.f32 %v594, %v600
    %v604 = vsel %vm562, %v580, 0
    %606 = vmatprep.subr.mxu0 0.0
    %607 = vmatpush1.msra.mxu0 %v320
    %608 = vmatprep.subr.mxu0 0.0
    %609 = vmatpush1.msra.mxu0 0.0
    %610 = vmatprep.subr.mxu0 0.0
    %611 = vmatpush1.msra.mxu0 0.0
    %612 = vmatprep.subr.mxu0 0.0
    %613 = vmatpush1.msra.mxu0 0.0
    %614 = vmatprep.subr.mxu0 0.0
    %615 = vmatpush1.msra.mxu0 0.0
    %616 = vmatprep.subr.mxu0 0.0
    %617 = vmatpush1.msra.mxu0 0.0
    %618 = vmatprep.subr.mxu0 0.0
    %619 = vmatpush1.msra.mxu0 0.0
    %620 = vmatprep.subr.mxu0 0.0
    %621 = vmatpush1.msra.mxu0 0.0
    %622 = vmatprep.subr.mxu0 0.0
    %623 = vmatpush1.msra.mxu0 0.0
    %624 = vmatprep.subr.mxu0 0.0
    %625 = vmatpush1.msra.mxu0 0.0
    %626 = vmatprep.subr.mxu0 0.0
    %627 = vmatpush1.msra.mxu0 0.0
    %628 = vmatprep.subr.mxu0 0.0
    %629 = vmatpush1.msra.mxu0 0.0
    %630 = vmatprep.subr.mxu0 0.0
    %631 = vmatpush1.msra.mxu0 0.0
    %632 = vmatprep.subr.mxu0 0.0
    %633 = vmatpush1.msra.mxu0 0.0
    %634 = vmatprep.subr.mxu0 0.0
    %635 = vmatpush1.msra.mxu0 0.0
    %636 = vmatprep.subr.mxu0 0.0
    %637 = vmatpush1.msra.mxu0 0.0
    %638 = vmatprep.subr.mxu0 0.0
    %639 = vmatpush1.msra.mxu0 0.0
    %640 = vmatprep.subr.mxu0 0.0
    %641 = vmatpush1.msra.mxu0 0.0
    %642 = vmatprep.subr.mxu0 0.0
    %643 = vmatpush1.msra.mxu0 0.0
    %644 = vmatprep.subr.mxu0 0.0
    %645 = vmatpush1.msra.mxu0 0.0
    %646 = vmatprep.subr.mxu0 0.0
    %647 = vmatpush1.msra.mxu0 0.0
    %648 = vmatprep.subr.mxu0 0.0
    %649 = vmatpush1.msra.mxu0 0.0
    %650 = vmatprep.subr.mxu0 0.0
    %651 = vmatpush1.msra.mxu0 0.0
    %652 = vmatprep.subr.mxu0 0.0
    %653 = vmatpush1.msra.mxu0 0.0
    %654 = vmatprep.subr.mxu0 0.0
    %655 = vmatpush1.msra.mxu0 0.0
    %656 = vmatprep.subr.mxu0 0.0
    %657 = vmatpush1.msra.mxu0 0.0
    %658 = vmatprep.subr.mxu0 0.0
    %659 = vmatpush1.msra.mxu0 0.0
    %660 = vmatprep.subr.mxu0 0.0
    %661 = vmatpush1.msra.mxu0 0.0
    %662 = vmatprep.subr.mxu0 0.0
    %663 = vmatpush1.msra.mxu0 0.0
    %664 = vmatprep.subr.mxu0 0.0
    %665 = vmatpush1.msra.mxu0 0.0
    %666 = vmatprep.subr.mxu0 0.0
    %667 = vmatpush1.msra.mxu0 0.0
    %668 = vmatprep.subr.mxu0 0.0
    %669 = vmatpush1.msra.mxu0 0.0
    %670 = vmatprep.mubr.f32.mxu0 0.0
    %671 = vmatmul.mubr.f32.gmra.mrb[0].mxu0 %v604
    %v672 = vpop.f32.mrb[0].mxu0
    %v673 = vadd.f32 0.0, %v672
    %v674 = vpop.f32.mrb[0].mxu0
    %675 = vdwg.mxu0
    %v677 = vsel %vm562, %v582, 0
    %679 = vmatprep.subr.mxu0 0.0
    %680 = vmatpush1.msra.mxu0 %v325
    %681 = vmatprep.subr.mxu0 0.0
    %682 = vmatpush1.msra.mxu0 0.0
    %683 = vmatprep.subr.mxu0 0.0
    %684 = vmatpush1.msra.mxu0 0.0
    %685 = vmatprep.subr.mxu0 0.0
    %686 = vmatpush1.msra.mxu0 0.0
    %687 = vmatprep.subr.mxu0 0.0
    %688 = vmatpush1.msra.mxu0 0.0
    %689 = vmatprep.subr.mxu0 0.0
    %690 = vmatpush1.msra.mxu0 0.0
    %691 = vmatprep.subr.mxu0 0.0
    %692 = vmatpush1.msra.mxu0 0.0
    %693 = vmatprep.subr.mxu0 0.0
    %694 = vmatpush1.msra.mxu0 0.0
    %695 = vmatprep.subr.mxu0 0.0
    %696 = vmatpush1.msra.mxu0 0.0
    %697 = vmatprep.subr.mxu0 0.0
    %698 = vmatpush1.msra.mxu0 0.0
    %699 = vmatprep.subr.mxu0 0.0
    %700 = vmatpush1.msra.mxu0 0.0
    %701 = vmatprep.subr.mxu0 0.0
    %702 = vmatpush1.msra.mxu0 0.0
    %703 = vmatprep.subr.mxu0 0.0
    %704 = vmatpush1.msra.mxu0 0.0
    %705 = vmatprep.subr.mxu0 0.0
    %706 = vmatpush1.msra.mxu0 0.0
    %707 = vmatprep.subr.mxu0 0.0
    %708 = vmatpush1.msra.mxu0 0.0
    %709 = vmatprep.subr.mxu0 0.0
    %710 = vmatpush1.msra.mxu0 0.0
    %711 = vmatprep.subr.mxu0 0.0
    %712 = vmatpush1.msra.mxu0 0.0
    %713 = vmatprep.subr.mxu0 0.0
    %714 = vmatpush1.msra.mxu0 0.0
    %715 = vmatprep.subr.mxu0 0.0
    %716 = vmatpush1.msra.mxu0 0.0
    %717 = vmatprep.subr.mxu0 0.0
    %718 = vmatpush1.msra.mxu0 0.0
    %719 = vmatprep.subr.mxu0 0.0
    %720 = vmatpush1.msra.mxu0 0.0
    %721 = vmatprep.subr.mxu0 0.0
    %722 = vmatpush1.msra.mxu0 0.0
    %723 = vmatprep.subr.mxu0 0.0
    %724 = vmatpush1.msra.mxu0 0.0
    %725 = vmatprep.subr.mxu0 0.0
    %726 = vmatpush1.msra.mxu0 0.0
    %727 = vmatprep.subr.mxu0 0.0
    %728 = vmatpush1.msra.mxu0 0.0
    %729 = vmatprep.subr.mxu0 0.0
    %730 = vmatpush1.msra.mxu0 0.0
    %731 = vmatprep.subr.mxu0 0.0
    %732 = vmatpush1.msra.mxu0 0.0
    %733 = vmatprep.subr.mxu0 0.0
    %734 = vmatpush1.msra.mxu0 0.0
    %735 = vmatprep.subr.mxu0 0.0
    %736 = vmatpush1.msra.mxu0 0.0
    %737 = vmatprep.subr.mxu0 0.0
    %738 = vmatpush1.msra.mxu0 0.0
    %739 = vmatprep.subr.mxu0 0.0
    %740 = vmatpush1.msra.mxu0 0.0
    %741 = vmatprep.subr.mxu0 0.0
    %742 = vmatpush1.msra.mxu0 0.0
    %743 = vmatprep.mubr.f32.mxu0 0.0
    %744 = vmatmul.mubr.f32.gmra.mrb[0].mxu0 %v677
    %v745 = vpop.f32.mrb[0].mxu0
    %v746 = vadd.f32 0.0, %v745
    %v747 = vpop.f32.mrb[0].mxu0
    %748 = vdwg.mxu0
    %v749 = vld [vmem:[%s12] sm:$0xff]
    %v751 = vsel %vm562, %v586, 0
    %v754 = vsel %vm562, %v588, 0
    %756 = vmatprep.subr.mxu0 0.0
    %757 = vmatpush1.msra.mxu0 %v749
    %758 = vmatprep.subr.mxu0 0.0
    %759 = vmatpush1.msra.mxu0 0.0
    %760 = vmatprep.subr.mxu0 0.0
    %761 = vmatpush1.msra.mxu0 0.0
    %762 = vmatprep.subr.mxu0 0.0
    %763 = vmatpush1.msra.mxu0 0.0
    %764 = vmatprep.subr.mxu0 0.0
    %765 = vmatpush1.msra.mxu0 0.0
    %766 = vmatprep.subr.mxu0 0.0
    %767 = vmatpush1.msra.mxu0 0.0
    %768 = vmatprep.subr.mxu0 0.0
    %769 = vmatpush1.msra.mxu0 0.0
    %770 = vmatprep.subr.mxu0 0.0
    %771 = vmatpush1.msra.mxu0 0.0
    %772 = vmatprep.subr.mxu0 0.0
    %773 = vmatpush1.msra.mxu0 0.0
    %774 = vmatprep.subr.mxu0 0.0
    %775 = vmatpush1.msra.mxu0 0.0
    %776 = vmatprep.subr.mxu0 0.0
    %777 = vmatpush1.msra.mxu0 0.0
    %778 = vmatprep.subr.mxu0 0.0
    %779 = vmatpush1.msra.mxu0 0.0
    %780 = vmatprep.subr.mxu0 0.0
    %781 = vmatpush1.msra.mxu0 0.0
    %782 = vmatprep.subr.mxu0 0.0
    %783 = vmatpush1.msra.mxu0 0.0
    %784 = vmatprep.subr.mxu0 0.0
    %785 = vmatpush1.msra.mxu0 0.0
    %786 = vmatprep.subr.mxu0 0.0
    %787 = vmatpush1.msra.mxu0 0.0
    %788 = vmatprep.subr.mxu0 0.0
    %789 = vmatpush1.msra.mxu0 0.0
    %790 = vmatprep.subr.mxu0 0.0
    %791 = vmatpush1.msra.mxu0 0.0
    %792 = vmatprep.subr.mxu0 0.0
    %793 = vmatpush1.msra.mxu0 0.0
    %794 = vmatprep.subr.mxu0 0.0
    %795 = vmatpush1.msra.mxu0 0.0
    %796 = vmatprep.subr.mxu0 0.0
    %797 = vmatpush1.msra.mxu0 0.0
    %798 = vmatprep.subr.mxu0 0.0
    %799 = vmatpush1.msra.mxu0 0.0
    %800 = vmatprep.subr.mxu0 0.0
    %801 = vmatpush1.msra.mxu0 0.0
    %802 = vmatprep.subr.mxu0 0.0
    %803 = vmatpush1.msra.mxu0 0.0
    %804 = vmatprep.subr.mxu0 0.0
    %805 = vmatpush1.msra.mxu0 0.0
    %806 = vmatprep.subr.mxu0 0.0
    %807 = vmatpush1.msra.mxu0 0.0
    %808 = vmatprep.subr.mxu0 0.0
    %809 = vmatpush1.msra.mxu0 0.0
    %810 = vmatprep.subr.mxu0 0.0
    %811 = vmatpush1.msra.mxu0 0.0
    %812 = vmatprep.subr.mxu0 0.0
    %813 = vmatpush1.msra.mxu0 0.0
    %814 = vmatprep.subr.mxu0 0.0
    %815 = vmatpush1.msra.mxu0 0.0
    %816 = vmatprep.subr.mxu0 0.0
    %817 = vmatpush1.msra.mxu0 0.0
    %818 = vmatprep.subr.mxu0 0.0
    %819 = vmatpush1.msra.mxu0 0.0
    %820 = vmatprep.mubr.f32.mxu0 0.0
    %821 = vmatmul.mubr.f32.gmra.mrb[0].mxu0 %v751
    %v822 = vpop.f32.mrb[0].mxu0
    %v823 = vadd.f32 0.0, %v822
    %v824 = vpop.f32.mrb[0].mxu0
    %825 = vmatprep.mubr.f32.mxu0 0.0
    %826 = vmatmul.mubr.f32.gmra.mrb[0].mxu0 %v754
    %v827 = vpop.f32.mrb[0].mxu0
    %v828 = vadd.f32 0.0, %v827
    %v829 = vpop.f32.mrb[0].mxu0
    %830 = vdwg.mxu0
    %v831 = vadd.f32 %v673, %v823
    %v832 = vadd.f32 %v746, %v828
    %v833 = vrcp.pop %v601
    %v834 = vrcp.pop %v602
    %v835 = vmul.f32 %v831, %v833
    %v836 = vmul.f32 %v832, %v834
    %837 = vst.msk [vmem:[#allocation2] sm:$0xff] %vm328, %v835
    %838 = vst.msk [vmem:[#allocation2 + $0x8] sm:$0xff] %vm328, %v836
    %s839 = scalar_lea.vmem %s3, 32
    %v840 = vld [vmem:[%s839] sm:$0xff]
    %v841 = vld [vmem:[%s839 + $0x8] sm:$0xff]
    %v842 = vld [vmem:[%s839 + $0x10] sm:$0xff]
    %v843 = vld [vmem:[%s839 + $0x18] sm:$0xff]
    %s844 = scalar_lea.vmem %s4, 1
    %v845 = vld [vmem:[%s844] sm:$0x1]
    %v847 = vlaneseq
    %v848 = vshrl.u32 %v847, 7
    %v849 = vsub.s32 0, %v848
    %v850 = vrot.slane %v845, %v849
    %852 = vmatprep.subr.mxu0 0.0
    %853 = vmatpush1.msra.mxu0 %v840
    %854 = vmatprep.subr.mxu0 0.0
    %855 = vmatpush1.msra.mxu0 %v841
    %856 = vmatprep.subr.mxu0 0.0
    %857 = vmatpush1.msra.mxu0 %v842
    %858 = vmatprep.subr.mxu0 0.0
    %859 = vmatpush1.msra.mxu0 %v843
    %860 = vmatprep.subr.mxu0 0.0
    %861 = vmatpush1.msra.mxu0 0.0
    %862 = vmatprep.subr.mxu0 0.0
    %863 = vmatpush1.msra.mxu0 0.0
    %864 = vmatprep.subr.mxu0 0.0
    %865 = vmatpush1.msra.mxu0 0.0
    %866 = vmatprep.subr.mxu0 0.0
    %867 = vmatpush1.msra.mxu0 0.0
    %868 = vmatprep.subr.mxu0 0.0
    %869 = vmatpush1.msra.mxu0 0.0
    %870 = vmatprep.subr.mxu0 0.0
    %871 = vmatpush1.msra.mxu0 0.0
    %872 = vmatprep.subr.mxu0 0.0
    %873 = vmatpush1.msra.mxu0 0.0
    %874 = vmatprep.subr.mxu0 0.0
    %875 = vmatpush1.msra.mxu0 0.0
    %876 = vmatprep.subr.mxu0 0.0
    %877 = vmatpush1.msra.mxu0 0.0
    %878 = vmatprep.subr.mxu0 0.0
    %879 = vmatpush1.msra.mxu0 0.0
    %880 = vmatprep.subr.mxu0 0.0
    %881 = vmatpush1.msra.mxu0 0.0
    %882 = vmatprep.subr.mxu0 0.0
    %883 = vmatpush1.msra.mxu0 0.0
    %884 = vmatprep.subr.mxu0 0.0
    %885 = vmatpush1.msra.mxu0 0.0
    %886 = vmatprep.subr.mxu0 0.0
    %887 = vmatpush1.msra.mxu0 0.0
    %888 = vmatprep.subr.mxu0 0.0
    %889 = vmatpush1.msra.mxu0 0.0
    %890 = vmatprep.subr.mxu0 0.0
    %891 = vmatpush1.msra.mxu0 0.0
    %892 = vmatprep.subr.mxu0 0.0
    %893 = vmatpush1.msra.mxu0 0.0
    %894 = vmatprep.subr.mxu0 0.0
    %895 = vmatpush1.msra.mxu0 0.0
    %896 = vmatprep.subr.mxu0 0.0
    %897 = vmatpush1.msra.mxu0 0.0
    %898 = vmatprep.subr.mxu0 0.0
    %899 = vmatpush1.msra.mxu0 0.0
    %900 = vmatprep.subr.mxu0 0.0
    %901 = vmatpush1.msra.mxu0 0.0
    %902 = vmatprep.subr.mxu0 0.0
    %903 = vmatpush1.msra.mxu0 0.0
    %904 = vmatprep.subr.mxu0 0.0
    %905 = vmatpush1.msra.mxu0 0.0
    %906 = vmatprep.subr.mxu0 0.0
    %907 = vmatpush1.msra.mxu0 0.0
    %908 = vmatprep.subr.mxu0 0.0
    %909 = vmatpush1.msra.mxu0 0.0
    %910 = vmatprep.subr.mxu0 0.0
    %911 = vmatpush1.msra.mxu0 0.0
    %912 = vmatprep.subr.mxu0 0.0
    %913 = vmatpush1.msra.mxu0 0.0
    %914 = vmatprep.subr.mxu0 0.0
    %915 = vmatpush1.msra.mxu0 0.0
    %916 = vmatprep.mubr.f32.mxu0 0.0
    %917 = vmatmul.mubr.f32.gmra.mrb[0].mxu0 %v64
    %v918 = vpop.f32.mrb[0].mxu0
    %v919 = vadd.f32 %v850, %v918
    %v920 = vpop.f32.mrb[0].mxu0
    %921 = vmatprep.mubr.f32.mxu0 0.0
    %922 = vmatmul.mubr.f32.gmra.mrb[0].mxu0 %v67
    %v923 = vpop.f32.mrb[0].mxu0
    %v924 = vadd.f32 %v850, %v923
    %v925 = vpop.f32.mrb[0].mxu0
    %926 = vdwg.mxu0
    %s927 = scalar_lea.vmem %s5, 32
    %v928 = vld [vmem:[%s927] sm:$0xff]
    %v929 = vld [vmem:[%s927 + $0x8] sm:$0xff]
    %v930 = vld [vmem:[%s927 + $0x10] sm:$0xff]
    %v931 = vld [vmem:[%s927 + $0x18] sm:$0xff]
    %s932 = scalar_lea.vmem %s6, 1
    %v933 = vld [vmem:[%s932] sm:$0x1]
    %v935 = vlaneseq
    %v936 = vshrl.u32 %v935, 7
    %v937 = vsub.s32 0, %v936
    %v938 = vrot.slane %v933, %v937
    %940 = vmatprep.subr.mxu0 0.0
    %941 = vmatpush1.msra.mxu0 %v928
    %942 = vmatprep.subr.mxu0 0.0
    %943 = vmatpush1.msra.mxu0 %v929
    %944 = vmatprep.subr.mxu0 0.0
    %945 = vmatpush1.msra.mxu0 %v930
    %946 = vmatprep.subr.mxu0 0.0
    %947 = vmatpush1.msra.mxu0 %v931
    %948 = vmatprep.subr.mxu0 0.0
    %949 = vmatpush1.msra.mxu0 0.0
    %950 = vmatprep.subr.mxu0 0.0
    %951 = vmatpush1.msra.mxu0 0.0
    %952 = vmatprep.subr.mxu0 0.0
    %953 = vmatpush1.msra.mxu0 0.0
    %954 = vmatprep.subr.mxu0 0.0
    %955 = vmatpush1.msra.mxu0 0.0
    %956 = vmatprep.subr.mxu0 0.0
    %957 = vmatpush1.msra.mxu0 0.0
    %958 = vmatprep.subr.mxu0 0.0
    %959 = vmatpush1.msra.mxu0 0.0
    %960 = vmatprep.subr.mxu0 0.0
    %961 = vmatpush1.msra.mxu0 0.0
    %962 = vmatprep.subr.mxu0 0.0
    %963 = vmatpush1.msra.mxu0 0.0
    %964 = vmatprep.subr.mxu0 0.0
    %965 = vmatpush1.msra.mxu0 0.0
    %966 = vmatprep.subr.mxu0 0.0
    %967 = vmatpush1.msra.mxu0 0.0
    %968 = vmatprep.subr.mxu0 0.0
    %969 = vmatpush1.msra.mxu0 0.0
    %970 = vmatprep.subr.mxu0 0.0
    %971 = vmatpush1.msra.mxu0 0.0
    %972 = vmatprep.subr.mxu0 0.0
    %973 = vmatpush1.msra.mxu0 0.0
    %974 = vmatprep.subr.mxu0 0.0
    %975 = vmatpush1.msra.mxu0 0.0
    %976 = vmatprep.subr.mxu0 0.0
    %977 = vmatpush1.msra.mxu0 0.0
    %978 = vmatprep.subr.mxu0 0.0
    %979 = vmatpush1.msra.mxu0 0.0
    %980 = vmatprep.subr.mxu0 0.0
    %981 = vmatpush1.msra.mxu0 0.0
    %982 = vmatprep.subr.mxu0 0.0
    %983 = vmatpush1.msra.mxu0 0.0
    %984 = vmatprep.subr.mxu0 0.0
    %985 = vmatpush1.msra.mxu0 0.0
    %986 = vmatprep.subr.mxu0 0.0
    %987 = vmatpush1.msra.mxu0 0.0
    %988 = vmatprep.subr.mxu0 0.0
    %989 = vmatpush1.msra.mxu0 0.0
    %990 = vmatprep.subr.mxu0 0.0
    %991 = vmatpush1.msra.mxu0 0.0
    %992 = vmatprep.subr.mxu0 0.0
    %993 = vmatpush1.msra.mxu0 0.0
    %994 = vmatprep.subr.mxu0 0.0
    %995 = vmatpush1.msra.mxu0 0.0
    %996 = vmatprep.subr.mxu0 0.0
    %997 = vmatpush1.msra.mxu0 0.0
    %998 = vmatprep.subr.mxu0 0.0
    %999 = vmatpush1.msra.mxu0 0.0
    %1000 = vmatprep.subr.mxu0 0.0
    %1001 = vmatpush1.msra.mxu0 0.0
    %1002 = vmatprep.subr.mxu0 0.0
    %1003 = vmatpush1.msra.mxu0 0.0
    %1004 = vmatprep.mubr.f32.mxu0 0.0
    %1005 = vmatmul.mubr.f32.gmra.mrb[0].mxu0 %v156
    %v1006 = vpop.f32.mrb[0].mxu0
    %v1007 = vadd.f32 %v938, %v1006
    %v1008 = vpop.f32.mrb[0].mxu0
    %1009 = vmatprep.mubr.f32.mxu0 0.0
    %1010 = vmatmul.mubr.f32.gmra.mrb[0].mxu0 %v159
    %v1011 = vpop.f32.mrb[0].mxu0
    %v1012 = vadd.f32 %v938, %v1011
    %v1013 = vpop.f32.mrb[0].mxu0
    %1014 = vdwg.mxu0
    %s1015 = scalar_lea.vmem %s7, 32
    %v1016 = vld [vmem:[%s1015] sm:$0xff]
    %v1017 = vld [vmem:[%s1015 + $0x8] sm:$0xff]
    %v1018 = vld [vmem:[%s1015 + $0x10] sm:$0xff]
    %v1019 = vld [vmem:[%s1015 + $0x18] sm:$0xff]
    %s1020 = scalar_lea.vmem %s8, 1
    %v1021 = vld [vmem:[%s1020] sm:$0x1]
    %v1023 = vlaneseq
    %v1024 = vshrl.u32 %v1023, 7
    %v1025 = vsub.s32 0, %v1024
    %v1026 = vrot.slane %v1021, %v1025
    %1028 = vmatprep.subr.mxu0 0.0
    %1029 = vmatpush1.msra.mxu0 %v1016
    %1030 = vmatprep.subr.mxu0 0.0
    %1031 = vmatpush1.msra.mxu0 %v1017
    %1032 = vmatprep.subr.mxu0 0.0
    %1033 = vmatpush1.msra.mxu0 %v1018
    %1034 = vmatprep.subr.mxu0 0.0
    %1035 = vmatpush1.msra.mxu0 %v1019
    %1036 = vmatprep.subr.mxu0 0.0
    %1037 = vmatpush1.msra.mxu0 0.0
    %1038 = vmatprep.subr.mxu0 0.0
    %1039 = vmatpush1.msra.mxu0 0.0
    %1040 = vmatprep.subr.mxu0 0.0
    %1041 = vmatpush1.msra.mxu0 0.0
    %1042 = vmatprep.subr.mxu0 0.0
    %1043 = vmatpush1.msra.mxu0 0.0
    %1044 = vmatprep.subr.mxu0 0.0
    %1045 = vmatpush1.msra.mxu0 0.0
    %1046 = vmatprep.subr.mxu0 0.0
    %1047 = vmatpush1.msra.mxu0 0.0
    %1048 = vmatprep.subr.mxu0 0.0
    %1049 = vmatpush1.msra.mxu0 0.0
    %1050 = vmatprep.subr.mxu0 0.0
    %1051 = vmatpush1.msra.mxu0 0.0
    %1052 = vmatprep.subr.mxu0 0.0
    %1053 = vmatpush1.msra.mxu0 0.0
    %1054 = vmatprep.subr.mxu0 0.0
    %1055 = vmatpush1.msra.mxu0 0.0
    %1056 = vmatprep.subr.mxu0 0.0
    %1057 = vmatpush1.msra.mxu0 0.0
    %1058 = vmatprep.subr.mxu0 0.0
    %1059 = vmatpush1.msra.mxu0 0.0
    %1060 = vmatprep.subr.mxu0 0.0
    %1061 = vmatpush1.msra.mxu0 0.0
    %1062 = vmatprep.subr.mxu0 0.0
    %1063 = vmatpush1.msra.mxu0 0.0
    %1064 = vmatprep.subr.mxu0 0.0
    %1065 = vmatpush1.msra.mxu0 0.0
    %1066 = vmatprep.subr.mxu0 0.0
    %1067 = vmatpush1.msra.mxu0 0.0
    %1068 = vmatprep.subr.mxu0 0.0
    %1069 = vmatpush1.msra.mxu0 0.0
    %1070 = vmatprep.subr.mxu0 0.0
    %1071 = vmatpush1.msra.mxu0 0.0
    %1072 = vmatprep.subr.mxu0 0.0
    %1073 = vmatpush1.msra.mxu0 0.0
    %1074 = vmatprep.subr.mxu0 0.0
    %1075 = vmatpush1.msra.mxu0 0.0
    %1076 = vmatprep.subr.mxu0 0.0
    %1077 = vmatpush1.msra.mxu0 0.0
    %1078 = vmatprep.subr.mxu0 0.0
    %1079 = vmatpush1.msra.mxu0 0.0
    %1080 = vmatprep.subr.mxu0 0.0
    %1081 = vmatpush1.msra.mxu0 0.0
    %1082 = vmatprep.subr.mxu0 0.0
    %1083 = vmatpush1.msra.mxu0 0.0
    %1084 = vmatprep.subr.mxu0 0.0
    %1085 = vmatpush1.msra.mxu0 0.0
    %1086 = vmatprep.subr.mxu0 0.0
    %1087 = vmatpush1.msra.mxu0 0.0
    %1088 = vmatprep.subr.mxu0 0.0
    %1089 = vmatpush1.msra.mxu0 0.0
    %1090 = vmatprep.subr.mxu0 0.0
    %1091 = vmatpush1.msra.mxu0 0.0
    %1092 = vmatprep.mubr.f32.mxu0 0.0
    %1093 = vmatmul.mubr.f32.gmra.mrb[0].mxu0 %v248
    %v1094 = vpop.f32.mrb[0].mxu0
    %v1095 = vadd.f32 %v1026, %v1094
    %v1096 = vpop.f32.mrb[0].mxu0
    %1097 = vmatprep.mubr.f32.mxu0 0.0
    %1098 = vmatmul.mubr.f32.gmra.mrb[0].mxu0 %v251
    %v1099 = vpop.f32.mrb[0].mxu0
    %v1100 = vadd.f32 %v1026, %v1099
    %v1101 = vpop.f32.mrb[0].mxu0
    %1102 = vdwg.mxu0
    %v1104 = vsel %vm328, %v919, 0
    %v1107 = vsel %vm328, %v1007, 0
    %1109 = vmatprep.subr.mxu0 0.0
    %1110 = vmatpush1.xpose.msra.mxu0 %v1107
    %1111 = vmatprep.subr.mxu0 0.0
    %1112 = vmatpush1.xpose.msra.mxu0 0.0
    %1113 = vmatprep.subr.mxu0 0.0
    %1114 = vmatpush1.xpose.msra.mxu0 0.0
    %1115 = vmatprep.subr.mxu0 0.0
    %1116 = vmatpush1.xpose.msra.mxu0 0.0
    %1117 = vmatprep.subr.mxu0 0.0
    %1118 = vmatpush1.xpose.msra.mxu0 0.0
    %1119 = vmatprep.subr.mxu0 0.0
    %1120 = vmatpush1.xpose.msra.mxu0 0.0
    %1121 = vmatprep.subr.mxu0 0.0
    %1122 = vmatpush1.xpose.msra.mxu0 0.0
    %1123 = vmatprep.subr.mxu0 0.0
    %1124 = vmatpush1.xpose.msra.mxu0 0.0
    %1125 = vmatprep.subr.mxu0 0.0
    %1126 = vmatpush1.xpose.msra.mxu0 0.0
    %1127 = vmatprep.subr.mxu0 0.0
    %1128 = vmatpush1.xpose.msra.mxu0 0.0
    %1129 = vmatprep.subr.mxu0 0.0
    %1130 = vmatpush1.xpose.msra.mxu0 0.0
    %1131 = vmatprep.subr.mxu0 0.0
    %1132 = vmatpush1.xpose.msra.mxu0 0.0
    %1133 = vmatprep.subr.mxu0 0.0
    %1134 = vmatpush1.xpose.msra.mxu0 0.0
    %1135 = vmatprep.subr.mxu0 0.0
    %1136 = vmatpush1.xpose.msra.mxu0 0.0
    %1137 = vmatprep.subr.mxu0 0.0
    %1138 = vmatpush1.xpose.msra.mxu0 0.0
    %1139 = vmatprep.subr.mxu0 0.0
    %1140 = vmatpush1.xpose.msra.mxu0 0.0
    %1141 = vmatprep.subr.mxu0 0.0
    %1142 = vmatpush1.xpose.msra.mxu0 0.0
    %1143 = vmatprep.subr.mxu0 0.0
    %1144 = vmatpush1.xpose.msra.mxu0 0.0
    %1145 = vmatprep.subr.mxu0 0.0
    %1146 = vmatpush1.xpose.msra.mxu0 0.0
    %1147 = vmatprep.subr.mxu0 0.0
    %1148 = vmatpush1.xpose.msra.mxu0 0.0
    %1149 = vmatprep.subr.mxu0 0.0
    %1150 = vmatpush1.xpose.msra.mxu0 0.0
    %1151 = vmatprep.subr.mxu0 0.0
    %1152 = vmatpush1.xpose.msra.mxu0 0.0
    %1153 = vmatprep.subr.mxu0 0.0
    %1154 = vmatpush1.xpose.msra.mxu0 0.0
    %1155 = vmatprep.subr.mxu0 0.0
    %1156 = vmatpush1.xpose.msra.mxu0 0.0
    %1157 = vmatprep.subr.mxu0 0.0
    %1158 = vmatpush1.xpose.msra.mxu0 0.0
    %1159 = vmatprep.subr.mxu0 0.0
    %1160 = vmatpush1.xpose.msra.mxu0 0.0
    %1161 = vmatprep.subr.mxu0 0.0
    %1162 = vmatpush1.xpose.msra.mxu0 0.0
    %1163 = vmatprep.subr.mxu0 0.0
    %1164 = vmatpush1.xpose.msra.mxu0 0.0
    %1165 = vmatprep.subr.mxu0 0.0
    %1166 = vmatpush1.xpose.msra.mxu0 0.0
    %1167 = vmatprep.subr.mxu0 0.0
    %1168 = vmatpush1.xpose.msra.mxu0 0.0
    %1169 = vmatprep.subr.mxu0 0.0
    %1170 = vmatpush1.xpose.msra.mxu0 0.0
    %1171 = vmatprep.subr.mxu0 0.0
    %1172 = vmatpush1.xpose.msra.mxu0 0.0
    %1173 = vmatprep.mubr.f32.mxu0 0.0
    %1174 = vmatmul.mubr.f32.gmra.mrb[0].mxu0 %v1104
    %v1175 = vpop.f32.mrb[0].mxu0
    %v1176 = vadd.f32 0.0, %v1175
    %v1177 = vpop.f32.mrb[0].mxu0
    %1178 = vdwg.mxu0
    %v1180 = vsel %vm328, %v924, 0
    %v1183 = vsel %vm328, %v1012, 0
    %1185 = vmatprep.subr.mxu0 0.0
    %1186 = vmatpush1.xpose.msra.mxu0 %v1183
    %1187 = vmatprep.subr.mxu0 0.0
    %1188 = vmatpush1.xpose.msra.mxu0 0.0
    %1189 = vmatprep.subr.mxu0 0.0
    %1190 = vmatpush1.xpose.msra.mxu0 0.0
    %1191 = vmatprep.subr.mxu0 0.0
    %1192 = vmatpush1.xpose.msra.mxu0 0.0
    %1193 = vmatprep.subr.mxu0 0.0
    %1194 = vmatpush1.xpose.msra.mxu0 0.0
    %1195 = vmatprep.subr.mxu0 0.0
    %1196 = vmatpush1.xpose.msra.mxu0 0.0
    %1197 = vmatprep.subr.mxu0 0.0
    %1198 = vmatpush1.xpose.msra.mxu0 0.0
    %1199 = vmatprep.subr.mxu0 0.0
    %1200 = vmatpush1.xpose.msra.mxu0 0.0
    %1201 = vmatprep.subr.mxu0 0.0
    %1202 = vmatpush1.xpose.msra.mxu0 0.0
    %1203 = vmatprep.subr.mxu0 0.0
    %1204 = vmatpush1.xpose.msra.mxu0 0.0
    %1205 = vmatprep.subr.mxu0 0.0
    %1206 = vmatpush1.xpose.msra.mxu0 0.0
    %1207 = vmatprep.subr.mxu0 0.0
    %1208 = vmatpush1.xpose.msra.mxu0 0.0
    %1209 = vmatprep.subr.mxu0 0.0
    %1210 = vmatpush1.xpose.msra.mxu0 0.0
    %1211 = vmatprep.subr.mxu0 0.0
    %1212 = vmatpush1.xpose.msra.mxu0 0.0
    %1213 = vmatprep.subr.mxu0 0.0
    %1214 = vmatpush1.xpose.msra.mxu0 0.0
    %1215 = vmatprep.subr.mxu0 0.0
    %1216 = vmatpush1.xpose.msra.mxu0 0.0
    %1217 = vmatprep.subr.mxu0 0.0
    %1218 = vmatpush1.xpose.msra.mxu0 0.0
    %1219 = vmatprep.subr.mxu0 0.0
    %1220 = vmatpush1.xpose.msra.mxu0 0.0
    %1221 = vmatprep.subr.mxu0 0.0
    %1222 = vmatpush1.xpose.msra.mxu0 0.0
    %1223 = vmatprep.subr.mxu0 0.0
    %1224 = vmatpush1.xpose.msra.mxu0 0.0
    %1225 = vmatprep.subr.mxu0 0.0
    %1226 = vmatpush1.xpose.msra.mxu0 0.0
    %1227 = vmatprep.subr.mxu0 0.0
    %1228 = vmatpush1.xpose.msra.mxu0 0.0
    %1229 = vmatprep.subr.mxu0 0.0
    %1230 = vmatpush1.xpose.msra.mxu0 0.0
    %1231 = vmatprep.subr.mxu0 0.0
    %1232 = vmatpush1.xpose.msra.mxu0 0.0
    %1233 = vmatprep.subr.mxu0 0.0
    %1234 = vmatpush1.xpose.msra.mxu0 0.0
    %1235 = vmatprep.subr.mxu0 0.0
    %1236 = vmatpush1.xpose.msra.mxu0 0.0
    %1237 = vmatprep.subr.mxu0 0.0
    %1238 = vmatpush1.xpose.msra.mxu0 0.0
    %1239 = vmatprep.subr.mxu0 0.0
    %1240 = vmatpush1.xpose.msra.mxu0 0.0
    %1241 = vmatprep.subr.mxu0 0.0
    %1242 = vmatpush1.xpose.msra.mxu0 0.0
    %1243 = vmatprep.subr.mxu0 0.0
    %1244 = vmatpush1.xpose.msra.mxu0 0.0
    %1245 = vmatprep.subr.mxu0 0.0
    %1246 = vmatpush1.xpose.msra.mxu0 0.0
    %1247 = vmatprep.subr.mxu0 0.0
    %1248 = vmatpush1.xpose.msra.mxu0 0.0
    %1249 = vmatprep.mubr.f32.mxu0 0.0
    %1250 = vmatmul.mubr.f32.gmra.mrb[0].mxu0 %v1180
    %v1251 = vpop.f32.mrb[0].mxu0
    %v1252 = vadd.f32 0.0, %v1251
    %v1253 = vpop.f32.mrb[0].mxu0
    %1254 = vdwg.mxu0
    %v1255 = vmul.f32 %v1176, 0.25
    %v1256 = vmul.f32 %v1252, 0.25
    %s1257 = scalar_lea.vmem %s11, 8
    %v1258 = vld [vmem:[%s1257] sm:$0xff]
    %v1260 = vsel %vm328, %v1258, 0
    %1262 = vmatprep.subr.mxu0 0.0
    %1263 = vmatpush1.xpose.msra.mxu0 %v1260
    %1264 = vmatprep.subr.mxu0 0.0
    %1265 = vmatpush1.xpose.msra.mxu0 0.0
    %1266 = vmatprep.subr.mxu0 0.0
    %1267 = vmatpush1.xpose.msra.mxu0 0.0
    %1268 = vmatprep.subr.mxu0 0.0
    %1269 = vmatpush1.xpose.msra.mxu0 0.0
    %1270 = vmatprep.subr.mxu0 0.0
    %1271 = vmatpush1.xpose.msra.mxu0 0.0
    %1272 = vmatprep.subr.mxu0 0.0
    %1273 = vmatpush1.xpose.msra.mxu0 0.0
    %1274 = vmatprep.subr.mxu0 0.0
    %1275 = vmatpush1.xpose.msra.mxu0 0.0
    %1276 = vmatprep.subr.mxu0 0.0
    %1277 = vmatpush1.xpose.msra.mxu0 0.0
    %1278 = vmatprep.subr.mxu0 0.0
    %1279 = vmatpush1.xpose.msra.mxu0 0.0
    %1280 = vmatprep.subr.mxu0 0.0
    %1281 = vmatpush1.xpose.msra.mxu0 0.0
    %1282 = vmatprep.subr.mxu0 0.0
    %1283 = vmatpush1.xpose.msra.mxu0 0.0
    %1284 = vmatprep.subr.mxu0 0.0
    %1285 = vmatpush1.xpose.msra.mxu0 0.0
    %1286 = vmatprep.subr.mxu0 0.0
    %1287 = vmatpush1.xpose.msra.mxu0 0.0
    %1288 = vmatprep.subr.mxu0 0.0
    %1289 = vmatpush1.xpose.msra.mxu0 0.0
    %1290 = vmatprep.subr.mxu0 0.0
    %1291 = vmatpush1.xpose.msra.mxu0 0.0
    %1292 = vmatprep.subr.mxu0 0.0
    %1293 = vmatpush1.xpose.msra.mxu0 0.0
    %1294 = vmatprep.subr.mxu0 0.0
    %1295 = vmatpush1.xpose.msra.mxu0 0.0
    %1296 = vmatprep.subr.mxu0 0.0
    %1297 = vmatpush1.xpose.msra.mxu0 0.0
    %1298 = vmatprep.subr.mxu0 0.0
    %1299 = vmatpush1.xpose.msra.mxu0 0.0
    %1300 = vmatprep.subr.mxu0 0.0
    %1301 = vmatpush1.xpose.msra.mxu0 0.0
    %1302 = vmatprep.subr.mxu0 0.0
    %1303 = vmatpush1.xpose.msra.mxu0 0.0
    %1304 = vmatprep.subr.mxu0 0.0
    %1305 = vmatpush1.xpose.msra.mxu0 0.0
    %1306 = vmatprep.subr.mxu0 0.0
    %1307 = vmatpush1.xpose.msra.mxu0 0.0
    %1308 = vmatprep.subr.mxu0 0.0
    %1309 = vmatpush1.xpose.msra.mxu0 0.0
    %1310 = vmatprep.subr.mxu0 0.0
    %1311 = vmatpush1.xpose.msra.mxu0 0.0
    %1312 = vmatprep.subr.mxu0 0.0
    %1313 = vmatpush1.xpose.msra.mxu0 0.0
    %1314 = vmatprep.subr.mxu0 0.0
    %1315 = vmatpush1.xpose.msra.mxu0 0.0
    %1316 = vmatprep.subr.mxu0 0.0
    %1317 = vmatpush1.xpose.msra.mxu0 0.0
    %1318 = vmatprep.subr.mxu0 0.0
    %1319 = vmatpush1.xpose.msra.mxu0 0.0
    %1320 = vmatprep.subr.mxu0 0.0
    %1321 = vmatpush1.xpose.msra.mxu0 0.0
    %1322 = vmatprep.subr.mxu0 0.0
    %1323 = vmatpush1.xpose.msra.mxu0 0.0
    %1324 = vmatprep.subr.mxu0 0.0
    %1325 = vmatpush1.xpose.msra.mxu0 0.0
    %1326 = vmatprep.mubr.f32.mxu0 0.0
    %1327 = vmatmul.mubr.f32.gmra.mrb[0].mxu0 %v1104
    %v1328 = vpop.f32.mrb[0].mxu0
    %v1329 = vadd.f32 0.0, %v1328
    %v1330 = vpop.f32.mrb[0].mxu0
    %1331 = vmatprep.mubr.f32.mxu0 0.0
    %1332 = vmatmul.mubr.f32.gmra.mrb[0].mxu0 %v1180
    %v1333 = vpop.f32.mrb[0].mxu0
    %v1334 = vadd.f32 0.0, %v1333
    %v1335 = vpop.f32.mrb[0].mxu0
    %1336 = vdwg.mxu0
    %v1337 = vsel %vm562, %v1255, -inf
    %1338 = vmax.xlane.f32.xlu0 %v1337
    %v1339 = vpop.xlane.xlu0 %1338
    %v1340 = vsel %vm562, %v1256, -inf
    %1341 = vmax.xlane.f32.xlu0 %v1340
    %v1342 = vpop.xlane.xlu0 %1341
    %v1343 = vsel %vm562, %v1329, -inf
    %1344 = vmax.xlane.f32.xlu0 %v1343
    %v1345 = vpop.xlane.xlu0 %1344
    %v1346 = vsel %vm562, %v1334, -inf
    %1347 = vmax.xlane.f32.xlu0 %v1346
    %v1348 = vpop.xlane.xlu0 %1347
    %v1349 = vmax.f32 %v1339, %v1345
    %v1350 = vmax.f32 %v1342, %v1348
    %v1351 = vsub.f32 %v1255, %v1349
    %v1352 = vsub.f32 %v1256, %v1350
    %v1353 = vmul.f32 %v1351, 1.442695
    %v1354 = vpow.pop %v1353
    %v1355 = vmul.f32 %v1352, 1.442695
    %v1356 = vpow.pop %v1355
    %v1357 = vsub.f32 %v1329, %v1349
    %v1358 = vsub.f32 %v1334, %v1350
    %v1359 = vmul.f32 %v1357, 1.442695
    %v1360 = vpow.pop %v1359
    %v1361 = vmul.f32 %v1358, 1.442695
    %v1362 = vpow.pop %v1361
    %v1363 = vsel %vm562, %v1354, 0.0
    %1364 = vadd.xlane.f32.xlu0 %v1363
    %v1365 = vpop.xlane.xlu0 %1364
    %v1366 = vsel %vm562, %v1356, 0.0
    %1367 = vadd.xlane.f32.xlu0 %v1366
    %v1368 = vpop.xlane.xlu0 %1367
    %v1369 = vsel %vm562, %v1360, 0.0
    %1370 = vadd.xlane.f32.xlu0 %v1369
    %v1371 = vpop.xlane.xlu0 %1370
    %v1372 = vsel %vm562, %v1362, 0.0
    %1373 = vadd.xlane.f32.xlu0 %v1372
    %v1374 = vpop.xlane.xlu0 %1373
    %v1375 = vadd.f32 %v1365, %v1371
    %v1376 = vadd.f32 %v1368, %v1374
    %v1378 = vsel %vm562, %v1354, 0
    %1380 = vmatprep.subr.mxu0 0.0
    %1381 = vmatpush1.msra.mxu0 %v1095
    %1382 = vmatprep.subr.mxu0 0.0
    %1383 = vmatpush1.msra.mxu0 0.0
    %1384 = vmatprep.subr.mxu0 0.0
    %1385 = vmatpush1.msra.mxu0 0.0
    %1386 = vmatprep.subr.mxu0 0.0
    %1387 = vmatpush1.msra.mxu0 0.0
    %1388 = vmatprep.subr.mxu0 0.0
    %1389 = vmatpush1.msra.mxu0 0.0
    %1390 = vmatprep.subr.mxu0 0.0
    %1391 = vmatpush1.msra.mxu0 0.0
    %1392 = vmatprep.subr.mxu0 0.0
    %1393 = vmatpush1.msra.mxu0 0.0
    %1394 = vmatprep.subr.mxu0 0.0
    %1395 = vmatpush1.msra.mxu0 0.0
    %1396 = vmatprep.subr.mxu0 0.0
    %1397 = vmatpush1.msra.mxu0 0.0
    %1398 = vmatprep.subr.mxu0 0.0
    %1399 = vmatpush1.msra.mxu0 0.0
    %1400 = vmatprep.subr.mxu0 0.0
    %1401 = vmatpush1.msra.mxu0 0.0
    %1402 = vmatprep.subr.mxu0 0.0
    %1403 = vmatpush1.msra.mxu0 0.0
    %1404 = vmatprep.subr.mxu0 0.0
    %1405 = vmatpush1.msra.mxu0 0.0
    %1406 = vmatprep.subr.mxu0 0.0
    %1407 = vmatpush1.msra.mxu0 0.0
    %1408 = vmatprep.subr.mxu0 0.0
    %1409 = vmatpush1.msra.mxu0 0.0
    %1410 = vmatprep.subr.mxu0 0.0
    %1411 = vmatpush1.msra.mxu0 0.0
    %1412 = vmatprep.subr.mxu0 0.0
    %1413 = vmatpush1.msra.mxu0 0.0
    %1414 = vmatprep.subr.mxu0 0.0
    %1415 = vmatpush1.msra.mxu0 0.0
    %1416 = vmatprep.subr.mxu0 0.0
    %1417 = vmatpush1.msra.mxu0 0.0
    %1418 = vmatprep.subr.mxu0 0.0
    %1419 = vmatpush1.msra.mxu0 0.0
    %1420 = vmatprep.subr.mxu0 0.0
    %1421 = vmatpush1.msra.mxu0 0.0
    %1422 = vmatprep.subr.mxu0 0.0
    %1423 = vmatpush1.msra.mxu0 0.0
    %1424 = vmatprep.subr.mxu0 0.0
    %1425 = vmatpush1.msra.mxu0 0.0
    %1426 = vmatprep.subr.mxu0 0.0
    %1427 = vmatpush1.msra.mxu0 0.0
    %1428 = vmatprep.subr.mxu0 0.0
    %1429 = vmatpush1.msra.mxu0 0.0
    %1430 = vmatprep.subr.mxu0 0.0
    %1431 = vmatpush1.msra.mxu0 0.0
    %1432 = vmatprep.subr.mxu0 0.0
    %1433 = vmatpush1.msra.mxu0 0.0
    %1434 = vmatprep.subr.mxu0 0.0
    %1435 = vmatpush1.msra.mxu0 0.0
    %1436 = vmatprep.subr.mxu0 0.0
    %1437 = vmatpush1.msra.mxu0 0.0
    %1438 = vmatprep.subr.mxu0 0.0
    %1439 = vmatpush1.msra.mxu0 0.0
    %1440 = vmatprep.subr.mxu0 0.0
    %1441 = vmatpush1.msra.mxu0 0.0
    %1442 = vmatprep.subr.mxu0 0.0
    %1443 = vmatpush1.msra.mxu0 0.0
    %1444 = vmatprep.mubr.f32.mxu0 0.0
    %1445 = vmatmul.mubr.f32.gmra.mrb[0].mxu0 %v1378
    %v1446 = vpop.f32.mrb[0].mxu0
    %v1447 = vadd.f32 0.0, %v1446
    %v1448 = vpop.f32.mrb[0].mxu0
    %1449 = vdwg.mxu0
    %v1451 = vsel %vm562, %v1356, 0
    %1453 = vmatprep.subr.mxu0 0.0
    %1454 = vmatpush1.msra.mxu0 %v1100
    %1455 = vmatprep.subr.mxu0 0.0
    %1456 = vmatpush1.msra.mxu0 0.0
    %1457 = vmatprep.subr.mxu0 0.0
    %1458 = vmatpush1.msra.mxu0 0.0
    %1459 = vmatprep.subr.mxu0 0.0
    %1460 = vmatpush1.msra.mxu0 0.0
    %1461 = vmatprep.subr.mxu0 0.0
    %1462 = vmatpush1.msra.mxu0 0.0
    %1463 = vmatprep.subr.mxu0 0.0
    %1464 = vmatpush1.msra.mxu0 0.0
    %1465 = vmatprep.subr.mxu0 0.0
    %1466 = vmatpush1.msra.mxu0 0.0
    %1467 = vmatprep.subr.mxu0 0.0
    %1468 = vmatpush1.msra.mxu0 0.0
    %1469 = vmatprep.subr.mxu0 0.0
    %1470 = vmatpush1.msra.mxu0 0.0
    %1471 = vmatprep.subr.mxu0 0.0
    %1472 = vmatpush1.msra.mxu0 0.0
    %1473 = vmatprep.subr.mxu0 0.0
    %1474 = vmatpush1.msra.mxu0 0.0
    %1475 = vmatprep.subr.mxu0 0.0
    %1476 = vmatpush1.msra.mxu0 0.0
    %1477 = vmatprep.subr.mxu0 0.0
    %1478 = vmatpush1.msra.mxu0 0.0
    %1479 = vmatprep.subr.mxu0 0.0
    %1480 = vmatpush1.msra.mxu0 0.0
    %1481 = vmatprep.subr.mxu0 0.0
    %1482 = vmatpush1.msra.mxu0 0.0
    %1483 = vmatprep.subr.mxu0 0.0
    %1484 = vmatpush1.msra.mxu0 0.0
    %1485 = vmatprep.subr.mxu0 0.0
    %1486 = vmatpush1.msra.mxu0 0.0
    %1487 = vmatprep.subr.mxu0 0.0
    %1488 = vmatpush1.msra.mxu0 0.0
    %1489 = vmatprep.subr.mxu0 0.0
    %1490 = vmatpush1.msra.mxu0 0.0
    %1491 = vmatprep.subr.mxu0 0.0
    %1492 = vmatpush1.msra.mxu0 0.0
    %1493 = vmatprep.subr.mxu0 0.0
    %1494 = vmatpush1.msra.mxu0 0.0
    %1495 = vmatprep.subr.mxu0 0.0
    %1496 = vmatpush1.msra.mxu0 0.0
    %1497 = vmatprep.subr.mxu0 0.0
    %1498 = vmatpush1.msra.mxu0 0.0
    %1499 = vmatprep.subr.mxu0 0.0
    %1500 = vmatpush1.msra.mxu0 0.0
    %1501 = vmatprep.subr.mxu0 0.0
    %1502 = vmatpush1.msra.mxu0 0.0
    %1503 = vmatprep.subr.mxu0 0.0
    %1504 = vmatpush1.msra.mxu0 0.0
    %1505 = vmatprep.subr.mxu0 0.0
    %1506 = vmatpush1.msra.mxu0 0.0
    %1507 = vmatprep.subr.mxu0 0.0
    %1508 = vmatpush1.msra.mxu0 0.0
    %1509 = vmatprep.subr.mxu0 0.0
    %1510 = vmatpush1.msra.mxu0 0.0
    %1511 = vmatprep.subr.mxu0 0.0
    %1512 = vmatpush1.msra.mxu0 0.0
    %1513 = vmatprep.subr.mxu0 0.0
    %1514 = vmatpush1.msra.mxu0 0.0
    %1515 = vmatprep.subr.mxu0 0.0
    %1516 = vmatpush1.msra.mxu0 0.0
    %1517 = vmatprep.mubr.f32.mxu0 0.0
    %1518 = vmatmul.mubr.f32.gmra.mrb[0].mxu0 %v1451
    %v1519 = vpop.f32.mrb[0].mxu0
    %v1520 = vadd.f32 0.0, %v1519
    %v1521 = vpop.f32.mrb[0].mxu0
    %1522 = vdwg.mxu0
    %s1523 = scalar_lea.vmem %s12, 8
    %v1524 = vld [vmem:[%s1523] sm:$0xff]
    %v1526 = vsel %vm562, %v1360, 0
    %v1529 = vsel %vm562, %v1362, 0
    %1531 = vmatprep.subr.mxu0 0.0
    %1532 = vmatpush1.msra.mxu0 %v1524
    %1533 = vmatprep.subr.mxu0 0.0
    %1534 = vmatpush1.msra.mxu0 0.0
    %1535 = vmatprep.subr.mxu0 0.0
    %1536 = vmatpush1.msra.mxu0 0.0
    %1537 = vmatprep.subr.mxu0 0.0
    %1538 = vmatpush1.msra.mxu0 0.0
    %1539 = vmatprep.subr.mxu0 0.0
    %1540 = vmatpush1.msra.mxu0 0.0
    %1541 = vmatprep.subr.mxu0 0.0
    %1542 = vmatpush1.msra.mxu0 0.0
    %1543 = vmatprep.subr.mxu0 0.0
    %1544 = vmatpush1.msra.mxu0 0.0
    %1545 = vmatprep.subr.mxu0 0.0
    %1546 = vmatpush1.msra.mxu0 0.0
    %1547 = vmatprep.subr.mxu0 0.0
    %1548 = vmatpush1.msra.mxu0 0.0
    %1549 = vmatprep.subr.mxu0 0.0
    %1550 = vmatpush1.msra.mxu0 0.0
    %1551 = vmatprep.subr.mxu0 0.0
    %1552 = vmatpush1.msra.mxu0 0.0
    %1553 = vmatprep.subr.mxu0 0.0
    %1554 = vmatpush1.msra.mxu0 0.0
    %1555 = vmatprep.subr.mxu0 0.0
    %1556 = vmatpush1.msra.mxu0 0.0
    %1557 = vmatprep.subr.mxu0 0.0
    %1558 = vmatpush1.msra.mxu0 0.0
    %1559 = vmatprep.subr.mxu0 0.0
    %1560 = vmatpush1.msra.mxu0 0.0
    %1561 = vmatprep.subr.mxu0 0.0
    %1562 = vmatpush1.msra.mxu0 0.0
    %1563 = vmatprep.subr.mxu0 0.0
    %1564 = vmatpush1.msra.mxu0 0.0
    %1565 = vmatprep.subr.mxu0 0.0
    %1566 = vmatpush1.msra.mxu0 0.0
    %1567 = vmatprep.subr.mxu0 0.0
    %1568 = vmatpush1.msra.mxu0 0.0
    %1569 = vmatprep.subr.mxu0 0.0
    %1570 = vmatpush1.msra.mxu0 0.0
    %1571 = vmatprep.subr.mxu0 0.0
    %1572 = vmatpush1.msra.mxu0 0.0
    %1573 = vmatprep.subr.mxu0 0.0
    %1574 = vmatpush1.msra.mxu0 0.0
    %1575 = vmatprep.subr.mxu0 0.0
    %1576 = vmatpush1.msra.mxu0 0.0
    %1577 = vmatprep.subr.mxu0 0.0
    %1578 = vmatpush1.msra.mxu0 0.0
    %1579 = vmatprep.subr.mxu0 0.0
    %1580 = vmatpush1.msra.mxu0 0.0
    %1581 = vmatprep.subr.mxu0 0.0
    %1582 = vmatpush1.msra.mxu0 0.0
    %1583 = vmatprep.subr.mxu0 0.0
    %1584 = vmatpush1.msra.mxu0 0.0
    %1585 = vmatprep.subr.mxu0 0.0
    %1586 = vmatpush1.msra.mxu0 0.0
    %1587 = vmatprep.subr.mxu0 0.0
    %1588 = vmatpush1.msra.mxu0 0.0
    %1589 = vmatprep.subr.mxu0 0.0
    %1590 = vmatpush1.msra.mxu0 0.0
    %1591 = vmatprep.subr.mxu0 0.0
    %1592 = vmatpush1.msra.mxu0 0.0
    %1593 = vmatprep.subr.mxu0 0.0
    %1594 = vmatpush1.msra.mxu0 0.0
    %1595 = vmatprep.mubr.f32.mxu0 0.0
    %1596 = vmatmul.mubr.f32.gmra.mrb[0].mxu0 %v1526
    %v1597 = vpop.f32.mrb[0].mxu0
    %v1598 = vadd.f32 0.0, %v1597
    %v1599 = vpop.f32.mrb[0].mxu0
    %1600 = vmatprep.mubr.f32.mxu0 0.0
    %1601 = vmatmul.mubr.f32.gmra.mrb[0].mxu0 %v1529
    %v1602 = vpop.f32.mrb[0].mxu0
    %v1603 = vadd.f32 0.0, %v1602
    %v1604 = vpop.f32.mrb[0].mxu0
    %1605 = vdwg.mxu0
    %v1606 = vadd.f32 %v1447, %v1598
    %v1607 = vadd.f32 %v1520, %v1603
    %v1608 = vrcp.pop %v1375
    %v1609 = vrcp.pop %v1376
    %v1610 = vmul.f32 %v1606, %v1608
    %v1611 = vmul.f32 %v1607, %v1609
    %1614 = vrot.lane.b32.xlu0 %v1610, 16
    %v1615 = vpop.permute.xlu0 %1614
    %1616 = vrot.lane.b32.xlu0 %v1611, 16
    %v1617 = vpop.permute.xlu0 %1616
    %vm1620 = vcmask 261248
    %1621 = vst.msk [vmem:[#allocation2] sm:$0xff] %vm1620, %v1615
    %1622 = vst.msk [vmem:[#allocation2 + $0x8] sm:$0xff] %vm1620, %v1617
    %s1623 = scalar_lea.vmem %s3, 64
    %v1624 = vld [vmem:[%s1623] sm:$0xff]
    %v1625 = vld [vmem:[%s1623 + $0x8] sm:$0xff]
    %v1626 = vld [vmem:[%s1623 + $0x10] sm:$0xff]
    %v1627 = vld [vmem:[%s1623 + $0x18] sm:$0xff]
    %s1628 = scalar_lea.vmem %s4, 2
    %v1629 = vld [vmem:[%s1628] sm:$0x1]
    %v1631 = vlaneseq
    %v1632 = vshrl.u32 %v1631, 7
    %v1633 = vsub.s32 0, %v1632
    %v1634 = vrot.slane %v1629, %v1633
    %1636 = vmatprep.subr.mxu0 0.0
    %1637 = vmatpush1.msra.mxu0 %v1624
    %1638 = vmatprep.subr.mxu0 0.0
    %1639 = vmatpush1.msra.mxu0 %v1625
    %1640 = vmatprep.subr.mxu0 0.0
    %1641 = vmatpush1.msra.mxu0 %v1626
    %1642 = vmatprep.subr.mxu0 0.0
    %1643 = vmatpush1.msra.mxu0 %v1627
    %1644 = vmatprep.subr.mxu0 0.0
    %1645 = vmatpush1.msra.mxu0 0.0
    %1646 = vmatprep.subr.mxu0 0.0
    %1647 = vmatpush1.msra.mxu0 0.0
    %1648 = vmatprep.subr.mxu0 0.0
    %1649 = vmatpush1.msra.mxu0 0.0
    %1650 = vmatprep.subr.mxu0 0.0
    %1651 = vmatpush1.msra.mxu0 0.0
    %1652 = vmatprep.subr.mxu0 0.0
    %1653 = vmatpush1.msra.mxu0 0.0
    %1654 = vmatprep.subr.mxu0 0.0
    %1655 = vmatpush1.msra.mxu0 0.0
    %1656 = vmatprep.subr.mxu0 0.0
    %1657 = vmatpush1.msra.mxu0 0.0
    %1658 = vmatprep.subr.mxu0 0.0
    %1659 = vmatpush1.msra.mxu0 0.0
    %1660 = vmatprep.subr.mxu0 0.0
    %1661 = vmatpush1.msra.mxu0 0.0
    %1662 = vmatprep.subr.mxu0 0.0
    %1663 = vmatpush1.msra.mxu0 0.0
    %1664 = vmatprep.subr.mxu0 0.0
    %1665 = vmatpush1.msra.mxu0 0.0
    %1666 = vmatprep.subr.mxu0 0.0
    %1667 = vmatpush1.msra.mxu0 0.0
    %1668 = vmatprep.subr.mxu0 0.0
    %1669 = vmatpush1.msra.mxu0 0.0
    %1670 = vmatprep.subr.mxu0 0.0
    %1671 = vmatpush1.msra.mxu0 0.0
    %1672 = vmatprep.subr.mxu0 0.0
    %1673 = vmatpush1.msra.mxu0 0.0
    %1674 = vmatprep.subr.mxu0 0.0
    %1675 = vmatpush1.msra.mxu0 0.0
    %1676 = vmatprep.subr.mxu0 0.0
    %1677 = vmatpush1.msra.mxu0 0.0
    %1678 = vmatprep.subr.mxu0 0.0
    %1679 = vmatpush1.msra.mxu0 0.0
    %1680 = vmatprep.subr.mxu0 0.0
    %1681 = vmatpush1.msra.mxu0 0.0
    %1682 = vmatprep.subr.mxu0 0.0
    %1683 = vmatpush1.msra.mxu0 0.0
    %1684 = vmatprep.subr.mxu0 0.0
    %1685 = vmatpush1.msra.mxu0 0.0
    %1686 = vmatprep.subr.mxu0 0.0
    %1687 = vmatpush1.msra.mxu0 0.0
    %1688 = vmatprep.subr.mxu0 0.0
    %1689 = vmatpush1.msra.mxu0 0.0
    %1690 = vmatprep.subr.mxu0 0.0
    %1691 = vmatpush1.msra.mxu0 0.0
    %1692 = vmatprep.subr.mxu0 0.0
    %1693 = vmatpush1.msra.mxu0 0.0
    %1694 = vmatprep.subr.mxu0 0.0
    %1695 = vmatpush1.msra.mxu0 0.0
    %1696 = vmatprep.subr.mxu0 0.0
    %1697 = vmatpush1.msra.mxu0 0.0
    %1698 = vmatprep.subr.mxu0 0.0
    %1699 = vmatpush1.msra.mxu0 0.0
    %1700 = vmatprep.mubr.f32.mxu0 0.0
    %1701 = vmatmul.mubr.f32.gmra.mrb[0].mxu0 %v64
    %v1702 = vpop.f32.mrb[0].mxu0
    %v1703 = vadd.f32 %v1634, %v1702
    %v1704 = vpop.f32.mrb[0].mxu0
    %1705 = vmatprep.mubr.f32.mxu0 0.0
    %1706 = vmatmul.mubr.f32.gmra.mrb[0].mxu0 %v67
    %v1707 = vpop.f32.mrb[0].mxu0
    %v1708 = vadd.f32 %v1634, %v1707
    %v1709 = vpop.f32.mrb[0].mxu0
    %1710 = vdwg.mxu0
    %s1711 = scalar_lea.vmem %s5, 64
    %v1712 = vld [vmem:[%s1711] sm:$0xff]
    %v1713 = vld [vmem:[%s1711 + $0x8] sm:$0xff]
    %v1714 = vld [vmem:[%s1711 + $0x10] sm:$0xff]
    %v1715 = vld [vmem:[%s1711 + $0x18] sm:$0xff]
    %s1716 = scalar_lea.vmem %s6, 2
    %v1717 = vld [vmem:[%s1716] sm:$0x1]
    %v1719 = vlaneseq
    %v1720 = vshrl.u32 %v1719, 7
    %v1721 = vsub.s32 0, %v1720
    %v1722 = vrot.slane %v1717, %v1721
    %1724 = vmatprep.subr.mxu0 0.0
    %1725 = vmatpush1.msra.mxu0 %v1712
    %1726 = vmatprep.subr.mxu0 0.0
    %1727 = vmatpush1.msra.mxu0 %v1713
    %1728 = vmatprep.subr.mxu0 0.0
    %1729 = vmatpush1.msra.mxu0 %v1714
    %1730 = vmatprep.subr.mxu0 0.0
    %1731 = vmatpush1.msra.mxu0 %v1715
    %1732 = vmatprep.subr.mxu0 0.0
    %1733 = vmatpush1.msra.mxu0 0.0
    %1734 = vmatprep.subr.mxu0 0.0
    %1735 = vmatpush1.msra.mxu0 0.0
    %1736 = vmatprep.subr.mxu0 0.0
    %1737 = vmatpush1.msra.mxu0 0.0
    %1738 = vmatprep.subr.mxu0 0.0
    %1739 = vmatpush1.msra.mxu0 0.0
    %1740 = vmatprep.subr.mxu0 0.0
    %1741 = vmatpush1.msra.mxu0 0.0
    %1742 = vmatprep.subr.mxu0 0.0
    %1743 = vmatpush1.msra.mxu0 0.0
    %1744 = vmatprep.subr.mxu0 0.0
    %1745 = vmatpush1.msra.mxu0 0.0
    %1746 = vmatprep.subr.mxu0 0.0
    %1747 = vmatpush1.msra.mxu0 0.0
    %1748 = vmatprep.subr.mxu0 0.0
    %1749 = vmatpush1.msra.mxu0 0.0
    %1750 = vmatprep.subr.mxu0 0.0
    %1751 = vmatpush1.msra.mxu0 0.0
    %1752 = vmatprep.subr.mxu0 0.0
    %1753 = vmatpush1.msra.mxu0 0.0
    %1754 = vmatprep.subr.mxu0 0.0
    %1755 = vmatpush1.msra.mxu0 0.0
    %1756 = vmatprep.subr.mxu0 0.0
    %1757 = vmatpush1.msra.mxu0 0.0
    %1758 = vmatprep.subr.mxu0 0.0
    %1759 = vmatpush1.msra.mxu0 0.0
    %1760 = vmatprep.subr.mxu0 0.0
    %1761 = vmatpush1.msra.mxu0 0.0
    %1762 = vmatprep.subr.mxu0 0.0
    %1763 = vmatpush1.msra.mxu0 0.0
    %1764 = vmatprep.subr.mxu0 0.0
    %1765 = vmatpush1.msra.mxu0 0.0
    %1766 = vmatprep.subr.mxu0 0.0
    %1767 = vmatpush1.msra.mxu0 0.0
    %1768 = vmatprep.subr.mxu0 0.0
    %1769 = vmatpush1.msra.mxu0 0.0
    %1770 = vmatprep.subr.mxu0 0.0
    %1771 = vmatpush1.msra.mxu0 0.0
    %1772 = vmatprep.subr.mxu0 0.0
    %1773 = vmatpush1.msra.mxu0 0.0
    %1774 = vmatprep.subr.mxu0 0.0
    %1775 = vmatpush1.msra.mxu0 0.0
    %1776 = vmatprep.subr.mxu0 0.0
    %1777 = vmatpush1.msra.mxu0 0.0
    %1778 = vmatprep.subr.mxu0 0.0
    %1779 = vmatpush1.msra.mxu0 0.0
    %1780 = vmatprep.subr.mxu0 0.0
    %1781 = vmatpush1.msra.mxu0 0.0
    %1782 = vmatprep.subr.mxu0 0.0
    %1783 = vmatpush1.msra.mxu0 0.0
    %1784 = vmatprep.subr.mxu0 0.0
    %1785 = vmatpush1.msra.mxu0 0.0
    %1786 = vmatprep.subr.mxu0 0.0
    %1787 = vmatpush1.msra.mxu0 0.0
    %1788 = vmatprep.mubr.f32.mxu0 0.0
    %1789 = vmatmul.mubr.f32.gmra.mrb[0].mxu0 %v156
    %v1790 = vpop.f32.mrb[0].mxu0
    %v1791 = vadd.f32 %v1722, %v1790
    %v1792 = vpop.f32.mrb[0].mxu0
    %1793 = vmatprep.mubr.f32.mxu0 0.0
    %1794 = vmatmul.mubr.f32.gmra.mrb[0].mxu0 %v159
    %v1795 = vpop.f32.mrb[0].mxu0
    %v1796 = vadd.f32 %v1722, %v1795
    %v1797 = vpop.f32.mrb[0].mxu0
    %1798 = vdwg.mxu0
    %s1799 = scalar_lea.vmem %s7, 64
    %v1800 = vld [vmem:[%s1799] sm:$0xff]
    %v1801 = vld [vmem:[%s1799 + $0x8] sm:$0xff]
    %v1802 = vld [vmem:[%s1799 + $0x10] sm:$0xff]
    %v1803 = vld [vmem:[%s1799 + $0x18] sm:$0xff]
    %s1804 = scalar_lea.vmem %s8, 2
    %v1805 = vld [vmem:[%s1804] sm:$0x1]
    %v1807 = vlaneseq
    %v1808 = vshrl.u32 %v1807, 7
    %v1809 = vsub.s32 0, %v1808
    %v1810 = vrot.slane %v1805, %v1809
    %1812 = vmatprep.subr.mxu0 0.0
    %1813 = vmatpush1.msra.mxu0 %v1800
    %1814 = vmatprep.subr.mxu0 0.0
    %1815 = vmatpush1.msra.mxu0 %v1801
    %1816 = vmatprep.subr.mxu0 0.0
    %1817 = vmatpush1.msra.mxu0 %v1802
    %1818 = vmatprep.subr.mxu0 0.0
    %1819 = vmatpush1.msra.mxu0 %v1803
    %1820 = vmatprep.subr.mxu0 0.0
    %1821 = vmatpush1.msra.mxu0 0.0
    %1822 = vmatprep.subr.mxu0 0.0
    %1823 = vmatpush1.msra.mxu0 0.0
    %1824 = vmatprep.subr.mxu0 0.0
    %1825 = vmatpush1.msra.mxu0 0.0
    %1826 = vmatprep.subr.mxu0 0.0
    %1827 = vmatpush1.msra.mxu0 0.0
    %1828 = vmatprep.subr.mxu0 0.0
    %1829 = vmatpush1.msra.mxu0 0.0
    %1830 = vmatprep.subr.mxu0 0.0
    %1831 = vmatpush1.msra.mxu0 0.0
    %1832 = vmatprep.subr.mxu0 0.0
    %1833 = vmatpush1.msra.mxu0 0.0
    %1834 = vmatprep.subr.mxu0 0.0
    %1835 = vmatpush1.msra.mxu0 0.0
    %1836 = vmatprep.subr.mxu0 0.0
    %1837 = vmatpush1.msra.mxu0 0.0
    %1838 = vmatprep.subr.mxu0 0.0
    %1839 = vmatpush1.msra.mxu0 0.0
    %1840 = vmatprep.subr.mxu0 0.0
    %1841 = vmatpush1.msra.mxu0 0.0
    %1842 = vmatprep.subr.mxu0 0.0
    %1843 = vmatpush1.msra.mxu0 0.0
    %1844 = vmatprep.subr.mxu0 0.0
    %1845 = vmatpush1.msra.mxu0 0.0
    %1846 = vmatprep.subr.mxu0 0.0
    %1847 = vmatpush1.msra.mxu0 0.0
    %1848 = vmatprep.subr.mxu0 0.0
    %1849 = vmatpush1.msra.mxu0 0.0
    %1850 = vmatprep.subr.mxu0 0.0
    %1851 = vmatpush1.msra.mxu0 0.0
    %1852 = vmatprep.subr.mxu0 0.0
    %1853 = vmatpush1.msra.mxu0 0.0
    %1854 = vmatprep.subr.mxu0 0.0
    %1855 = vmatpush1.msra.mxu0 0.0
    %1856 = vmatprep.subr.mxu0 0.0
    %1857 = vmatpush1.msra.mxu0 0.0
    %1858 = vmatprep.subr.mxu0 0.0
    %1859 = vmatpush1.msra.mxu0 0.0
    %1860 = vmatprep.subr.mxu0 0.0
    %1861 = vmatpush1.msra.mxu0 0.0
    %1862 = vmatprep.subr.mxu0 0.0
    %1863 = vmatpush1.msra.mxu0 0.0
    %1864 = vmatprep.subr.mxu0 0.0
    %1865 = vmatpush1.msra.mxu0 0.0
    %1866 = vmatprep.subr.mxu0 0.0
    %1867 = vmatpush1.msra.mxu0 0.0
    %1868 = vmatprep.subr.mxu0 0.0
    %1869 = vmatpush1.msra.mxu0 0.0
    %1870 = vmatprep.subr.mxu0 0.0
    %1871 = vmatpush1.msra.mxu0 0.0
    %1872 = vmatprep.subr.mxu0 0.0
    %1873 = vmatpush1.msra.mxu0 0.0
    %1874 = vmatprep.subr.mxu0 0.0
    %1875 = vmatpush1.msra.mxu0 0.0
    %1876 = vmatprep.mubr.f32.mxu0 0.0
    %1877 = vmatmul.mubr.f32.gmra.mrb[0].mxu0 %v248
    %v1878 = vpop.f32.mrb[0].mxu0
    %v1879 = vadd.f32 %v1810, %v1878
    %v1880 = vpop.f32.mrb[0].mxu0
    %1881 = vmatprep.mubr.f32.mxu0 0.0
    %1882 = vmatmul.mubr.f32.gmra.mrb[0].mxu0 %v251
    %v1883 = vpop.f32.mrb[0].mxu0
    %v1884 = vadd.f32 %v1810, %v1883
    %v1885 = vpop.f32.mrb[0].mxu0
    %1886 = vdwg.mxu0
    %v1888 = vsel %vm328, %v1703, 0
    %v1891 = vsel %vm328, %v1791, 0
    %1893 = vmatprep.subr.mxu0 0.0
    %1894 = vmatpush1.xpose.msra.mxu0 %v1891
    %1895 = vmatprep.subr.mxu0 0.0
    %1896 = vmatpush1.xpose.msra.mxu0 0.0
    %1897 = vmatprep.subr.mxu0 0.0
    %1898 = vmatpush1.xpose.msra.mxu0 0.0
    %1899 = vmatprep.subr.mxu0 0.0
    %1900 = vmatpush1.xpose.msra.mxu0 0.0
    %1901 = vmatprep.subr.mxu0 0.0
    %1902 = vmatpush1.xpose.msra.mxu0 0.0
    %1903 = vmatprep.subr.mxu0 0.0
    %1904 = vmatpush1.xpose.msra.mxu0 0.0
    %1905 = vmatprep.subr.mxu0 0.0
    %1906 = vmatpush1.xpose.msra.mxu0 0.0
    %1907 = vmatprep.subr.mxu0 0.0
    %1908 = vmatpush1.xpose.msra.mxu0 0.0
    %1909 = vmatprep.subr.mxu0 0.0
    %1910 = vmatpush1.xpose.msra.mxu0 0.0
    %1911 = vmatprep.subr.mxu0 0.0
    %1912 = vmatpush1.xpose.msra.mxu0 0.0
    %1913 = vmatprep.subr.mxu0 0.0
    %1914 = vmatpush1.xpose.msra.mxu0 0.0
    %1915 = vmatprep.subr.mxu0 0.0
    %1916 = vmatpush1.xpose.msra.mxu0 0.0
    %1917 = vmatprep.subr.mxu0 0.0
    %1918 = vmatpush1.xpose.msra.mxu0 0.0
    %1919 = vmatprep.subr.mxu0 0.0
    %1920 = vmatpush1.xpose.msra.mxu0 0.0
    %1921 = vmatprep.subr.mxu0 0.0
    %1922 = vmatpush1.xpose.msra.mxu0 0.0
    %1923 = vmatprep.subr.mxu0 0.0
    %1924 = vmatpush1.xpose.msra.mxu0 0.0
    %1925 = vmatprep.subr.mxu0 0.0
    %1926 = vmatpush1.xpose.msra.mxu0 0.0
    %1927 = vmatprep.subr.mxu0 0.0
    %1928 = vmatpush1.xpose.msra.mxu0 0.0
    %1929 = vmatprep.subr.mxu0 0.0
    %1930 = vmatpush1.xpose.msra.mxu0 0.0
    %1931 = vmatprep.subr.mxu0 0.0
    %1932 = vmatpush1.xpose.msra.mxu0 0.0
    %1933 = vmatprep.subr.mxu0 0.0
    %1934 = vmatpush1.xpose.msra.mxu0 0.0
    %1935 = vmatprep.subr.mxu0 0.0
    %1936 = vmatpush1.xpose.msra.mxu0 0.0
    %1937 = vmatprep.subr.mxu0 0.0
    %1938 = vmatpush1.xpose.msra.mxu0 0.0
    %1939 = vmatprep.subr.mxu0 0.0
    %1940 = vmatpush1.xpose.msra.mxu0 0.0
    %1941 = vmatprep.subr.mxu0 0.0
    %1942 = vmatpush1.xpose.msra.mxu0 0.0
    %1943 = vmatprep.subr.mxu0 0.0
    %1944 = vmatpush1.xpose.msra.mxu0 0.0
    %1945 = vmatprep.subr.mxu0 0.0
    %1946 = vmatpush1.xpose.msra.mxu0 0.0
    %1947 = vmatprep.subr.mxu0 0.0
    %1948 = vmatpush1.xpose.msra.mxu0 0.0
    %1949 = vmatprep.subr.mxu0 0.0
    %1950 = vmatpush1.xpose.msra.mxu0 0.0
    %1951 = vmatprep.subr.mxu0 0.0
    %1952 = vmatpush1.xpose.msra.mxu0 0.0
    %1953 = vmatprep.subr.mxu0 0.0
    %1954 = vmatpush1.xpose.msra.mxu0 0.0
    %1955 = vmatprep.subr.mxu0 0.0
    %1956 = vmatpush1.xpose.msra.mxu0 0.0
    %1957 = vmatprep.mubr.f32.mxu0 0.0
    %1958 = vmatmul.mubr.f32.gmra.mrb[0].mxu0 %v1888
    %v1959 = vpop.f32.mrb[0].mxu0
    %v1960 = vadd.f32 0.0, %v1959
    %v1961 = vpop.f32.mrb[0].mxu0
    %1962 = vdwg.mxu0
    %v1964 = vsel %vm328, %v1708, 0
    %v1967 = vsel %vm328, %v1796, 0
    %1969 = vmatprep.subr.mxu0 0.0
    %1970 = vmatpush1.xpose.msra.mxu0 %v1967
    %1971 = vmatprep.subr.mxu0 0.0
    %1972 = vmatpush1.xpose.msra.mxu0 0.0
    %1973 = vmatprep.subr.mxu0 0.0
    %1974 = vmatpush1.xpose.msra.mxu0 0.0
    %1975 = vmatprep.subr.mxu0 0.0
    %1976 = vmatpush1.xpose.msra.mxu0 0.0
    %1977 = vmatprep.subr.mxu0 0.0
    %1978 = vmatpush1.xpose.msra.mxu0 0.0
    %1979 = vmatprep.subr.mxu0 0.0
    %1980 = vmatpush1.xpose.msra.mxu0 0.0
    %1981 = vmatprep.subr.mxu0 0.0
    %1982 = vmatpush1.xpose.msra.mxu0 0.0
    %1983 = vmatprep.subr.mxu0 0.0
    %1984 = vmatpush1.xpose.msra.mxu0 0.0
    %1985 = vmatprep.subr.mxu0 0.0
    %1986 = vmatpush1.xpose.msra.mxu0 0.0
    %1987 = vmatprep.subr.mxu0 0.0
    %1988 = vmatpush1.xpose.msra.mxu0 0.0
    %1989 = vmatprep.subr.mxu0 0.0
    %1990 = vmatpush1.xpose.msra.mxu0 0.0
    %1991 = vmatprep.subr.mxu0 0.0
    %1992 = vmatpush1.xpose.msra.mxu0 0.0
    %1993 = vmatprep.subr.mxu0 0.0
    %1994 = vmatpush1.xpose.msra.mxu0 0.0
    %1995 = vmatprep.subr.mxu0 0.0
    %1996 = vmatpush1.xpose.msra.mxu0 0.0
    %1997 = vmatprep.subr.mxu0 0.0
    %1998 = vmatpush1.xpose.msra.mxu0 0.0
    %1999 = vmatprep.subr.mxu0 0.0
    %2000 = vmatpush1.xpose.msra.mxu0 0.0
    %2001 = vmatprep.subr.mxu0 0.0
    %2002 = vmatpush1.xpose.msra.mxu0 0.0
    %2003 = vmatprep.subr.mxu0 0.0
    %2004 = vmatpush1.xpose.msra.mxu0 0.0
    %2005 = vmatprep.subr.mxu0 0.0
    %2006 = vmatpush1.xpose.msra.mxu0 0.0
    %2007 = vmatprep.subr.mxu0 0.0
    %2008 = vmatpush1.xpose.msra.mxu0 0.0
    %2009 = vmatprep.subr.mxu0 0.0
    %2010 = vmatpush1.xpose.msra.mxu0 0.0
    %2011 = vmatprep.subr.mxu0 0.0
    %2012 = vmatpush1.xpose.msra.mxu0 0.0
    %2013 = vmatprep.subr.mxu0 0.0
    %2014 = vmatpush1.xpose.msra.mxu0 0.0
    %2015 = vmatprep.subr.mxu0 0.0
    %2016 = vmatpush1.xpose.msra.mxu0 0.0
    %2017 = vmatprep.subr.mxu0 0.0
    %2018 = vmatpush1.xpose.msra.mxu0 0.0
    %2019 = vmatprep.subr.mxu0 0.0
    %2020 = vmatpush1.xpose.msra.mxu0 0.0
    %2021 = vmatprep.subr.mxu0 0.0
    %2022 = vmatpush1.xpose.msra.mxu0 0.0
    %2023 = vmatprep.subr.mxu0 0.0
    %2024 = vmatpush1.xpose.msra.mxu0 0.0
    %2025 = vmatprep.subr.mxu0 0.0
    %2026 = vmatpush1.xpose.msra.mxu0 0.0
    %2027 = vmatprep.subr.mxu0 0.0
    %2028 = vmatpush1.xpose.msra.mxu0 0.0
    %2029 = vmatprep.subr.mxu0 0.0
    %2030 = vmatpush1.xpose.msra.mxu0 0.0
    %2031 = vmatprep.subr.mxu0 0.0
    %2032 = vmatpush1.xpose.msra.mxu0 0.0
    %2033 = vmatprep.mubr.f32.mxu0 0.0
    %2034 = vmatmul.mubr.f32.gmra.mrb[0].mxu0 %v1964
    %v2035 = vpop.f32.mrb[0].mxu0
    %v2036 = vadd.f32 0.0, %v2035
    %v2037 = vpop.f32.mrb[0].mxu0
    %2038 = vdwg.mxu0
    %v2039 = vmul.f32 %v1960, 0.25
    %v2040 = vmul.f32 %v2036, 0.25
    %s2041 = scalar_lea.vmem %s11, 16
    %v2042 = vld [vmem:[%s2041] sm:$0xff]
    %v2044 = vsel %vm328, %v2042, 0
    %2046 = vmatprep.subr.mxu0 0.0
    %2047 = vmatpush1.xpose.msra.mxu0 %v2044
    %2048 = vmatprep.subr.mxu0 0.0
    %2049 = vmatpush1.xpose.msra.mxu0 0.0
    %2050 = vmatprep.subr.mxu0 0.0
    %2051 = vmatpush1.xpose.msra.mxu0 0.0
    %2052 = vmatprep.subr.mxu0 0.0
    %2053 = vmatpush1.xpose.msra.mxu0 0.0
    %2054 = vmatprep.subr.mxu0 0.0
    %2055 = vmatpush1.xpose.msra.mxu0 0.0
    %2056 = vmatprep.subr.mxu0 0.0
    %2057 = vmatpush1.xpose.msra.mxu0 0.0
    %2058 = vmatprep.subr.mxu0 0.0
    %2059 = vmatpush1.xpose.msra.mxu0 0.0
    %2060 = vmatprep.subr.mxu0 0.0
    %2061 = vmatpush1.xpose.msra.mxu0 0.0
    %2062 = vmatprep.subr.mxu0 0.0
    %2063 = vmatpush1.xpose.msra.mxu0 0.0
    %2064 = vmatprep.subr.mxu0 0.0
    %2065 = vmatpush1.xpose.msra.mxu0 0.0
    %2066 = vmatprep.subr.mxu0 0.0
    %2067 = vmatpush1.xpose.msra.mxu0 0.0
    %2068 = vmatprep.subr.mxu0 0.0
    %2069 = vmatpush1.xpose.msra.mxu0 0.0
    %2070 = vmatprep.subr.mxu0 0.0
    %2071 = vmatpush1.xpose.msra.mxu0 0.0
    %2072 = vmatprep.subr.mxu0 0.0
    %2073 = vmatpush1.xpose.msra.mxu0 0.0
    %2074 = vmatprep.subr.mxu0 0.0
    %2075 = vmatpush1.xpose.msra.mxu0 0.0
    %2076 = vmatprep.subr.mxu0 0.0
    %2077 = vmatpush1.xpose.msra.mxu0 0.0
    %2078 = vmatprep.subr.mxu0 0.0
    %2079 = vmatpush1.xpose.msra.mxu0 0.0
    %2080 = vmatprep.subr.mxu0 0.0
    %2081 = vmatpush1.xpose.msra.mxu0 0.0
    %2082 = vmatprep.subr.mxu0 0.0
    %2083 = vmatpush1.xpose.msra.mxu0 0.0
    %2084 = vmatprep.subr.mxu0 0.0
    %2085 = vmatpush1.xpose.msra.mxu0 0.0
    %2086 = vmatprep.subr.mxu0 0.0
    %2087 = vmatpush1.xpose.msra.mxu0 0.0
    %2088 = vmatprep.subr.mxu0 0.0
    %2089 = vmatpush1.xpose.msra.mxu0 0.0
    %2090 = vmatprep.subr.mxu0 0.0
    %2091 = vmatpush1.xpose.msra.mxu0 0.0
    %2092 = vmatprep.subr.mxu0 0.0
    %2093 = vmatpush1.xpose.msra.mxu0 0.0
    %2094 = vmatprep.subr.mxu0 0.0
    %2095 = vmatpush1.xpose.msra.mxu0 0.0
    %2096 = vmatprep.subr.mxu0 0.0
    %2097 = vmatpush1.xpose.msra.mxu0 0.0
    %2098 = vmatprep.subr.mxu0 0.0
    %2099 = vmatpush1.xpose.msra.mxu0 0.0
    %2100 = vmatprep.subr.mxu0 0.0
    %2101 = vmatpush1.xpose.msra.mxu0 0.0
    %2102 = vmatprep.subr.mxu0 0.0
    %2103 = vmatpush1.xpose.msra.mxu0 0.0
    %2104 = vmatprep.subr.mxu0 0.0
    %2105 = vmatpush1.xpose.msra.mxu0 0.0
    %2106 = vmatprep.subr.mxu0 0.0
    %2107 = vmatpush1.xpose.msra.mxu0 0.0
    %2108 = vmatprep.subr.mxu0 0.0
    %2109 = vmatpush1.xpose.msra.mxu0 0.0
    %2110 = vmatprep.mubr.f32.mxu0 0.0
    %2111 = vmatmul.mubr.f32.gmra.mrb[0].mxu0 %v1888
    %v2112 = vpop.f32.mrb[0].mxu0
    %v2113 = vadd.f32 0.0, %v2112
    %v2114 = vpop.f32.mrb[0].mxu0
    %2115 = vmatprep.mubr.f32.mxu0 0.0
    %2116 = vmatmul.mubr.f32.gmra.mrb[0].mxu0 %v1964
    %v2117 = vpop.f32.mrb[0].mxu0
    %v2118 = vadd.f32 0.0, %v2117
    %v2119 = vpop.f32.mrb[0].mxu0
    %2120 = vdwg.mxu0
    %v2121 = vsel %vm562, %v2039, -inf
    %2122 = vmax.xlane.f32.xlu0 %v2121
    %v2123 = vpop.xlane.xlu0 %2122
    %v2124 = vsel %vm562, %v2040, -inf
    %2125 = vmax.xlane.f32.xlu0 %v2124
    %v2126 = vpop.xlane.xlu0 %2125
    %v2127 = vsel %vm562, %v2113, -inf
    %2128 = vmax.xlane.f32.xlu0 %v2127
    %v2129 = vpop.xlane.xlu0 %2128
    %v2130 = vsel %vm562, %v2118, -inf
    %2131 = vmax.xlane.f32.xlu0 %v2130
    %v2132 = vpop.xlane.xlu0 %2131
    %v2133 = vmax.f32 %v2123, %v2129
    %v2134 = vmax.f32 %v2126, %v2132
    %v2135 = vsub.f32 %v2039, %v2133
    %v2136 = vsub.f32 %v2040, %v2134
    %v2137 = vmul.f32 %v2135, 1.442695
    %v2138 = vpow.pop %v2137
    %v2139 = vmul.f32 %v2136, 1.442695
    %v2140 = vpow.pop %v2139
    %v2141 = vsub.f32 %v2113, %v2133
    %v2142 = vsub.f32 %v2118, %v2134
    %v2143 = vmul.f32 %v2141, 1.442695
    %v2144 = vpow.pop %v2143
    %v2145 = vmul.f32 %v2142, 1.442695
    %v2146 = vpow.pop %v2145
    %v2147 = vsel %vm562, %v2138, 0.0
    %2148 = vadd.xlane.f32.xlu0 %v2147
    %v2149 = vpop.xlane.xlu0 %2148
    %v2150 = vsel %vm562, %v2140, 0.0
    %2151 = vadd.xlane.f32.xlu0 %v2150
    %v2152 = vpop.xlane.xlu0 %2151
    %v2153 = vsel %vm562, %v2144, 0.0
    %2154 = vadd.xlane.f32.xlu0 %v2153
    %v2155 = vpop.xlane.xlu0 %2154
    %v2156 = vsel %vm562, %v2146, 0.0
    %2157 = vadd.xlane.f32.xlu0 %v2156
    %v2158 = vpop.xlane.xlu0 %2157
    %v2159 = vadd.f32 %v2149, %v2155
    %v2160 = vadd.f32 %v2152, %v2158
    %v2162 = vsel %vm562, %v2138, 0
    %2164 = vmatprep.subr.mxu0 0.0
    %2165 = vmatpush1.msra.mxu0 %v1879
    %2166 = vmatprep.subr.mxu0 0.0
    %2167 = vmatpush1.msra.mxu0 0.0
    %2168 = vmatprep.subr.mxu0 0.0
    %2169 = vmatpush1.msra.mxu0 0.0
    %2170 = vmatprep.subr.mxu0 0.0
    %2171 = vmatpush1.msra.mxu0 0.0
    %2172 = vmatprep.subr.mxu0 0.0
    %2173 = vmatpush1.msra.mxu0 0.0
    %2174 = vmatprep.subr.mxu0 0.0
    %2175 = vmatpush1.msra.mxu0 0.0
    %2176 = vmatprep.subr.mxu0 0.0
    %2177 = vmatpush1.msra.mxu0 0.0
    %2178 = vmatprep.subr.mxu0 0.0
    %2179 = vmatpush1.msra.mxu0 0.0
    %2180 = vmatprep.subr.mxu0 0.0
    %2181 = vmatpush1.msra.mxu0 0.0
    %2182 = vmatprep.subr.mxu0 0.0
    %2183 = vmatpush1.msra.mxu0 0.0
    %2184 = vmatprep.subr.mxu0 0.0
    %2185 = vmatpush1.msra.mxu0 0.0
    %2186 = vmatprep.subr.mxu0 0.0
    %2187 = vmatpush1.msra.mxu0 0.0
    %2188 = vmatprep.subr.mxu0 0.0
    %2189 = vmatpush1.msra.mxu0 0.0
    %2190 = vmatprep.subr.mxu0 0.0
    %2191 = vmatpush1.msra.mxu0 0.0
    %2192 = vmatprep.subr.mxu0 0.0
    %2193 = vmatpush1.msra.mxu0 0.0
    %2194 = vmatprep.subr.mxu0 0.0
    %2195 = vmatpush1.msra.mxu0 0.0
    %2196 = vmatprep.subr.mxu0 0.0
    %2197 = vmatpush1.msra.mxu0 0.0
    %2198 = vmatprep.subr.mxu0 0.0
    %2199 = vmatpush1.msra.mxu0 0.0
    %2200 = vmatprep.subr.mxu0 0.0
    %2201 = vmatpush1.msra.mxu0 0.0
    %2202 = vmatprep.subr.mxu0 0.0
    %2203 = vmatpush1.msra.mxu0 0.0
    %2204 = vmatprep.subr.mxu0 0.0
    %2205 = vmatpush1.msra.mxu0 0.0
    %2206 = vmatprep.subr.mxu0 0.0
    %2207 = vmatpush1.msra.mxu0 0.0
    %2208 = vmatprep.subr.mxu0 0.0
    %2209 = vmatpush1.msra.mxu0 0.0
    %2210 = vmatprep.subr.mxu0 0.0
    %2211 = vmatpush1.msra.mxu0 0.0
    %2212 = vmatprep.subr.mxu0 0.0
    %2213 = vmatpush1.msra.mxu0 0.0
    %2214 = vmatprep.subr.mxu0 0.0
    %2215 = vmatpush1.msra.mxu0 0.0
    %2216 = vmatprep.subr.mxu0 0.0
    %2217 = vmatpush1.msra.mxu0 0.0
    %2218 = vmatprep.subr.mxu0 0.0
    %2219 = vmatpush1.msra.mxu0 0.0
    %2220 = vmatprep.subr.mxu0 0.0
    %2221 = vmatpush1.msra.mxu0 0.0
    %2222 = vmatprep.subr.mxu0 0.0
    %2223 = vmatpush1.msra.mxu0 0.0
    %2224 = vmatprep.subr.mxu0 0.0
    %2225 = vmatpush1.msra.mxu0 0.0
    %2226 = vmatprep.subr.mxu0 0.0
    %2227 = vmatpush1.msra.mxu0 0.0
    %2228 = vmatprep.mubr.f32.mxu0 0.0
    %2229 = vmatmul.mubr.f32.gmra.mrb[0].mxu0 %v2162
    %v2230 = vpop.f32.mrb[0].mxu0
    %v2231 = vadd.f32 0.0, %v2230
    %v2232 = vpop.f32.mrb[0].mxu0
    %2233 = vdwg.mxu0
    %v2235 = vsel %vm562, %v2140, 0
    %2237 = vmatprep.subr.mxu0 0.0
    %2238 = vmatpush1.msra.mxu0 %v1884
    %2239 = vmatprep.subr.mxu0 0.0
    %2240 = vmatpush1.msra.mxu0 0.0
    %2241 = vmatprep.subr.mxu0 0.0
    %2242 = vmatpush1.msra.mxu0 0.0
    %2243 = vmatprep.subr.mxu0 0.0
    %2244 = vmatpush1.msra.mxu0 0.0
    %2245 = vmatprep.subr.mxu0 0.0
    %2246 = vmatpush1.msra.mxu0 0.0
    %2247 = vmatprep.subr.mxu0 0.0
    %2248 = vmatpush1.msra.mxu0 0.0
    %2249 = vmatprep.subr.mxu0 0.0
    %2250 = vmatpush1.msra.mxu0 0.0
    %2251 = vmatprep.subr.mxu0 0.0
    %2252 = vmatpush1.msra.mxu0 0.0
    %2253 = vmatprep.subr.mxu0 0.0
    %2254 = vmatpush1.msra.mxu0 0.0
    %2255 = vmatprep.subr.mxu0 0.0
    %2256 = vmatpush1.msra.mxu0 0.0
    %2257 = vmatprep.subr.mxu0 0.0
    %2258 = vmatpush1.msra.mxu0 0.0
    %2259 = vmatprep.subr.mxu0 0.0
    %2260 = vmatpush1.msra.mxu0 0.0
    %2261 = vmatprep.subr.mxu0 0.0
    %2262 = vmatpush1.msra.mxu0 0.0
    %2263 = vmatprep.subr.mxu0 0.0
    %2264 = vmatpush1.msra.mxu0 0.0
    %2265 = vmatprep.subr.mxu0 0.0
    %2266 = vmatpush1.msra.mxu0 0.0
    %2267 = vmatprep.subr.mxu0 0.0
    %2268 = vmatpush1.msra.mxu0 0.0
    %2269 = vmatprep.subr.mxu0 0.0
    %2270 = vmatpush1.msra.mxu0 0.0
    %2271 = vmatprep.subr.mxu0 0.0
    %2272 = vmatpush1.msra.mxu0 0.0
    %2273 = vmatprep.subr.mxu0 0.0
    %2274 = vmatpush1.msra.mxu0 0.0
    %2275 = vmatprep.subr.mxu0 0.0
    %2276 = vmatpush1.msra.mxu0 0.0
    %2277 = vmatprep.subr.mxu0 0.0
    %2278 = vmatpush1.msra.mxu0 0.0
    %2279 = vmatprep.subr.mxu0 0.0
    %2280 = vmatpush1.msra.mxu0 0.0
    %2281 = vmatprep.subr.mxu0 0.0
    %2282 = vmatpush1.msra.mxu0 0.0
    %2283 = vmatprep.subr.mxu0 0.0
    %2284 = vmatpush1.msra.mxu0 0.0
    %2285 = vmatprep.subr.mxu0 0.0
    %2286 = vmatpush1.msra.mxu0 0.0
    %2287 = vmatprep.subr.mxu0 0.0
    %2288 = vmatpush1.msra.mxu0 0.0
    %2289 = vmatprep.subr.mxu0 0.0
    %2290 = vmatpush1.msra.mxu0 0.0
    %2291 = vmatprep.subr.mxu0 0.0
    %2292 = vmatpush1.msra.mxu0 0.0
    %2293 = vmatprep.subr.mxu0 0.0
    %2294 = vmatpush1.msra.mxu0 0.0
    %2295 = vmatprep.subr.mxu0 0.0
    %2296 = vmatpush1.msra.mxu0 0.0
    %2297 = vmatprep.subr.mxu0 0.0
    %2298 = vmatpush1.msra.mxu0 0.0
    %2299 = vmatprep.subr.mxu0 0.0
    %2300 = vmatpush1.msra.mxu0 0.0
    %2301 = vmatprep.mubr.f32.mxu0 0.0
    %2302 = vmatmul.mubr.f32.gmra.mrb[0].mxu0 %v2235
    %v2303 = vpop.f32.mrb[0].mxu0
    %v2304 = vadd.f32 0.0, %v2303
    %v2305 = vpop.f32.mrb[0].mxu0
    %2306 = vdwg.mxu0
    %s2307 = scalar_lea.vmem %s12, 16
    %v2308 = vld [vmem:[%s2307] sm:$0xff]
    %v2310 = vsel %vm562, %v2144, 0
    %v2313 = vsel %vm562, %v2146, 0
    %2315 = vmatprep.subr.mxu0 0.0
    %2316 = vmatpush1.msra.mxu0 %v2308
    %2317 = vmatprep.subr.mxu0 0.0
    %2318 = vmatpush1.msra.mxu0 0.0
    %2319 = vmatprep.subr.mxu0 0.0
    %2320 = vmatpush1.msra.mxu0 0.0
    %2321 = vmatprep.subr.mxu0 0.0
    %2322 = vmatpush1.msra.mxu0 0.0
    %2323 = vmatprep.subr.mxu0 0.0
    %2324 = vmatpush1.msra.mxu0 0.0
    %2325 = vmatprep.subr.mxu0 0.0
    %2326 = vmatpush1.msra.mxu0 0.0
    %2327 = vmatprep.subr.mxu0 0.0
    %2328 = vmatpush1.msra.mxu0 0.0
    %2329 = vmatprep.subr.mxu0 0.0
    %2330 = vmatpush1.msra.mxu0 0.0
    %2331 = vmatprep.subr.mxu0 0.0
    %2332 = vmatpush1.msra.mxu0 0.0
    %2333 = vmatprep.subr.mxu0 0.0
    %2334 = vmatpush1.msra.mxu0 0.0
    %2335 = vmatprep.subr.mxu0 0.0
    %2336 = vmatpush1.msra.mxu0 0.0
    %2337 = vmatprep.subr.mxu0 0.0
    %2338 = vmatpush1.msra.mxu0 0.0
    %2339 = vmatprep.subr.mxu0 0.0
    %2340 = vmatpush1.msra.mxu0 0.0
    %2341 = vmatprep.subr.mxu0 0.0
    %2342 = vmatpush1.msra.mxu0 0.0
    %2343 = vmatprep.subr.mxu0 0.0
    %2344 = vmatpush1.msra.mxu0 0.0
    %2345 = vmatprep.subr.mxu0 0.0
    %2346 = vmatpush1.msra.mxu0 0.0
    %2347 = vmatprep.subr.mxu0 0.0
    %2348 = vmatpush1.msra.mxu0 0.0
    %2349 = vmatprep.subr.mxu0 0.0
    %2350 = vmatpush1.msra.mxu0 0.0
    %2351 = vmatprep.subr.mxu0 0.0
    %2352 = vmatpush1.msra.mxu0 0.0
    %2353 = vmatprep.subr.mxu0 0.0
    %2354 = vmatpush1.msra.mxu0 0.0
    %2355 = vmatprep.subr.mxu0 0.0
    %2356 = vmatpush1.msra.mxu0 0.0
    %2357 = vmatprep.subr.mxu0 0.0
    %2358 = vmatpush1.msra.mxu0 0.0
    %2359 = vmatprep.subr.mxu0 0.0
    %2360 = vmatpush1.msra.mxu0 0.0
    %2361 = vmatprep.subr.mxu0 0.0
    %2362 = vmatpush1.msra.mxu0 0.0
    %2363 = vmatprep.subr.mxu0 0.0
    %2364 = vmatpush1.msra.mxu0 0.0
    %2365 = vmatprep.subr.mxu0 0.0
    %2366 = vmatpush1.msra.mxu0 0.0
    %2367 = vmatprep.subr.mxu0 0.0
    %2368 = vmatpush1.msra.mxu0 0.0
    %2369 = vmatprep.subr.mxu0 0.0
    %2370 = vmatpush1.msra.mxu0 0.0
    %2371 = vmatprep.subr.mxu0 0.0
    %2372 = vmatpush1.msra.mxu0 0.0
    %2373 = vmatprep.subr.mxu0 0.0
    %2374 = vmatpush1.msra.mxu0 0.0
    %2375 = vmatprep.subr.mxu0 0.0
    %2376 = vmatpush1.msra.mxu0 0.0
    %2377 = vmatprep.subr.mxu0 0.0
    %2378 = vmatpush1.msra.mxu0 0.0
    %2379 = vmatprep.mubr.f32.mxu0 0.0
    %2380 = vmatmul.mubr.f32.gmra.mrb[0].mxu0 %v2310
    %v2381 = vpop.f32.mrb[0].mxu0
    %v2382 = vadd.f32 0.0, %v2381
    %v2383 = vpop.f32.mrb[0].mxu0
    %2384 = vmatprep.mubr.f32.mxu0 0.0
    %2385 = vmatmul.mubr.f32.gmra.mrb[0].mxu0 %v2313
    %v2386 = vpop.f32.mrb[0].mxu0
    %v2387 = vadd.f32 0.0, %v2386
    %v2388 = vpop.f32.mrb[0].mxu0
    %2389 = vdwg.mxu0
    %v2390 = vadd.f32 %v2231, %v2382
    %v2391 = vadd.f32 %v2304, %v2387
    %v2392 = vrcp.pop %v2159
    %v2393 = vrcp.pop %v2160
    %v2394 = vmul.f32 %v2390, %v2392
    %v2395 = vmul.f32 %v2391, %v2393
    %2398 = vrot.lane.b32.xlu0 %v2394, 32
    %v2399 = vpop.permute.xlu0 %2398
    %2400 = vrot.lane.b32.xlu0 %v2395, 32
    %v2401 = vpop.permute.xlu0 %2400
    %vm2404 = vcmask 392448
    %2405 = vst.msk [vmem:[#allocation2] sm:$0xff] %vm2404, %v2399
    %2406 = vst.msk [vmem:[#allocation2 + $0x8] sm:$0xff] %vm2404, %v2401
    %s2407 = scalar_lea.vmem %s3, 96
    %v2408 = vld [vmem:[%s2407] sm:$0xff]
    %v2409 = vld [vmem:[%s2407 + $0x8] sm:$0xff]
    %v2410 = vld [vmem:[%s2407 + $0x10] sm:$0xff]
    %v2411 = vld [vmem:[%s2407 + $0x18] sm:$0xff]
    %s2412 = scalar_lea.vmem %s4, 3
    %v2413 = vld [vmem:[%s2412] sm:$0x1]
    %v2415 = vlaneseq
    %v2416 = vshrl.u32 %v2415, 7
    %v2417 = vsub.s32 0, %v2416
    %v2418 = vrot.slane %v2413, %v2417
    %2420 = vmatprep.subr.mxu0 0.0
    %2421 = vmatpush1.msra.mxu0 %v2408
    %2422 = vmatprep.subr.mxu0 0.0
    %2423 = vmatpush1.msra.mxu0 %v2409
    %2424 = vmatprep.subr.mxu0 0.0
    %2425 = vmatpush1.msra.mxu0 %v2410
    %2426 = vmatprep.subr.mxu0 0.0
    %2427 = vmatpush1.msra.mxu0 %v2411
    %2428 = vmatprep.subr.mxu0 0.0
    %2429 = vmatpush1.msra.mxu0 0.0
    %2430 = vmatprep.subr.mxu0 0.0
    %2431 = vmatpush1.msra.mxu0 0.0
    %2432 = vmatprep.subr.mxu0 0.0
    %2433 = vmatpush1.msra.mxu0 0.0
    %2434 = vmatprep.subr.mxu0 0.0
    %2435 = vmatpush1.msra.mxu0 0.0
    %2436 = vmatprep.subr.mxu0 0.0
    %2437 = vmatpush1.msra.mxu0 0.0
    %2438 = vmatprep.subr.mxu0 0.0
    %2439 = vmatpush1.msra.mxu0 0.0
    %2440 = vmatprep.subr.mxu0 0.0
    %2441 = vmatpush1.msra.mxu0 0.0
    %2442 = vmatprep.subr.mxu0 0.0
    %2443 = vmatpush1.msra.mxu0 0.0
    %2444 = vmatprep.subr.mxu0 0.0
    %2445 = vmatpush1.msra.mxu0 0.0
    %2446 = vmatprep.subr.mxu0 0.0
    %2447 = vmatpush1.msra.mxu0 0.0
    %2448 = vmatprep.subr.mxu0 0.0
    %2449 = vmatpush1.msra.mxu0 0.0
    %2450 = vmatprep.subr.mxu0 0.0
    %2451 = vmatpush1.msra.mxu0 0.0
    %2452 = vmatprep.subr.mxu0 0.0
    %2453 = vmatpush1.msra.mxu0 0.0
    %2454 = vmatprep.subr.mxu0 0.0
    %2455 = vmatpush1.msra.mxu0 0.0
    %2456 = vmatprep.subr.mxu0 0.0
    %2457 = vmatpush1.msra.mxu0 0.0
    %2458 = vmatprep.subr.mxu0 0.0
    %2459 = vmatpush1.msra.mxu0 0.0
    %2460 = vmatprep.subr.mxu0 0.0
    %2461 = vmatpush1.msra.mxu0 0.0
    %2462 = vmatprep.subr.mxu0 0.0
    %2463 = vmatpush1.msra.mxu0 0.0
    %2464 = vmatprep.subr.mxu0 0.0
    %2465 = vmatpush1.msra.mxu0 0.0
    %2466 = vmatprep.subr.mxu0 0.0
    %2467 = vmatpush1.msra.mxu0 0.0
    %2468 = vmatprep.subr.mxu0 0.0
    %2469 = vmatpush1.msra.mxu0 0.0
    %2470 = vmatprep.subr.mxu0 0.0
    %2471 = vmatpush1.msra.mxu0 0.0
    %2472 = vmatprep.subr.mxu0 0.0
    %2473 = vmatpush1.msra.mxu0 0.0
    %2474 = vmatprep.subr.mxu0 0.0
    %2475 = vmatpush1.msra.mxu0 0.0
    %2476 = vmatprep.subr.mxu0 0.0
    %2477 = vmatpush1.msra.mxu0 0.0
    %2478 = vmatprep.subr.mxu0 0.0
    %2479 = vmatpush1.msra.mxu0 0.0
    %2480 = vmatprep.subr.mxu0 0.0
    %2481 = vmatpush1.msra.mxu0 0.0
    %2482 = vmatprep.subr.mxu0 0.0
    %2483 = vmatpush1.msra.mxu0 0.0
    %2484 = vmatprep.mubr.f32.mxu0 0.0
    %2485 = vmatmul.mubr.f32.gmra.mrb[0].mxu0 %v64
    %v2486 = vpop.f32.mrb[0].mxu0
    %v2487 = vadd.f32 %v2418, %v2486
    %v2488 = vpop.f32.mrb[0].mxu0
    %2489 = vmatprep.mubr.f32.mxu0 0.0
    %2490 = vmatmul.mubr.f32.gmra.mrb[0].mxu0 %v67
    %v2491 = vpop.f32.mrb[0].mxu0
    %v2492 = vadd.f32 %v2418, %v2491
    %v2493 = vpop.f32.mrb[0].mxu0
    %2494 = vdwg.mxu0
    %s2495 = scalar_lea.vmem %s5, 96
    %v2496 = vld [vmem:[%s2495] sm:$0xff]
    %v2497 = vld [vmem:[%s2495 + $0x8] sm:$0xff]
    %v2498 = vld [vmem:[%s2495 + $0x10] sm:$0xff]
    %v2499 = vld [vmem:[%s2495 + $0x18] sm:$0xff]
    %s2500 = scalar_lea.vmem %s6, 3
    %v2501 = vld [vmem:[%s2500] sm:$0x1]
    %v2503 = vlaneseq
    %v2504 = vshrl.u32 %v2503, 7
    %v2505 = vsub.s32 0, %v2504
    %v2506 = vrot.slane %v2501, %v2505
    %2508 = vmatprep.subr.mxu0 0.0
    %2509 = vmatpush1.msra.mxu0 %v2496
    %2510 = vmatprep.subr.mxu0 0.0
    %2511 = vmatpush1.msra.mxu0 %v2497
    %2512 = vmatprep.subr.mxu0 0.0
    %2513 = vmatpush1.msra.mxu0 %v2498
    %2514 = vmatprep.subr.mxu0 0.0
    %2515 = vmatpush1.msra.mxu0 %v2499
    %2516 = vmatprep.subr.mxu0 0.0
    %2517 = vmatpush1.msra.mxu0 0.0
    %2518 = vmatprep.subr.mxu0 0.0
    %2519 = vmatpush1.msra.mxu0 0.0
    %2520 = vmatprep.subr.mxu0 0.0
    %2521 = vmatpush1.msra.mxu0 0.0
    %2522 = vmatprep.subr.mxu0 0.0
    %2523 = vmatpush1.msra.mxu0 0.0
    %2524 = vmatprep.subr.mxu0 0.0
    %2525 = vmatpush1.msra.mxu0 0.0
    %2526 = vmatprep.subr.mxu0 0.0
    %2527 = vmatpush1.msra.mxu0 0.0
    %2528 = vmatprep.subr.mxu0 0.0
    %2529 = vmatpush1.msra.mxu0 0.0
    %2530 = vmatprep.subr.mxu0 0.0
    %2531 = vmatpush1.msra.mxu0 0.0
    %2532 = vmatprep.subr.mxu0 0.0
    %2533 = vmatpush1.msra.mxu0 0.0
    %2534 = vmatprep.subr.mxu0 0.0
    %2535 = vmatpush1.msra.mxu0 0.0
    %2536 = vmatprep.subr.mxu0 0.0
    %2537 = vmatpush1.msra.mxu0 0.0
    %2538 = vmatprep.subr.mxu0 0.0
    %2539 = vmatpush1.msra.mxu0 0.0
    %2540 = vmatprep.subr.mxu0 0.0
    %2541 = vmatpush1.msra.mxu0 0.0
    %2542 = vmatprep.subr.mxu0 0.0
    %2543 = vmatpush1.msra.mxu0 0.0
    %2544 = vmatprep.subr.mxu0 0.0
    %2545 = vmatpush1.msra.mxu0 0.0
    %2546 = vmatprep.subr.mxu0 0.0
    %2547 = vmatpush1.msra.mxu0 0.0
    %2548 = vmatprep.subr.mxu0 0.0
    %2549 = vmatpush1.msra.mxu0 0.0
    %2550 = vmatprep.subr.mxu0 0.0
    %2551 = vmatpush1.msra.mxu0 0.0
    %2552 = vmatprep.subr.mxu0 0.0
    %2553 = vmatpush1.msra.mxu0 0.0
    %2554 = vmatprep.subr.mxu0 0.0
    %2555 = vmatpush1.msra.mxu0 0.0
    %2556 = vmatprep.subr.mxu0 0.0
    %2557 = vmatpush1.msra.mxu0 0.0
    %2558 = vmatprep.subr.mxu0 0.0
    %2559 = vmatpush1.msra.mxu0 0.0
    %2560 = vmatprep.subr.mxu0 0.0
    %2561 = vmatpush1.msra.mxu0 0.0
    %2562 = vmatprep.subr.mxu0 0.0
    %2563 = vmatpush1.msra.mxu0 0.0
    %2564 = vmatprep.subr.mxu0 0.0
    %2565 = vmatpush1.msra.mxu0 0.0
    %2566 = vmatprep.subr.mxu0 0.0
    %2567 = vmatpush1.msra.mxu0 0.0
    %2568 = vmatprep.subr.mxu0 0.0
    %2569 = vmatpush1.msra.mxu0 0.0
    %2570 = vmatprep.subr.mxu0 0.0
    %2571 = vmatpush1.msra.mxu0 0.0
    %2572 = vmatprep.mubr.f32.mxu0 0.0
    %2573 = vmatmul.mubr.f32.gmra.mrb[0].mxu0 %v156
    %v2574 = vpop.f32.mrb[0].mxu0
    %v2575 = vadd.f32 %v2506, %v2574
    %v2576 = vpop.f32.mrb[0].mxu0
    %2577 = vmatprep.mubr.f32.mxu0 0.0
    %2578 = vmatmul.mubr.f32.gmra.mrb[0].mxu0 %v159
    %v2579 = vpop.f32.mrb[0].mxu0
    %v2580 = vadd.f32 %v2506, %v2579
    %v2581 = vpop.f32.mrb[0].mxu0
    %2582 = vdwg.mxu0
    %s2583 = scalar_lea.vmem %s7, 96
    %v2584 = vld [vmem:[%s2583] sm:$0xff]
    %v2585 = vld [vmem:[%s2583 + $0x8] sm:$0xff]
    %v2586 = vld [vmem:[%s2583 + $0x10] sm:$0xff]
    %v2587 = vld [vmem:[%s2583 + $0x18] sm:$0xff]
    %s2588 = scalar_lea.vmem %s8, 3
    %v2589 = vld [vmem:[%s2588] sm:$0x1]
    %v2591 = vlaneseq
    %v2592 = vshrl.u32 %v2591, 7
    %v2593 = vsub.s32 0, %v2592
    %v2594 = vrot.slane %v2589, %v2593
    %2596 = vmatprep.subr.mxu0 0.0
    %2597 = vmatpush1.msra.mxu0 %v2584
    %2598 = vmatprep.subr.mxu0 0.0
    %2599 = vmatpush1.msra.mxu0 %v2585
    %2600 = vmatprep.subr.mxu0 0.0
    %2601 = vmatpush1.msra.mxu0 %v2586
    %2602 = vmatprep.subr.mxu0 0.0
    %2603 = vmatpush1.msra.mxu0 %v2587
    %2604 = vmatprep.subr.mxu0 0.0
    %2605 = vmatpush1.msra.mxu0 0.0
    %2606 = vmatprep.subr.mxu0 0.0
    %2607 = vmatpush1.msra.mxu0 0.0
    %2608 = vmatprep.subr.mxu0 0.0
    %2609 = vmatpush1.msra.mxu0 0.0
    %2610 = vmatprep.subr.mxu0 0.0
    %2611 = vmatpush1.msra.mxu0 0.0
    %2612 = vmatprep.subr.mxu0 0.0
    %2613 = vmatpush1.msra.mxu0 0.0
    %2614 = vmatprep.subr.mxu0 0.0
    %2615 = vmatpush1.msra.mxu0 0.0
    %2616 = vmatprep.subr.mxu0 0.0
    %2617 = vmatpush1.msra.mxu0 0.0
    %2618 = vmatprep.subr.mxu0 0.0
    %2619 = vmatpush1.msra.mxu0 0.0
    %2620 = vmatprep.subr.mxu0 0.0
    %2621 = vmatpush1.msra.mxu0 0.0
    %2622 = vmatprep.subr.mxu0 0.0
    %2623 = vmatpush1.msra.mxu0 0.0
    %2624 = vmatprep.subr.mxu0 0.0
    %2625 = vmatpush1.msra.mxu0 0.0
    %2626 = vmatprep.subr.mxu0 0.0
    %2627 = vmatpush1.msra.mxu0 0.0
    %2628 = vmatprep.subr.mxu0 0.0
    %2629 = vmatpush1.msra.mxu0 0.0
    %2630 = vmatprep.subr.mxu0 0.0
    %2631 = vmatpush1.msra.mxu0 0.0
    %2632 = vmatprep.subr.mxu0 0.0
    %2633 = vmatpush1.msra.mxu0 0.0
    %2634 = vmatprep.subr.mxu0 0.0
    %2635 = vmatpush1.msra.mxu0 0.0
    %2636 = vmatprep.subr.mxu0 0.0
    %2637 = vmatpush1.msra.mxu0 0.0
    %2638 = vmatprep.subr.mxu0 0.0
    %2639 = vmatpush1.msra.mxu0 0.0
    %2640 = vmatprep.subr.mxu0 0.0
    %2641 = vmatpush1.msra.mxu0 0.0
    %2642 = vmatprep.subr.mxu0 0.0
    %2643 = vmatpush1.msra.mxu0 0.0
    %2644 = vmatprep.subr.mxu0 0.0
    %2645 = vmatpush1.msra.mxu0 0.0
    %2646 = vmatprep.subr.mxu0 0.0
    %2647 = vmatpush1.msra.mxu0 0.0
    %2648 = vmatprep.subr.mxu0 0.0
    %2649 = vmatpush1.msra.mxu0 0.0
    %2650 = vmatprep.subr.mxu0 0.0
    %2651 = vmatpush1.msra.mxu0 0.0
    %2652 = vmatprep.subr.mxu0 0.0
    %2653 = vmatpush1.msra.mxu0 0.0
    %2654 = vmatprep.subr.mxu0 0.0
    %2655 = vmatpush1.msra.mxu0 0.0
    %2656 = vmatprep.subr.mxu0 0.0
    %2657 = vmatpush1.msra.mxu0 0.0
    %2658 = vmatprep.subr.mxu0 0.0
    %2659 = vmatpush1.msra.mxu0 0.0
    %2660 = vmatprep.mubr.f32.mxu0 0.0
    %2661 = vmatmul.mubr.f32.gmra.mrb[0].mxu0 %v248
    %v2662 = vpop.f32.mrb[0].mxu0
    %v2663 = vadd.f32 %v2594, %v2662
    %v2664 = vpop.f32.mrb[0].mxu0
    %2665 = vmatprep.mubr.f32.mxu0 0.0
    %2666 = vmatmul.mubr.f32.gmra.mrb[0].mxu0 %v251
    %v2667 = vpop.f32.mrb[0].mxu0
    %v2668 = vadd.f32 %v2594, %v2667
    %v2669 = vpop.f32.mrb[0].mxu0
    %2670 = vdwg.mxu0
    %v2672 = vsel %vm328, %v2487, 0
    %v2675 = vsel %vm328, %v2575, 0
    %2677 = vmatprep.subr.mxu0 0.0
    %2678 = vmatpush1.xpose.msra.mxu0 %v2675
    %2679 = vmatprep.subr.mxu0 0.0
    %2680 = vmatpush1.xpose.msra.mxu0 0.0
    %2681 = vmatprep.subr.mxu0 0.0
    %2682 = vmatpush1.xpose.msra.mxu0 0.0
    %2683 = vmatprep.subr.mxu0 0.0
    %2684 = vmatpush1.xpose.msra.mxu0 0.0
    %2685 = vmatprep.subr.mxu0 0.0
    %2686 = vmatpush1.xpose.msra.mxu0 0.0
    %2687 = vmatprep.subr.mxu0 0.0
    %2688 = vmatpush1.xpose.msra.mxu0 0.0
    %2689 = vmatprep.subr.mxu0 0.0
    %2690 = vmatpush1.xpose.msra.mxu0 0.0
    %2691 = vmatprep.subr.mxu0 0.0
    %2692 = vmatpush1.xpose.msra.mxu0 0.0
    %2693 = vmatprep.subr.mxu0 0.0
    %2694 = vmatpush1.xpose.msra.mxu0 0.0
    %2695 = vmatprep.subr.mxu0 0.0
    %2696 = vmatpush1.xpose.msra.mxu0 0.0
    %2697 = vmatprep.subr.mxu0 0.0
    %2698 = vmatpush1.xpose.msra.mxu0 0.0
    %2699 = vmatprep.subr.mxu0 0.0
    %2700 = vmatpush1.xpose.msra.mxu0 0.0
    %2701 = vmatprep.subr.mxu0 0.0
    %2702 = vmatpush1.xpose.msra.mxu0 0.0
    %2703 = vmatprep.subr.mxu0 0.0
    %2704 = vmatpush1.xpose.msra.mxu0 0.0
    %2705 = vmatprep.subr.mxu0 0.0
    %2706 = vmatpush1.xpose.msra.mxu0 0.0
    %2707 = vmatprep.subr.mxu0 0.0
    %2708 = vmatpush1.xpose.msra.mxu0 0.0
    %2709 = vmatprep.subr.mxu0 0.0
    %2710 = vmatpush1.xpose.msra.mxu0 0.0
    %2711 = vmatprep.subr.mxu0 0.0
    %2712 = vmatpush1.xpose.msra.mxu0 0.0
    %2713 = vmatprep.subr.mxu0 0.0
    %2714 = vmatpush1.xpose.msra.mxu0 0.0
    %2715 = vmatprep.subr.mxu0 0.0
    %2716 = vmatpush1.xpose.msra.mxu0 0.0
    %2717 = vmatprep.subr.mxu0 0.0
    %2718 = vmatpush1.xpose.msra.mxu0 0.0
    %2719 = vmatprep.subr.mxu0 0.0
    %2720 = vmatpush1.xpose.msra.mxu0 0.0
    %2721 = vmatprep.subr.mxu0 0.0
    %2722 = vmatpush1.xpose.msra.mxu0 0.0
    %2723 = vmatprep.subr.mxu0 0.0
    %2724 = vmatpush1.xpose.msra.mxu0 0.0
    %2725 = vmatprep.subr.mxu0 0.0
    %2726 = vmatpush1.xpose.msra.mxu0 0.0
    %2727 = vmatprep.subr.mxu0 0.0
    %2728 = vmatpush1.xpose.msra.mxu0 0.0
    %2729 = vmatprep.subr.mxu0 0.0
    %2730 = vmatpush1.xpose.msra.mxu0 0.0
    %2731 = vmatprep.subr.mxu0 0.0
    %2732 = vmatpush1.xpose.msra.mxu0 0.0
    %2733 = vmatprep.subr.mxu0 0.0
    %2734 = vmatpush1.xpose.msra.mxu0 0.0
    %2735 = vmatprep.subr.mxu0 0.0
    %2736 = vmatpush1.xpose.msra.mxu0 0.0
    %2737 = vmatprep.subr.mxu0 0.0
    %2738 = vmatpush1.xpose.msra.mxu0 0.0
    %2739 = vmatprep.subr.mxu0 0.0
    %2740 = vmatpush1.xpose.msra.mxu0 0.0
    %2741 = vmatprep.mubr.f32.mxu0 0.0
    %2742 = vmatmul.mubr.f32.gmra.mrb[0].mxu0 %v2672
    %v2743 = vpop.f32.mrb[0].mxu0
    %v2744 = vadd.f32 0.0, %v2743
    %v2745 = vpop.f32.mrb[0].mxu0
    %2746 = vdwg.mxu0
    %v2748 = vsel %vm328, %v2492, 0
    %v2751 = vsel %vm328, %v2580, 0
    %2753 = vmatprep.subr.mxu0 0.0
    %2754 = vmatpush1.xpose.msra.mxu0 %v2751
    %2755 = vmatprep.subr.mxu0 0.0
    %2756 = vmatpush1.xpose.msra.mxu0 0.0
    %2757 = vmatprep.subr.mxu0 0.0
    %2758 = vmatpush1.xpose.msra.mxu0 0.0
    %2759 = vmatprep.subr.mxu0 0.0
    %2760 = vmatpush1.xpose.msra.mxu0 0.0
    %2761 = vmatprep.subr.mxu0 0.0
    %2762 = vmatpush1.xpose.msra.mxu0 0.0
    %2763 = vmatprep.subr.mxu0 0.0
    %2764 = vmatpush1.xpose.msra.mxu0 0.0
    %2765 = vmatprep.subr.mxu0 0.0
    %2766 = vmatpush1.xpose.msra.mxu0 0.0
    %2767 = vmatprep.subr.mxu0 0.0
    %2768 = vmatpush1.xpose.msra.mxu0 0.0
    %2769 = vmatprep.subr.mxu0 0.0
    %2770 = vmatpush1.xpose.msra.mxu0 0.0
    %2771 = vmatprep.subr.mxu0 0.0
    %2772 = vmatpush1.xpose.msra.mxu0 0.0
    %2773 = vmatprep.subr.mxu0 0.0
    %2774 = vmatpush1.xpose.msra.mxu0 0.0
    %2775 = vmatprep.subr.mxu0 0.0
    %2776 = vmatpush1.xpose.msra.mxu0 0.0
    %2777 = vmatprep.subr.mxu0 0.0
    %2778 = vmatpush1.xpose.msra.mxu0 0.0
    %2779 = vmatprep.subr.mxu0 0.0
    %2780 = vmatpush1.xpose.msra.mxu0 0.0
    %2781 = vmatprep.subr.mxu0 0.0
    %2782 = vmatpush1.xpose.msra.mxu0 0.0
    %2783 = vmatprep.subr.mxu0 0.0
    %2784 = vmatpush1.xpose.msra.mxu0 0.0
    %2785 = vmatprep.subr.mxu0 0.0
    %2786 = vmatpush1.xpose.msra.mxu0 0.0
    %2787 = vmatprep.subr.mxu0 0.0
    %2788 = vmatpush1.xpose.msra.mxu0 0.0
    %2789 = vmatprep.subr.mxu0 0.0
    %2790 = vmatpush1.xpose.msra.mxu0 0.0
    %2791 = vmatprep.subr.mxu0 0.0
    %2792 = vmatpush1.xpose.msra.mxu0 0.0
    %2793 = vmatprep.subr.mxu0 0.0
    %2794 = vmatpush1.xpose.msra.mxu0 0.0
    %2795 = vmatprep.subr.mxu0 0.0
    %2796 = vmatpush1.xpose.msra.mxu0 0.0
    %2797 = vmatprep.subr.mxu0 0.0
    %2798 = vmatpush1.xpose.msra.mxu0 0.0
    %2799 = vmatprep.subr.mxu0 0.0
    %2800 = vmatpush1.xpose.msra.mxu0 0.0
    %2801 = vmatprep.subr.mxu0 0.0
    %2802 = vmatpush1.xpose.msra.mxu0 0.0
    %2803 = vmatprep.subr.mxu0 0.0
    %2804 = vmatpush1.xpose.msra.mxu0 0.0
    %2805 = vmatprep.subr.mxu0 0.0
    %2806 = vmatpush1.xpose.msra.mxu0 0.0
    %2807 = vmatprep.subr.mxu0 0.0
    %2808 = vmatpush1.xpose.msra.mxu0 0.0
    %2809 = vmatprep.subr.mxu0 0.0
    %2810 = vmatpush1.xpose.msra.mxu0 0.0
    %2811 = vmatprep.subr.mxu0 0.0
    %2812 = vmatpush1.xpose.msra.mxu0 0.0
    %2813 = vmatprep.subr.mxu0 0.0
    %2814 = vmatpush1.xpose.msra.mxu0 0.0
    %2815 = vmatprep.subr.mxu0 0.0
    %2816 = vmatpush1.xpose.msra.mxu0 0.0
    %2817 = vmatprep.mubr.f32.mxu0 0.0
    %2818 = vmatmul.mubr.f32.gmra.mrb[0].mxu0 %v2748
    %v2819 = vpop.f32.mrb[0].mxu0
    %v2820 = vadd.f32 0.0, %v2819
    %v2821 = vpop.f32.mrb[0].mxu0
    %2822 = vdwg.mxu0
    %v2823 = vmul.f32 %v2744, 0.25
    %v2824 = vmul.f32 %v2820, 0.25
    %s2825 = scalar_lea.vmem %s11, 24
    %v2826 = vld [vmem:[%s2825] sm:$0xff]
    %v2828 = vsel %vm328, %v2826, 0
    %2830 = vmatprep.subr.mxu0 0.0
    %2831 = vmatpush1.xpose.msra.mxu0 %v2828
    %2832 = vmatprep.subr.mxu0 0.0
    %2833 = vmatpush1.xpose.msra.mxu0 0.0
    %2834 = vmatprep.subr.mxu0 0.0
    %2835 = vmatpush1.xpose.msra.mxu0 0.0
    %2836 = vmatprep.subr.mxu0 0.0
    %2837 = vmatpush1.xpose.msra.mxu0 0.0
    %2838 = vmatprep.subr.mxu0 0.0
    %2839 = vmatpush1.xpose.msra.mxu0 0.0
    %2840 = vmatprep.subr.mxu0 0.0
    %2841 = vmatpush1.xpose.msra.mxu0 0.0
    %2842 = vmatprep.subr.mxu0 0.0
    %2843 = vmatpush1.xpose.msra.mxu0 0.0
    %2844 = vmatprep.subr.mxu0 0.0
    %2845 = vmatpush1.xpose.msra.mxu0 0.0
    %2846 = vmatprep.subr.mxu0 0.0
    %2847 = vmatpush1.xpose.msra.mxu0 0.0
    %2848 = vmatprep.subr.mxu0 0.0
    %2849 = vmatpush1.xpose.msra.mxu0 0.0
    %2850 = vmatprep.subr.mxu0 0.0
    %2851 = vmatpush1.xpose.msra.mxu0 0.0
    %2852 = vmatprep.subr.mxu0 0.0
    %2853 = vmatpush1.xpose.msra.mxu0 0.0
    %2854 = vmatprep.subr.mxu0 0.0
    %2855 = vmatpush1.xpose.msra.mxu0 0.0
    %2856 = vmatprep.subr.mxu0 0.0
    %2857 = vmatpush1.xpose.msra.mxu0 0.0
    %2858 = vmatprep.subr.mxu0 0.0
    %2859 = vmatpush1.xpose.msra.mxu0 0.0
    %2860 = vmatprep.subr.mxu0 0.0
    %2861 = vmatpush1.xpose.msra.mxu0 0.0
    %2862 = vmatprep.subr.mxu0 0.0
    %2863 = vmatpush1.xpose.msra.mxu0 0.0
    %2864 = vmatprep.subr.mxu0 0.0
    %2865 = vmatpush1.xpose.msra.mxu0 0.0
    %2866 = vmatprep.subr.mxu0 0.0
    %2867 = vmatpush1.xpose.msra.mxu0 0.0
    %2868 = vmatprep.subr.mxu0 0.0
    %2869 = vmatpush1.xpose.msra.mxu0 0.0
    %2870 = vmatprep.subr.mxu0 0.0
    %2871 = vmatpush1.xpose.msra.mxu0 0.0
    %2872 = vmatprep.subr.mxu0 0.0
    %2873 = vmatpush1.xpose.msra.mxu0 0.0
    %2874 = vmatprep.subr.mxu0 0.0
    %2875 = vmatpush1.xpose.msra.mxu0 0.0
    %2876 = vmatprep.subr.mxu0 0.0
    %2877 = vmatpush1.xpose.msra.mxu0 0.0
    %2878 = vmatprep.subr.mxu0 0.0
    %2879 = vmatpush1.xpose.msra.mxu0 0.0
    %2880 = vmatprep.subr.mxu0 0.0
    %2881 = vmatpush1.xpose.msra.mxu0 0.0
    %2882 = vmatprep.subr.mxu0 0.0
    %2883 = vmatpush1.xpose.msra.mxu0 0.0
    %2884 = vmatprep.subr.mxu0 0.0
    %2885 = vmatpush1.xpose.msra.mxu0 0.0
    %2886 = vmatprep.subr.mxu0 0.0
    %2887 = vmatpush1.xpose.msra.mxu0 0.0
    %2888 = vmatprep.subr.mxu0 0.0
    %2889 = vmatpush1.xpose.msra.mxu0 0.0
    %2890 = vmatprep.subr.mxu0 0.0
    %2891 = vmatpush1.xpose.msra.mxu0 0.0
    %2892 = vmatprep.subr.mxu0 0.0
    %2893 = vmatpush1.xpose.msra.mxu0 0.0
    %2894 = vmatprep.mubr.f32.mxu0 0.0
    %2895 = vmatmul.mubr.f32.gmra.mrb[0].mxu0 %v2672
    %v2896 = vpop.f32.mrb[0].mxu0
    %v2897 = vadd.f32 0.0, %v2896
    %v2898 = vpop.f32.mrb[0].mxu0
    %2899 = vmatprep.mubr.f32.mxu0 0.0
    %2900 = vmatmul.mubr.f32.gmra.mrb[0].mxu0 %v2748
    %v2901 = vpop.f32.mrb[0].mxu0
    %v2902 = vadd.f32 0.0, %v2901
    %v2903 = vpop.f32.mrb[0].mxu0
    %2904 = vdwg.mxu0
    %v2905 = vsel %vm562, %v2823, -inf
    %2906 = vmax.xlane.f32.xlu0 %v2905
    %v2907 = vpop.xlane.xlu0 %2906
    %v2908 = vsel %vm562, %v2824, -inf
    %2909 = vmax.xlane.f32.xlu0 %v2908
    %v2910 = vpop.xlane.xlu0 %2909
    %v2911 = vsel %vm562, %v2897, -inf
    %2912 = vmax.xlane.f32.xlu0 %v2911
    %v2913 = vpop.xlane.xlu0 %2912
    %v2914 = vsel %vm562, %v2902, -inf
    %2915 = vmax.xlane.f32.xlu0 %v2914
    %v2916 = vpop.xlane.xlu0 %2915
    %v2917 = vmax.f32 %v2907, %v2913
    %v2918 = vmax.f32 %v2910, %v2916
    %v2919 = vsub.f32 %v2823, %v2917
    %v2920 = vsub.f32 %v2824, %v2918
    %v2921 = vmul.f32 %v2919, 1.442695
    %v2922 = vpow.pop %v2921
    %v2923 = vmul.f32 %v2920, 1.442695
    %v2924 = vpow.pop %v2923
    %v2925 = vsub.f32 %v2897, %v2917
    %v2926 = vsub.f32 %v2902, %v2918
    %v2927 = vmul.f32 %v2925, 1.442695
    %v2928 = vpow.pop %v2927
    %v2929 = vmul.f32 %v2926, 1.442695
    %v2930 = vpow.pop %v2929
    %v2931 = vsel %vm562, %v2922, 0.0
    %2932 = vadd.xlane.f32.xlu0 %v2931
    %v2933 = vpop.xlane.xlu0 %2932
    %v2934 = vsel %vm562, %v2924, 0.0
    %2935 = vadd.xlane.f32.xlu0 %v2934
    %v2936 = vpop.xlane.xlu0 %2935
    %v2937 = vsel %vm562, %v2928, 0.0
    %2938 = vadd.xlane.f32.xlu0 %v2937
    %v2939 = vpop.xlane.xlu0 %2938
    %v2940 = vsel %vm562, %v2930, 0.0
    %2941 = vadd.xlane.f32.xlu0 %v2940
    %v2942 = vpop.xlane.xlu0 %2941
    %v2943 = vadd.f32 %v2933, %v2939
    %v2944 = vadd.f32 %v2936, %v2942
    %v2946 = vsel %vm562, %v2922, 0
    %2948 = vmatprep.subr.mxu0 0.0
    %2949 = vmatpush1.msra.mxu0 %v2663
    %2950 = vmatprep.subr.mxu0 0.0
    %2951 = vmatpush1.msra.mxu0 0.0
    %2952 = vmatprep.subr.mxu0 0.0
    %2953 = vmatpush1.msra.mxu0 0.0
    %2954 = vmatprep.subr.mxu0 0.0
    %2955 = vmatpush1.msra.mxu0 0.0
    %2956 = vmatprep.subr.mxu0 0.0
    %2957 = vmatpush1.msra.mxu0 0.0
    %2958 = vmatprep.subr.mxu0 0.0
    %2959 = vmatpush1.msra.mxu0 0.0
    %2960 = vmatprep.subr.mxu0 0.0
    %2961 = vmatpush1.msra.mxu0 0.0
    %2962 = vmatprep.subr.mxu0 0.0
    %2963 = vmatpush1.msra.mxu0 0.0
    %2964 = vmatprep.subr.mxu0 0.0
    %2965 = vmatpush1.msra.mxu0 0.0
    %2966 = vmatprep.subr.mxu0 0.0
    %2967 = vmatpush1.msra.mxu0 0.0
    %2968 = vmatprep.subr.mxu0 0.0
    %2969 = vmatpush1.msra.mxu0 0.0
    %2970 = vmatprep.subr.mxu0 0.0
    %2971 = vmatpush1.msra.mxu0 0.0
    %2972 = vmatprep.subr.mxu0 0.0
    %2973 = vmatpush1.msra.mxu0 0.0
    %2974 = vmatprep.subr.mxu0 0.0
    %2975 = vmatpush1.msra.mxu0 0.0
    %2976 = vmatprep.subr.mxu0 0.0
    %2977 = vmatpush1.msra.mxu0 0.0
    %2978 = vmatprep.subr.mxu0 0.0
    %2979 = vmatpush1.msra.mxu0 0.0
    %2980 = vmatprep.subr.mxu0 0.0
    %2981 = vmatpush1.msra.mxu0 0.0
    %2982 = vmatprep.subr.mxu0 0.0
    %2983 = vmatpush1.msra.mxu0 0.0
    %2984 = vmatprep.subr.mxu0 0.0
    %2985 = vmatpush1.msra.mxu0 0.0
    %2986 = vmatprep.subr.mxu0 0.0
    %2987 = vmatpush1.msra.mxu0 0.0
    %2988 = vmatprep.subr.mxu0 0.0
    %2989 = vmatpush1.msra.mxu0 0.0
    %2990 = vmatprep.subr.mxu0 0.0
    %2991 = vmatpush1.msra.mxu0 0.0
    %2992 = vmatprep.subr.mxu0 0.0
    %2993 = vmatpush1.msra.mxu0 0.0
    %2994 = vmatprep.subr.mxu0 0.0
    %2995 = vmatpush1.msra.mxu0 0.0
    %2996 = vmatprep.subr.mxu0 0.0
    %2997 = vmatpush1.msra.mxu0 0.0
    %2998 = vmatprep.subr.mxu0 0.0
    %2999 = vmatpush1.msra.mxu0 0.0
    %3000 = vmatprep.subr.mxu0 0.0
    %3001 = vmatpush1.msra.mxu0 0.0
    %3002 = vmatprep.subr.mxu0 0.0
    %3003 = vmatpush1.msra.mxu0 0.0
    %3004 = vmatprep.subr.mxu0 0.0
    %3005 = vmatpush1.msra.mxu0 0.0
    %3006 = vmatprep.subr.mxu0 0.0
    %3007 = vmatpush1.msra.mxu0 0.0
    %3008 = vmatprep.subr.mxu0 0.0
    %3009 = vmatpush1.msra.mxu0 0.0
    %3010 = vmatprep.subr.mxu0 0.0
    %3011 = vmatpush1.msra.mxu0 0.0
    %3012 = vmatprep.mubr.f32.mxu0 0.0
    %3013 = vmatmul.mubr.f32.gmra.mrb[0].mxu0 %v2946
    %v3014 = vpop.f32.mrb[0].mxu0
    %v3015 = vadd.f32 0.0, %v3014
    %v3016 = vpop.f32.mrb[0].mxu0
    %3017 = vdwg.mxu0
    %v3019 = vsel %vm562, %v2924, 0
    %3021 = vmatprep.subr.mxu0 0.0
    %3022 = vmatpush1.msra.mxu0 %v2668
    %3023 = vmatprep.subr.mxu0 0.0
    %3024 = vmatpush1.msra.mxu0 0.0
    %3025 = vmatprep.subr.mxu0 0.0
    %3026 = vmatpush1.msra.mxu0 0.0
    %3027 = vmatprep.subr.mxu0 0.0
    %3028 = vmatpush1.msra.mxu0 0.0
    %3029 = vmatprep.subr.mxu0 0.0
    %3030 = vmatpush1.msra.mxu0 0.0
    %3031 = vmatprep.subr.mxu0 0.0
    %3032 = vmatpush1.msra.mxu0 0.0
    %3033 = vmatprep.subr.mxu0 0.0
    %3034 = vmatpush1.msra.mxu0 0.0
    %3035 = vmatprep.subr.mxu0 0.0
    %3036 = vmatpush1.msra.mxu0 0.0
    %3037 = vmatprep.subr.mxu0 0.0
    %3038 = vmatpush1.msra.mxu0 0.0
    %3039 = vmatprep.subr.mxu0 0.0
    %3040 = vmatpush1.msra.mxu0 0.0
    %3041 = vmatprep.subr.mxu0 0.0
    %3042 = vmatpush1.msra.mxu0 0.0
    %3043 = vmatprep.subr.mxu0 0.0
    %3044 = vmatpush1.msra.mxu0 0.0
    %3045 = vmatprep.subr.mxu0 0.0
    %3046 = vmatpush1.msra.mxu0 0.0
    %3047 = vmatprep.subr.mxu0 0.0
    %3048 = vmatpush1.msra.mxu0 0.0
    %3049 = vmatprep.subr.mxu0 0.0
    %3050 = vmatpush1.msra.mxu0 0.0
    %3051 = vmatprep.subr.mxu0 0.0
    %3052 = vmatpush1.msra.mxu0 0.0
    %3053 = vmatprep.subr.mxu0 0.0
    %3054 = vmatpush1.msra.mxu0 0.0
    %3055 = vmatprep.subr.mxu0 0.0
    %3056 = vmatpush1.msra.mxu0 0.0
    %3057 = vmatprep.subr.mxu0 0.0
    %3058 = vmatpush1.msra.mxu0 0.0
    %3059 = vmatprep.subr.mxu0 0.0
    %3060 = vmatpush1.msra.mxu0 0.0
    %3061 = vmatprep.subr.mxu0 0.0
    %3062 = vmatpush1.msra.mxu0 0.0
    %3063 = vmatprep.subr.mxu0 0.0
    %3064 = vmatpush1.msra.mxu0 0.0
    %3065 = vmatprep.subr.mxu0 0.0
    %3066 = vmatpush1.msra.mxu0 0.0
    %3067 = vmatprep.subr.mxu0 0.0
    %3068 = vmatpush1.msra.mxu0 0.0
    %3069 = vmatprep.subr.mxu0 0.0
    %3070 = vmatpush1.msra.mxu0 0.0
    %3071 = vmatprep.subr.mxu0 0.0
    %3072 = vmatpush1.msra.mxu0 0.0
    %3073 = vmatprep.subr.mxu0 0.0
    %3074 = vmatpush1.msra.mxu0 0.0
    %3075 = vmatprep.subr.mxu0 0.0
    %3076 = vmatpush1.msra.mxu0 0.0
    %3077 = vmatprep.subr.mxu0 0.0
    %3078 = vmatpush1.msra.mxu0 0.0
    %3079 = vmatprep.subr.mxu0 0.0
    %3080 = vmatpush1.msra.mxu0 0.0
    %3081 = vmatprep.subr.mxu0 0.0
    %3082 = vmatpush1.msra.mxu0 0.0
    %3083 = vmatprep.subr.mxu0 0.0
    %3084 = vmatpush1.msra.mxu0 0.0
    %3085 = vmatprep.mubr.f32.mxu0 0.0
    %3086 = vmatmul.mubr.f32.gmra.mrb[0].mxu0 %v3019
    %v3087 = vpop.f32.mrb[0].mxu0
    %v3088 = vadd.f32 0.0, %v3087
    %v3089 = vpop.f32.mrb[0].mxu0
    %3090 = vdwg.mxu0
    %s3091 = scalar_lea.vmem %s12, 24
    %v3092 = vld [vmem:[%s3091] sm:$0xff]
    %v3094 = vsel %vm562, %v2928, 0
    %v3097 = vsel %vm562, %v2930, 0
    %3099 = vmatprep.subr.mxu0 0.0
    %3100 = vmatpush1.msra.mxu0 %v3092
    %3101 = vmatprep.subr.mxu0 0.0
    %3102 = vmatpush1.msra.mxu0 0.0
    %3103 = vmatprep.subr.mxu0 0.0
    %3104 = vmatpush1.msra.mxu0 0.0
    %3105 = vmatprep.subr.mxu0 0.0
    %3106 = vmatpush1.msra.mxu0 0.0
    %3107 = vmatprep.subr.mxu0 0.0
    %3108 = vmatpush1.msra.mxu0 0.0
    %3109 = vmatprep.subr.mxu0 0.0
    %3110 = vmatpush1.msra.mxu0 0.0
    %3111 = vmatprep.subr.mxu0 0.0
    %3112 = vmatpush1.msra.mxu0 0.0
    %3113 = vmatprep.subr.mxu0 0.0
    %3114 = vmatpush1.msra.mxu0 0.0
    %3115 = vmatprep.subr.mxu0 0.0
    %3116 = vmatpush1.msra.mxu0 0.0
    %3117 = vmatprep.subr.mxu0 0.0
    %3118 = vmatpush1.msra.mxu0 0.0
    %3119 = vmatprep.subr.mxu0 0.0
    %3120 = vmatpush1.msra.mxu0 0.0
    %3121 = vmatprep.subr.mxu0 0.0
    %3122 = vmatpush1.msra.mxu0 0.0
    %3123 = vmatprep.subr.mxu0 0.0
    %3124 = vmatpush1.msra.mxu0 0.0
    %3125 = vmatprep.subr.mxu0 0.0
    %3126 = vmatpush1.msra.mxu0 0.0
    %3127 = vmatprep.subr.mxu0 0.0
    %3128 = vmatpush1.msra.mxu0 0.0
    %3129 = vmatprep.subr.mxu0 0.0
    %3130 = vmatpush1.msra.mxu0 0.0
    %3131 = vmatprep.subr.mxu0 0.0
    %3132 = vmatpush1.msra.mxu0 0.0
    %3133 = vmatprep.subr.mxu0 0.0
    %3134 = vmatpush1.msra.mxu0 0.0
    %3135 = vmatprep.subr.mxu0 0.0
    %3136 = vmatpush1.msra.mxu0 0.0
    %3137 = vmatprep.subr.mxu0 0.0
    %3138 = vmatpush1.msra.mxu0 0.0
    %3139 = vmatprep.subr.mxu0 0.0
    %3140 = vmatpush1.msra.mxu0 0.0
    %3141 = vmatprep.subr.mxu0 0.0
    %3142 = vmatpush1.msra.mxu0 0.0
    %3143 = vmatprep.subr.mxu0 0.0
    %3144 = vmatpush1.msra.mxu0 0.0
    %3145 = vmatprep.subr.mxu0 0.0
    %3146 = vmatpush1.msra.mxu0 0.0
    %3147 = vmatprep.subr.mxu0 0.0
    %3148 = vmatpush1.msra.mxu0 0.0
    %3149 = vmatprep.subr.mxu0 0.0
    %3150 = vmatpush1.msra.mxu0 0.0
    %3151 = vmatprep.subr.mxu0 0.0
    %3152 = vmatpush1.msra.mxu0 0.0
    %3153 = vmatprep.subr.mxu0 0.0
    %3154 = vmatpush1.msra.mxu0 0.0
    %3155 = vmatprep.subr.mxu0 0.0
    %3156 = vmatpush1.msra.mxu0 0.0
    %3157 = vmatprep.subr.mxu0 0.0
    %3158 = vmatpush1.msra.mxu0 0.0
    %3159 = vmatprep.subr.mxu0 0.0
    %3160 = vmatpush1.msra.mxu0 0.0
    %3161 = vmatprep.subr.mxu0 0.0
    %3162 = vmatpush1.msra.mxu0 0.0
    %3163 = vmatprep.mubr.f32.mxu0 0.0
    %3164 = vmatmul.mubr.f32.gmra.mrb[0].mxu0 %v3094
    %v3165 = vpop.f32.mrb[0].mxu0
    %v3166 = vadd.f32 0.0, %v3165
    %v3167 = vpop.f32.mrb[0].mxu0
    %3168 = vmatprep.mubr.f32.mxu0 0.0
    %3169 = vmatmul.mubr.f32.gmra.mrb[0].mxu0 %v3097
    %v3170 = vpop.f32.mrb[0].mxu0
    %v3171 = vadd.f32 0.0, %v3170
    %v3172 = vpop.f32.mrb[0].mxu0
    %3173 = vdwg.mxu0
    %v3174 = vadd.f32 %v3015, %v3166
    %v3175 = vadd.f32 %v3088, %v3171
    %v3176 = vrcp.pop %v2943
    %v3177 = vrcp.pop %v2944
    %v3178 = vmul.f32 %v3174, %v3176
    %v3179 = vmul.f32 %v3175, %v3177
    %3182 = vrot.lane.b32.xlu0 %v3178, 48
    %v3183 = vpop.permute.xlu0 %3182
    %3184 = vrot.lane.b32.xlu0 %v3179, 48
    %v3185 = vpop.permute.xlu0 %3184
    %vm3188 = vcmask 523648
    %3189 = vst.msk [vmem:[#allocation2] sm:$0xff] %vm3188, %v3183
    %3190 = vst.msk [vmem:[#allocation2 + $0x8] sm:$0xff] %vm3188, %v3185
    %v3191 = vld [vmem:[#allocation2] sm:$0xff]
    %v3192 = vld [vmem:[#allocation2 + $0x8] sm:$0xff]
    %v3193 = vld [vmem:[%s9] sm:$0xff]
    %v3194 = vld [vmem:[%s9 + $0x8] sm:$0xff]
    %v3195 = vld [vmem:[%s9 + $0x10] sm:$0xff]
    %v3196 = vld [vmem:[%s9 + $0x18] sm:$0xff]
    %v3197 = vld [vmem:[%s9 + $0x20] sm:$0xff]
    %v3198 = vld [vmem:[%s9 + $0x28] sm:$0xff]
    %v3199 = vld [vmem:[%s9 + $0x30] sm:$0xff]
    %v3200 = vld [vmem:[%s9 + $0x38] sm:$0xff]
    %v3201 = vld [vmem:[%s10] sm:$0x1]
    %v3203 = vlaneseq
    %v3204 = vshrl.u32 %v3203, 7
    %v3205 = vsub.s32 0, %v3204
    %v3206 = vrot.slane %v3201, %v3205
    %vm3208 = vcmask 523264
    %v3210 = vsel %vm3208, %v3191, 0
    %v3213 = vsel %vm3208, %v3192, 0
    %3215 = vmatprep.subr.mxu0 0.0
    %3216 = vmatpush1.msra.mxu0 %v3193
    %3217 = vmatprep.subr.mxu0 0.0
    %3218 = vmatpush1.msra.mxu0 %v3194
    %3219 = vmatprep.subr.mxu0 0.0
    %3220 = vmatpush1.msra.mxu0 %v3195
    %3221 = vmatprep.subr.mxu0 0.0
    %3222 = vmatpush1.msra.mxu0 %v3196
    %3223 = vmatprep.subr.mxu0 0.0
    %3224 = vmatpush1.msra.mxu0 %v3197
    %3225 = vmatprep.subr.mxu0 0.0
    %3226 = vmatpush1.msra.mxu0 %v3198
    %3227 = vmatprep.subr.mxu0 0.0
    %3228 = vmatpush1.msra.mxu0 %v3199
    %3229 = vmatprep.subr.mxu0 0.0
    %3230 = vmatpush1.msra.mxu0 %v3200
    %3231 = vmatprep.subr.mxu0 0.0
    %3232 = vmatpush1.msra.mxu0 0.0
    %3233 = vmatprep.subr.mxu0 0.0
    %3234 = vmatpush1.msra.mxu0 0.0
    %3235 = vmatprep.subr.mxu0 0.0
    %3236 = vmatpush1.msra.mxu0 0.0
    %3237 = vmatprep.subr.mxu0 0.0
    %3238 = vmatpush1.msra.mxu0 0.0
    %3239 = vmatprep.subr.mxu0 0.0
    %3240 = vmatpush1.msra.mxu0 0.0
    %3241 = vmatprep.subr.mxu0 0.0
    %3242 = vmatpush1.msra.mxu0 0.0
    %3243 = vmatprep.subr.mxu0 0.0
    %3244 = vmatpush1.msra.mxu0 0.0
    %3245 = vmatprep.subr.mxu0 0.0
    %3246 = vmatpush1.msra.mxu0 0.0
    %3247 = vmatprep.subr.mxu0 0.0
    %3248 = vmatpush1.msra.mxu0 0.0
    %3249 = vmatprep.subr.mxu0 0.0
    %3250 = vmatpush1.msra.mxu0 0.0
    %3251 = vmatprep.subr.mxu0 0.0
    %3252 = vmatpush1.msra.mxu0 0.0
    %3253 = vmatprep.subr.mxu0 0.0
    %3254 = vmatpush1.msra.mxu0 0.0
    %3255 = vmatprep.subr.mxu0 0.0
    %3256 = vmatpush1.msra.mxu0 0.0
    %3257 = vmatprep.subr.mxu0 0.0
    %3258 = vmatpush1.msra.mxu0 0.0
    %3259 = vmatprep.subr.mxu0 0.0
    %3260 = vmatpush1.msra.mxu0 0.0
    %3261 = vmatprep.subr.mxu0 0.0
    %3262 = vmatpush1.msra.mxu0 0.0
    %3263 = vmatprep.subr.mxu0 0.0
    %3264 = vmatpush1.msra.mxu0 0.0
    %3265 = vmatprep.subr.mxu0 0.0
    %3266 = vmatpush1.msra.mxu0 0.0
    %3267 = vmatprep.subr.mxu0 0.0
    %3268 = vmatpush1.msra.mxu0 0.0
    %3269 = vmatprep.subr.mxu0 0.0
    %3270 = vmatpush1.msra.mxu0 0.0
    %3271 = vmatprep.subr.mxu0 0.0
    %3272 = vmatpush1.msra.mxu0 0.0
    %3273 = vmatprep.subr.mxu0 0.0
    %3274 = vmatpush1.msra.mxu0 0.0
    %3275 = vmatprep.subr.mxu0 0.0
    %3276 = vmatpush1.msra.mxu0 0.0
    %3277 = vmatprep.subr.mxu0 0.0
    %3278 = vmatpush1.msra.mxu0 0.0
    %3279 = vmatprep.mubr.f32.mxu0 0.0
    %3280 = vmatmul.mubr.f32.gmra.mrb[0].mxu0 %v3210
    %v3281 = vpop.f32.mrb[0].mxu0
    %v3282 = vadd.f32 %v3206, %v3281
    %v3283 = vpop.f32.mrb[0].mxu0
    %3284 = vmatprep.mubr.f32.mxu0 0.0
    %3285 = vmatmul.mubr.f32.gmra.mrb[0].mxu0 %v3213
    %v3286 = vpop.f32.mrb[0].mxu0
    %v3287 = vadd.f32 %v3206, %v3286
    %v3288 = vpop.f32.mrb[0].mxu0
    %3289 = vdwg.mxu0
    %3290 = vst.msk [vmem:[#allocation3] sm:$0xff] %vm62, %v3282
    %3291 = vst.msk [vmem:[#allocation3 + $0x8] sm:$0xff] %vm62, %v3287
    // Predicated region
    $region54: #{tpu_custom_call.1} parent=1 // pred_check
      _
    $region55: #{tpu_custom_call.1} parent=1 // pred_check_branch
      %3293 = sbr.rel (0) target = $region57
    $region56: #{tpu_custom_call.1} parent=1 // pred_region
      %s3295 = ssub.s32 256, 256
      %3296 = vsyncadd [#allocation4], %s3295
      %s3297 = sshll.u32 [#allocation3], 4
      %s3298 = int_to_ptr.vmem [resolvable:$true] %s3297
      %3303 = dma.vmem_to_hbm [thread:$0]  %s3298, 256, %s13, [#allocation4], 128, 128, 8
    $region57: #{tpu_custom_call.1} parent=1 // pred_fallthru
      _
    // Predicated region
    $region58: #{tpu_custom_call.1} parent=1 // pred_check
      _
    $region59: #{tpu_custom_call.1} parent=1 // pred_check_branch
      %3305 = sbr.rel (0) target = $region61
    $region60: #{tpu_custom_call.1} parent=1 // pred_region
      %3306 = dma.done [#allocation4], 256
    $region61: #{tpu_custom_call.1} parent=1 // pred_fallthru
      _
    %3307 = vsyncpa [#allocation4], 1

// kernel: tpu_custom_call.1
$region0: #{tpu_custom_call.1}
  #allocation0 [shape = 'u32[]', space=smem, size = 0x4, offset = 0x4, fixed_abs, tag = 'smem constant byte address 0x4 - core index']
  #allocation1 [shape = 'u32[144,128]{1,0:T(1,128)}', space=vmem, size = 0x12000, scoped, tag = 'internal scratch']
  #allocation2 [shape = 'f32[16,64]{1,0:T(8,128)}', space=vmem, size = 0x2000, scoped, tag = 'scratch operand']
  %s0 = inlined_call_operand.vmem [shape: f32[16,32], index: 0, kind: input, shape index: {}]
  %s1 = inlined_call_operand.vmem [shape: f32[16,32], index: 1, kind: input, shape index: {}]
  %s2 = inlined_call_operand.vmem [shape: f32[16,32], index: 2, kind: input, shape index: {}]
  %s3 = inlined_call_operand.vmem [shape: f32[4,32,16], index: 3, kind: input, shape index: {}]
  %s4 = inlined_call_operand.vmem [shape: f32[4,1,16], index: 4, kind: input, shape index: {}]
  %s5 = inlined_call_operand.vmem [shape: f32[4,32,16], index: 5, kind: input, shape index: {}]
  %s6 = inlined_call_operand.vmem [shape: f32[4,1,16], index: 6, kind: input, shape index: {}]
  %s7 = inlined_call_operand.vmem [shape: f32[4,32,16], index: 7, kind: input, shape index: {}]
  %s8 = inlined_call_operand.vmem [shape: f32[4,1,16], index: 8, kind: input, shape index: {}]
  %s9 = inlined_call_operand.vmem [shape: f32[64,32], index: 9, kind: input, shape index: {}]
  %s10 = inlined_call_operand.vmem [shape: f32[1,32], index: 10, kind: input, shape index: {}]
  %s11 = inlined_call_operand.vmem [shape: f32[4,8,16], index: 11, kind: input, shape index: {}]
  %s12 = inlined_call_operand.vmem [shape: f32[4,8,16], index: 12, kind: input, shape index: {}]
  %s13 = inlined_call_operand.hbm [shape: f32[16,32], index: 13, kind: output, shape index: {}]
  %s14 = sld [smem:[#allocation0]]
  $region62: #{tpu_custom_call.1} parent=0
    _
  %s16 = ssub.s32 1, %s14
  %s17 = scalar_select 0, %s16, %s14
  $region1: #{tpu_custom_call.1} parent=0
    #allocation3 [shape = 'u8[8192]{0}', space=vmem, size = 0x2000, scoped, tag = 'output window, operand 0, single buffered']
    #allocation4 [shape = 's32[1]{0}', space=sflag, size = 0x4, scoped, tag = 'scoped memory for tpu_custom_call.1']
    %18 = vsyncpa [#allocation4], 0
    // Predicated region
    $region2: #{tpu_custom_call.1} parent=1 // pred_check
      _
    $region3: #{tpu_custom_call.1} parent=1 // pred_check_branch
      %20 = sbr.rel (0) target = $region5
    $region4: #{tpu_custom_call.1} parent=1 // pred_region
      _
    $region5: #{tpu_custom_call.1} parent=1 // pred_fallthru
      _
    // Predicated region
    $region6: #{tpu_custom_call.1} parent=1 // pred_check
      _
    $region7: #{tpu_custom_call.1} parent=1 // pred_check_branch
      %22 = sbr.rel (0) target = $region9
    $region8: #{tpu_custom_call.1} parent=1 // pred_region
      _
    $region9: #{tpu_custom_call.1} parent=1 // pred_fallthru
      _
    // Predicated region
    $region10: #{tpu_custom_call.1} parent=1 // pred_check
      _
    $region11: #{tpu_custom_call.1} parent=1 // pred_check_branch
      %24 = sbr.rel (0) target = $region13
    $region12: #{tpu_custom_call.1} parent=1 // pred_region
      _
    $region13: #{tpu_custom_call.1} parent=1 // pred_fallthru
      _
    // Predicated region
    $region14: #{tpu_custom_call.1} parent=1 // pred_check
      _
    $region15: #{tpu_custom_call.1} parent=1 // pred_check_branch
      %26 = sbr.rel (0) target = $region17
    $region16: #{tpu_custom_call.1} parent=1 // pred_region
      _
    $region17: #{tpu_custom_call.1} parent=1 // pred_fallthru
      _
    // Predicated region
    $region18: #{tpu_custom_call.1} parent=1 // pred_check
      _
    $region19: #{tpu_custom_call.1} parent=1 // pred_check_branch
      %28 = sbr.rel (0) target = $region21
    $region20: #{tpu_custom_call.1} parent=1 // pred_region
      _
    $region21: #{tpu_custom_call.1} parent=1 // pred_fallthru
      _
    // Predicated region
    $region22: #{tpu_custom_call.1} parent=1 // pred_check
      _
    $region23: #{tpu_custom_call.1} parent=1 // pred_check_branch
      %30 = sbr.rel (0) target = $region25
    $region24: #{tpu_custom_call.1} parent=1 // pred_region
      _
    $region25: #{tpu_custom_call.1} parent=1 // pred_fallthru
      _
    // Predicated region
    $region26: #{tpu_custom_call.1} parent=1 // pred_check
      _
    $region27: #{tpu_custom_call.1} parent=1 // pred_check_branch
      %32 = sbr.rel (0) target = $region29
    $region28: #{tpu_custom_call.1} parent=1 // pred_region
      _
    $region29: #{tpu_custom_call.1} parent=1 // pred_fallthru
      _
    // Predicated region
    $region30: #{tpu_custom_call.1} parent=1 // pred_check
      _
    $region31: #{tpu_custom_call.1} parent=1 // pred_check_branch
      %34 = sbr.rel (0) target = $region33
    $region32: #{tpu_custom_call.1} parent=1 // pred_region
      _
    $region33: #{tpu_custom_call.1} parent=1 // pred_fallthru
      _
    // Predicated region
    $region34: #{tpu_custom_call.1} parent=1 // pred_check
      _
    $region35: #{tpu_custom_call.1} parent=1 // pred_check_branch
      %36 = sbr.rel (0) target = $region37
    $region36: #{tpu_custom_call.1} parent=1 // pred_region
      _
    $region37: #{tpu_custom_call.1} parent=1 // pred_fallthru
      _
    // Predicated region
    $region38: #{tpu_custom_call.1} parent=1 // pred_check
      _
    $region39: #{tpu_custom_call.1} parent=1 // pred_check_branch
      %38 = sbr.rel (0) target = $region41
    $region40: #{tpu_custom_call.1} parent=1 // pred_region
      _
    $region41: #{tpu_custom_call.1} parent=1 // pred_fallthru
      _
    // Predicated region
    $region42: #{tpu_custom_call.1} parent=1 // pred_check
      _
    $region43: #{tpu_custom_call.1} parent=1 // pred_check_branch
      %40 = sbr.rel (0) target = $region45
    $region44: #{tpu_custom_call.1} parent=1 // pred_region
      _
    $region45: #{tpu_custom_call.1} parent=1 // pred_fallthru
      _
    // Predicated region
    $region46: #{tpu_custom_call.1} parent=1 // pred_check
      _
    $region47: #{tpu_custom_call.1} parent=1 // pred_check_branch
      %42 = sbr.rel (0) target = $region49
    $region48: #{tpu_custom_call.1} parent=1 // pred_region
      _
    $region49: #{tpu_custom_call.1} parent=1 // pred_fallthru
      _
    // Predicated region
    $region50: #{tpu_custom_call.1} parent=1 // pred_check
      _
    $region51: #{tpu_custom_call.1} parent=1 // pred_check_branch
      %44 = sbr.rel (0) target = $region53
    $region52: #{tpu_custom_call.1} parent=1 // pred_region
      _
    $region53: #{tpu_custom_call.1} parent=1 // pred_fallthru
      _
    %v45 = vld [vmem:[%s0] sm:$0xff]
    %v46 = vld [vmem:[%s0 + $0x8] sm:$0xff]
    %v47 = vld [vmem:[%s1] sm:$0xff]
    %v48 = vld [vmem:[%s1 + $0x8] sm:$0xff]
    %v49 = vld [vmem:[%s2] sm:$0xff]
    %v50 = vld [vmem:[%s2 + $0x8] sm:$0xff]
    %v51 = vld [vmem:[%s3] sm:$0xff]
    %v52 = vld [vmem:[%s3 + $0x8] sm:$0xff]
    %v53 = vld [vmem:[%s3 + $0x10] sm:$0xff]
    %v54 = vld [vmem:[%s3 + $0x18] sm:$0xff]
    %v55 = vld [vmem:[%s4] sm:$0x1]
    %v57 = vlaneseq
    %v58 = vshrl.u32 %v57, 7
    %v59 = vsub.s32 0, %v58
    %v60 = vrot.slane %v55, %v59
    %vm62 = vcmask 261120
    %v64 = vsel %vm62, %v45, 0
    %v67 = vsel %vm62, %v46, 0
    %69 = vmatprep.subr.mxu0 0.0
    %70 = vmatpush1.msra.mxu0 %v51
    %71 = vmatprep.subr.mxu0 0.0
    %72 = vmatpush1.msra.mxu0 %v52
    %73 = vmatprep.subr.mxu0 0.0
    %74 = vmatpush1.msra.mxu0 %v53
    %75 = vmatprep.subr.mxu0 0.0
    %76 = vmatpush1.msra.mxu0 %v54
    %77 = vmatprep.subr.mxu0 0.0
    %78 = vmatpush1.msra.mxu0 0.0
    %79 = vmatprep.subr.mxu0 0.0
    %80 = vmatpush1.msra.mxu0 0.0
    %81 = vmatprep.subr.mxu0 0.0
    %82 = vmatpush1.msra.mxu0 0.0
    %83 = vmatprep.subr.mxu0 0.0
    %84 = vmatpush1.msra.mxu0 0.0
    %85 = vmatprep.subr.mxu0 0.0
    %86 = vmatpush1.msra.mxu0 0.0
    %87 = vmatprep.subr.mxu0 0.0
    %88 = vmatpush1.msra.mxu0 0.0
    %89 = vmatprep.subr.mxu0 0.0
    %90 = vmatpush1.msra.mxu0 0.0
    %91 = vmatprep.subr.mxu0 0.0
    %92 = vmatpush1.msra.mxu0 0.0
    %93 = vmatprep.subr.mxu0 0.0
    %94 = vmatpush1.msra.mxu0 0.0
    %95 = vmatprep.subr.mxu0 0.0
    %96 = vmatpush1.msra.mxu0 0.0
    %97 = vmatprep.subr.mxu0 0.0
    %98 = vmatpush1.msra.mxu0 0.0
    %99 = vmatprep.subr.mxu0 0.0
    %100 = vmatpush1.msra.mxu0 0.0
    %101 = vmatprep.subr.mxu0 0.0
    %102 = vmatpush1.msra.mxu0 0.0
    %103 = vmatprep.subr.mxu0 0.0
    %104 = vmatpush1.msra.mxu0 0.0
    %105 = vmatprep.subr.mxu0 0.0
    %106 = vmatpush1.msra.mxu0 0.0
    %107 = vmatprep.subr.mxu0 0.0
    %108 = vmatpush1.msra.mxu0 0.0
    %109 = vmatprep.subr.mxu0 0.0
    %110 = vmatpush1.msra.mxu0 0.0
    %111 = vmatprep.subr.mxu0 0.0
    %112 = vmatpush1.msra.mxu0 0.0
    %113 = vmatprep.subr.mxu0 0.0
    %114 = vmatpush1.msra.mxu0 0.0
    %115 = vmatprep.subr.mxu0 0.0
    %116 = vmatpush1.msra.mxu0 0.0
    %117 = vmatprep.subr.mxu0 0.0
    %118 = vmatpush1.msra.mxu0 0.0
    %119 = vmatprep.subr.mxu0 0.0
    %120 = vmatpush1.msra.mxu0 0.0
    %121 = vmatprep.subr.mxu0 0.0
    %122 = vmatpush1.msra.mxu0 0.0
    %123 = vmatprep.subr.mxu0 0.0
    %124 = vmatpush1.msra.mxu0 0.0
    %125 = vmatprep.subr.mxu0 0.0
    %126 = vmatpush1.msra.mxu0 0.0
    %127 = vmatprep.subr.mxu0 0.0
    %128 = vmatpush1.msra.mxu0 0.0
    %129 = vmatprep.subr.mxu0 0.0
    %130 = vmatpush1.msra.mxu0 0.0
    %131 = vmatprep.subr.mxu0 0.0
    %132 = vmatpush1.msra.mxu0 0.0
    %133 = vmatprep.mubr.f32.mxu0 0.0
    %134 = vmatmul.mubr.f32.gmra.mrb[0].mxu0 %v64
    %v135 = vpop.f32.mrb[0].mxu0
    %v136 = vadd.f32 %v60, %v135
    %v137 = vpop.f32.mrb[0].mxu0
    %138 = vmatprep.mubr.f32.mxu0 0.0
    %139 = vmatmul.mubr.f32.gmra.mrb[0].mxu0 %v67
    %v140 = vpop.f32.mrb[0].mxu0
    %v141 = vadd.f32 %v60, %v140
    %v142 = vpop.f32.mrb[0].mxu0
    %143 = vdwg.mxu0
    %v144 = vld [vmem:[%s5] sm:$0xff]
    %v145 = vld [vmem:[%s5 + $0x8] sm:$0xff]
    %v146 = vld [vmem:[%s5 + $0x10] sm:$0xff]
    %v147 = vld [vmem:[%s5 + $0x18] sm:$0xff]
    %v148 = vld [vmem:[%s6] sm:$0x1]
    %v150 = vlaneseq
    %v151 = vshrl.u32 %v150, 7
    %v152 = vsub.s32 0, %v151
    %v153 = vrot.slane %v148, %v152
    %v156 = vsel %vm62, %v47, 0
    %v159 = vsel %vm62, %v48, 0
    %161 = vmatprep.subr.mxu0 0.0
    %162 = vmatpush1.msra.mxu0 %v144
    %163 = vmatprep.subr.mxu0 0.0
    %164 = vmatpush1.msra.mxu0 %v145
    %165 = vmatprep.subr.mxu0 0.0
    %166 = vmatpush1.msra.mxu0 %v146
    %167 = vmatprep.subr.mxu0 0.0
    %168 = vmatpush1.msra.mxu0 %v147
    %169 = vmatprep.subr.mxu0 0.0
    %170 = vmatpush1.msra.mxu0 0.0
    %171 = vmatprep.subr.mxu0 0.0
    %172 = vmatpush1.msra.mxu0 0.0
    %173 = vmatprep.subr.mxu0 0.0
    %174 = vmatpush1.msra.mxu0 0.0
    %175 = vmatprep.subr.mxu0 0.0
    %176 = vmatpush1.msra.mxu0 0.0
    %177 = vmatprep.subr.mxu0 0.0
    %178 = vmatpush1.msra.mxu0 0.0
    %179 = vmatprep.subr.mxu0 0.0
    %180 = vmatpush1.msra.mxu0 0.0
    %181 = vmatprep.subr.mxu0 0.0
    %182 = vmatpush1.msra.mxu0 0.0
    %183 = vmatprep.subr.mxu0 0.0
    %184 = vmatpush1.msra.mxu0 0.0
    %185 = vmatprep.subr.mxu0 0.0
    %186 = vmatpush1.msra.mxu0 0.0
    %187 = vmatprep.subr.mxu0 0.0
    %188 = vmatpush1.msra.mxu0 0.0
    %189 = vmatprep.subr.mxu0 0.0
    %190 = vmatpush1.msra.mxu0 0.0
    %191 = vmatprep.subr.mxu0 0.0
    %192 = vmatpush1.msra.mxu0 0.0
    %193 = vmatprep.subr.mxu0 0.0
    %194 = vmatpush1.msra.mxu0 0.0
    %195 = vmatprep.subr.mxu0 0.0
    %196 = vmatpush1.msra.mxu0 0.0
    %197 = vmatprep.subr.mxu0 0.0
    %198 = vmatpush1.msra.mxu0 0.0
    %199 = vmatprep.subr.mxu0 0.0
    %200 = vmatpush1.msra.mxu0 0.0
    %201 = vmatprep.subr.mxu0 0.0
    %202 = vmatpush1.msra.mxu0 0.0
    %203 = vmatprep.subr.mxu0 0.0
    %204 = vmatpush1.msra.mxu0 0.0
    %205 = vmatprep.subr.mxu0 0.0
    %206 = vmatpush1.msra.mxu0 0.0
    %207 = vmatprep.subr.mxu0 0.0
    %208 = vmatpush1.msra.mxu0 0.0
    %209 = vmatprep.subr.mxu0 0.0
    %210 = vmatpush1.msra.mxu0 0.0
    %211 = vmatprep.subr.mxu0 0.0
    %212 = vmatpush1.msra.mxu0 0.0
    %213 = vmatprep.subr.mxu0 0.0
    %214 = vmatpush1.msra.mxu0 0.0
    %215 = vmatprep.subr.mxu0 0.0
    %216 = vmatpush1.msra.mxu0 0.0
    %217 = vmatprep.subr.mxu0 0.0
    %218 = vmatpush1.msra.mxu0 0.0
    %219 = vmatprep.subr.mxu0 0.0
    %220 = vmatpush1.msra.mxu0 0.0
    %221 = vmatprep.subr.mxu0 0.0
    %222 = vmatpush1.msra.mxu0 0.0
    %223 = vmatprep.subr.mxu0 0.0
    %224 = vmatpush1.msra.mxu0 0.0
    %225 = vmatprep.mubr.f32.mxu0 0.0
    %226 = vmatmul.mubr.f32.gmra.mrb[0].mxu0 %v156
    %v227 = vpop.f32.mrb[0].mxu0
    %v228 = vadd.f32 %v153, %v227
    %v229 = vpop.f32.mrb[0].mxu0
    %230 = vmatprep.mubr.f32.mxu0 0.0
    %231 = vmatmul.mubr.f32.gmra.mrb[0].mxu0 %v159
    %v232 = vpop.f32.mrb[0].mxu0
    %v233 = vadd.f32 %v153, %v232
    %v234 = vpop.f32.mrb[0].mxu0
    %235 = vdwg.mxu0
    %v236 = vld [vmem:[%s7] sm:$0xff]
    %v237 = vld [vmem:[%s7 + $0x8] sm:$0xff]
    %v238 = vld [vmem:[%s7 + $0x10] sm:$0xff]
    %v239 = vld [vmem:[%s7 + $0x18] sm:$0xff]
    %v240 = vld [vmem:[%s8] sm:$0x1]
    %v242 = vlaneseq
    %v243 = vshrl.u32 %v242, 7
    %v244 = vsub.s32 0, %v243
    %v245 = vrot.slane %v240, %v244
    %v248 = vsel %vm62, %v49, 0
    %v251 = vsel %vm62, %v50, 0
    %253 = vmatprep.subr.mxu0 0.0
    %254 = vmatpush1.msra.mxu0 %v236
    %255 = vmatprep.subr.mxu0 0.0
    %256 = vmatpush1.msra.mxu0 %v237
    %257 = vmatprep.subr.mxu0 0.0
    %258 = vmatpush1.msra.mxu0 %v238
    %259 = vmatprep.subr.mxu0 0.0
    %260 = vmatpush1.msra.mxu0 %v239
    %261 = vmatprep.subr.mxu0 0.0
    %262 = vmatpush1.msra.mxu0 0.0
    %263 = vmatprep.subr.mxu0 0.0
    %264 = vmatpush1.msra.mxu0 0.0
    %265 = vmatprep.subr.mxu0 0.0
    %266 = vmatpush1.msra.mxu0 0.0
    %267 = vmatprep.subr.mxu0 0.0
    %268 = vmatpush1.msra.mxu0 0.0
    %269 = vmatprep.subr.mxu0 0.0
    %270 = vmatpush1.msra.mxu0 0.0
    %271 = vmatprep.subr.mxu0 0.0
    %272 = vmatpush1.msra.mxu0 0.0
    %273 = vmatprep.subr.mxu0 0.0
    %274 = vmatpush1.msra.mxu0 0.0
    %275 = vmatprep.subr.mxu0 0.0
    %276 = vmatpush1.msra.mxu0 0.0
    %277 = vmatprep.subr.mxu0 0.0
    %278 = vmatpush1.msra.mxu0 0.0
    %279 = vmatprep.subr.mxu0 0.0
    %280 = vmatpush1.msra.mxu0 0.0
    %281 = vmatprep.subr.mxu0 0.0
    %282 = vmatpush1.msra.mxu0 0.0
    %283 = vmatprep.subr.mxu0 0.0
    %284 = vmatpush1.msra.mxu0 0.0
    %285 = vmatprep.subr.mxu0 0.0
    %286 = vmatpush1.msra.mxu0 0.0
    %287 = vmatprep.subr.mxu0 0.0
    %288 = vmatpush1.msra.mxu0 0.0
    %289 = vmatprep.subr.mxu0 0.0
    %290 = vmatpush1.msra.mxu0 0.0
    %291 = vmatprep.subr.mxu0 0.0
    %292 = vmatpush1.msra.mxu0 0.0
    %293 = vmatprep.subr.mxu0 0.0
    %294 = vmatpush1.msra.mxu0 0.0
    %295 = vmatprep.subr.mxu0 0.0
    %296 = vmatpush1.msra.mxu0 0.0
    %297 = vmatprep.subr.mxu0 0.0
    %298 = vmatpush1.msra.mxu0 0.0
    %299 = vmatprep.subr.mxu0 0.0
    %300 = vmatpush1.msra.mxu0 0.0
    %301 = vmatprep.subr.mxu0 0.0
    %302 = vmatpush1.msra.mxu0 0.0
    %303 = vmatprep.subr.mxu0 0.0
    %304 = vmatpush1.msra.mxu0 0.0
    %305 = vmatprep.subr.mxu0 0.0
    %306 = vmatpush1.msra.mxu0 0.0
    %307 = vmatprep.subr.mxu0 0.0
    %308 = vmatpush1.msra.mxu0 0.0
    %309 = vmatprep.subr.mxu0 0.0
    %310 = vmatpush1.msra.mxu0 0.0
    %311 = vmatprep.subr.mxu0 0.0
    %312 = vmatpush1.msra.mxu0 0.0
    %313 = vmatprep.subr.mxu0 0.0
    %314 = vmatpush1.msra.mxu0 0.0
    %315 = vmatprep.subr.mxu0 0.0
    %316 = vmatpush1.msra.mxu0 0.0
    %317 = vmatprep.mubr.f32.mxu0 0.0
    %318 = vmatmul.mubr.f32.gmra.mrb[0].mxu0 %v248
    %v319 = vpop.f32.mrb[0].mxu0
    %v320 = vadd.f32 %v245, %v319
    %v321 = vpop.f32.mrb[0].mxu0
    %322 = vmatprep.mubr.f32.mxu0 0.0
    %323 = vmatmul.mubr.f32.gmra.mrb[0].mxu0 %v251
    %v324 = vpop.f32.mrb[0].mxu0
    %v325 = vadd.f32 %v245, %v324
    %v326 = vpop.f32.mrb[0].mxu0
    %327 = vdwg.mxu0
    %vm328 = vcmask 130048
    %v330 = vsel %vm328, %v136, 0
    %v333 = vsel %vm328, %v228, 0
    %335 = vmatprep.subr.mxu0 0.0
    %336 = vmatpush1.xpose.msra.mxu0 %v333
    %337 = vmatprep.subr.mxu0 0.0
    %338 = vmatpush1.xpose.msra.mxu0 0.0
    %339 = vmatprep.subr.mxu0 0.0
    %340 = vmatpush1.xpose.msra.mxu0 0.0
    %341 = vmatprep.subr.mxu0 0.0
    %342 = vmatpush1.xpose.msra.mxu0 0.0
    %343 = vmatprep.subr.mxu0 0.0
    %344 = vmatpush1.xpose.msra.mxu0 0.0
    %345 = vmatprep.subr.mxu0 0.0
    %346 = vmatpush1.xpose.msra.mxu0 0.0
    %347 = vmatprep.subr.mxu0 0.0
    %348 = vmatpush1.xpose.msra.mxu0 0.0
    %349 = vmatprep.subr.mxu0 0.0
    %350 = vmatpush1.xpose.msra.mxu0 0.0
    %351 = vmatprep.subr.mxu0 0.0
    %352 = vmatpush1.xpose.msra.mxu0 0.0
    %353 = vmatprep.subr.mxu0 0.0
    %354 = vmatpush1.xpose.msra.mxu0 0.0
    %355 = vmatprep.subr.mxu0 0.0
    %356 = vmatpush1.xpose.msra.mxu0 0.0
    %357 = vmatprep.subr.mxu0 0.0
    %358 = vmatpush1.xpose.msra.mxu0 0.0
    %359 = vmatprep.subr.mxu0 0.0
    %360 = vmatpush1.xpose.msra.mxu0 0.0
    %361 = vmatprep.subr.mxu0 0.0
    %362 = vmatpush1.xpose.msra.mxu0 0.0
    %363 = vmatprep.subr.mxu0 0.0
    %364 = vmatpush1.xpose.msra.mxu0 0.0
    %365 = vmatprep.subr.mxu0 0.0
    %366 = vmatpush1.xpose.msra.mxu0 0.0
    %367 = vmatprep.subr.mxu0 0.0
    %368 = vmatpush1.xpose.msra.mxu0 0.0
    %369 = vmatprep.subr.mxu0 0.0
    %370 = vmatpush1.xpose.msra.mxu0 0.0
    %371 = vmatprep.subr.mxu0 0.0
    %372 = vmatpush1.xpose.msra.mxu0 0.0
    %373 = vmatprep.subr.mxu0 0.0
    %374 = vmatpush1.xpose.msra.mxu0 0.0
    %375 = vmatprep.subr.mxu0 0.0
    %376 = vmatpush1.xpose.msra.mxu0 0.0
    %377 = vmatprep.subr.mxu0 0.0
    %378 = vmatpush1.xpose.msra.mxu0 0.0
    %379 = vmatprep.subr.mxu0 0.0
    %380 = vmatpush1.xpose.msra.mxu0 0.0
    %381 = vmatprep.subr.mxu0 0.0
    %382 = vmatpush1.xpose.msra.mxu0 0.0
    %383 = vmatprep.subr.mxu0 0.0
    %384 = vmatpush1.xpose.msra.mxu0 0.0
    %385 = vmatprep.subr.mxu0 0.0
    %386 = vmatpush1.xpose.msra.mxu0 0.0
    %387 = vmatprep.subr.mxu0 0.0
    %388 = vmatpush1.xpose.msra.mxu0 0.0
    %389 = vmatprep.subr.mxu0 0.0
    %390 = vmatpush1.xpose.msra.mxu0 0.0
    %391 = vmatprep.subr.mxu0 0.0
    %392 = vmatpush1.xpose.msra.mxu0 0.0
    %393 = vmatprep.subr.mxu0 0.0
    %394 = vmatpush1.xpose.msra.mxu0 0.0
    %395 = vmatprep.subr.mxu0 0.0
    %396 = vmatpush1.xpose.msra.mxu0 0.0
    %397 = vmatprep.subr.mxu0 0.0
    %398 = vmatpush1.xpose.msra.mxu0 0.0
    %399 = vmatprep.mubr.f32.mxu0 0.0
    %400 = vmatmul.mubr.f32.gmra.mrb[0].mxu0 %v330
    %v401 = vpop.f32.mrb[0].mxu0
    %v402 = vadd.f32 0.0, %v401
    %v403 = vpop.f32.mrb[0].mxu0
    %404 = vdwg.mxu0
    %v406 = vsel %vm328, %v141, 0
    %v409 = vsel %vm328, %v233, 0
    %411 = vmatprep.subr.mxu0 0.0
    %412 = vmatpush1.xpose.msra.mxu0 %v409
    %413 = vmatprep.subr.mxu0 0.0
    %414 = vmatpush1.xpose.msra.mxu0 0.0
    %415 = vmatprep.subr.mxu0 0.0
    %416 = vmatpush1.xpose.msra.mxu0 0.0
    %417 = vmatprep.subr.mxu0 0.0
    %418 = vmatpush1.xpose.msra.mxu0 0.0
    %419 = vmatprep.subr.mxu0 0.0
    %420 = vmatpush1.xpose.msra.mxu0 0.0
    %421 = vmatprep.subr.mxu0 0.0
    %422 = vmatpush1.xpose.msra.mxu0 0.0
    %423 = vmatprep.subr.mxu0 0.0
    %424 = vmatpush1.xpose.msra.mxu0 0.0
    %425 = vmatprep.subr.mxu0 0.0
    %426 = vmatpush1.xpose.msra.mxu0 0.0
    %427 = vmatprep.subr.mxu0 0.0
    %428 = vmatpush1.xpose.msra.mxu0 0.0
    %429 = vmatprep.subr.mxu0 0.0
    %430 = vmatpush1.xpose.msra.mxu0 0.0
    %431 = vmatprep.subr.mxu0 0.0
    %432 = vmatpush1.xpose.msra.mxu0 0.0
    %433 = vmatprep.subr.mxu0 0.0
    %434 = vmatpush1.xpose.msra.mxu0 0.0
    %435 = vmatprep.subr.mxu0 0.0
    %436 = vmatpush1.xpose.msra.mxu0 0.0
    %437 = vmatprep.subr.mxu0 0.0
    %438 = vmatpush1.xpose.msra.mxu0 0.0
    %439 = vmatprep.subr.mxu0 0.0
    %440 = vmatpush1.xpose.msra.mxu0 0.0
    %441 = vmatprep.subr.mxu0 0.0
    %442 = vmatpush1.xpose.msra.mxu0 0.0
    %443 = vmatprep.subr.mxu0 0.0
    %444 = vmatpush1.xpose.msra.mxu0 0.0
    %445 = vmatprep.subr.mxu0 0.0
    %446 = vmatpush1.xpose.msra.mxu0 0.0
    %447 = vmatprep.subr.mxu0 0.0
    %448 = vmatpush1.xpose.msra.mxu0 0.0
    %449 = vmatprep.subr.mxu0 0.0
    %450 = vmatpush1.xpose.msra.mxu0 0.0
    %451 = vmatprep.subr.mxu0 0.0
    %452 = vmatpush1.xpose.msra.mxu0 0.0
    %453 = vmatprep.subr.mxu0 0.0
    %454 = vmatpush1.xpose.msra.mxu0 0.0
    %455 = vmatprep.subr.mxu0 0.0
    %456 = vmatpush1.xpose.msra.mxu0 0.0
    %457 = vmatprep.subr.mxu0 0.0
    %458 = vmatpush1.xpose.msra.mxu0 0.0
    %459 = vmatprep.subr.mxu0 0.0
    %460 = vmatpush1.xpose.msra.mxu0 0.0
    %461 = vmatprep.subr.mxu0 0.0
    %462 = vmatpush1.xpose.msra.mxu0 0.0
    %463 = vmatprep.subr.mxu0 0.0
    %464 = vmatpush1.xpose.msra.mxu0 0.0
    %465 = vmatprep.subr.mxu0 0.0
    %466 = vmatpush1.xpose.msra.mxu0 0.0
    %467 = vmatprep.subr.mxu0 0.0
    %468 = vmatpush1.xpose.msra.mxu0 0.0
    %469 = vmatprep.subr.mxu0 0.0
    %470 = vmatpush1.xpose.msra.mxu0 0.0
    %471 = vmatprep.subr.mxu0 0.0
    %472 = vmatpush1.xpose.msra.mxu0 0.0
    %473 = vmatprep.subr.mxu0 0.0
    %474 = vmatpush1.xpose.msra.mxu0 0.0
    %475 = vmatprep.mubr.f32.mxu0 0.0
    %476 = vmatmul.mubr.f32.gmra.mrb[0].mxu0 %v406
    %v477 = vpop.f32.mrb[0].mxu0
    %v478 = vadd.f32 0.0, %v477
    %v479 = vpop.f32.mrb[0].mxu0
    %480 = vdwg.mxu0
    %v481 = vmul.f32 %v402, 0.25
    %v482 = vmul.f32 %v478, 0.25
    %v483 = vld [vmem:[%s11] sm:$0xff]
    %v485 = vsel %vm328, %v483, 0
    %487 = vmatprep.subr.mxu0 0.0
    %488 = vmatpush1.xpose.msra.mxu0 %v485
    %489 = vmatprep.subr.mxu0 0.0
    %490 = vmatpush1.xpose.msra.mxu0 0.0
    %491 = vmatprep.subr.mxu0 0.0
    %492 = vmatpush1.xpose.msra.mxu0 0.0
    %493 = vmatprep.subr.mxu0 0.0
    %494 = vmatpush1.xpose.msra.mxu0 0.0
    %495 = vmatprep.subr.mxu0 0.0
    %496 = vmatpush1.xpose.msra.mxu0 0.0
    %497 = vmatprep.subr.mxu0 0.0
    %498 = vmatpush1.xpose.msra.mxu0 0.0
    %499 = vmatprep.subr.mxu0 0.0
    %500 = vmatpush1.xpose.msra.mxu0 0.0
    %501 = vmatprep.subr.mxu0 0.0
    %502 = vmatpush1.xpose.msra.mxu0 0.0
    %503 = vmatprep.subr.mxu0 0.0
    %504 = vmatpush1.xpose.msra.mxu0 0.0
    %505 = vmatprep.subr.mxu0 0.0
    %506 = vmatpush1.xpose.msra.mxu0 0.0
    %507 = vmatprep.subr.mxu0 0.0
    %508 = vmatpush1.xpose.msra.mxu0 0.0
    %509 = vmatprep.subr.mxu0 0.0
    %510 = vmatpush1.xpose.msra.mxu0 0.0
    %511 = vmatprep.subr.mxu0 0.0
    %512 = vmatpush1.xpose.msra.mxu0 0.0
    %513 = vmatprep.subr.mxu0 0.0
    %514 = vmatpush1.xpose.msra.mxu0 0.0
    %515 = vmatprep.subr.mxu0 0.0
    %516 = vmatpush1.xpose.msra.mxu0 0.0
    %517 = vmatprep.subr.mxu0 0.0
    %518 = vmatpush1.xpose.msra.mxu0 0.0
    %519 = vmatprep.subr.mxu0 0.0
    %520 = vmatpush1.xpose.msra.mxu0 0.0
    %521 = vmatprep.subr.mxu0 0.0
    %522 = vmatpush1.xpose.msra.mxu0 0.0
    %523 = vmatprep.subr.mxu0 0.0
    %524 = vmatpush1.xpose.msra.mxu0 0.0
    %525 = vmatprep.subr.mxu0 0.0
    %526 = vmatpush1.xpose.msra.mxu0 0.0
    %527 = vmatprep.subr.mxu0 0.0
    %528 = vmatpush1.xpose.msra.mxu0 0.0
    %529 = vmatprep.subr.mxu0 0.0
    %530 = vmatpush1.xpose.msra.mxu0 0.0
    %531 = vmatprep.subr.mxu0 0.0
    %532 = vmatpush1.xpose.msra.mxu0 0.0
    %533 = vmatprep.subr.mxu0 0.0
    %534 = vmatpush1.xpose.msra.mxu0 0.0
    %535 = vmatprep.subr.mxu0 0.0
    %536 = vmatpush1.xpose.msra.mxu0 0.0
    %537 = vmatprep.subr.mxu0 0.0
    %538 = vmatpush1.xpose.msra.mxu0 0.0
    %539 = vmatprep.subr.mxu0 0.0
    %540 = vmatpush1.xpose.msra.mxu0 0.0
    %541 = vmatprep.subr.mxu0 0.0
    %542 = vmatpush1.xpose.msra.mxu0 0.0
    %543 = vmatprep.subr.mxu0 0.0
    %544 = vmatpush1.xpose.msra.mxu0 0.0
    %545 = vmatprep.subr.mxu0 0.0
    %546 = vmatpush1.xpose.msra.mxu0 0.0
    %547 = vmatprep.subr.mxu0 0.0
    %548 = vmatpush1.xpose.msra.mxu0 0.0
    %549 = vmatprep.subr.mxu0 0.0
    %550 = vmatpush1.xpose.msra.mxu0 0.0
    %551 = vmatprep.mubr.f32.mxu0 0.0
    %552 = vmatmul.mubr.f32.gmra.mrb[0].mxu0 %v330
    %v553 = vpop.f32.mrb[0].mxu0
    %v554 = vadd.f32 0.0, %v553
    %v555 = vpop.f32.mrb[0].mxu0
    %556 = vmatprep.mubr.f32.mxu0 0.0
    %557 = vmatmul.mubr.f32.gmra.mrb[0].mxu0 %v406
    %v558 = vpop.f32.mrb[0].mxu0
    %v559 = vadd.f32 0.0, %v558
    %v560 = vpop.f32.mrb[0].mxu0
    %561 = vdwg.mxu0
    %vm562 = vcmask 64512
    %v563 = vsel %vm562, %v481, -inf
    %564 = vmax.xlane.f32.xlu0 %v563
    %v565 = vpop.xlane.xlu0 %564
    %v566 = vsel %vm562, %v482, -inf
    %567 = vmax.xlane.f32.xlu0 %v566
    %v568 = vpop.xlane.xlu0 %567
    %v569 = vsel %vm562, %v554, -inf
    %570 = vmax.xlane.f32.xlu0 %v569
    %v571 = vpop.xlane.xlu0 %570
    %v572 = vsel %vm562, %v559, -inf
    %573 = vmax.xlane.f32.xlu0 %v572
    %v574 = vpop.xlane.xlu0 %573
    %v575 = vmax.f32 %v565, %v571
    %v576 = vmax.f32 %v568, %v574
    %v577 = vsub.f32 %v481, %v575
    %v578 = vsub.f32 %v482, %v576
    %v579 = vmul.f32 %v577, 1.442695
    %v580 = vpow.pop %v579
    %v581 = vmul.f32 %v578, 1.442695
    %v582 = vpow.pop %v581
    %v583 = vsub.f32 %v554, %v575
    %v584 = vsub.f32 %v559, %v576
    %v585 = vmul.f32 %v583, 1.442695
    %v586 = vpow.pop %v585
    %v587 = vmul.f32 %v584, 1.442695
    %v588 = vpow.pop %v587
    %v589 = vsel %vm562, %v580, 0.0
    %590 = vadd.xlane.f32.xlu0 %v589
    %v591 = vpop.xlane.xlu0 %590
    %v592 = vsel %vm562, %v582, 0.0
    %593 = vadd.xlane.f32.xlu0 %v592
    %v594 = vpop.xlane.xlu0 %593
    %v595 = vsel %vm562, %v586, 0.0
    %596 = vadd.xlane.f32.xlu0 %v595
    %v597 = vpop.xlane.xlu0 %596
    %v598 = vsel %vm562, %v588, 0.0
    %599 = vadd.xlane.f32.xlu0 %v598
    %v600 = vpop.xlane.xlu0 %599
    %v601 = vadd.f32 %v591, %v597
    %v602 = vadd.f32 %v594, %v600
    %v604 = vsel %vm562, %v580, 0
    %606 = vmatprep.subr.mxu0 0.0
    %607 = vmatpush1.msra.mxu0 %v320
    %608 = vmatprep.subr.mxu0 0.0
    %609 = vmatpush1.msra.mxu0 0.0
    %610 = vmatprep.subr.mxu0 0.0
    %611 = vmatpush1.msra.mxu0 0.0
    %612 = vmatprep.subr.mxu0 0.0
    %613 = vmatpush1.msra.mxu0 0.0
    %614 = vmatprep.subr.mxu0 0.0
    %615 = vmatpush1.msra.mxu0 0.0
    %616 = vmatprep.subr.mxu0 0.0
    %617 = vmatpush1.msra.mxu0 0.0
    %618 = vmatprep.subr.mxu0 0.0
    %619 = vmatpush1.msra.mxu0 0.0
    %620 = vmatprep.subr.mxu0 0.0
    %621 = vmatpush1.msra.mxu0 0.0
    %622 = vmatprep.subr.mxu0 0.0
    %623 = vmatpush1.msra.mxu0 0.0
    %624 = vmatprep.subr.mxu0 0.0
    %625 = vmatpush1.msra.mxu0 0.0
    %626 = vmatprep.subr.mxu0 0.0
    %627 = vmatpush1.msra.mxu0 0.0
    %628 = vmatprep.subr.mxu0 0.0
    %629 = vmatpush1.msra.mxu0 0.0
    %630 = vmatprep.subr.mxu0 0.0
    %631 = vmatpush1.msra.mxu0 0.0
    %632 = vmatprep.subr.mxu0 0.0
    %633 = vmatpush1.msra.mxu0 0.0
    %634 = vmatprep.subr.mxu0 0.0
    %635 = vmatpush1.msra.mxu0 0.0
    %636 = vmatprep.subr.mxu0 0.0
    %637 = vmatpush1.msra.mxu0 0.0
    %638 = vmatprep.subr.mxu0 0.0
    %639 = vmatpush1.msra.mxu0 0.0
    %640 = vmatprep.subr.mxu0 0.0
    %641 = vmatpush1.msra.mxu0 0.0
    %642 = vmatprep.subr.mxu0 0.0
    %643 = vmatpush1.msra.mxu0 0.0
    %644 = vmatprep.subr.mxu0 0.0
    %645 = vmatpush1.msra.mxu0 0.0
    %646 = vmatprep.subr.mxu0 0.0
    %647 = vmatpush1.msra.mxu0 0.0
    %648 = vmatprep.subr.mxu0 0.0
    %649 = vmatpush1.msra.mxu0 0.0
    %650 = vmatprep.subr.mxu0 0.0
    %651 = vmatpush1.msra.mxu0 0.0
    %652 = vmatprep.subr.mxu0 0.0
    %653 = vmatpush1.msra.mxu0 0.0
    %654 = vmatprep.subr.mxu0 0.0
    %655 = vmatpush1.msra.mxu0 0.0
    %656 = vmatprep.subr.mxu0 0.0
    %657 = vmatpush1.msra.mxu0 0.0
    %658 = vmatprep.subr.mxu0 0.0
    %659 = vmatpush1.msra.mxu0 0.0
    %660 = vmatprep.subr.mxu0 0.0
    %661 = vmatpush1.msra.mxu0 0.0
    %662 = vmatprep.subr.mxu0 0.0
    %663 = vmatpush1.msra.mxu0 0.0
    %664 = vmatprep.subr.mxu0 0.0
    %665 = vmatpush1.msra.mxu0 0.0
    %666 = vmatprep.subr.mxu0 0.0
    %667 = vmatpush1.msra.mxu0 0.0
    %668 = vmatprep.subr.mxu0 0.0
    %669 = vmatpush1.msra.mxu0 0.0
    %670 = vmatprep.mubr.f32.mxu0 0.0
    %671 = vmatmul.mubr.f32.gmra.mrb[0].mxu0 %v604
    %v672 = vpop.f32.mrb[0].mxu0
    %v673 = vadd.f32 0.0, %v672
    %v674 = vpop.f32.mrb[0].mxu0
    %675 = vdwg.mxu0
    %v677 = vsel %vm562, %v582, 0
    %679 = vmatprep.subr.mxu0 0.0
    %680 = vmatpush1.msra.mxu0 %v325
    %681 = vmatprep.subr.mxu0 0.0
    %682 = vmatpush1.msra.mxu0 0.0
    %683 = vmatprep.subr.mxu0 0.0
    %684 = vmatpush1.msra.mxu0 0.0
    %685 = vmatprep.subr.mxu0 0.0
    %686 = vmatpush1.msra.mxu0 0.0
    %687 = vmatprep.subr.mxu0 0.0
    %688 = vmatpush1.msra.mxu0 0.0
    %689 = vmatprep.subr.mxu0 0.0
    %690 = vmatpush1.msra.mxu0 0.0
    %691 = vmatprep.subr.mxu0 0.0
    %692 = vmatpush1.msra.mxu0 0.0
    %693 = vmatprep.subr.mxu0 0.0
    %694 = vmatpush1.msra.mxu0 0.0
    %695 = vmatprep.subr.mxu0 0.0
    %696 = vmatpush1.msra.mxu0 0.0
    %697 = vmatprep.subr.mxu0 0.0
    %698 = vmatpush1.msra.mxu0 0.0
    %699 = vmatprep.subr.mxu0 0.0
    %700 = vmatpush1.msra.mxu0 0.0
    %701 = vmatprep.subr.mxu0 0.0
    %702 = vmatpush1.msra.mxu0 0.0
    %703 = vmatprep.subr.mxu0 0.0
    %704 = vmatpush1.msra.mxu0 0.0
    %705 = vmatprep.subr.mxu0 0.0
    %706 = vmatpush1.msra.mxu0 0.0
    %707 = vmatprep.subr.mxu0 0.0
    %708 = vmatpush1.msra.mxu0 0.0
    %709 = vmatprep.subr.mxu0 0.0
    %710 = vmatpush1.msra.mxu0 0.0
    %711 = vmatprep.subr.mxu0 0.0
    %712 = vmatpush1.msra.mxu0 0.0
    %713 = vmatprep.subr.mxu0 0.0
    %714 = vmatpush1.msra.mxu0 0.0
    %715 = vmatprep.subr.mxu0 0.0
    %716 = vmatpush1.msra.mxu0 0.0
    %717 = vmatprep.subr.mxu0 0.0
    %718 = vmatpush1.msra.mxu0 0.0
    %719 = vmatprep.subr.mxu0 0.0
    %720 = vmatpush1.msra.mxu0 0.0
    %721 = vmatprep.subr.mxu0 0.0
    %722 = vmatpush1.msra.mxu0 0.0
    %723 = vmatprep.subr.mxu0 0.0
    %724 = vmatpush1.msra.mxu0 0.0
    %725 = vmatprep.subr.mxu0 0.0
    %726 = vmatpush1.msra.mxu0 0.0
    %727 = vmatprep.subr.mxu0 0.0
    %728 = vmatpush1.msra.mxu0 0.0
    %729 = vmatprep.subr.mxu0 0.0
    %730 = vmatpush1.msra.mxu0 0.0
    %731 = vmatprep.subr.mxu0 0.0
    %732 = vmatpush1.msra.mxu0 0.0
    %733 = vmatprep.subr.mxu0 0.0
    %734 = vmatpush1.msra.mxu0 0.0
    %735 = vmatprep.subr.mxu0 0.0
    %736 = vmatpush1.msra.mxu0 0.0
    %737 = vmatprep.subr.mxu0 0.0
    %738 = vmatpush1.msra.mxu0 0.0
    %739 = vmatprep.subr.mxu0 0.0
    %740 = vmatpush1.msra.mxu0 0.0
    %741 = vmatprep.subr.mxu0 0.0
    %742 = vmatpush1.msra.mxu0 0.0
    %743 = vmatprep.mubr.f32.mxu0 0.0
    %744 = vmatmul.mubr.f32.gmra.mrb[0].mxu0 %v677
    %v745 = vpop.f32.mrb[0].mxu0
    %v746 = vadd.f32 0.0, %v745
    %v747 = vpop.f32.mrb[0].mxu0
    %748 = vdwg.mxu0
    %v749 = vld [vmem:[%s12] sm:$0xff]
    %v751 = vsel %vm562, %v586, 0
    %v754 = vsel %vm562, %v588, 0
    %756 = vmatprep.subr.mxu0 0.0
    %757 = vmatpush1.msra.mxu0 %v749
    %758 = vmatprep.subr.mxu0 0.0
    %759 = vmatpush1.msra.mxu0 0.0
    %760 = vmatprep.subr.mxu0 0.0
    %761 = vmatpush1.msra.mxu0 0.0
    %762 = vmatprep.subr.mxu0 0.0
    %763 = vmatpush1.msra.mxu0 0.0
    %764 = vmatprep.subr.mxu0 0.0
    %765 = vmatpush1.msra.mxu0 0.0
    %766 = vmatprep.subr.mxu0 0.0
    %767 = vmatpush1.msra.mxu0 0.0
    %768 = vmatprep.subr.mxu0 0.0
    %769 = vmatpush1.msra.mxu0 0.0
    %770 = vmatprep.subr.mxu0 0.0
    %771 = vmatpush1.msra.mxu0 0.0
    %772 = vmatprep.subr.mxu0 0.0
    %773 = vmatpush1.msra.mxu0 0.0
    %774 = vmatprep.subr.mxu0 0.0
    %775 = vmatpush1.msra.mxu0 0.0
    %776 = vmatprep.subr.mxu0 0.0
    %777 = vmatpush1.msra.mxu0 0.0
    %778 = vmatprep.subr.mxu0 0.0
    %779 = vmatpush1.msra.mxu0 0.0
    %780 = vmatprep.subr.mxu0 0.0
    %781 = vmatpush1.msra.mxu0 0.0
    %782 = vmatprep.subr.mxu0 0.0
    %783 = vmatpush1.msra.mxu0 0.0
    %784 = vmatprep.subr.mxu0 0.0
    %785 = vmatpush1.msra.mxu0 0.0
    %786 = vmatprep.subr.mxu0 0.0
    %787 = vmatpush1.msra.mxu0 0.0
    %788 = vmatprep.subr.mxu0 0.0
    %789 = vmatpush1.msra.mxu0 0.0
    %790 = vmatprep.subr.mxu0 0.0
    %791 = vmatpush1.msra.mxu0 0.0
    %792 = vmatprep.subr.mxu0 0.0
    %793 = vmatpush1.msra.mxu0 0.0
    %794 = vmatprep.subr.mxu0 0.0
    %795 = vmatpush1.msra.mxu0 0.0
    %796 = vmatprep.subr.mxu0 0.0
    %797 = vmatpush1.msra.mxu0 0.0
    %798 = vmatprep.subr.mxu0 0.0
    %799 = vmatpush1.msra.mxu0 0.0
    %800 = vmatprep.subr.mxu0 0.0
    %801 = vmatpush1.msra.mxu0 0.0
    %802 = vmatprep.subr.mxu0 0.0
    %803 = vmatpush1.msra.mxu0 0.0
    %804 = vmatprep.subr.mxu0 0.0
    %805 = vmatpush1.msra.mxu0 0.0
    %806 = vmatprep.subr.mxu0 0.0
    %807 = vmatpush1.msra.mxu0 0.0
    %808 = vmatprep.subr.mxu0 0.0
    %809 = vmatpush1.msra.mxu0 0.0
    %810 = vmatprep.subr.mxu0 0.0
    %811 = vmatpush1.msra.mxu0 0.0
    %812 = vmatprep.subr.mxu0 0.0
    %813 = vmatpush1.msra.mxu0 0.0
    %814 = vmatprep.subr.mxu0 0.0
    %815 = vmatpush1.msra.mxu0 0.0
    %816 = vmatprep.subr.mxu0 0.0
    %817 = vmatpush1.msra.mxu0 0.0
    %818 = vmatprep.subr.mxu0 0.0
    %819 = vmatpush1.msra.mxu0 0.0
    %820 = vmatprep.mubr.f32.mxu0 0.0
    %821 = vmatmul.mubr.f32.gmra.mrb[0].mxu0 %v751
    %v822 = vpop.f32.mrb[0].mxu0
    %v823 = vadd.f32 0.0, %v822
    %v824 = vpop.f32.mrb[0].mxu0
    %825 = vmatprep.mubr.f32.mxu0 0.0
    %826 = vmatmul.mubr.f32.gmra.mrb[0].mxu0 %v754
    %v827 = vpop.f32.mrb[0].mxu0
    %v828 = vadd.f32 0.0, %v827
    %v829 = vpop.f32.mrb[0].mxu0
    %830 = vdwg.mxu0
    %v831 = vadd.f32 %v673, %v823
    %v832 = vadd.f32 %v746, %v828
    %v833 = vrcp.pop %v601
    %v834 = vrcp.pop %v602
    %v835 = vmul.f32 %v831, %v833
    %v836 = vmul.f32 %v832, %v834
    %837 = vst.msk [vmem:[#allocation2] sm:$0xff] %vm328, %v835
    %838 = vst.msk [vmem:[#allocation2 + $0x8] sm:$0xff] %vm328, %v836
    %s839 = scalar_lea.vmem %s3, 32
    %v840 = vld [vmem:[%s839] sm:$0xff]
    %v841 = vld [vmem:[%s839 + $0x8] sm:$0xff]
    %v842 = vld [vmem:[%s839 + $0x10] sm:$0xff]
    %v843 = vld [vmem:[%s839 + $0x18] sm:$0xff]
    %s844 = scalar_lea.vmem %s4, 1
    %v845 = vld [vmem:[%s844] sm:$0x1]
    %v847 = vlaneseq
    %v848 = vshrl.u32 %v847, 7
    %v849 = vsub.s32 0, %v848
    %v850 = vrot.slane %v845, %v849
    %852 = vmatprep.subr.mxu0 0.0
    %853 = vmatpush1.msra.mxu0 %v840
    %854 = vmatprep.subr.mxu0 0.0
    %855 = vmatpush1.msra.mxu0 %v841
    %856 = vmatprep.subr.mxu0 0.0
    %857 = vmatpush1.msra.mxu0 %v842
    %858 = vmatprep.subr.mxu0 0.0
    %859 = vmatpush1.msra.mxu0 %v843
    %860 = vmatprep.subr.mxu0 0.0
    %861 = vmatpush1.msra.mxu0 0.0
    %862 = vmatprep.subr.mxu0 0.0
    %863 = vmatpush1.msra.mxu0 0.0
    %864 = vmatprep.subr.mxu0 0.0
    %865 = vmatpush1.msra.mxu0 0.0
    %866 = vmatprep.subr.mxu0 0.0
    %867 = vmatpush1.msra.mxu0 0.0
    %868 = vmatprep.subr.mxu0 0.0
    %869 = vmatpush1.msra.mxu0 0.0
    %870 = vmatprep.subr.mxu0 0.0
    %871 = vmatpush1.msra.mxu0 0.0
    %872 = vmatprep.subr.mxu0 0.0
    %873 = vmatpush1.msra.mxu0 0.0
    %874 = vmatprep.subr.mxu0 0.0
    %875 = vmatpush1.msra.mxu0 0.0
    %876 = vmatprep.subr.mxu0 0.0
    %877 = vmatpush1.msra.mxu0 0.0
    %878 = vmatprep.subr.mxu0 0.0
    %879 = vmatpush1.msra.mxu0 0.0
    %880 = vmatprep.subr.mxu0 0.0
    %881 = vmatpush1.msra.mxu0 0.0
    %882 = vmatprep.subr.mxu0 0.0
    %883 = vmatpush1.msra.mxu0 0.0
    %884 = vmatprep.subr.mxu0 0.0
    %885 = vmatpush1.msra.mxu0 0.0
    %886 = vmatprep.subr.mxu0 0.0
    %887 = vmatpush1.msra.mxu0 0.0
    %888 = vmatprep.subr.mxu0 0.0
    %889 = vmatpush1.msra.mxu0 0.0
    %890 = vmatprep.subr.mxu0 0.0
    %891 = vmatpush1.msra.mxu0 0.0
    %892 = vmatprep.subr.mxu0 0.0
    %893 = vmatpush1.msra.mxu0 0.0
    %894 = vmatprep.subr.mxu0 0.0
    %895 = vmatpush1.msra.mxu0 0.0
    %896 = vmatprep.subr.mxu0 0.0
    %897 = vmatpush1.msra.mxu0 0.0
    %898 = vmatprep.subr.mxu0 0.0
    %899 = vmatpush1.msra.mxu0 0.0
    %900 = vmatprep.subr.mxu0 0.0
    %901 = vmatpush1.msra.mxu0 0.0
    %902 = vmatprep.subr.mxu0 0.0
    %903 = vmatpush1.msra.mxu0 0.0
    %904 = vmatprep.subr.mxu0 0.0
    %905 = vmatpush1.msra.mxu0 0.0
    %906 = vmatprep.subr.mxu0 0.0
    %907 = vmatpush1.msra.mxu0 0.0
    %908 = vmatprep.subr.mxu0 0.0
    %909 = vmatpush1.msra.mxu0 0.0
    %910 = vmatprep.subr.mxu0 0.0
    %911 = vmatpush1.msra.mxu0 0.0
    %912 = vmatprep.subr.mxu0 0.0
    %913 = vmatpush1.msra.mxu0 0.0
    %914 = vmatprep.subr.mxu0 0.0
    %915 = vmatpush1.msra.mxu0 0.0
    %916 = vmatprep.mubr.f32.mxu0 0.0
    %917 = vmatmul.mubr.f32.gmra.mrb[0].mxu0 %v64
    %v918 = vpop.f32.mrb[0].mxu0
    %v919 = vadd.f32 %v850, %v918
    %v920 = vpop.f32.mrb[0].mxu0
    %921 = vmatprep.mubr.f32.mxu0 0.0
    %922 = vmatmul.mubr.f32.gmra.mrb[0].mxu0 %v67
    %v923 = vpop.f32.mrb[0].mxu0
    %v924 = vadd.f32 %v850, %v923
    %v925 = vpop.f32.mrb[0].mxu0
    %926 = vdwg.mxu0
    %s927 = scalar_lea.vmem %s5, 32
    %v928 = vld [vmem:[%s927] sm:$0xff]
    %v929 = vld [vmem:[%s927 + $0x8] sm:$0xff]
    %v930 = vld [vmem:[%s927 + $0x10] sm:$0xff]
    %v931 = vld [vmem:[%s927 + $0x18] sm:$0xff]
    %s932 = scalar_lea.vmem %s6, 1
    %v933 = vld [vmem:[%s932] sm:$0x1]
    %v935 = vlaneseq
    %v936 = vshrl.u32 %v935, 7
    %v937 = vsub.s32 0, %v936
    %v938 = vrot.slane %v933, %v937
    %940 = vmatprep.subr.mxu0 0.0
    %941 = vmatpush1.msra.mxu0 %v928
    %942 = vmatprep.subr.mxu0 0.0
    %943 = vmatpush1.msra.mxu0 %v929
    %944 = vmatprep.subr.mxu0 0.0
    %945 = vmatpush1.msra.mxu0 %v930
    %946 = vmatprep.subr.mxu0 0.0
    %947 = vmatpush1.msra.mxu0 %v931
    %948 = vmatprep.subr.mxu0 0.0
    %949 = vmatpush1.msra.mxu0 0.0
    %950 = vmatprep.subr.mxu0 0.0
    %951 = vmatpush1.msra.mxu0 0.0
    %952 = vmatprep.subr.mxu0 0.0
    %953 = vmatpush1.msra.mxu0 0.0
    %954 = vmatprep.subr.mxu0 0.0
    %955 = vmatpush1.msra.mxu0 0.0
    %956 = vmatprep.subr.mxu0 0.0
    %957 = vmatpush1.msra.mxu0 0.0
    %958 = vmatprep.subr.mxu0 0.0
    %959 = vmatpush1.msra.mxu0 0.0
    %960 = vmatprep.subr.mxu0 0.0
    %961 = vmatpush1.msra.mxu0 0.0
    %962 = vmatprep.subr.mxu0 0.0
    %963 = vmatpush1.msra.mxu0 0.0
    %964 = vmatprep.subr.mxu0 0.0
    %965 = vmatpush1.msra.mxu0 0.0
    %966 = vmatprep.subr.mxu0 0.0
    %967 = vmatpush1.msra.mxu0 0.0
    %968 = vmatprep.subr.mxu0 0.0
    %969 = vmatpush1.msra.mxu0 0.0
    %970 = vmatprep.subr.mxu0 0.0
    %971 = vmatpush1.msra.mxu0 0.0
    %972 = vmatprep.subr.mxu0 0.0
    %973 = vmatpush1.msra.mxu0 0.0
    %974 = vmatprep.subr.mxu0 0.0
    %975 = vmatpush1.msra.mxu0 0.0
    %976 = vmatprep.subr.mxu0 0.0
    %977 = vmatpush1.msra.mxu0 0.0
    %978 = vmatprep.subr.mxu0 0.0
    %979 = vmatpush1.msra.mxu0 0.0
    %980 = vmatprep.subr.mxu0 0.0
    %981 = vmatpush1.msra.mxu0 0.0
    %982 = vmatprep.subr.mxu0 0.0
    %983 = vmatpush1.msra.mxu0 0.0
    %984 = vmatprep.subr.mxu0 0.0
    %985 = vmatpush1.msra.mxu0 0.0
    %986 = vmatprep.subr.mxu0 0.0
    %987 = vmatpush1.msra.mxu0 0.0
    %988 = vmatprep.subr.mxu0 0.0
    %989 = vmatpush1.msra.mxu0 0.0
    %990 = vmatprep.subr.mxu0 0.0
    %991 = vmatpush1.msra.mxu0 0.0
    %992 = vmatprep.subr.mxu0 0.0
    %993 = vmatpush1.msra.mxu0 0.0
    %994 = vmatprep.subr.mxu0 0.0
    %995 = vmatpush1.msra.mxu0 0.0
    %996 = vmatprep.subr.mxu0 0.0
    %997 = vmatpush1.msra.mxu0 0.0
    %998 = vmatprep.subr.mxu0 0.0
    %999 = vmatpush1.msra.mxu0 0.0
    %1000 = vmatprep.subr.mxu0 0.0
    %1001 = vmatpush1.msra.mxu0 0.0
    %1002 = vmatprep.subr.mxu0 0.0
    %1003 = vmatpush1.msra.mxu0 0.0
    %1004 = vmatprep.mubr.f32.mxu0 0.0
    %1005 = vmatmul.mubr.f32.gmra.mrb[0].mxu0 %v156
    %v1006 = vpop.f32.mrb[0].mxu0
    %v1007 = vadd.f32 %v938, %v1006
    %v1008 = vpop.f32.mrb[0].mxu0
    %1009 = vmatprep.mubr.f32.mxu0 0.0
    %1010 = vmatmul.mubr.f32.gmra.mrb[0].mxu0 %v159
    %v1011 = vpop.f32.mrb[0].mxu0
    %v1012 = vadd.f32 %v938, %v1011
    %v1013 = vpop.f32.mrb[0].mxu0
    %1014 = vdwg.mxu0
    %s1015 = scalar_lea.vmem %s7, 32
    %v1016 = vld [vmem:[%s1015] sm:$0xff]
    %v1017 = vld [vmem:[%s1015 + $0x8] sm:$0xff]
    %v1018 = vld [vmem:[%s1015 + $0x10] sm:$0xff]
    %v1019 = vld [vmem:[%s1015 + $0x18] sm:$0xff]
    %s1020 = scalar_lea.vmem %s8, 1
    %v1021 = vld [vmem:[%s1020] sm:$0x1]
    %v1023 = vlaneseq
    %v1024 = vshrl.u32 %v1023, 7
    %v1025 = vsub.s32 0, %v1024
    %v1026 = vrot.slane %v1021, %v1025
    %1028 = vmatprep.subr.mxu0 0.0
    %1029 = vmatpush1.msra.mxu0 %v1016
    %1030 = vmatprep.subr.mxu0 0.0
    %1031 = vmatpush1.msra.mxu0 %v1017
    %1032 = vmatprep.subr.mxu0 0.0
    %1033 = vmatpush1.msra.mxu0 %v1018
    %1034 = vmatprep.subr.mxu0 0.0
    %1035 = vmatpush1.msra.mxu0 %v1019
    %1036 = vmatprep.subr.mxu0 0.0
    %1037 = vmatpush1.msra.mxu0 0.0
    %1038 = vmatprep.subr.mxu0 0.0
    %1039 = vmatpush1.msra.mxu0 0.0
    %1040 = vmatprep.subr.mxu0 0.0
    %1041 = vmatpush1.msra.mxu0 0.0
    %1042 = vmatprep.subr.mxu0 0.0
    %1043 = vmatpush1.msra.mxu0 0.0
    %1044 = vmatprep.subr.mxu0 0.0
    %1045 = vmatpush1.msra.mxu0 0.0
    %1046 = vmatprep.subr.mxu0 0.0
    %1047 = vmatpush1.msra.mxu0 0.0
    %1048 = vmatprep.subr.mxu0 0.0
    %1049 = vmatpush1.msra.mxu0 0.0
    %1050 = vmatprep.subr.mxu0 0.0
    %1051 = vmatpush1.msra.mxu0 0.0
    %1052 = vmatprep.subr.mxu0 0.0
    %1053 = vmatpush1.msra.mxu0 0.0
    %1054 = vmatprep.subr.mxu0 0.0
    %1055 = vmatpush1.msra.mxu0 0.0
    %1056 = vmatprep.subr.mxu0 0.0
    %1057 = vmatpush1.msra.mxu0 0.0
    %1058 = vmatprep.subr.mxu0 0.0
    %1059 = vmatpush1.msra.mxu0 0.0
    %1060 = vmatprep.subr.mxu0 0.0
    %1061 = vmatpush1.msra.mxu0 0.0
    %1062 = vmatprep.subr.mxu0 0.0
    %1063 = vmatpush1.msra.mxu0 0.0
    %1064 = vmatprep.subr.mxu0 0.0
    %1065 = vmatpush1.msra.mxu0 0.0
    %1066 = vmatprep.subr.mxu0 0.0
    %1067 = vmatpush1.msra.mxu0 0.0
    %1068 = vmatprep.subr.mxu0 0.0
    %1069 = vmatpush1.msra.mxu0 0.0
    %1070 = vmatprep.subr.mxu0 0.0
    %1071 = vmatpush1.msra.mxu0 0.0
    %1072 = vmatprep.subr.mxu0 0.0
    %1073 = vmatpush1.msra.mxu0 0.0
    %1074 = vmatprep.subr.mxu0 0.0
    %1075 = vmatpush1.msra.mxu0 0.0
    %1076 = vmatprep.subr.mxu0 0.0
    %1077 = vmatpush1.msra.mxu0 0.0
    %1078 = vmatprep.subr.mxu0 0.0
    %1079 = vmatpush1.msra.mxu0 0.0
    %1080 = vmatprep.subr.mxu0 0.0
    %1081 = vmatpush1.msra.mxu0 0.0
    %1082 = vmatprep.subr.mxu0 0.0
    %1083 = vmatpush1.msra.mxu0 0.0
    %1084 = vmatprep.subr.mxu0 0.0
    %1085 = vmatpush1.msra.mxu0 0.0
    %1086 = vmatprep.subr.mxu0 0.0
    %1087 = vmatpush1.msra.mxu0 0.0
    %1088 = vmatprep.subr.mxu0 0.0
    %1089 = vmatpush1.msra.mxu0 0.0
    %1090 = vmatprep.subr.mxu0 0.0
    %1091 = vmatpush1.msra.mxu0 0.0
    %1092 = vmatprep.mubr.f32.mxu0 0.0
    %1093 = vmatmul.mubr.f32.gmra.mrb[0].mxu0 %v248
    %v1094 = vpop.f32.mrb[0].mxu0
    %v1095 = vadd.f32 %v1026, %v1094
    %v1096 = vpop.f32.mrb[0].mxu0
    %1097 = vmatprep.mubr.f32.mxu0 0.0
    %1098 = vmatmul.mubr.f32.gmra.mrb[0].mxu0 %v251
    %v1099 = vpop.f32.mrb[0].mxu0
    %v1100 = vadd.f32 %v1026, %v1099
    %v1101 = vpop.f32.mrb[0].mxu0
    %1102 = vdwg.mxu0
    %v1104 = vsel %vm328, %v919, 0
    %v1107 = vsel %vm328, %v1007, 0
    %1109 = vmatprep.subr.mxu0 0.0
    %1110 = vmatpush1.xpose.msra.mxu0 %v1107
    %1111 = vmatprep.subr.mxu0 0.0
    %1112 = vmatpush1.xpose.msra.mxu0 0.0
    %1113 = vmatprep.subr.mxu0 0.0
    %1114 = vmatpush1.xpose.msra.mxu0 0.0
    %1115 = vmatprep.subr.mxu0 0.0
    %1116 = vmatpush1.xpose.msra.mxu0 0.0
    %1117 = vmatprep.subr.mxu0 0.0
    %1118 = vmatpush1.xpose.msra.mxu0 0.0
    %1119 = vmatprep.subr.mxu0 0.0
    %1120 = vmatpush1.xpose.msra.mxu0 0.0
    %1121 = vmatprep.subr.mxu0 0.0
    %1122 = vmatpush1.xpose.msra.mxu0 0.0
    %1123 = vmatprep.subr.mxu0 0.0
    %1124 = vmatpush1.xpose.msra.mxu0 0.0
    %1125 = vmatprep.subr.mxu0 0.0
    %1126 = vmatpush1.xpose.msra.mxu0 0.0
    %1127 = vmatprep.subr.mxu0 0.0
    %1128 = vmatpush1.xpose.msra.mxu0 0.0
    %1129 = vmatprep.subr.mxu0 0.0
    %1130 = vmatpush1.xpose.msra.mxu0 0.0
    %1131 = vmatprep.subr.mxu0 0.0
    %1132 = vmatpush1.xpose.msra.mxu0 0.0
    %1133 = vmatprep.subr.mxu0 0.0
    %1134 = vmatpush1.xpose.msra.mxu0 0.0
    %1135 = vmatprep.subr.mxu0 0.0
    %1136 = vmatpush1.xpose.msra.mxu0 0.0
    %1137 = vmatprep.subr.mxu0 0.0
    %1138 = vmatpush1.xpose.msra.mxu0 0.0
    %1139 = vmatprep.subr.mxu0 0.0
    %1140 = vmatpush1.xpose.msra.mxu0 0.0
    %1141 = vmatprep.subr.mxu0 0.0
    %1142 = vmatpush1.xpose.msra.mxu0 0.0
    %1143 = vmatprep.subr.mxu0 0.0
    %1144 = vmatpush1.xpose.msra.mxu0 0.0
    %1145 = vmatprep.subr.mxu0 0.0
    %1146 = vmatpush1.xpose.msra.mxu0 0.0
    %1147 = vmatprep.subr.mxu0 0.0
    %1148 = vmatpush1.xpose.msra.mxu0 0.0
    %1149 = vmatprep.subr.mxu0 0.0
    %1150 = vmatpush1.xpose.msra.mxu0 0.0
    %1151 = vmatprep.subr.mxu0 0.0
    %1152 = vmatpush1.xpose.msra.mxu0 0.0
    %1153 = vmatprep.subr.mxu0 0.0
    %1154 = vmatpush1.xpose.msra.mxu0 0.0
    %1155 = vmatprep.subr.mxu0 0.0
    %1156 = vmatpush1.xpose.msra.mxu0 0.0
    %1157 = vmatprep.subr.mxu0 0.0
    %1158 = vmatpush1.xpose.msra.mxu0 0.0
    %1159 = vmatprep.subr.mxu0 0.0
    %1160 = vmatpush1.xpose.msra.mxu0 0.0
    %1161 = vmatprep.subr.mxu0 0.0
    %1162 = vmatpush1.xpose.msra.mxu0 0.0
    %1163 = vmatprep.subr.mxu0 0.0
    %1164 = vmatpush1.xpose.msra.mxu0 0.0
    %1165 = vmatprep.subr.mxu0 0.0
    %1166 = vmatpush1.xpose.msra.mxu0 0.0
    %1167 = vmatprep.subr.mxu0 0.0
    %1168 = vmatpush1.xpose.msra.mxu0 0.0
    %1169 = vmatprep.subr.mxu0 0.0
    %1170 = vmatpush1.xpose.msra.mxu0 0.0
    %1171 = vmatprep.subr.mxu0 0.0
    %1172 = vmatpush1.xpose.msra.mxu0 0.0
    %1173 = vmatprep.mubr.f32.mxu0 0.0
    %1174 = vmatmul.mubr.f32.gmra.mrb[0].mxu0 %v1104
    %v1175 = vpop.f32.mrb[0].mxu0
    %v1176 = vadd.f32 0.0, %v1175
    %v1177 = vpop.f32.mrb[0].mxu0
    %1178 = vdwg.mxu0
    %v1180 = vsel %vm328, %v924, 0
    %v1183 = vsel %vm328, %v1012, 0
    %1185 = vmatprep.subr.mxu0 0.0
    %1186 = vmatpush1.xpose.msra.mxu0 %v1183
    %1187 = vmatprep.subr.mxu0 0.0
    %1188 = vmatpush1.xpose.msra.mxu0 0.0
    %1189 = vmatprep.subr.mxu0 0.0
    %1190 = vmatpush1.xpose.msra.mxu0 0.0
    %1191 = vmatprep.subr.mxu0 0.0
    %1192 = vmatpush1.xpose.msra.mxu0 0.0
    %1193 = vmatprep.subr.mxu0 0.0
    %1194 = vmatpush1.xpose.msra.mxu0 0.0
    %1195 = vmatprep.subr.mxu0 0.0
    %1196 = vmatpush1.xpose.msra.mxu0 0.0
    %1197 = vmatprep.subr.mxu0 0.0
    %1198 = vmatpush1.xpose.msra.mxu0 0.0
    %1199 = vmatprep.subr.mxu0 0.0
    %1200 = vmatpush1.xpose.msra.mxu0 0.0
    %1201 = vmatprep.subr.mxu0 0.0
    %1202 = vmatpush1.xpose.msra.mxu0 0.0
    %1203 = vmatprep.subr.mxu0 0.0
    %1204 = vmatpush1.xpose.msra.mxu0 0.0
    %1205 = vmatprep.subr.mxu0 0.0
    %1206 = vmatpush1.xpose.msra.mxu0 0.0
    %1207 = vmatprep.subr.mxu0 0.0
    %1208 = vmatpush1.xpose.msra.mxu0 0.0
    %1209 = vmatprep.subr.mxu0 0.0
    %1210 = vmatpush1.xpose.msra.mxu0 0.0
    %1211 = vmatprep.subr.mxu0 0.0
    %1212 = vmatpush1.xpose.msra.mxu0 0.0
    %1213 = vmatprep.subr.mxu0 0.0
    %1214 = vmatpush1.xpose.msra.mxu0 0.0
    %1215 = vmatprep.subr.mxu0 0.0
    %1216 = vmatpush1.xpose.msra.mxu0 0.0
    %1217 = vmatprep.subr.mxu0 0.0
    %1218 = vmatpush1.xpose.msra.mxu0 0.0
    %1219 = vmatprep.subr.mxu0 0.0
    %1220 = vmatpush1.xpose.msra.mxu0 0.0
    %1221 = vmatprep.subr.mxu0 0.0
    %1222 = vmatpush1.xpose.msra.mxu0 0.0
    %1223 = vmatprep.subr.mxu0 0.0
    %1224 = vmatpush1.xpose.msra.mxu0 0.0
    %1225 = vmatprep.subr.mxu0 0.0
    %1226 = vmatpush1.xpose.msra.mxu0 0.0
    %1227 = vmatprep.subr.mxu0 0.0
    %1228 = vmatpush1.xpose.msra.mxu0 0.0
    %1229 = vmatprep.subr.mxu0 0.0
    %1230 = vmatpush1.xpose.msra.mxu0 0.0
    %1231 = vmatprep.subr.mxu0 0.0
    %1232 = vmatpush1.xpose.msra.mxu0 0.0
    %1233 = vmatprep.subr.mxu0 0.0
    %1234 = vmatpush1.xpose.msra.mxu0 0.0
    %1235 = vmatprep.subr.mxu0 0.0
    %1236 = vmatpush1.xpose.msra.mxu0 0.0
    %1237 = vmatprep.subr.mxu0 0.0
    %1238 = vmatpush1.xpose.msra.mxu0 0.0
    %1239 = vmatprep.subr.mxu0 0.0
    %1240 = vmatpush1.xpose.msra.mxu0 0.0
    %1241 = vmatprep.subr.mxu0 0.0
    %1242 = vmatpush1.xpose.msra.mxu0 0.0
    %1243 = vmatprep.subr.mxu0 0.0
    %1244 = vmatpush1.xpose.msra.mxu0 0.0
    %1245 = vmatprep.subr.mxu0 0.0
    %1246 = vmatpush1.xpose.msra.mxu0 0.0
    %1247 = vmatprep.subr.mxu0 0.0
    %1248 = vmatpush1.xpose.msra.mxu0 0.0
    %1249 = vmatprep.mubr.f32.mxu0 0.0
    %1250 = vmatmul.mubr.f32.gmra.mrb[0].mxu0 %v1180
    %v1251 = vpop.f32.mrb[0].mxu0
    %v1252 = vadd.f32 0.0, %v1251
    %v1253 = vpop.f32.mrb[0].mxu0
    %1254 = vdwg.mxu0
    %v1255 = vmul.f32 %v1176, 0.25
    %v1256 = vmul.f32 %v1252, 0.25
    %s1257 = scalar_lea.vmem %s11, 8
    %v1258 = vld [vmem:[%s1257] sm:$0xff]
    %v1260 = vsel %vm328, %v1258, 0
    %1262 = vmatprep.subr.mxu0 0.0
    %1263 = vmatpush1.xpose.msra.mxu0 %v1260
    %1264 = vmatprep.subr.mxu0 0.0
    %1265 = vmatpush1.xpose.msra.mxu0 0.0
    %1266 = vmatprep.subr.mxu0 0.0
    %1267 = vmatpush1.xpose.msra.mxu0 0.0
    %1268 = vmatprep.subr.mxu0 0.0
    %1269 = vmatpush1.xpose.msra.mxu0 0.0
    %1270 = vmatprep.subr.mxu0 0.0
    %1271 = vmatpush1.xpose.msra.mxu0 0.0
    %1272 = vmatprep.subr.mxu0 0.0
    %1273 = vmatpush1.xpose.msra.mxu0 0.0
    %1274 = vmatprep.subr.mxu0 0.0
    %1275 = vmatpush1.xpose.msra.mxu0 0.0
    %1276 = vmatprep.subr.mxu0 0.0
    %1277 = vmatpush1.xpose.msra.mxu0 0.0
    %1278 = vmatprep.subr.mxu0 0.0
    %1279 = vmatpush1.xpose.msra.mxu0 0.0
    %1280 = vmatprep.subr.mxu0 0.0
    %1281 = vmatpush1.xpose.msra.mxu0 0.0
    %1282 = vmatprep.subr.mxu0 0.0
    %1283 = vmatpush1.xpose.msra.mxu0 0.0
    %1284 = vmatprep.subr.mxu0 0.0
    %1285 = vmatpush1.xpose.msra.mxu0 0.0
    %1286 = vmatprep.subr.mxu0 0.0
    %1287 = vmatpush1.xpose.msra.mxu0 0.0
    %1288 = vmatprep.subr.mxu0 0.0
    %1289 = vmatpush1.xpose.msra.mxu0 0.0
    %1290 = vmatprep.subr.mxu0 0.0
    %1291 = vmatpush1.xpose.msra.mxu0 0.0
    %1292 = vmatprep.subr.mxu0 0.0
    %1293 = vmatpush1.xpose.msra.mxu0 0.0
    %1294 = vmatprep.subr.mxu0 0.0
    %1295 = vmatpush1.xpose.msra.mxu0 0.0
    %1296 = vmatprep.subr.mxu0 0.0
    %1297 = vmatpush1.xpose.msra.mxu0 0.0
    %1298 = vmatprep.subr.mxu0 0.0
    %1299 = vmatpush1.xpose.msra.mxu0 0.0
    %1300 = vmatprep.subr.mxu0 0.0
    %1301 = vmatpush1.xpose.msra.mxu0 0.0
    %1302 = vmatprep.subr.mxu0 0.0
    %1303 = vmatpush1.xpose.msra.mxu0 0.0
    %1304 = vmatprep.subr.mxu0 0.0
    %1305 = vmatpush1.xpose.msra.mxu0 0.0
    %1306 = vmatprep.subr.mxu0 0.0
    %1307 = vmatpush1.xpose.msra.mxu0 0.0
    %1308 = vmatprep.subr.mxu0 0.0
    %1309 = vmatpush1.xpose.msra.mxu0 0.0
    %1310 = vmatprep.subr.mxu0 0.0
    %1311 = vmatpush1.xpose.msra.mxu0 0.0
    %1312 = vmatprep.subr.mxu0 0.0
    %1313 = vmatpush1.xpose.msra.mxu0 0.0
    %1314 = vmatprep.subr.mxu0 0.0
    %1315 = vmatpush1.xpose.msra.mxu0 0.0
    %1316 = vmatprep.subr.mxu0 0.0
    %1317 = vmatpush1.xpose.msra.mxu0 0.0
    %1318 = vmatprep.subr.mxu0 0.0
    %1319 = vmatpush1.xpose.msra.mxu0 0.0
    %1320 = vmatprep.subr.mxu0 0.0
    %1321 = vmatpush1.xpose.msra.mxu0 0.0
    %1322 = vmatprep.subr.mxu0 0.0
    %1323 = vmatpush1.xpose.msra.mxu0 0.0
    %1324 = vmatprep.subr.mxu0 0.0
    %1325 = vmatpush1.xpose.msra.mxu0 0.0
    %1326 = vmatprep.mubr.f32.mxu0 0.0
    %1327 = vmatmul.mubr.f32.gmra.mrb[0].mxu0 %v1104
    %v1328 = vpop.f32.mrb[0].mxu0
    %v1329 = vadd.f32 0.0, %v1328
    %v1330 = vpop.f32.mrb[0].mxu0
    %1331 = vmatprep.mubr.f32.mxu0 0.0
    %1332 = vmatmul.mubr.f32.gmra.mrb[0].mxu0 %v1180
    %v1333 = vpop.f32.mrb[0].mxu0
    %v1334 = vadd.f32 0.0, %v1333
    %v1335 = vpop.f32.mrb[0].mxu0
    %1336 = vdwg.mxu0
    %v1337 = vsel %vm562, %v1255, -inf
    %1338 = vmax.xlane.f32.xlu0 %v1337
    %v1339 = vpop.xlane.xlu0 %1338
    %v1340 = vsel %vm562, %v1256, -inf
    %1341 = vmax.xlane.f32.xlu0 %v1340
    %v1342 = vpop.xlane.xlu0 %1341
    %v1343 = vsel %vm562, %v1329, -inf
    %1344 = vmax.xlane.f32.xlu0 %v1343
    %v1345 = vpop.xlane.xlu0 %1344
    %v1346 = vsel %vm562, %v1334, -inf
    %1347 = vmax.xlane.f32.xlu0 %v1346
    %v1348 = vpop.xlane.xlu0 %1347
    %v1349 = vmax.f32 %v1339, %v1345
    %v1350 = vmax.f32 %v1342, %v1348
    %v1351 = vsub.f32 %v1255, %v1349
    %v1352 = vsub.f32 %v1256, %v1350
    %v1353 = vmul.f32 %v1351, 1.442695
    %v1354 = vpow.pop %v1353
    %v1355 = vmul.f32 %v1352, 1.442695
    %v1356 = vpow.pop %v1355
    %v1357 = vsub.f32 %v1329, %v1349
    %v1358 = vsub.f32 %v1334, %v1350
    %v1359 = vmul.f32 %v1357, 1.442695
    %v1360 = vpow.pop %v1359
    %v1361 = vmul.f32 %v1358, 1.442695
    %v1362 = vpow.pop %v1361
    %v1363 = vsel %vm562, %v1354, 0.0
    %1364 = vadd.xlane.f32.xlu0 %v1363
    %v1365 = vpop.xlane.xlu0 %1364
    %v1366 = vsel %vm562, %v1356, 0.0
    %1367 = vadd.xlane.f32.xlu0 %v1366
    %v1368 = vpop.xlane.xlu0 %1367
    %v1369 = vsel %vm562, %v1360, 0.0
    %1370 = vadd.xlane.f32.xlu0 %v1369
    %v1371 = vpop.xlane.xlu0 %1370
    %v1372 = vsel %vm562, %v1362, 0.0
    %1373 = vadd.xlane.f32.xlu0 %v1372
    %v1374 = vpop.xlane.xlu0 %1373
    %v1375 = vadd.f32 %v1365, %v1371
    %v1376 = vadd.f32 %v1368, %v1374
    %v1378 = vsel %vm562, %v1354, 0
    %1380 = vmatprep.subr.mxu0 0.0
    %1381 = vmatpush1.msra.mxu0 %v1095
    %1382 = vmatprep.subr.mxu0 0.0
    %1383 = vmatpush1.msra.mxu0 0.0
    %1384 = vmatprep.subr.mxu0 0.0
    %1385 = vmatpush1.msra.mxu0 0.0
    %1386 = vmatprep.subr.mxu0 0.0
    %1387 = vmatpush1.msra.mxu0 0.0
    %1388 = vmatprep.subr.mxu0 0.0
    %1389 = vmatpush1.msra.mxu0 0.0
    %1390 = vmatprep.subr.mxu0 0.0
    %1391 = vmatpush1.msra.mxu0 0.0
    %1392 = vmatprep.subr.mxu0 0.0
    %1393 = vmatpush1.msra.mxu0 0.0
    %1394 = vmatprep.subr.mxu0 0.0
    %1395 = vmatpush1.msra.mxu0 0.0
    %1396 = vmatprep.subr.mxu0 0.0
    %1397 = vmatpush1.msra.mxu0 0.0
    %1398 = vmatprep.subr.mxu0 0.0
    %1399 = vmatpush1.msra.mxu0 0.0
    %1400 = vmatprep.subr.mxu0 0.0
    %1401 = vmatpush1.msra.mxu0 0.0
    %1402 = vmatprep.subr.mxu0 0.0
    %1403 = vmatpush1.msra.mxu0 0.0
    %1404 = vmatprep.subr.mxu0 0.0
    %1405 = vmatpush1.msra.mxu0 0.0
    %1406 = vmatprep.subr.mxu0 0.0
    %1407 = vmatpush1.msra.mxu0 0.0
    %1408 = vmatprep.subr.mxu0 0.0
    %1409 = vmatpush1.msra.mxu0 0.0
    %1410 = vmatprep.subr.mxu0 0.0
    %1411 = vmatpush1.msra.mxu0 0.0
    %1412 = vmatprep.subr.mxu0 0.0
    %1413 = vmatpush1.msra.mxu0 0.0
    %1414 = vmatprep.subr.mxu0 0.0
    %1415 = vmatpush1.msra.mxu0 0.0
    %1416 = vmatprep.subr.mxu0 0.0
    %1417 = vmatpush1.msra.mxu0 0.0
    %1418 = vmatprep.subr.mxu0 0.0
    %1419 = vmatpush1.msra.mxu0 0.0
    %1420 = vmatprep.subr.mxu0 0.0
    %1421 = vmatpush1.msra.mxu0 0.0
    %1422 = vmatprep.subr.mxu0 0.0
    %1423 = vmatpush1.msra.mxu0 0.0
    %1424 = vmatprep.subr.mxu0 0.0
    %1425 = vmatpush1.msra.mxu0 0.0
    %1426 = vmatprep.subr.mxu0 0.0
    %1427 = vmatpush1.msra.mxu0 0.0
    %1428 = vmatprep.subr.mxu0 0.0
    %1429 = vmatpush1.msra.mxu0 0.0
    %1430 = vmatprep.subr.mxu0 0.0
    %1431 = vmatpush1.msra.mxu0 0.0
    %1432 = vmatprep.subr.mxu0 0.0
    %1433 = vmatpush1.msra.mxu0 0.0
    %1434 = vmatprep.subr.mxu0 0.0
    %1435 = vmatpush1.msra.mxu0 0.0
    %1436 = vmatprep.subr.mxu0 0.0
    %1437 = vmatpush1.msra.mxu0 0.0
    %1438 = vmatprep.subr.mxu0 0.0
    %1439 = vmatpush1.msra.mxu0 0.0
    %1440 = vmatprep.subr.mxu0 0.0
    %1441 = vmatpush1.msra.mxu0 0.0
    %1442 = vmatprep.subr.mxu0 0.0
    %1443 = vmatpush1.msra.mxu0 0.0
    %1444 = vmatprep.mubr.f32.mxu0 0.0
    %1445 = vmatmul.mubr.f32.gmra.mrb[0].mxu0 %v1378
    %v1446 = vpop.f32.mrb[0].mxu0
    %v1447 = vadd.f32 0.0, %v1446
    %v1448 = vpop.f32.mrb[0].mxu0
    %1449 = vdwg.mxu0
    %v1451 = vsel %vm562, %v1356, 0
    %1453 = vmatprep.subr.mxu0 0.0
    %1454 = vmatpush1.msra.mxu0 %v1100
    %1455 = vmatprep.subr.mxu0 0.0
    %1456 = vmatpush1.msra.mxu0 0.0
    %1457 = vmatprep.subr.mxu0 0.0
    %1458 = vmatpush1.msra.mxu0 0.0
    %1459 = vmatprep.subr.mxu0 0.0
    %1460 = vmatpush1.msra.mxu0 0.0
    %1461 = vmatprep.subr.mxu0 0.0
    %1462 = vmatpush1.msra.mxu0 0.0
    %1463 = vmatprep.subr.mxu0 0.0
    %1464 = vmatpush1.msra.mxu0 0.0
    %1465 = vmatprep.subr.mxu0 0.0
    %1466 = vmatpush1.msra.mxu0 0.0
    %1467 = vmatprep.subr.mxu0 0.0
    %1468 = vmatpush1.msra.mxu0 0.0
    %1469 = vmatprep.subr.mxu0 0.0
    %1470 = vmatpush1.msra.mxu0 0.0
    %1471 = vmatprep.subr.mxu0 0.0
    %1472 = vmatpush1.msra.mxu0 0.0
    %1473 = vmatprep.subr.mxu0 0.0
    %1474 = vmatpush1.msra.mxu0 0.0
    %1475 = vmatprep.subr.mxu0 0.0
    %1476 = vmatpush1.msra.mxu0 0.0
    %1477 = vmatprep.subr.mxu0 0.0
    %1478 = vmatpush1.msra.mxu0 0.0
    %1479 = vmatprep.subr.mxu0 0.0
    %1480 = vmatpush1.msra.mxu0 0.0
    %1481 = vmatprep.subr.mxu0 0.0
    %1482 = vmatpush1.msra.mxu0 0.0
    %1483 = vmatprep.subr.mxu0 0.0
    %1484 = vmatpush1.msra.mxu0 0.0
    %1485 = vmatprep.subr.mxu0 0.0
    %1486 = vmatpush1.msra.mxu0 0.0
    %1487 = vmatprep.subr.mxu0 0.0
    %1488 = vmatpush1.msra.mxu0 0.0
    %1489 = vmatprep.subr.mxu0 0.0
    %1490 = vmatpush1.msra.mxu0 0.0
    %1491 = vmatprep.subr.mxu0 0.0
    %1492 = vmatpush1.msra.mxu0 0.0
    %1493 = vmatprep.subr.mxu0 0.0
    %1494 = vmatpush1.msra.mxu0 0.0
    %1495 = vmatprep.subr.mxu0 0.0
    %1496 = vmatpush1.msra.mxu0 0.0
    %1497 = vmatprep.subr.mxu0 0.0
    %1498 = vmatpush1.msra.mxu0 0.0
    %1499 = vmatprep.subr.mxu0 0.0
    %1500 = vmatpush1.msra.mxu0 0.0
    %1501 = vmatprep.subr.mxu0 0.0
    %1502 = vmatpush1.msra.mxu0 0.0
    %1503 = vmatprep.subr.mxu0 0.0
    %1504 = vmatpush1.msra.mxu0 0.0
    %1505 = vmatprep.subr.mxu0 0.0
    %1506 = vmatpush1.msra.mxu0 0.0
    %1507 = vmatprep.subr.mxu0 0.0
    %1508 = vmatpush1.msra.mxu0 0.0
    %1509 = vmatprep.subr.mxu0 0.0
    %1510 = vmatpush1.msra.mxu0 0.0
    %1511 = vmatprep.subr.mxu0 0.0
    %1512 = vmatpush1.msra.mxu0 0.0
    %1513 = vmatprep.subr.mxu0 0.0
    %1514 = vmatpush1.msra.mxu0 0.0
    %1515 = vmatprep.subr.mxu0 0.0
    %1516 = vmatpush1.msra.mxu0 0.0
    %1517 = vmatprep.mubr.f32.mxu0 0.0
    %1518 = vmatmul.mubr.f32.gmra.mrb[0].mxu0 %v1451
    %v1519 = vpop.f32.mrb[0].mxu0
    %v1520 = vadd.f32 0.0, %v1519
    %v1521 = vpop.f32.mrb[0].mxu0
    %1522 = vdwg.mxu0
    %s1523 = scalar_lea.vmem %s12, 8
    %v1524 = vld [vmem:[%s1523] sm:$0xff]
    %v1526 = vsel %vm562, %v1360, 0
    %v1529 = vsel %vm562, %v1362, 0
    %1531 = vmatprep.subr.mxu0 0.0
    %1532 = vmatpush1.msra.mxu0 %v1524
    %1533 = vmatprep.subr.mxu0 0.0
    %1534 = vmatpush1.msra.mxu0 0.0
    %1535 = vmatprep.subr.mxu0 0.0
    %1536 = vmatpush1.msra.mxu0 0.0
    %1537 = vmatprep.subr.mxu0 0.0
    %1538 = vmatpush1.msra.mxu0 0.0
    %1539 = vmatprep.subr.mxu0 0.0
    %1540 = vmatpush1.msra.mxu0 0.0
    %1541 = vmatprep.subr.mxu0 0.0
    %1542 = vmatpush1.msra.mxu0 0.0
    %1543 = vmatprep.subr.mxu0 0.0
    %1544 = vmatpush1.msra.mxu0 0.0
    %1545 = vmatprep.subr.mxu0 0.0
    %1546 = vmatpush1.msra.mxu0 0.0
    %1547 = vmatprep.subr.mxu0 0.0
    %1548 = vmatpush1.msra.mxu0 0.0
    %1549 = vmatprep.subr.mxu0 0.0
    %1550 = vmatpush1.msra.mxu0 0.0
    %1551 = vmatprep.subr.mxu0 0.0
    %1552 = vmatpush1.msra.mxu0 0.0
    %1553 = vmatprep.subr.mxu0 0.0
    %1554 = vmatpush1.msra.mxu0 0.0
    %1555 = vmatprep.subr.mxu0 0.0
    %1556 = vmatpush1.msra.mxu0 0.0
    %1557 = vmatprep.subr.mxu0 0.0
    %1558 = vmatpush1.msra.mxu0 0.0
    %1559 = vmatprep.subr.mxu0 0.0
    %1560 = vmatpush1.msra.mxu0 0.0
    %1561 = vmatprep.subr.mxu0 0.0
    %1562 = vmatpush1.msra.mxu0 0.0
    %1563 = vmatprep.subr.mxu0 0.0
    %1564 = vmatpush1.msra.mxu0 0.0
    %1565 = vmatprep.subr.mxu0 0.0
    %1566 = vmatpush1.msra.mxu0 0.0
    %1567 = vmatprep.subr.mxu0 0.0
    %1568 = vmatpush1.msra.mxu0 0.0
    %1569 = vmatprep.subr.mxu0 0.0
    %1570 = vmatpush1.msra.mxu0 0.0
    %1571 = vmatprep.subr.mxu0 0.0
    %1572 = vmatpush1.msra.mxu0 0.0
    %1573 = vmatprep.subr.mxu0 0.0
    %1574 = vmatpush1.msra.mxu0 0.0
    %1575 = vmatprep.subr.mxu0 0.0
    %1576 = vmatpush1.msra.mxu0 0.0
    %1577 = vmatprep.subr.mxu0 0.0
    %1578 = vmatpush1.msra.mxu0 0.0
    %1579 = vmatprep.subr.mxu0 0.0
    %1580 = vmatpush1.msra.mxu0 0.0
    %1581 = vmatprep.subr.mxu0 0.0
    %1582 = vmatpush1.msra.mxu0 0.0
    %1583 = vmatprep.subr.mxu0 0.0
    %1584 = vmatpush1.msra.mxu0 0.0
    %1585 = vmatprep.subr.mxu0 0.0
    %1586 = vmatpush1.msra.mxu0 0.0
    %1587 = vmatprep.subr.mxu0 0.0
    %1588 = vmatpush1.msra.mxu0 0.0
    %1589 = vmatprep.subr.mxu0 0.0
    %1590 = vmatpush1.msra.mxu0 0.0
    %1591 = vmatprep.subr.mxu0 0.0
    %1592 = vmatpush1.msra.mxu0 0.0
    %1593 = vmatprep.subr.mxu0 0.0
    %1594 = vmatpush1.msra.mxu0 0.0
    %1595 = vmatprep.mubr.f32.mxu0 0.0
    %1596 = vmatmul.mubr.f32.gmra.mrb[0].mxu0 %v1526
    %v1597 = vpop.f32.mrb[0].mxu0
    %v1598 = vadd.f32 0.0, %v1597
    %v1599 = vpop.f32.mrb[0].mxu0
    %1600 = vmatprep.mubr.f32.mxu0 0.0
    %1601 = vmatmul.mubr.f32.gmra.mrb[0].mxu0 %v1529
    %v1602 = vpop.f32.mrb[0].mxu0
    %v1603 = vadd.f32 0.0, %v1602
    %v1604 = vpop.f32.mrb[0].mxu0
    %1605 = vdwg.mxu0
    %v1606 = vadd.f32 %v1447, %v1598
    %v1607 = vadd.f32 %v1520, %v1603
    %v1608 = vrcp.pop %v1375
    %v1609 = vrcp.pop %v1376
    %v1610 = vmul.f32 %v1606, %v1608
    %v1611 = vmul.f32 %v1607, %v1609
    %1614 = vrot.lane.b32.xlu0 %v1610, 16
    %v1615 = vpop.permute.xlu0 %1614
    %1616 = vrot.lane.b32.xlu0 %v1611, 16
    %v1617 = vpop.permute.xlu0 %1616
    %vm1620 = vcmask 261248
    %1621 = vst.msk [vmem:[#allocation2] sm:$0xff] %vm1620, %v1615
    %1622 = vst.msk [vmem:[#allocation2 + $0x8] sm:$0xff] %vm1620, %v1617
    %s1623 = scalar_lea.vmem %s3, 64
    %v1624 = vld [vmem:[%s1623] sm:$0xff]
    %v1625 = vld [vmem:[%s1623 + $0x8] sm:$0xff]
    %v1626 = vld [vmem:[%s1623 + $0x10] sm:$0xff]
    %v1627 = vld [vmem:[%s1623 + $0x18] sm:$0xff]
    %s1628 = scalar_lea.vmem %s4, 2
    %v1629 = vld [vmem:[%s1628] sm:$0x1]
    %v1631 = vlaneseq
    %v1632 = vshrl.u32 %v1631, 7
    %v1633 = vsub.s32 0, %v1632
    %v1634 = vrot.slane %v1629, %v1633
    %1636 = vmatprep.subr.mxu0 0.0
    %1637 = vmatpush1.msra.mxu0 %v1624
    %1638 = vmatprep.subr.mxu0 0.0
    %1639 = vmatpush1.msra.mxu0 %v1625
    %1640 = vmatprep.subr.mxu0 0.0
    %1641 = vmatpush1.msra.mxu0 %v1626
    %1642 = vmatprep.subr.mxu0 0.0
    %1643 = vmatpush1.msra.mxu0 %v1627
    %1644 = vmatprep.subr.mxu0 0.0
    %1645 = vmatpush1.msra.mxu0 0.0
    %1646 = vmatprep.subr.mxu0 0.0
    %1647 = vmatpush1.msra.mxu0 0.0
    %1648 = vmatprep.subr.mxu0 0.0
    %1649 = vmatpush1.msra.mxu0 0.0
    %1650 = vmatprep.subr.mxu0 0.0
    %1651 = vmatpush1.msra.mxu0 0.0
    %1652 = vmatprep.subr.mxu0 0.0
    %1653 = vmatpush1.msra.mxu0 0.0
    %1654 = vmatprep.subr.mxu0 0.0
    %1655 = vmatpush1.msra.mxu0 0.0
    %1656 = vmatprep.subr.mxu0 0.0
    %1657 = vmatpush1.msra.mxu0 0.0
    %1658 = vmatprep.subr.mxu0 0.0
    %1659 = vmatpush1.msra.mxu0 0.0
    %1660 = vmatprep.subr.mxu0 0.0
    %1661 = vmatpush1.msra.mxu0 0.0
    %1662 = vmatprep.subr.mxu0 0.0
    %1663 = vmatpush1.msra.mxu0 0.0
    %1664 = vmatprep.subr.mxu0 0.0
    %1665 = vmatpush1.msra.mxu0 0.0
    %1666 = vmatprep.subr.mxu0 0.0
    %1667 = vmatpush1.msra.mxu0 0.0
    %1668 = vmatprep.subr.mxu0 0.0
    %1669 = vmatpush1.msra.mxu0 0.0
    %1670 = vmatprep.subr.mxu0 0.0
    %1671 = vmatpush1.msra.mxu0 0.0
    %1672 = vmatprep.subr.mxu0 0.0
    %1673 = vmatpush1.msra.mxu0 0.0
    %1674 = vmatprep.subr.mxu0 0.0
    %1675 = vmatpush1.msra.mxu0 0.0
    %1676 = vmatprep.subr.mxu0 0.0
    %1677 = vmatpush1.msra.mxu0 0.0
    %1678 = vmatprep.subr.mxu0 0.0
    %1679 = vmatpush1.msra.mxu0 0.0
    %1680 = vmatprep.subr.mxu0 0.0
    %1681 = vmatpush1.msra.mxu0 0.0
    %1682 = vmatprep.subr.mxu0 0.0
    %1683 = vmatpush1.msra.mxu0 0.0
    %1684 = vmatprep.subr.mxu0 0.0
    %1685 = vmatpush1.msra.mxu0 0.0
    %1686 = vmatprep.subr.mxu0 0.0
    %1687 = vmatpush1.msra.mxu0 0.0
    %1688 = vmatprep.subr.mxu0 0.0
    %1689 = vmatpush1.msra.mxu0 0.0
    %1690 = vmatprep.subr.mxu0 0.0
    %1691 = vmatpush1.msra.mxu0 0.0
    %1692 = vmatprep.subr.mxu0 0.0
    %1693 = vmatpush1.msra.mxu0 0.0
    %1694 = vmatprep.subr.mxu0 0.0
    %1695 = vmatpush1.msra.mxu0 0.0
    %1696 = vmatprep.subr.mxu0 0.0
    %1697 = vmatpush1.msra.mxu0 0.0
    %1698 = vmatprep.subr.mxu0 0.0
    %1699 = vmatpush1.msra.mxu0 0.0
    %1700 = vmatprep.mubr.f32.mxu0 0.0
    %1701 = vmatmul.mubr.f32.gmra.mrb[0].mxu0 %v64
    %v1702 = vpop.f32.mrb[0].mxu0
    %v1703 = vadd.f32 %v1634, %v1702
    %v1704 = vpop.f32.mrb[0].mxu0
    %1705 = vmatprep.mubr.f32.mxu0 0.0
    %1706 = vmatmul.mubr.f32.gmra.mrb[0].mxu0 %v67
    %v1707 = vpop.f32.mrb[0].mxu0
    %v1708 = vadd.f32 %v1634, %v1707
    %v1709 = vpop.f32.mrb[0].mxu0
    %1710 = vdwg.mxu0
    %s1711 = scalar_lea.vmem %s5, 64
    %v1712 = vld [vmem:[%s1711] sm:$0xff]
    %v1713 = vld [vmem:[%s1711 + $0x8] sm:$0xff]
    %v1714 = vld [vmem:[%s1711 + $0x10] sm:$0xff]
    %v1715 = vld [vmem:[%s1711 + $0x18] sm:$0xff]
    %s1716 = scalar_lea.vmem %s6, 2
    %v1717 = vld [vmem:[%s1716] sm:$0x1]
    %v1719 = vlaneseq
    %v1720 = vshrl.u32 %v1719, 7
    %v1721 = vsub.s32 0, %v1720
    %v1722 = vrot.slane %v1717, %v1721
    %1724 = vmatprep.subr.mxu0 0.0
    %1725 = vmatpush1.msra.mxu0 %v1712
    %1726 = vmatprep.subr.mxu0 0.0
    %1727 = vmatpush1.msra.mxu0 %v1713
    %1728 = vmatprep.subr.mxu0 0.0
    %1729 = vmatpush1.msra.mxu0 %v1714
    %1730 = vmatprep.subr.mxu0 0.0
    %1731 = vmatpush1.msra.mxu0 %v1715
    %1732 = vmatprep.subr.mxu0 0.0
    %1733 = vmatpush1.msra.mxu0 0.0
    %1734 = vmatprep.subr.mxu0 0.0
    %1735 = vmatpush1.msra.mxu0 0.0
    %1736 = vmatprep.subr.mxu0 0.0
    %1737 = vmatpush1.msra.mxu0 0.0
    %1738 = vmatprep.subr.mxu0 0.0
    %1739 = vmatpush1.msra.mxu0 0.0
    %1740 = vmatprep.subr.mxu0 0.0
    %1741 = vmatpush1.msra.mxu0 0.0
    %1742 = vmatprep.subr.mxu0 0.0
    %1743 = vmatpush1.msra.mxu0 0.0
    %1744 = vmatprep.subr.mxu0 0.0
    %1745 = vmatpush1.msra.mxu0 0.0
    %1746 = vmatprep.subr.mxu0 0.0
    %1747 = vmatpush1.msra.mxu0 0.0
    %1748 = vmatprep.subr.mxu0 0.0
    %1749 = vmatpush1.msra.mxu0 0.0
    %1750 = vmatprep.subr.mxu0 0.0
    %1751 = vmatpush1.msra.mxu0 0.0
    %1752 = vmatprep.subr.mxu0 0.0
    %1753 = vmatpush1.msra.mxu0 0.0
    %1754 = vmatprep.subr.mxu0 0.0
    %1755 = vmatpush1.msra.mxu0 0.0
    %1756 = vmatprep.subr.mxu0 0.0
    %1757 = vmatpush1.msra.mxu0 0.0
    %1758 = vmatprep.subr.mxu0 0.0
    %1759 = vmatpush1.msra.mxu0 0.0
    %1760 = vmatprep.subr.mxu0 0.0
    %1761 = vmatpush1.msra.mxu0 0.0
    %1762 = vmatprep.subr.mxu0 0.0
    %1763 = vmatpush1.msra.mxu0 0.0
    %1764 = vmatprep.subr.mxu0 0.0
    %1765 = vmatpush1.msra.mxu0 0.0
    %1766 = vmatprep.subr.mxu0 0.0
    %1767 = vmatpush1.msra.mxu0 0.0
    %1768 = vmatprep.subr.mxu0 0.0
    %1769 = vmatpush1.msra.mxu0 0.0
    %1770 = vmatprep.subr.mxu0 0.0
    %1771 = vmatpush1.msra.mxu0 0.0
    %1772 = vmatprep.subr.mxu0 0.0
    %1773 = vmatpush1.msra.mxu0 0.0
    %1774 = vmatprep.subr.mxu0 0.0
    %1775 = vmatpush1.msra.mxu0 0.0
    %1776 = vmatprep.subr.mxu0 0.0
    %1777 = vmatpush1.msra.mxu0 0.0
    %1778 = vmatprep.subr.mxu0 0.0
    %1779 = vmatpush1.msra.mxu0 0.0
    %1780 = vmatprep.subr.mxu0 0.0
    %1781 = vmatpush1.msra.mxu0 0.0
    %1782 = vmatprep.subr.mxu0 0.0
    %1783 = vmatpush1.msra.mxu0 0.0
    %1784 = vmatprep.subr.mxu0 0.0
    %1785 = vmatpush1.msra.mxu0 0.0
    %1786 = vmatprep.subr.mxu0 0.0
    %1787 = vmatpush1.msra.mxu0 0.0
    %1788 = vmatprep.mubr.f32.mxu0 0.0
    %1789 = vmatmul.mubr.f32.gmra.mrb[0].mxu0 %v156
    %v1790 = vpop.f32.mrb[0].mxu0
    %v1791 = vadd.f32 %v1722, %v1790
    %v1792 = vpop.f32.mrb[0].mxu0
    %1793 = vmatprep.mubr.f32.mxu0 0.0
    %1794 = vmatmul.mubr.f32.gmra.mrb[0].mxu0 %v159
    %v1795 = vpop.f32.mrb[0].mxu0
    %v1796 = vadd.f32 %v1722, %v1795
    %v1797 = vpop.f32.mrb[0].mxu0
    %1798 = vdwg.mxu0
    %s1799 = scalar_lea.vmem %s7, 64
    %v1800 = vld [vmem:[%s1799] sm:$0xff]
    %v1801 = vld [vmem:[%s1799 + $0x8] sm:$0xff]
    %v1802 = vld [vmem:[%s1799 + $0x10] sm:$0xff]
    %v1803 = vld [vmem:[%s1799 + $0x18] sm:$0xff]
    %s1804 = scalar_lea.vmem %s8, 2
    %v1805 = vld [vmem:[%s1804] sm:$0x1]
    %v1807 = vlaneseq
    %v1808 = vshrl.u32 %v1807, 7
    %v1809 = vsub.s32 0, %v1808
    %v1810 = vrot.slane %v1805, %v1809
    %1812 = vmatprep.subr.mxu0 0.0
    %1813 = vmatpush1.msra.mxu0 %v1800
    %1814 = vmatprep.subr.mxu0 0.0
    %1815 = vmatpush1.msra.mxu0 %v1801
    %1816 = vmatprep.subr.mxu0 0.0
    %1817 = vmatpush1.msra.mxu0 %v1802
    %1818 = vmatprep.subr.mxu0 0.0
    %1819 = vmatpush1.msra.mxu0 %v1803
    %1820 = vmatprep.subr.mxu0 0.0
    %1821 = vmatpush1.msra.mxu0 0.0
    %1822 = vmatprep.subr.mxu0 0.0
    %1823 = vmatpush1.msra.mxu0 0.0
    %1824 = vmatprep.subr.mxu0 0.0
    %1825 = vmatpush1.msra.mxu0 0.0
    %1826 = vmatprep.subr.mxu0 0.0
    %1827 = vmatpush1.msra.mxu0 0.0
    %1828 = vmatprep.subr.mxu0 0.0
    %1829 = vmatpush1.msra.mxu0 0.0
    %1830 = vmatprep.subr.mxu0 0.0
    %1831 = vmatpush1.msra.mxu0 0.0
    %1832 = vmatprep.subr.mxu0 0.0
    %1833 = vmatpush1.msra.mxu0 0.0
    %1834 = vmatprep.subr.mxu0 0.0
    %1835 = vmatpush1.msra.mxu0 0.0
    %1836 = vmatprep.subr.mxu0 0.0
    %1837 = vmatpush1.msra.mxu0 0.0
    %1838 = vmatprep.subr.mxu0 0.0
    %1839 = vmatpush1.msra.mxu0 0.0
    %1840 = vmatprep.subr.mxu0 0.0
    %1841 = vmatpush1.msra.mxu0 0.0
    %1842 = vmatprep.subr.mxu0 0.0
    %1843 = vmatpush1.msra.mxu0 0.0
    %1844 = vmatprep.subr.mxu0 0.0
    %1845 = vmatpush1.msra.mxu0 0.0
    %1846 = vmatprep.subr.mxu0 0.0
    %1847 = vmatpush1.msra.mxu0 0.0
    %1848 = vmatprep.subr.mxu0 0.0
    %1849 = vmatpush1.msra.mxu0 0.0
    %1850 = vmatprep.subr.mxu0 0.0
    %1851 = vmatpush1.msra.mxu0 0.0
    %1852 = vmatprep.subr.mxu0 0.0
    %1853 = vmatpush1.msra.mxu0 0.0
    %1854 = vmatprep.subr.mxu0 0.0
    %1855 = vmatpush1.msra.mxu0 0.0
    %1856 = vmatprep.subr.mxu0 0.0
    %1857 = vmatpush1.msra.mxu0 0.0
    %1858 = vmatprep.subr.mxu0 0.0
    %1859 = vmatpush1.msra.mxu0 0.0
    %1860 = vmatprep.subr.mxu0 0.0
    %1861 = vmatpush1.msra.mxu0 0.0
    %1862 = vmatprep.subr.mxu0 0.0
    %1863 = vmatpush1.msra.mxu0 0.0
    %1864 = vmatprep.subr.mxu0 0.0
    %1865 = vmatpush1.msra.mxu0 0.0
    %1866 = vmatprep.subr.mxu0 0.0
    %1867 = vmatpush1.msra.mxu0 0.0
    %1868 = vmatprep.subr.mxu0 0.0
    %1869 = vmatpush1.msra.mxu0 0.0
    %1870 = vmatprep.subr.mxu0 0.0
    %1871 = vmatpush1.msra.mxu0 0.0
    %1872 = vmatprep.subr.mxu0 0.0
    %1873 = vmatpush1.msra.mxu0 0.0
    %1874 = vmatprep.subr.mxu0 0.0
    %1875 = vmatpush1.msra.mxu0 0.0
    %1876 = vmatprep.mubr.f32.mxu0 0.0
    %1877 = vmatmul.mubr.f32.gmra.mrb[0].mxu0 %v248
    %v1878 = vpop.f32.mrb[0].mxu0
    %v1879 = vadd.f32 %v1810, %v1878
    %v1880 = vpop.f32.mrb[0].mxu0
    %1881 = vmatprep.mubr.f32.mxu0 0.0
    %1882 = vmatmul.mubr.f32.gmra.mrb[0].mxu0 %v251
    %v1883 = vpop.f32.mrb[0].mxu0
    %v1884 = vadd.f32 %v1810, %v1883
    %v1885 = vpop.f32.mrb[0].mxu0
    %1886 = vdwg.mxu0
    %v1888 = vsel %vm328, %v1703, 0
    %v1891 = vsel %vm328, %v1791, 0
    %1893 = vmatprep.subr.mxu0 0.0
    %1894 = vmatpush1.xpose.msra.mxu0 %v1891
    %1895 = vmatprep.subr.mxu0 0.0
    %1896 = vmatpush1.xpose.msra.mxu0 0.0
    %1897 = vmatprep.subr.mxu0 0.0
    %1898 = vmatpush1.xpose.msra.mxu0 0.0
    %1899 = vmatprep.subr.mxu0 0.0
    %1900 = vmatpush1.xpose.msra.mxu0 0.0
    %1901 = vmatprep.subr.mxu0 0.0
    %1902 = vmatpush1.xpose.msra.mxu0 0.0
    %1903 = vmatprep.subr.mxu0 0.0
    %1904 = vmatpush1.xpose.msra.mxu0 0.0
    %1905 = vmatprep.subr.mxu0 0.0
    %1906 = vmatpush1.xpose.msra.mxu0 0.0
    %1907 = vmatprep.subr.mxu0 0.0
    %1908 = vmatpush1.xpose.msra.mxu0 0.0
    %1909 = vmatprep.subr.mxu0 0.0
    %1910 = vmatpush1.xpose.msra.mxu0 0.0
    %1911 = vmatprep.subr.mxu0 0.0
    %1912 = vmatpush1.xpose.msra.mxu0 0.0
    %1913 = vmatprep.subr.mxu0 0.0
    %1914 = vmatpush1.xpose.msra.mxu0 0.0
    %1915 = vmatprep.subr.mxu0 0.0
    %1916 = vmatpush1.xpose.msra.mxu0 0.0
    %1917 = vmatprep.subr.mxu0 0.0
    %1918 = vmatpush1.xpose.msra.mxu0 0.0
    %1919 = vmatprep.subr.mxu0 0.0
    %1920 = vmatpush1.xpose.msra.mxu0 0.0
    %1921 = vmatprep.subr.mxu0 0.0
    %1922 = vmatpush1.xpose.msra.mxu0 0.0
    %1923 = vmatprep.subr.mxu0 0.0
    %1924 = vmatpush1.xpose.msra.mxu0 0.0
    %1925 = vmatprep.subr.mxu0 0.0
    %1926 = vmatpush1.xpose.msra.mxu0 0.0
    %1927 = vmatprep.subr.mxu0 0.0
    %1928 = vmatpush1.xpose.msra.mxu0 0.0
    %1929 = vmatprep.subr.mxu0 0.0
    %1930 = vmatpush1.xpose.msra.mxu0 0.0
    %1931 = vmatprep.subr.mxu0 0.0
    %1932 = vmatpush1.xpose.msra.mxu0 0.0
    %1933 = vmatprep.subr.mxu0 0.0
    %1934 = vmatpush1.xpose.msra.mxu0 0.0
    %1935 = vmatprep.subr.mxu0 0.0
    %1936 = vmatpush1.xpose.msra.mxu0 0.0
    %1937 = vmatprep.subr.mxu0 0.0
    %1938 = vmatpush1.xpose.msra.mxu0 0.0
    %1939 = vmatprep.subr.mxu0 0.0
    %1940 = vmatpush1.xpose.msra.mxu0 0.0
    %1941 = vmatprep.subr.mxu0 0.0
    %1942 = vmatpush1.xpose.msra.mxu0 0.0
    %1943 = vmatprep.subr.mxu0 0.0
    %1944 = vmatpush1.xpose.msra.mxu0 0.0
    %1945 = vmatprep.subr.mxu0 0.0
    %1946 = vmatpush1.xpose.msra.mxu0 0.0
    %1947 = vmatprep.subr.mxu0 0.0
    %1948 = vmatpush1.xpose.msra.mxu0 0.0
    %1949 = vmatprep.subr.mxu0 0.0
    %1950 = vmatpush1.xpose.msra.mxu0 0.0
    %1951 = vmatprep.subr.mxu0 0.0
    %1952 = vmatpush1.xpose.msra.mxu0 0.0
    %1953 = vmatprep.subr.mxu0 0.0
    %1954 = vmatpush1.xpose.msra.mxu0 0.0
    %1955 = vmatprep.subr.mxu0 0.0
    %1956 = vmatpush1.xpose.msra.mxu0 0.0
    %1957 = vmatprep.mubr.f32.mxu0 0.0
    %1958 = vmatmul.mubr.f32.gmra.mrb[0].mxu0 %v1888
    %v1959 = vpop.f32.mrb[0].mxu0
    %v1960 = vadd.f32 0.0, %v1959
    %v1961 = vpop.f32.mrb[0].mxu0
    %1962 = vdwg.mxu0
    %v1964 = vsel %vm328, %v1708, 0
    %v1967 = vsel %vm328, %v1796, 0
    %1969 = vmatprep.subr.mxu0 0.0
    %1970 = vmatpush1.xpose.msra.mxu0 %v1967
    %1971 = vmatprep.subr.mxu0 0.0
    %1972 = vmatpush1.xpose.msra.mxu0 0.0
    %1973 = vmatprep.subr.mxu0 0.0
    %1974 = vmatpush1.xpose.msra.mxu0 0.0
    %1975 = vmatprep.subr.mxu0 0.0
    %1976 = vmatpush1.xpose.msra.mxu0 0.0
    %1977 = vmatprep.subr.mxu0 0.0
    %1978 = vmatpush1.xpose.msra.mxu0 0.0
    %1979 = vmatprep.subr.mxu0 0.0
    %1980 = vmatpush1.xpose.msra.mxu0 0.0
    %1981 = vmatprep.subr.mxu0 0.0
    %1982 = vmatpush1.xpose.msra.mxu0 0.0
    %1983 = vmatprep.subr.mxu0 0.0
    %1984 = vmatpush1.xpose.msra.mxu0 0.0
    %1985 = vmatprep.subr.mxu0 0.0
    %1986 = vmatpush1.xpose.msra.mxu0 0.0
    %1987 = vmatprep.subr.mxu0 0.0
    %1988 = vmatpush1.xpose.msra.mxu0 0.0
    %1989 = vmatprep.subr.mxu0 0.0
    %1990 = vmatpush1.xpose.msra.mxu0 0.0
    %1991 = vmatprep.subr.mxu0 0.0
    %1992 = vmatpush1.xpose.msra.mxu0 0.0
    %1993 = vmatprep.subr.mxu0 0.0
    %1994 = vmatpush1.xpose.msra.mxu0 0.0
    %1995 = vmatprep.subr.mxu0 0.0
    %1996 = vmatpush1.xpose.msra.mxu0 0.0
    %1997 = vmatprep.subr.mxu0 0.0
    %1998 = vmatpush1.xpose.msra.mxu0 0.0
    %1999 = vmatprep.subr.mxu0 0.0
    %2000 = vmatpush1.xpose.msra.mxu0 0.0
    %2001 = vmatprep.subr.mxu0 0.0
    %2002 = vmatpush1.xpose.msra.mxu0 0.0
    %2003 = vmatprep.subr.mxu0 0.0
    %2004 = vmatpush1.xpose.msra.mxu0 0.0
    %2005 = vmatprep.subr.mxu0 0.0
    %2006 = vmatpush1.xpose.msra.mxu0 0.0
    %2007 = vmatprep.subr.mxu0 0.0
    %2008 = vmatpush1.xpose.msra.mxu0 0.0
    %2009 = vmatprep.subr.mxu0 0.0
    %2010 = vmatpush1.xpose.msra.mxu0 0.0
    %2011 = vmatprep.subr.mxu0 0.0
    %2012 = vmatpush1.xpose.msra.mxu0 0.0
    %2013 = vmatprep.subr.mxu0 0.0
    %2014 = vmatpush1.xpose.msra.mxu0 0.0
    %2015 = vmatprep.subr.mxu0 0.0
    %2016 = vmatpush1.xpose.msra.mxu0 0.0
    %2017 = vmatprep.subr.mxu0 0.0
    %2018 = vmatpush1.xpose.msra.mxu0 0.0
    %2019 = vmatprep.subr.mxu0 0.0
    %2020 = vmatpush1.xpose.msra.mxu0 0.0
    %2021 = vmatprep.subr.mxu0 0.0
    %2022 = vmatpush1.xpose.msra.mxu0 0.0
    %2023 = vmatprep.subr.mxu0 0.0
    %2024 = vmatpush1.xpose.msra.mxu0 0.0
    %2025 = vmatprep.subr.mxu0 0.0
    %2026 = vmatpush1.xpose.msra.mxu0 0.0
    %2027 = vmatprep.subr.mxu0 0.0
    %2028 = vmatpush1.xpose.msra.mxu0 0.0
    %2029 = vmatprep.subr.mxu0 0.0
    %2030 = vmatpush1.xpose.msra.mxu0 0.0
    %2031 = vmatprep.subr.mxu0 0.0
    %2032 = vmatpush1.xpose.msra.mxu0 0.0
    %2033 = vmatprep.mubr.f32.mxu0 0.0
    %2034 = vmatmul.mubr.f32.gmra.mrb[0].mxu0 %v1964
    %v2035 = vpop.f32.mrb[0].mxu0
    %v2036 = vadd.f32 0.0, %v2035
    %v2037 = vpop.f32.mrb[0].mxu0
    %2038 = vdwg.mxu0
    %v2039 = vmul.f32 %v1960, 0.25
    %v2040 = vmul.f32 %v2036, 0.25
    %s2041 = scalar_lea.vmem %s11, 16
    %v2042 = vld [vmem:[%s2041] sm:$0xff]
    %v2044 = vsel %vm328, %v2042, 0
    %2046 = vmatprep.subr.mxu0 0.0
    %2047 = vmatpush1.xpose.msra.mxu0 %v2044
    %2048 = vmatprep.subr.mxu0 0.0
    %2049 = vmatpush1.xpose.msra.mxu0 0.0
    %2050 = vmatprep.subr.mxu0 0.0
    %2051 = vmatpush1.xpose.msra.mxu0 0.0
    %2052 = vmatprep.subr.mxu0 0.0
    %2053 = vmatpush1.xpose.msra.mxu0 0.0
    %2054 = vmatprep.subr.mxu0 0.0
    %2055 = vmatpush1.xpose.msra.mxu0 0.0
    %2056 = vmatprep.subr.mxu0 0.0
    %2057 = vmatpush1.xpose.msra.mxu0 0.0
    %2058 = vmatprep.subr.mxu0 0.0
    %2059 = vmatpush1.xpose.msra.mxu0 0.0
    %2060 = vmatprep.subr.mxu0 0.0
    %2061 = vmatpush1.xpose.msra.mxu0 0.0
    %2062 = vmatprep.subr.mxu0 0.0
    %2063 = vmatpush1.xpose.msra.mxu0 0.0
    %2064 = vmatprep.subr.mxu0 0.0
    %2065 = vmatpush1.xpose.msra.mxu0 0.0
    %2066 = vmatprep.subr.mxu0 0.0
    %2067 = vmatpush1.xpose.msra.mxu0 0.0
    %2068 = vmatprep.subr.mxu0 0.0
    %2069 = vmatpush1.xpose.msra.mxu0 0.0
    %2070 = vmatprep.subr.mxu0 0.0
    %2071 = vmatpush1.xpose.msra.mxu0 0.0
    %2072 = vmatprep.subr.mxu0 0.0
    %2073 = vmatpush1.xpose.msra.mxu0 0.0
    %2074 = vmatprep.subr.mxu0 0.0
    %2075 = vmatpush1.xpose.msra.mxu0 0.0
    %2076 = vmatprep.subr.mxu0 0.0
    %2077 = vmatpush1.xpose.msra.mxu0 0.0
    %2078 = vmatprep.subr.mxu0 0.0
    %2079 = vmatpush1.xpose.msra.mxu0 0.0
    %2080 = vmatprep.subr.mxu0 0.0
    %2081 = vmatpush1.xpose.msra.mxu0 0.0
    %2082 = vmatprep.subr.mxu0 0.0
    %2083 = vmatpush1.xpose.msra.mxu0 0.0
    %2084 = vmatprep.subr.mxu0 0.0
    %2085 = vmatpush1.xpose.msra.mxu0 0.0
    %2086 = vmatprep.subr.mxu0 0.0
    %2087 = vmatpush1.xpose.msra.mxu0 0.0
    %2088 = vmatprep.subr.mxu0 0.0
    %2089 = vmatpush1.xpose.msra.mxu0 0.0
    %2090 = vmatprep.subr.mxu0 0.0
    %2091 = vmatpush1.xpose.msra.mxu0 0.0
    %2092 = vmatprep.subr.mxu0 0.0
    %2093 = vmatpush1.xpose.msra.mxu0 0.0
    %2094 = vmatprep.subr.mxu0 0.0
    %2095 = vmatpush1.xpose.msra.mxu0 0.0
    %2096 = vmatprep.subr.mxu0 0.0
    %2097 = vmatpush1.xpose.msra.mxu0 0.0
    %2098 = vmatprep.subr.mxu0 0.0
    %2099 = vmatpush1.xpose.msra.mxu0 0.0
    %2100 = vmatprep.subr.mxu0 0.0
    %2101 = vmatpush1.xpose.msra.mxu0 0.0
    %2102 = vmatprep.subr.mxu0 0.0
    %2103 = vmatpush1.xpose.msra.mxu0 0.0
    %2104 = vmatprep.subr.mxu0 0.0
    %2105 = vmatpush1.xpose.msra.mxu0 0.0
    %2106 = vmatprep.subr.mxu0 0.0
    %2107 = vmatpush1.xpose.msra.mxu0 0.0
    %2108 = vmatprep.subr.mxu0 0.0
    %2109 = vmatpush1.xpose.msra.mxu0 0.0
    %2110 = vmatprep.mubr.f32.mxu0 0.0
    %2111 = vmatmul.mubr.f32.gmra.mrb[0].mxu0 %v1888
    %v2112 = vpop.f32.mrb[0].mxu0
    %v2113 = vadd.f32 0.0, %v2112
    %v2114 = vpop.f32.mrb[0].mxu0
    %2115 = vmatprep.mubr.f32.mxu0 0.0
    %2116 = vmatmul.mubr.f32.gmra.mrb[0].mxu0 %v1964
    %v2117 = vpop.f32.mrb[0].mxu0
    %v2118 = vadd.f32 0.0, %v2117
    %v2119 = vpop.f32.mrb[0].mxu0
    %2120 = vdwg.mxu0
    %v2121 = vsel %vm562, %v2039, -inf
    %2122 = vmax.xlane.f32.xlu0 %v2121
    %v2123 = vpop.xlane.xlu0 %2122
    %v2124 = vsel %vm562, %v2040, -inf
    %2125 = vmax.xlane.f32.xlu0 %v2124
    %v2126 = vpop.xlane.xlu0 %2125
    %v2127 = vsel %vm562, %v2113, -inf
    %2128 = vmax.xlane.f32.xlu0 %v2127
    %v2129 = vpop.xlane.xlu0 %2128
    %v2130 = vsel %vm562, %v2118, -inf
    %2131 = vmax.xlane.f32.xlu0 %v2130
    %v2132 = vpop.xlane.xlu0 %2131
    %v2133 = vmax.f32 %v2123, %v2129
    %v2134 = vmax.f32 %v2126, %v2132
    %v2135 = vsub.f32 %v2039, %v2133
    %v2136 = vsub.f32 %v2040, %v2134
    %v2137 = vmul.f32 %v2135, 1.442695
    %v2138 = vpow.pop %v2137
    %v2139 = vmul.f32 %v2136, 1.442695
    %v2140 = vpow.pop %v2139
    %v2141 = vsub.f32 %v2113, %v2133
    %v2142 = vsub.f32 %v2118, %v2134
    %v2143 = vmul.f32 %v2141, 1.442695
    %v2144 = vpow.pop %v2143
    %v2145 = vmul.f32 %v2142, 1.442695
    %v2146 = vpow.pop %v2145
    %v2147 = vsel %vm562, %v2138, 0.0
    %2148 = vadd.xlane.f32.xlu0 %v2147
    %v2149 = vpop.xlane.xlu0 %2148
    %v2150 = vsel %vm562, %v2140, 0.0
    %2151 = vadd.xlane.f32.xlu0 %v2150
    %v2152 = vpop.xlane.xlu0 %2151
    %v2153 = vsel %vm562, %v2144, 0.0
    %2154 = vadd.xlane.f32.xlu0 %v2153
    %v2155 = vpop.xlane.xlu0 %2154
    %v2156 = vsel %vm562, %v2146, 0.0
    %2157 = vadd.xlane.f32.xlu0 %v2156
    %v2158 = vpop.xlane.xlu0 %2157
    %v2159 = vadd.f32 %v2149, %v2155
    %v2160 = vadd.f32 %v2152, %v2158
    %v2162 = vsel %vm562, %v2138, 0
    %2164 = vmatprep.subr.mxu0 0.0
    %2165 = vmatpush1.msra.mxu0 %v1879
    %2166 = vmatprep.subr.mxu0 0.0
    %2167 = vmatpush1.msra.mxu0 0.0
    %2168 = vmatprep.subr.mxu0 0.0
    %2169 = vmatpush1.msra.mxu0 0.0
    %2170 = vmatprep.subr.mxu0 0.0
    %2171 = vmatpush1.msra.mxu0 0.0
    %2172 = vmatprep.subr.mxu0 0.0
    %2173 = vmatpush1.msra.mxu0 0.0
    %2174 = vmatprep.subr.mxu0 0.0
    %2175 = vmatpush1.msra.mxu0 0.0
    %2176 = vmatprep.subr.mxu0 0.0
    %2177 = vmatpush1.msra.mxu0 0.0
    %2178 = vmatprep.subr.mxu0 0.0
    %2179 = vmatpush1.msra.mxu0 0.0
    %2180 = vmatprep.subr.mxu0 0.0
    %2181 = vmatpush1.msra.mxu0 0.0
    %2182 = vmatprep.subr.mxu0 0.0
    %2183 = vmatpush1.msra.mxu0 0.0
    %2184 = vmatprep.subr.mxu0 0.0
    %2185 = vmatpush1.msra.mxu0 0.0
    %2186 = vmatprep.subr.mxu0 0.0
    %2187 = vmatpush1.msra.mxu0 0.0
    %2188 = vmatprep.subr.mxu0 0.0
    %2189 = vmatpush1.msra.mxu0 0.0
    %2190 = vmatprep.subr.mxu0 0.0
    %2191 = vmatpush1.msra.mxu0 0.0
    %2192 = vmatprep.subr.mxu0 0.0
    %2193 = vmatpush1.msra.mxu0 0.0
    %2194 = vmatprep.subr.mxu0 0.0
    %2195 = vmatpush1.msra.mxu0 0.0
    %2196 = vmatprep.subr.mxu0 0.0
    %2197 = vmatpush1.msra.mxu0 0.0
    %2198 = vmatprep.subr.mxu0 0.0
    %2199 = vmatpush1.msra.mxu0 0.0
    %2200 = vmatprep.subr.mxu0 0.0
    %2201 = vmatpush1.msra.mxu0 0.0
    %2202 = vmatprep.subr.mxu0 0.0
    %2203 = vmatpush1.msra.mxu0 0.0
    %2204 = vmatprep.subr.mxu0 0.0
    %2205 = vmatpush1.msra.mxu0 0.0
    %2206 = vmatprep.subr.mxu0 0.0
    %2207 = vmatpush1.msra.mxu0 0.0
    %2208 = vmatprep.subr.mxu0 0.0
    %2209 = vmatpush1.msra.mxu0 0.0
    %2210 = vmatprep.subr.mxu0 0.0
    %2211 = vmatpush1.msra.mxu0 0.0
    %2212 = vmatprep.subr.mxu0 0.0
    %2213 = vmatpush1.msra.mxu0 0.0
    %2214 = vmatprep.subr.mxu0 0.0
    %2215 = vmatpush1.msra.mxu0 0.0
    %2216 = vmatprep.subr.mxu0 0.0
    %2217 = vmatpush1.msra.mxu0 0.0
    %2218 = vmatprep.subr.mxu0 0.0
    %2219 = vmatpush1.msra.mxu0 0.0
    %2220 = vmatprep.subr.mxu0 0.0
    %2221 = vmatpush1.msra.mxu0 0.0
    %2222 = vmatprep.subr.mxu0 0.0
    %2223 = vmatpush1.msra.mxu0 0.0
    %2224 = vmatprep.subr.mxu0 0.0
    %2225 = vmatpush1.msra.mxu0 0.0
    %2226 = vmatprep.subr.mxu0 0.0
    %2227 = vmatpush1.msra.mxu0 0.0
    %2228 = vmatprep.mubr.f32.mxu0 0.0
    %2229 = vmatmul.mubr.f32.gmra.mrb[0].mxu0 %v2162
    %v2230 = vpop.f32.mrb[0].mxu0
    %v2231 = vadd.f32 0.0, %v2230
    %v2232 = vpop.f32.mrb[0].mxu0
    %2233 = vdwg.mxu0
    %v2235 = vsel %vm562, %v2140, 0
    %2237 = vmatprep.subr.mxu0 0.0
    %2238 = vmatpush1.msra.mxu0 %v1884
    %2239 = vmatprep.subr.mxu0 0.0
    %2240 = vmatpush1.msra.mxu0 0.0
    %2241 = vmatprep.subr.mxu0 0.0
    %2242 = vmatpush1.msra.mxu0 0.0
    %2243 = vmatprep.subr.mxu0 0.0
    %2244 = vmatpush1.msra.mxu0 0.0
    %2245 = vmatprep.subr.mxu0 0.0
    %2246 = vmatpush1.msra.mxu0 0.0
    %2247 = vmatprep.subr.mxu0 0.0
    %2248 = vmatpush1.msra.mxu0 0.0
    %2249 = vmatprep.subr.mxu0 0.0
    %2250 = vmatpush1.msra.mxu0 0.0
    %2251 = vmatprep.subr.mxu0 0.0
    %2252 = vmatpush1.msra.mxu0 0.0
    %2253 = vmatprep.subr.mxu0 0.0
    %2254 = vmatpush1.msra.mxu0 0.0
    %2255 = vmatprep.subr.mxu0 0.0
    %2256 = vmatpush1.msra.mxu0 0.0
    %2257 = vmatprep.subr.mxu0 0.0
    %2258 = vmatpush1.msra.mxu0 0.0
    %2259 = vmatprep.subr.mxu0 0.0
    %2260 = vmatpush1.msra.mxu0 0.0
    %2261 = vmatprep.subr.mxu0 0.0
    %2262 = vmatpush1.msra.mxu0 0.0
    %2263 = vmatprep.subr.mxu0 0.0
    %2264 = vmatpush1.msra.mxu0 0.0
    %2265 = vmatprep.subr.mxu0 0.0
    %2266 = vmatpush1.msra.mxu0 0.0
    %2267 = vmatprep.subr.mxu0 0.0
    %2268 = vmatpush1.msra.mxu0 0.0
    %2269 = vmatprep.subr.mxu0 0.0
    %2270 = vmatpush1.msra.mxu0 0.0
    %2271 = vmatprep.subr.mxu0 0.0
    %2272 = vmatpush1.msra.mxu0 0.0
    %2273 = vmatprep.subr.mxu0 0.0
    %2274 = vmatpush1.msra.mxu0 0.0
    %2275 = vmatprep.subr.mxu0 0.0
    %2276 = vmatpush1.msra.mxu0 0.0
    %2277 = vmatprep.subr.mxu0 0.0
    %2278 = vmatpush1.msra.mxu0 0.0
    %2279 = vmatprep.subr.mxu0 0.0
    %2280 = vmatpush1.msra.mxu0 0.0
    %2281 = vmatprep.subr.mxu0 0.0
    %2282 = vmatpush1.msra.mxu0 0.0
    %2283 = vmatprep.subr.mxu0 0.0
    %2284 = vmatpush1.msra.mxu0 0.0
    %2285 = vmatprep.subr.mxu0 0.0
    %2286 = vmatpush1.msra.mxu0 0.0
    %2287 = vmatprep.subr.mxu0 0.0
    %2288 = vmatpush1.msra.mxu0 0.0
    %2289 = vmatprep.subr.mxu0 0.0
    %2290 = vmatpush1.msra.mxu0 0.0
    %2291 = vmatprep.subr.mxu0 0.0
    %2292 = vmatpush1.msra.mxu0 0.0
    %2293 = vmatprep.subr.mxu0 0.0
    %2294 = vmatpush1.msra.mxu0 0.0
    %2295 = vmatprep.subr.mxu0 0.0
    %2296 = vmatpush1.msra.mxu0 0.0
    %2297 = vmatprep.subr.mxu0 0.0
    %2298 = vmatpush1.msra.mxu0 0.0
    %2299 = vmatprep.subr.mxu0 0.0
    %2300 = vmatpush1.msra.mxu0 0.0
    %2301 = vmatprep.mubr.f32.mxu0 0.0
    %2302 = vmatmul.mubr.f32.gmra.mrb[0].mxu0 %v2235
    %v2303 = vpop.f32.mrb[0].mxu0
    %v2304 = vadd.f32 0.0, %v2303
    %v2305 = vpop.f32.mrb[0].mxu0
    %2306 = vdwg.mxu0
    %s2307 = scalar_lea.vmem %s12, 16
    %v2308 = vld [vmem:[%s2307] sm:$0xff]
    %v2310 = vsel %vm562, %v2144, 0
    %v2313 = vsel %vm562, %v2146, 0
    %2315 = vmatprep.subr.mxu0 0.0
    %2316 = vmatpush1.msra.mxu0 %v2308
    %2317 = vmatprep.subr.mxu0 0.0
    %2318 = vmatpush1.msra.mxu0 0.0
    %2319 = vmatprep.subr.mxu0 0.0
    %2320 = vmatpush1.msra.mxu0 0.0
    %2321 = vmatprep.subr.mxu0 0.0
    %2322 = vmatpush1.msra.mxu0 0.0
    %2323 = vmatprep.subr.mxu0 0.0
    %2324 = vmatpush1.msra.mxu0 0.0
    %2325 = vmatprep.subr.mxu0 0.0
    %2326 = vmatpush1.msra.mxu0 0.0
    %2327 = vmatprep.subr.mxu0 0.0
    %2328 = vmatpush1.msra.mxu0 0.0
    %2329 = vmatprep.subr.mxu0 0.0
    %2330 = vmatpush1.msra.mxu0 0.0
    %2331 = vmatprep.subr.mxu0 0.0
    %2332 = vmatpush1.msra.mxu0 0.0
    %2333 = vmatprep.subr.mxu0 0.0
    %2334 = vmatpush1.msra.mxu0 0.0
    %2335 = vmatprep.subr.mxu0 0.0
    %2336 = vmatpush1.msra.mxu0 0.0
    %2337 = vmatprep.subr.mxu0 0.0
    %2338 = vmatpush1.msra.mxu0 0.0
    %2339 = vmatprep.subr.mxu0 0.0
    %2340 = vmatpush1.msra.mxu0 0.0
    %2341 = vmatprep.subr.mxu0 0.0
    %2342 = vmatpush1.msra.mxu0 0.0
    %2343 = vmatprep.subr.mxu0 0.0
    %2344 = vmatpush1.msra.mxu0 0.0
    %2345 = vmatprep.subr.mxu0 0.0
    %2346 = vmatpush1.msra.mxu0 0.0
    %2347 = vmatprep.subr.mxu0 0.0
    %2348 = vmatpush1.msra.mxu0 0.0
    %2349 = vmatprep.subr.mxu0 0.0
    %2350 = vmatpush1.msra.mxu0 0.0
    %2351 = vmatprep.subr.mxu0 0.0
    %2352 = vmatpush1.msra.mxu0 0.0
    %2353 = vmatprep.subr.mxu0 0.0
    %2354 = vmatpush1.msra.mxu0 0.0
    %2355 = vmatprep.subr.mxu0 0.0
    %2356 = vmatpush1.msra.mxu0 0.0
    %2357 = vmatprep.subr.mxu0 0.0
    %2358 = vmatpush1.msra.mxu0 0.0
    %2359 = vmatprep.subr.mxu0 0.0
    %2360 = vmatpush1.msra.mxu0 0.0
    %2361 = vmatprep.subr.mxu0 0.0
    %2362 = vmatpush1.msra.mxu0 0.0
    %2363 = vmatprep.subr.mxu0 0.0
    %2364 = vmatpush1.msra.mxu0 0.0
    %2365 = vmatprep.subr.mxu0 0.0
    %2366 = vmatpush1.msra.mxu0 0.0
    %2367 = vmatprep.subr.mxu0 0.0
    %2368 = vmatpush1.msra.mxu0 0.0
    %2369 = vmatprep.subr.mxu0 0.0
    %2370 = vmatpush1.msra.mxu0 0.0
    %2371 = vmatprep.subr.mxu0 0.0
    %2372 = vmatpush1.msra.mxu0 0.0
    %2373 = vmatprep.subr.mxu0 0.0
    %2374 = vmatpush1.msra.mxu0 0.0
    %2375 = vmatprep.subr.mxu0 0.0
    %2376 = vmatpush1.msra.mxu0 0.0
    %2377 = vmatprep.subr.mxu0 0.0
    %2378 = vmatpush1.msra.mxu0 0.0
    %2379 = vmatprep.mubr.f32.mxu0 0.0
    %2380 = vmatmul.mubr.f32.gmra.mrb[0].mxu0 %v2310
    %v2381 = vpop.f32.mrb[0].mxu0
    %v2382 = vadd.f32 0.0, %v2381
    %v2383 = vpop.f32.mrb[0].mxu0
    %2384 = vmatprep.mubr.f32.mxu0 0.0
    %2385 = vmatmul.mubr.f32.gmra.mrb[0].mxu0 %v2313
    %v2386 = vpop.f32.mrb[0].mxu0
    %v2387 = vadd.f32 0.0, %v2386
    %v2388 = vpop.f32.mrb[0].mxu0
    %2389 = vdwg.mxu0
    %v2390 = vadd.f32 %v2231, %v2382
    %v2391 = vadd.f32 %v2304, %v2387
    %v2392 = vrcp.pop %v2159
    %v2393 = vrcp.pop %v2160
    %v2394 = vmul.f32 %v2390, %v2392
    %v2395 = vmul.f32 %v2391, %v2393
    %2398 = vrot.lane.b32.xlu0 %v2394, 32
    %v2399 = vpop.permute.xlu0 %2398
    %2400 = vrot.lane.b32.xlu0 %v2395, 32
    %v2401 = vpop.permute.xlu0 %2400
    %vm2404 = vcmask 392448
    %2405 = vst.msk [vmem:[#allocation2] sm:$0xff] %vm2404, %v2399
    %2406 = vst.msk [vmem:[#allocation2 + $0x8] sm:$0xff] %vm2404, %v2401
    %s2407 = scalar_lea.vmem %s3, 96
    %v2408 = vld [vmem:[%s2407] sm:$0xff]
    %v2409 = vld [vmem:[%s2407 + $0x8] sm:$0xff]
    %v2410 = vld [vmem:[%s2407 + $0x10] sm:$0xff]
    %v2411 = vld [vmem:[%s2407 + $0x18] sm:$0xff]
    %s2412 = scalar_lea.vmem %s4, 3
    %v2413 = vld [vmem:[%s2412] sm:$0x1]
    %v2415 = vlaneseq
    %v2416 = vshrl.u32 %v2415, 7
    %v2417 = vsub.s32 0, %v2416
    %v2418 = vrot.slane %v2413, %v2417
    %2420 = vmatprep.subr.mxu0 0.0
    %2421 = vmatpush1.msra.mxu0 %v2408
    %2422 = vmatprep.subr.mxu0 0.0
    %2423 = vmatpush1.msra.mxu0 %v2409
    %2424 = vmatprep.subr.mxu0 0.0
    %2425 = vmatpush1.msra.mxu0 %v2410
    %2426 = vmatprep.subr.mxu0 0.0
    %2427 = vmatpush1.msra.mxu0 %v2411
    %2428 = vmatprep.subr.mxu0 0.0
    %2429 = vmatpush1.msra.mxu0 0.0
    %2430 = vmatprep.subr.mxu0 0.0
    %2431 = vmatpush1.msra.mxu0 0.0
    %2432 = vmatprep.subr.mxu0 0.0
    %2433 = vmatpush1.msra.mxu0 0.0
    %2434 = vmatprep.subr.mxu0 0.0
    %2435 = vmatpush1.msra.mxu0 0.0
    %2436 = vmatprep.subr.mxu0 0.0
    %2437 = vmatpush1.msra.mxu0 0.0
    %2438 = vmatprep.subr.mxu0 0.0
    %2439 = vmatpush1.msra.mxu0 0.0
    %2440 = vmatprep.subr.mxu0 0.0
    %2441 = vmatpush1.msra.mxu0 0.0
    %2442 = vmatprep.subr.mxu0 0.0
    %2443 = vmatpush1.msra.mxu0 0.0
    %2444 = vmatprep.subr.mxu0 0.0
    %2445 = vmatpush1.msra.mxu0 0.0
    %2446 = vmatprep.subr.mxu0 0.0
    %2447 = vmatpush1.msra.mxu0 0.0
    %2448 = vmatprep.subr.mxu0 0.0
    %2449 = vmatpush1.msra.mxu0 0.0
    %2450 = vmatprep.subr.mxu0 0.0
    %2451 = vmatpush1.msra.mxu0 0.0
    %2452 = vmatprep.subr.mxu0 0.0
    %2453 = vmatpush1.msra.mxu0 0.0
    %2454 = vmatprep.subr.mxu0 0.0
    %2455 = vmatpush1.msra.mxu0 0.0
    %2456 = vmatprep.subr.mxu0 0.0
    %2457 = vmatpush1.msra.mxu0 0.0
    %2458 = vmatprep.subr.mxu0 0.0
    %2459 = vmatpush1.msra.mxu0 0.0
    %2460 = vmatprep.subr.mxu0 0.0
    %2461 = vmatpush1.msra.mxu0 0.0
    %2462 = vmatprep.subr.mxu0 0.0
    %2463 = vmatpush1.msra.mxu0 0.0
    %2464 = vmatprep.subr.mxu0 0.0
    %2465 = vmatpush1.msra.mxu0 0.0
    %2466 = vmatprep.subr.mxu0 0.0
    %2467 = vmatpush1.msra.mxu0 0.0
    %2468 = vmatprep.subr.mxu0 0.0
    %2469 = vmatpush1.msra.mxu0 0.0
    %2470 = vmatprep.subr.mxu0 0.0
    %2471 = vmatpush1.msra.mxu0 0.0
    %2472 = vmatprep.subr.mxu0 0.0
    %2473 = vmatpush1.msra.mxu0 0.0
    %2474 = vmatprep.subr.mxu0 0.0
    %2475 = vmatpush1.msra.mxu0 0.0
    %2476 = vmatprep.subr.mxu0 0.0
    %2477 = vmatpush1.msra.mxu0 0.0
    %2478 = vmatprep.subr.mxu0 0.0
    %2479 = vmatpush1.msra.mxu0 0.0
    %2480 = vmatprep.subr.mxu0 0.0
    %2481 = vmatpush1.msra.mxu0 0.0
    %2482 = vmatprep.subr.mxu0 0.0
    %2483 = vmatpush1.msra.mxu0 0.0
    %2484 = vmatprep.mubr.f32.mxu0 0.0
    %2485 = vmatmul.mubr.f32.gmra.mrb[0].mxu0 %v64
    %v2486 = vpop.f32.mrb[0].mxu0
    %v2487 = vadd.f32 %v2418, %v2486
    %v2488 = vpop.f32.mrb[0].mxu0
    %2489 = vmatprep.mubr.f32.mxu0 0.0
    %2490 = vmatmul.mubr.f32.gmra.mrb[0].mxu0 %v67
    %v2491 = vpop.f32.mrb[0].mxu0
    %v2492 = vadd.f32 %v2418, %v2491
    %v2493 = vpop.f32.mrb[0].mxu0
    %2494 = vdwg.mxu0
    %s2495 = scalar_lea.vmem %s5, 96
    %v2496 = vld [vmem:[%s2495] sm:$0xff]
    %v2497 = vld [vmem:[%s2495 + $0x8] sm:$0xff]
    %v2498 = vld [vmem:[%s2495 + $0x10] sm:$0xff]
    %v2499 = vld [vmem:[%s2495 + $0x18] sm:$0xff]
    %s2500 = scalar_lea.vmem %s6, 3
    %v2501 = vld [vmem:[%s2500] sm:$0x1]
    %v2503 = vlaneseq
    %v2504 = vshrl.u32 %v2503, 7
    %v2505 = vsub.s32 0, %v2504
    %v2506 = vrot.slane %v2501, %v2505
    %2508 = vmatprep.subr.mxu0 0.0
    %2509 = vmatpush1.msra.mxu0 %v2496
    %2510 = vmatprep.subr.mxu0 0.0
    %2511 = vmatpush1.msra.mxu0 %v2497
    %2512 = vmatprep.subr.mxu0 0.0
    %2513 = vmatpush1.msra.mxu0 %v2498
    %2514 = vmatprep.subr.mxu0 0.0
    %2515 = vmatpush1.msra.mxu0 %v2499
    %2516 = vmatprep.subr.mxu0 0.0
    %2517 = vmatpush1.msra.mxu0 0.0
    %2518 = vmatprep.subr.mxu0 0.0
    %2519 = vmatpush1.msra.mxu0 0.0
    %2520 = vmatprep.subr.mxu0 0.0
    %2521 = vmatpush1.msra.mxu0 0.0
    %2522 = vmatprep.subr.mxu0 0.0
    %2523 = vmatpush1.msra.mxu0 0.0
    %2524 = vmatprep.subr.mxu0 0.0
    %2525 = vmatpush1.msra.mxu0 0.0
    %2526 = vmatprep.subr.mxu0 0.0
    %2527 = vmatpush1.msra.mxu0 0.0
    %2528 = vmatprep.subr.mxu0 0.0
    %2529 = vmatpush1.msra.mxu0 0.0
    %2530 = vmatprep.subr.mxu0 0.0
    %2531 = vmatpush1.msra.mxu0 0.0
    %2532 = vmatprep.subr.mxu0 0.0
    %2533 = vmatpush1.msra.mxu0 0.0
    %2534 = vmatprep.subr.mxu0 0.0
    %2535 = vmatpush1.msra.mxu0 0.0
    %2536 = vmatprep.subr.mxu0 0.0
    %2537 = vmatpush1.msra.mxu0 0.0
    %2538 = vmatprep.subr.mxu0 0.0
    %2539 = vmatpush1.msra.mxu0 0.0
    %2540 = vmatprep.subr.mxu0 0.0
    %2541 = vmatpush1.msra.mxu0 0.0
    %2542 = vmatprep.subr.mxu0 0.0
    %2543 = vmatpush1.msra.mxu0 0.0
    %2544 = vmatprep.subr.mxu0 0.0
    %2545 = vmatpush1.msra.mxu0 0.0
    %2546 = vmatprep.subr.mxu0 0.0
    %2547 = vmatpush1.msra.mxu0 0.0
    %2548 = vmatprep.subr.mxu0 0.0
    %2549 = vmatpush1.msra.mxu0 0.0
    %2550 = vmatprep.subr.mxu0 0.0
    %2551 = vmatpush1.msra.mxu0 0.0
    %2552 = vmatprep.subr.mxu0 0.0
    %2553 = vmatpush1.msra.mxu0 0.0
    %2554 = vmatprep.subr.mxu0 0.0
    %2555 = vmatpush1.msra.mxu0 0.0
    %2556 = vmatprep.subr.mxu0 0.0
    %2557 = vmatpush1.msra.mxu0 0.0
    %2558 = vmatprep.subr.mxu0 0.0
    %2559 = vmatpush1.msra.mxu0 0.0
    %2560 = vmatprep.subr.mxu0 0.0
    %2561 = vmatpush1.msra.mxu0 0.0
    %2562 = vmatprep.subr.mxu0 0.0
    %2563 = vmatpush1.msra.mxu0 0.0
    %2564 = vmatprep.subr.mxu0 0.0
    %2565 = vmatpush1.msra.mxu0 0.0
    %2566 = vmatprep.subr.mxu0 0.0
    %2567 = vmatpush1.msra.mxu0 0.0
    %2568 = vmatprep.subr.mxu0 0.0
    %2569 = vmatpush1.msra.mxu0 0.0
    %2570 = vmatprep.subr.mxu0 0.0
    %2571 = vmatpush1.msra.mxu0 0.0
    %2572 = vmatprep.mubr.f32.mxu0 0.0
    %2573 = vmatmul.mubr.f32.gmra.mrb[0].mxu0 %v156
    %v2574 = vpop.f32.mrb[0].mxu0
    %v2575 = vadd.f32 %v2506, %v2574
    %v2576 = vpop.f32.mrb[0].mxu0
    %2577 = vmatprep.mubr.f32.mxu0 0.0
    %2578 = vmatmul.mubr.f32.gmra.mrb[0].mxu0 %v159
    %v2579 = vpop.f32.mrb[0].mxu0
    %v2580 = vadd.f32 %v2506, %v2579
    %v2581 = vpop.f32.mrb[0].mxu0
    %2582 = vdwg.mxu0
    %s2583 = scalar_lea.vmem %s7, 96
    %v2584 = vld [vmem:[%s2583] sm:$0xff]
    %v2585 = vld [vmem:[%s2583 + $0x8] sm:$0xff]
    %v2586 = vld [vmem:[%s2583 + $0x10] sm:$0xff]
    %v2587 = vld [vmem:[%s2583 + $0x18] sm:$0xff]
    %s2588 = scalar_lea.vmem %s8, 3
    %v2589 = vld [vmem:[%s2588] sm:$0x1]
    %v2591 = vlaneseq
    %v2592 = vshrl.u32 %v2591, 7
    %v2593 = vsub.s32 0, %v2592
    %v2594 = vrot.slane %v2589, %v2593
    %2596 = vmatprep.subr.mxu0 0.0
    %2597 = vmatpush1.msra.mxu0 %v2584
    %2598 = vmatprep.subr.mxu0 0.0
    %2599 = vmatpush1.msra.mxu0 %v2585
    %2600 = vmatprep.subr.mxu0 0.0
    %2601 = vmatpush1.msra.mxu0 %v2586
    %2602 = vmatprep.subr.mxu0 0.0
    %2603 = vmatpush1.msra.mxu0 %v2587
    %2604 = vmatprep.subr.mxu0 0.0
    %2605 = vmatpush1.msra.mxu0 0.0
    %2606 = vmatprep.subr.mxu0 0.0
    %2607 = vmatpush1.msra.mxu0 0.0
    %2608 = vmatprep.subr.mxu0 0.0
    %2609 = vmatpush1.msra.mxu0 0.0
    %2610 = vmatprep.subr.mxu0 0.0
    %2611 = vmatpush1.msra.mxu0 0.0
    %2612 = vmatprep.subr.mxu0 0.0
    %2613 = vmatpush1.msra.mxu0 0.0
    %2614 = vmatprep.subr.mxu0 0.0
    %2615 = vmatpush1.msra.mxu0 0.0
    %2616 = vmatprep.subr.mxu0 0.0
    %2617 = vmatpush1.msra.mxu0 0.0
    %2618 = vmatprep.subr.mxu0 0.0
    %2619 = vmatpush1.msra.mxu0 0.0
    %2620 = vmatprep.subr.mxu0 0.0
    %2621 = vmatpush1.msra.mxu0 0.0
    %2622 = vmatprep.subr.mxu0 0.0
    %2623 = vmatpush1.msra.mxu0 0.0
    %2624 = vmatprep.subr.mxu0 0.0
    %2625 = vmatpush1.msra.mxu0 0.0
    %2626 = vmatprep.subr.mxu0 0.0
    %2627 = vmatpush1.msra.mxu0 0.0
    %2628 = vmatprep.subr.mxu0 0.0
    %2629 = vmatpush1.msra.mxu0 0.0
    %2630 = vmatprep.subr.mxu0 0.0
    %2631 = vmatpush1.msra.mxu0 0.0
    %2632 = vmatprep.subr.mxu0 0.0
    %2633 = vmatpush1.msra.mxu0 0.0
    %2634 = vmatprep.subr.mxu0 0.0
    %2635 = vmatpush1.msra.mxu0 0.0
    %2636 = vmatprep.subr.mxu0 0.0
    %2637 = vmatpush1.msra.mxu0 0.0
    %2638 = vmatprep.subr.mxu0 0.0
    %2639 = vmatpush1.msra.mxu0 0.0
    %2640 = vmatprep.subr.mxu0 0.0
    %2641 = vmatpush1.msra.mxu0 0.0
    %2642 = vmatprep.subr.mxu0 0.0
    %2643 = vmatpush1.msra.mxu0 0.0
    %2644 = vmatprep.subr.mxu0 0.0
    %2645 = vmatpush1.msra.mxu0 0.0
    %2646 = vmatprep.subr.mxu0 0.0
    %2647 = vmatpush1.msra.mxu0 0.0
    %2648 = vmatprep.subr.mxu0 0.0
    %2649 = vmatpush1.msra.mxu0 0.0
    %2650 = vmatprep.subr.mxu0 0.0
    %2651 = vmatpush1.msra.mxu0 0.0
    %2652 = vmatprep.subr.mxu0 0.0
    %2653 = vmatpush1.msra.mxu0 0.0
    %2654 = vmatprep.subr.mxu0 0.0
    %2655 = vmatpush1.msra.mxu0 0.0
    %2656 = vmatprep.subr.mxu0 0.0
    %2657 = vmatpush1.msra.mxu0 0.0
    %2658 = vmatprep.subr.mxu0 0.0
    %2659 = vmatpush1.msra.mxu0 0.0
    %2660 = vmatprep.mubr.f32.mxu0 0.0
    %2661 = vmatmul.mubr.f32.gmra.mrb[0].mxu0 %v248
    %v2662 = vpop.f32.mrb[0].mxu0
    %v2663 = vadd.f32 %v2594, %v2662
    %v2664 = vpop.f32.mrb[0].mxu0
    %2665 = vmatprep.mubr.f32.mxu0 0.0
    %2666 = vmatmul.mubr.f32.gmra.mrb[0].mxu0 %v251
    %v2667 = vpop.f32.mrb[0].mxu0
    %v2668 = vadd.f32 %v2594, %v2667
    %v2669 = vpop.f32.mrb[0].mxu0
    %2670 = vdwg.mxu0
    %v2672 = vsel %vm328, %v2487, 0
    %v2675 = vsel %vm328, %v2575, 0
    %2677 = vmatprep.subr.mxu0 0.0
    %2678 = vmatpush1.xpose.msra.mxu0 %v2675
    %2679 = vmatprep.subr.mxu0 0.0
    %2680 = vmatpush1.xpose.msra.mxu0 0.0
    %2681 = vmatprep.subr.mxu0 0.0
    %2682 = vmatpush1.xpose.msra.mxu0 0.0
    %2683 = vmatprep.subr.mxu0 0.0
    %2684 = vmatpush1.xpose.msra.mxu0 0.0
    %2685 = vmatprep.subr.mxu0 0.0
    %2686 = vmatpush1.xpose.msra.mxu0 0.0
    %2687 = vmatprep.subr.mxu0 0.0
    %2688 = vmatpush1.xpose.msra.mxu0 0.0
    %2689 = vmatprep.subr.mxu0 0.0
    %2690 = vmatpush1.xpose.msra.mxu0 0.0
    %2691 = vmatprep.subr.mxu0 0.0
    %2692 = vmatpush1.xpose.msra.mxu0 0.0
    %2693 = vmatprep.subr.mxu0 0.0
    %2694 = vmatpush1.xpose.msra.mxu0 0.0
    %2695 = vmatprep.subr.mxu0 0.0
    %2696 = vmatpush1.xpose.msra.mxu0 0.0
    %2697 = vmatprep.subr.mxu0 0.0
    %2698 = vmatpush1.xpose.msra.mxu0 0.0
    %2699 = vmatprep.subr.mxu0 0.0
    %2700 = vmatpush1.xpose.msra.mxu0 0.0
    %2701 = vmatprep.subr.mxu0 0.0
    %2702 = vmatpush1.xpose.msra.mxu0 0.0
    %2703 = vmatprep.subr.mxu0 0.0
    %2704 = vmatpush1.xpose.msra.mxu0 0.0
    %2705 = vmatprep.subr.mxu0 0.0
    %2706 = vmatpush1.xpose.msra.mxu0 0.0
    %2707 = vmatprep.subr.mxu0 0.0
    %2708 = vmatpush1.xpose.msra.mxu0 0.0
    %2709 = vmatprep.subr.mxu0 0.0
    %2710 = vmatpush1.xpose.msra.mxu0 0.0
    %2711 = vmatprep.subr.mxu0 0.0
    %2712 = vmatpush1.xpose.msra.mxu0 0.0
    %2713 = vmatprep.subr.mxu0 0.0
    %2714 = vmatpush1.xpose.msra.mxu0 0.0
    %2715 = vmatprep.subr.mxu0 0.0
    %2716 = vmatpush1.xpose.msra.mxu0 0.0
    %2717 = vmatprep.subr.mxu0 0.0
    %2718 = vmatpush1.xpose.msra.mxu0 0.0
    %2719 = vmatprep.subr.mxu0 0.0
    %2720 = vmatpush1.xpose.msra.mxu0 0.0
    %2721 = vmatprep.subr.mxu0 0.0
    %2722 = vmatpush1.xpose.msra.mxu0 0.0
    %2723 = vmatprep.subr.mxu0 0.0
    %2724 = vmatpush1.xpose.msra.mxu0 0.0
    %2725 = vmatprep.subr.mxu0 0.0
    %2726 = vmatpush1.xpose.msra.mxu0 0.0
    %2727 = vmatprep.subr.mxu0 0.0
    %2728 = vmatpush1.xpose.msra.mxu0 0.0
    %2729 = vmatprep.subr.mxu0 0.0
    %2730 = vmatpush1.xpose.msra.mxu0 0.0
    %2731 = vmatprep.subr.mxu0 0.0
    %2732 = vmatpush1.xpose.msra.mxu0 0.0
    %2733 = vmatprep.subr.mxu0 0.0
    %2734 = vmatpush1.xpose.msra.mxu0 0.0
    %2735 = vmatprep.subr.mxu0 0.0
    %2736 = vmatpush1.xpose.msra.mxu0 0.0
    %2737 = vmatprep.subr.mxu0 0.0
    %2738 = vmatpush1.xpose.msra.mxu0 0.0
    %2739 = vmatprep.subr.mxu0 0.0
    %2740 = vmatpush1.xpose.msra.mxu0 0.0
    %2741 = vmatprep.mubr.f32.mxu0 0.0
    %2742 = vmatmul.mubr.f32.gmra.mrb[0].mxu0 %v2672
    %v2743 = vpop.f32.mrb[0].mxu0
    %v2744 = vadd.f32 0.0, %v2743
    %v2745 = vpop.f32.mrb[0].mxu0
    %2746 = vdwg.mxu0
    %v2748 = vsel %vm328, %v2492, 0
    %v2751 = vsel %vm328, %v2580, 0
    %2753 = vmatprep.subr.mxu0 0.0
    %2754 = vmatpush1.xpose.msra.mxu0 %v2751
    %2755 = vmatprep.subr.mxu0 0.0
    %2756 = vmatpush1.xpose.msra.mxu0 0.0
    %2757 = vmatprep.subr.mxu0 0.0
    %2758 = vmatpush1.xpose.msra.mxu0 0.0
    %2759 = vmatprep.subr.mxu0 0.0
    %2760 = vmatpush1.xpose.msra.mxu0 0.0
    %2761 = vmatprep.subr.mxu0 0.0
    %2762 = vmatpush1.xpose.msra.mxu0 0.0
    %2763 = vmatprep.subr.mxu0 0.0
    %2764 = vmatpush1.xpose.msra.mxu0 0.0
    %2765 = vmatprep.subr.mxu0 0.0
    %2766 = vmatpush1.xpose.msra.mxu0 0.0
    %2767 = vmatprep.subr.mxu0 0.0
    %2768 = vmatpush1.xpose.msra.mxu0 0.0
    %2769 = vmatprep.subr.mxu0 0.0
    %2770 = vmatpush1.xpose.msra.mxu0 0.0
    %2771 = vmatprep.subr.mxu0 0.0
    %2772 = vmatpush1.xpose.msra.mxu0 0.0
    %2773 = vmatprep.subr.mxu0 0.0
    %2774 = vmatpush1.xpose.msra.mxu0 0.0
    %2775 = vmatprep.subr.mxu0 0.0
    %2776 = vmatpush1.xpose.msra.mxu0 0.0
    %2777 = vmatprep.subr.mxu0 0.0
    %2778 = vmatpush1.xpose.msra.mxu0 0.0
    %2779 = vmatprep.subr.mxu0 0.0
    %2780 = vmatpush1.xpose.msra.mxu0 0.0
    %2781 = vmatprep.subr.mxu0 0.0
    %2782 = vmatpush1.xpose.msra.mxu0 0.0
    %2783 = vmatprep.subr.mxu0 0.0
    %2784 = vmatpush1.xpose.msra.mxu0 0.0
    %2785 = vmatprep.subr.mxu0 0.0
    %2786 = vmatpush1.xpose.msra.mxu0 0.0
    %2787 = vmatprep.subr.mxu0 0.0
    %2788 = vmatpush1.xpose.msra.mxu0 0.0
    %2789 = vmatprep.subr.mxu0 0.0
    %2790 = vmatpush1.xpose.msra.mxu0 0.0
    %2791 = vmatprep.subr.mxu0 0.0
    %2792 = vmatpush1.xpose.msra.mxu0 0.0
    %2793 = vmatprep.subr.mxu0 0.0
    %2794 = vmatpush1.xpose.msra.mxu0 0.0
    %2795 = vmatprep.subr.mxu0 0.0
    %2796 = vmatpush1.xpose.msra.mxu0 0.0
    %2797 = vmatprep.subr.mxu0 0.0
    %2798 = vmatpush1.xpose.msra.mxu0 0.0
    %2799 = vmatprep.subr.mxu0 0.0
    %2800 = vmatpush1.xpose.msra.mxu0 0.0
    %2801 = vmatprep.subr.mxu0 0.0
    %2802 = vmatpush1.xpose.msra.mxu0 0.0
    %2803 = vmatprep.subr.mxu0 0.0
    %2804 = vmatpush1.xpose.msra.mxu0 0.0
    %2805 = vmatprep.subr.mxu0 0.0
    %2806 = vmatpush1.xpose.msra.mxu0 0.0
    %2807 = vmatprep.subr.mxu0 0.0
    %2808 = vmatpush1.xpose.msra.mxu0 0.0
    %2809 = vmatprep.subr.mxu0 0.0
    %2810 = vmatpush1.xpose.msra.mxu0 0.0
    %2811 = vmatprep.subr.mxu0 0.0
    %2812 = vmatpush1.xpose.msra.mxu0 0.0
    %2813 = vmatprep.subr.mxu0 0.0
    %2814 = vmatpush1.xpose.msra.mxu0 0.0
    %2815 = vmatprep.subr.mxu0 0.0
    %2816 = vmatpush1.xpose.msra.mxu0 0.0
    %2817 = vmatprep.mubr.f32.mxu0 0.0
    %2818 = vmatmul.mubr.f32.gmra.mrb[0].mxu0 %v2748
    %v2819 = vpop.f32.mrb[0].mxu0
    %v2820 = vadd.f32 0.0, %v2819
    %v2821 = vpop.f32.mrb[0].mxu0
    %2822 = vdwg.mxu0
    %v2823 = vmul.f32 %v2744, 0.25
    %v2824 = vmul.f32 %v2820, 0.25
    %s2825 = scalar_lea.vmem %s11, 24
    %v2826 = vld [vmem:[%s2825] sm:$0xff]
    %v2828 = vsel %vm328, %v2826, 0
    %2830 = vmatprep.subr.mxu0 0.0
    %2831 = vmatpush1.xpose.msra.mxu0 %v2828
    %2832 = vmatprep.subr.mxu0 0.0
    %2833 = vmatpush1.xpose.msra.mxu0 0.0
    %2834 = vmatprep.subr.mxu0 0.0
    %2835 = vmatpush1.xpose.msra.mxu0 0.0
    %2836 = vmatprep.subr.mxu0 0.0
    %2837 = vmatpush1.xpose.msra.mxu0 0.0
    %2838 = vmatprep.subr.mxu0 0.0
    %2839 = vmatpush1.xpose.msra.mxu0 0.0
    %2840 = vmatprep.subr.mxu0 0.0
    %2841 = vmatpush1.xpose.msra.mxu0 0.0
    %2842 = vmatprep.subr.mxu0 0.0
    %2843 = vmatpush1.xpose.msra.mxu0 0.0
    %2844 = vmatprep.subr.mxu0 0.0
    %2845 = vmatpush1.xpose.msra.mxu0 0.0
    %2846 = vmatprep.subr.mxu0 0.0
    %2847 = vmatpush1.xpose.msra.mxu0 0.0
    %2848 = vmatprep.subr.mxu0 0.0
    %2849 = vmatpush1.xpose.msra.mxu0 0.0
    %2850 = vmatprep.subr.mxu0 0.0
    %2851 = vmatpush1.xpose.msra.mxu0 0.0
    %2852 = vmatprep.subr.mxu0 0.0
    %2853 = vmatpush1.xpose.msra.mxu0 0.0
    %2854 = vmatprep.subr.mxu0 0.0
    %2855 = vmatpush1.xpose.msra.mxu0 0.0
    %2856 = vmatprep.subr.mxu0 0.0
    %2857 = vmatpush1.xpose.msra.mxu0 0.0
    %2858 = vmatprep.subr.mxu0 0.0
    %2859 = vmatpush1.xpose.msra.mxu0 0.0
    %2860 = vmatprep.subr.mxu0 0.0
    %2861 = vmatpush1.xpose.msra.mxu0 0.0
    %2862 = vmatprep.subr.mxu0 0.0
    %2863 = vmatpush1.xpose.msra.mxu0 0.0
    %2864 = vmatprep.subr.mxu0 0.0
    %2865 = vmatpush1.xpose.msra.mxu0 0.0
    %2866 = vmatprep.subr.mxu0 0.0
    %2867 = vmatpush1.xpose.msra.mxu0 0.0
    %2868 = vmatprep.subr.mxu0 0.0
    %2869 = vmatpush1.xpose.msra.mxu0 0.0
    %2870 = vmatprep.subr.mxu0 0.0
    %2871 = vmatpush1.xpose.msra.mxu0 0.0
    %2872 = vmatprep.subr.mxu0 0.0
    %2873 = vmatpush1.xpose.msra.mxu0 0.0
    %2874 = vmatprep.subr.mxu0 0.0
    %2875 = vmatpush1.xpose.msra.mxu0 0.0
    %2876 = vmatprep.subr.mxu0 0.0
    %2877 = vmatpush1.xpose.msra.mxu0 0.0
    %2878 = vmatprep.subr.mxu0 0.0
    %2879 = vmatpush1.xpose.msra.mxu0 0.0
    %2880 = vmatprep.subr.mxu0 0.0
    %2881 = vmatpush1.xpose.msra.mxu0 0.0
    %2882 = vmatprep.subr.mxu0 0.0
    %2883 = vmatpush1.xpose.msra.mxu0 0.0
    %2884 = vmatprep.subr.mxu0 0.0
    %2885 = vmatpush1.xpose.msra.mxu0 0.0
    %2886 = vmatprep.subr.mxu0 0.0
    %2887 = vmatpush1.xpose.msra.mxu0 0.0
    %2888 = vmatprep.subr.mxu0 0.0
    %2889 = vmatpush1.xpose.msra.mxu0 0.0
    %2890 = vmatprep.subr.mxu0 0.0
    %2891 = vmatpush1.xpose.msra.mxu0 0.0
    %2892 = vmatprep.subr.mxu0 0.0
    %2893 = vmatpush1.xpose.msra.mxu0 0.0
    %2894 = vmatprep.mubr.f32.mxu0 0.0
    %2895 = vmatmul.mubr.f32.gmra.mrb[0].mxu0 %v2672
    %v2896 = vpop.f32.mrb[0].mxu0
    %v2897 = vadd.f32 0.0, %v2896
    %v2898 = vpop.f32.mrb[0].mxu0
    %2899 = vmatprep.mubr.f32.mxu0 0.0
    %2900 = vmatmul.mubr.f32.gmra.mrb[0].mxu0 %v2748
    %v2901 = vpop.f32.mrb[0].mxu0
    %v2902 = vadd.f32 0.0, %v2901
    %v2903 = vpop.f32.mrb[0].mxu0
    %2904 = vdwg.mxu0
    %v2905 = vsel %vm562, %v2823, -inf
    %2906 = vmax.xlane.f32.xlu0 %v2905
    %v2907 = vpop.xlane.xlu0 %2906
    %v2908 = vsel %vm562, %v2824, -inf
    %2909 = vmax.xlane.f32.xlu0 %v2908
    %v2910 = vpop.xlane.xlu0 %2909
    %v2911 = vsel %vm562, %v2897, -inf
    %2912 = vmax.xlane.f32.xlu0 %v2911
    %v2913 = vpop.xlane.xlu0 %2912
    %v2914 = vsel %vm562, %v2902, -inf
    %2915 = vmax.xlane.f32.xlu0 %v2914
    %v2916 = vpop.xlane.xlu0 %2915
    %v2917 = vmax.f32 %v2907, %v2913
    %v2918 = vmax.f32 %v2910, %v2916
    %v2919 = vsub.f32 %v2823, %v2917
    %v2920 = vsub.f32 %v2824, %v2918
    %v2921 = vmul.f32 %v2919, 1.442695
    %v2922 = vpow.pop %v2921
    %v2923 = vmul.f32 %v2920, 1.442695
    %v2924 = vpow.pop %v2923
    %v2925 = vsub.f32 %v2897, %v2917
    %v2926 = vsub.f32 %v2902, %v2918
    %v2927 = vmul.f32 %v2925, 1.442695
    %v2928 = vpow.pop %v2927
    %v2929 = vmul.f32 %v2926, 1.442695
    %v2930 = vpow.pop %v2929
    %v2931 = vsel %vm562, %v2922, 0.0
    %2932 = vadd.xlane.f32.xlu0 %v2931
    %v2933 = vpop.xlane.xlu0 %2932
    %v2934 = vsel %vm562, %v2924, 0.0
    %2935 = vadd.xlane.f32.xlu0 %v2934
    %v2936 = vpop.xlane.xlu0 %2935
    %v2937 = vsel %vm562, %v2928, 0.0
    %2938 = vadd.xlane.f32.xlu0 %v2937
    %v2939 = vpop.xlane.xlu0 %2938
    %v2940 = vsel %vm562, %v2930, 0.0
    %2941 = vadd.xlane.f32.xlu0 %v2940
    %v2942 = vpop.xlane.xlu0 %2941
    %v2943 = vadd.f32 %v2933, %v2939
    %v2944 = vadd.f32 %v2936, %v2942
    %v2946 = vsel %vm562, %v2922, 0
    %2948 = vmatprep.subr.mxu0 0.0
    %2949 = vmatpush1.msra.mxu0 %v2663
    %2950 = vmatprep.subr.mxu0 0.0
    %2951 = vmatpush1.msra.mxu0 0.0
    %2952 = vmatprep.subr.mxu0 0.0
    %2953 = vmatpush1.msra.mxu0 0.0
    %2954 = vmatprep.subr.mxu0 0.0
    %2955 = vmatpush1.msra.mxu0 0.0
    %2956 = vmatprep.subr.mxu0 0.0
    %2957 = vmatpush1.msra.mxu0 0.0
    %2958 = vmatprep.subr.mxu0 0.0
    %2959 = vmatpush1.msra.mxu0 0.0
    %2960 = vmatprep.subr.mxu0 0.0
    %2961 = vmatpush1.msra.mxu0 0.0
    %2962 = vmatprep.subr.mxu0 0.0
    %2963 = vmatpush1.msra.mxu0 0.0
    %2964 = vmatprep.subr.mxu0 0.0
    %2965 = vmatpush1.msra.mxu0 0.0
    %2966 = vmatprep.subr.mxu0 0.0
    %2967 = vmatpush1.msra.mxu0 0.0
    %2968 = vmatprep.subr.mxu0 0.0
    %2969 = vmatpush1.msra.mxu0 0.0
    %2970 = vmatprep.subr.mxu0 0.0
    %2971 = vmatpush1.msra.mxu0 0.0
    %2972 = vmatprep.subr.mxu0 0.0
    %2973 = vmatpush1.msra.mxu0 0.0
    %2974 = vmatprep.subr.mxu0 0.0
    %2975 = vmatpush1.msra.mxu0 0.0
    %2976 = vmatprep.subr.mxu0 0.0
    %2977 = vmatpush1.msra.mxu0 0.0
    %2978 = vmatprep.subr.mxu0 0.0
    %2979 = vmatpush1.msra.mxu0 0.0
    %2980 = vmatprep.subr.mxu0 0.0
    %2981 = vmatpush1.msra.mxu0 0.0
    %2982 = vmatprep.subr.mxu0 0.0
    %2983 = vmatpush1.msra.mxu0 0.0
    %2984 = vmatprep.subr.mxu0 0.0
    %2985 = vmatpush1.msra.mxu0 0.0
    %2986 = vmatprep.subr.mxu0 0.0
    %2987 = vmatpush1.msra.mxu0 0.0
    %2988 = vmatprep.subr.mxu0 0.0
    %2989 = vmatpush1.msra.mxu0 0.0
    %2990 = vmatprep.subr.mxu0 0.0
    %2991 = vmatpush1.msra.mxu0 0.0
    %2992 = vmatprep.subr.mxu0 0.0
    %2993 = vmatpush1.msra.mxu0 0.0
    %2994 = vmatprep.subr.mxu0 0.0
    %2995 = vmatpush1.msra.mxu0 0.0
    %2996 = vmatprep.subr.mxu0 0.0
    %2997 = vmatpush1.msra.mxu0 0.0
    %2998 = vmatprep.subr.mxu0 0.0
    %2999 = vmatpush1.msra.mxu0 0.0
    %3000 = vmatprep.subr.mxu0 0.0
    %3001 = vmatpush1.msra.mxu0 0.0
    %3002 = vmatprep.subr.mxu0 0.0
    %3003 = vmatpush1.msra.mxu0 0.0
    %3004 = vmatprep.subr.mxu0 0.0
    %3005 = vmatpush1.msra.mxu0 0.0
    %3006 = vmatprep.subr.mxu0 0.0
    %3007 = vmatpush1.msra.mxu0 0.0
    %3008 = vmatprep.subr.mxu0 0.0
    %3009 = vmatpush1.msra.mxu0 0.0
    %3010 = vmatprep.subr.mxu0 0.0
    %3011 = vmatpush1.msra.mxu0 0.0
    %3012 = vmatprep.mubr.f32.mxu0 0.0
    %3013 = vmatmul.mubr.f32.gmra.mrb[0].mxu0 %v2946
    %v3014 = vpop.f32.mrb[0].mxu0
    %v3015 = vadd.f32 0.0, %v3014
    %v3016 = vpop.f32.mrb[0].mxu0
    %3017 = vdwg.mxu0
    %v3019 = vsel %vm562, %v2924, 0
    %3021 = vmatprep.subr.mxu0 0.0
    %3022 = vmatpush1.msra.mxu0 %v2668
    %3023 = vmatprep.subr.mxu0 0.0
    %3024 = vmatpush1.msra.mxu0 0.0
    %3025 = vmatprep.subr.mxu0 0.0
    %3026 = vmatpush1.msra.mxu0 0.0
    %3027 = vmatprep.subr.mxu0 0.0
    %3028 = vmatpush1.msra.mxu0 0.0
    %3029 = vmatprep.subr.mxu0 0.0
    %3030 = vmatpush1.msra.mxu0 0.0
    %3031 = vmatprep.subr.mxu0 0.0
    %3032 = vmatpush1.msra.mxu0 0.0
    %3033 = vmatprep.subr.mxu0 0.0
    %3034 = vmatpush1.msra.mxu0 0.0
    %3035 = vmatprep.subr.mxu0 0.0
    %3036 = vmatpush1.msra.mxu0 0.0
    %3037 = vmatprep.subr.mxu0 0.0
    %3038 = vmatpush1.msra.mxu0 0.0
    %3039 = vmatprep.subr.mxu0 0.0
    %3040 = vmatpush1.msra.mxu0 0.0
    %3041 = vmatprep.subr.mxu0 0.0
    %3042 = vmatpush1.msra.mxu0 0.0
    %3043 = vmatprep.subr.mxu0 0.0
    %3044 = vmatpush1.msra.mxu0 0.0
    %3045 = vmatprep.subr.mxu0 0.0
    %3046 = vmatpush1.msra.mxu0 0.0
    %3047 = vmatprep.subr.mxu0 0.0
    %3048 = vmatpush1.msra.mxu0 0.0
    %3049 = vmatprep.subr.mxu0 0.0
    %3050 = vmatpush1.msra.mxu0 0.0
    %3051 = vmatprep.subr.mxu0 0.0
    %3052 = vmatpush1.msra.mxu0 0.0
    %3053 = vmatprep.subr.mxu0 0.0
    %3054 = vmatpush1.msra.mxu0 0.0
    %3055 = vmatprep.subr.mxu0 0.0
    %3056 = vmatpush1.msra.mxu0 0.0
    %3057 = vmatprep.subr.mxu0 0.0
    %3058 = vmatpush1.msra.mxu0 0.0
    %3059 = vmatprep.subr.mxu0 0.0
    %3060 = vmatpush1.msra.mxu0 0.0
    %3061 = vmatprep.subr.mxu0 0.0
    %3062 = vmatpush1.msra.mxu0 0.0
    %3063 = vmatprep.subr.mxu0 0.0
    %3064 = vmatpush1.msra.mxu0 0.0
    %3065 = vmatprep.subr.mxu0 0.0
    %3066 = vmatpush1.msra.mxu0 0.0
    %3067 = vmatprep.subr.mxu0 0.0
    %3068 = vmatpush1.msra.mxu0 0.0
    %3069 = vmatprep.subr.mxu0 0.0
    %3070 = vmatpush1.msra.mxu0 0.0
    %3071 = vmatprep.subr.mxu0 0.0
    %3072 = vmatpush1.msra.mxu0 0.0
    %3073 = vmatprep.subr.mxu0 0.0
    %3074 = vmatpush1.msra.mxu0 0.0
    %3075 = vmatprep.subr.mxu0 0.0
    %3076 = vmatpush1.msra.mxu0 0.0
    %3077 = vmatprep.subr.mxu0 0.0
    %3078 = vmatpush1.msra.mxu0 0.0
    %3079 = vmatprep.subr.mxu0 0.0
    %3080 = vmatpush1.msra.mxu0 0.0
    %3081 = vmatprep.subr.mxu0 0.0
    %3082 = vmatpush1.msra.mxu0 0.0
    %3083 = vmatprep.subr.mxu0 0.0
    %3084 = vmatpush1.msra.mxu0 0.0
    %3085 = vmatprep.mubr.f32.mxu0 0.0
    %3086 = vmatmul.mubr.f32.gmra.mrb[0].mxu0 %v3019
    %v3087 = vpop.f32.mrb[0].mxu0
    %v3088 = vadd.f32 0.0, %v3087
    %v3089 = vpop.f32.mrb[0].mxu0
    %3090 = vdwg.mxu0
    %s3091 = scalar_lea.vmem %s12, 24
    %v3092 = vld [vmem:[%s3091] sm:$0xff]
    %v3094 = vsel %vm562, %v2928, 0
    %v3097 = vsel %vm562, %v2930, 0
    %3099 = vmatprep.subr.mxu0 0.0
    %3100 = vmatpush1.msra.mxu0 %v3092
    %3101 = vmatprep.subr.mxu0 0.0
    %3102 = vmatpush1.msra.mxu0 0.0
    %3103 = vmatprep.subr.mxu0 0.0
    %3104 = vmatpush1.msra.mxu0 0.0
    %3105 = vmatprep.subr.mxu0 0.0
    %3106 = vmatpush1.msra.mxu0 0.0
    %3107 = vmatprep.subr.mxu0 0.0
    %3108 = vmatpush1.msra.mxu0 0.0
    %3109 = vmatprep.subr.mxu0 0.0
    %3110 = vmatpush1.msra.mxu0 0.0
    %3111 = vmatprep.subr.mxu0 0.0
    %3112 = vmatpush1.msra.mxu0 0.0
    %3113 = vmatprep.subr.mxu0 0.0
    %3114 = vmatpush1.msra.mxu0 0.0
    %3115 = vmatprep.subr.mxu0 0.0
    %3116 = vmatpush1.msra.mxu0 0.0
    %3117 = vmatprep.subr.mxu0 0.0
    %3118 = vmatpush1.msra.mxu0 0.0
    %3119 = vmatprep.subr.mxu0 0.0
    %3120 = vmatpush1.msra.mxu0 0.0
    %3121 = vmatprep.subr.mxu0 0.0
    %3122 = vmatpush1.msra.mxu0 0.0
    %3123 = vmatprep.subr.mxu0 0.0
    %3124 = vmatpush1.msra.mxu0 0.0
    %3125 = vmatprep.subr.mxu0 0.0
    %3126 = vmatpush1.msra.mxu0 0.0
    %3127 = vmatprep.subr.mxu0 0.0
    %3128 = vmatpush1.msra.mxu0 0.0
    %3129 = vmatprep.subr.mxu0 0.0
    %3130 = vmatpush1.msra.mxu0 0.0
    %3131 = vmatprep.subr.mxu0 0.0
    %3132 = vmatpush1.msra.mxu0 0.0
    %3133 = vmatprep.subr.mxu0 0.0
    %3134 = vmatpush1.msra.mxu0 0.0
    %3135 = vmatprep.subr.mxu0 0.0
    %3136 = vmatpush1.msra.mxu0 0.0
    %3137 = vmatprep.subr.mxu0 0.0
    %3138 = vmatpush1.msra.mxu0 0.0
    %3139 = vmatprep.subr.mxu0 0.0
    %3140 = vmatpush1.msra.mxu0 0.0
    %3141 = vmatprep.subr.mxu0 0.0
    %3142 = vmatpush1.msra.mxu0 0.0
    %3143 = vmatprep.subr.mxu0 0.0
    %3144 = vmatpush1.msra.mxu0 0.0
    %3145 = vmatprep.subr.mxu0 0.0
    %3146 = vmatpush1.msra.mxu0 0.0
    %3147 = vmatprep.subr.mxu0 0.0
    %3148 = vmatpush1.msra.mxu0 0.0
    %3149 = vmatprep.subr.mxu0 0.0
    %3150 = vmatpush1.msra.mxu0 0.0
    %3151 = vmatprep.subr.mxu0 0.0
    %3152 = vmatpush1.msra.mxu0 0.0
    %3153 = vmatprep.subr.mxu0 0.0
    %3154 = vmatpush1.msra.mxu0 0.0
    %3155 = vmatprep.subr.mxu0 0.0
    %3156 = vmatpush1.msra.mxu0 0.0
    %3157 = vmatprep.subr.mxu0 0.0
    %3158 = vmatpush1.msra.mxu0 0.0
    %3159 = vmatprep.subr.mxu0 0.0
    %3160 = vmatpush1.msra.mxu0 0.0
    %3161 = vmatprep.subr.mxu0 0.0
    %3162 = vmatpush1.msra.mxu0 0.0
    %3163 = vmatprep.mubr.f32.mxu0 0.0
    %3164 = vmatmul.mubr.f32.gmra.mrb[0].mxu0 %v3094
    %v3165 = vpop.f32.mrb[0].mxu0
    %v3166 = vadd.f32 0.0, %v3165
    %v3167 = vpop.f32.mrb[0].mxu0
    %3168 = vmatprep.mubr.f32.mxu0 0.0
    %3169 = vmatmul.mubr.f32.gmra.mrb[0].mxu0 %v3097
    %v3170 = vpop.f32.mrb[0].mxu0
    %v3171 = vadd.f32 0.0, %v3170
    %v3172 = vpop.f32.mrb[0].mxu0
    %3173 = vdwg.mxu0
    %v3174 = vadd.f32 %v3015, %v3166
    %v3175 = vadd.f32 %v3088, %v3171
    %v3176 = vrcp.pop %v2943
    %v3177 = vrcp.pop %v2944
    %v3178 = vmul.f32 %v3174, %v3176
    %v3179 = vmul.f32 %v3175, %v3177
    %3182 = vrot.lane.b32.xlu0 %v3178, 48
    %v3183 = vpop.permute.xlu0 %3182
    %3184 = vrot.lane.b32.xlu0 %v3179, 48
    %v3185 = vpop.permute.xlu0 %3184
    %vm3188 = vcmask 523648
    %3189 = vst.msk [vmem:[#allocation2] sm:$0xff] %vm3188, %v3183
    %3190 = vst.msk [vmem:[#allocation2 + $0x8] sm:$0xff] %vm3188, %v3185
    %v3191 = vld [vmem:[#allocation2] sm:$0xff]
    %v3192 = vld [vmem:[#allocation2 + $0x8] sm:$0xff]
    %v3193 = vld [vmem:[%s9] sm:$0xff]
    %v3194 = vld [vmem:[%s9 + $0x8] sm:$0xff]
    %v3195 = vld [vmem:[%s9 + $0x10] sm:$0xff]
    %v3196 = vld [vmem:[%s9 + $0x18] sm:$0xff]
    %v3197 = vld [vmem:[%s9 + $0x20] sm:$0xff]
    %v3198 = vld [vmem:[%s9 + $0x28] sm:$0xff]
    %v3199 = vld [vmem:[%s9 + $0x30] sm:$0xff]
    %v3200 = vld [vmem:[%s9 + $0x38] sm:$0xff]
    %v3201 = vld [vmem:[%s10] sm:$0x1]
    %v3203 = vlaneseq
    %v3204 = vshrl.u32 %v3203, 7
    %v3205 = vsub.s32 0, %v3204
    %v3206 = vrot.slane %v3201, %v3205
    %vm3208 = vcmask 523264
    %v3210 = vsel %vm3208, %v3191, 0
    %v3213 = vsel %vm3208, %v3192, 0
    %3215 = vmatprep.subr.mxu0 0.0
    %3216 = vmatpush1.msra.mxu0 %v3193
    %3217 = vmatprep.subr.mxu0 0.0
    %3218 = vmatpush1.msra.mxu0 %v3194
    %3219 = vmatprep.subr.mxu0 0.0
    %3220 = vmatpush1.msra.mxu0 %v3195
    %3221 = vmatprep.subr.mxu0 0.0
    %3222 = vmatpush1.msra.mxu0 %v3196
    %3223 = vmatprep.subr.mxu0 0.0
    %3224 = vmatpush1.msra.mxu0 %v3197
    %3225 = vmatprep.subr.mxu0 0.0
    %3226 = vmatpush1.msra.mxu0 %v3198
    %3227 = vmatprep.subr.mxu0 0.0
    %3228 = vmatpush1.msra.mxu0 %v3199
    %3229 = vmatprep.subr.mxu0 0.0
    %3230 = vmatpush1.msra.mxu0 %v3200
    %3231 = vmatprep.subr.mxu0 0.0
    %3232 = vmatpush1.msra.mxu0 0.0
    %3233 = vmatprep.subr.mxu0 0.0
    %3234 = vmatpush1.msra.mxu0 0.0
    %3235 = vmatprep.subr.mxu0 0.0
    %3236 = vmatpush1.msra.mxu0 0.0
    %3237 = vmatprep.subr.mxu0 0.0
    %3238 = vmatpush1.msra.mxu0 0.0
    %3239 = vmatprep.subr.mxu0 0.0
    %3240 = vmatpush1.msra.mxu0 0.0
    %3241 = vmatprep.subr.mxu0 0.0
    %3242 = vmatpush1.msra.mxu0 0.0
    %3243 = vmatprep.subr.mxu0 0.0
    %3244 = vmatpush1.msra.mxu0 0.0
    %3245 = vmatprep.subr.mxu0 0.0
    %3246 = vmatpush1.msra.mxu0 0.0
    %3247 = vmatprep.subr.mxu0 0.0
    %3248 = vmatpush1.msra.mxu0 0.0
    %3249 = vmatprep.subr.mxu0 0.0
    %3250 = vmatpush1.msra.mxu0 0.0
    %3251 = vmatprep.subr.mxu0 0.0
    %3252 = vmatpush1.msra.mxu0 0.0
    %3253 = vmatprep.subr.mxu0 0.0
    %3254 = vmatpush1.msra.mxu0 0.0
    %3255 = vmatprep.subr.mxu0 0.0
    %3256 = vmatpush1.msra.mxu0 0.0
    %3257 = vmatprep.subr.mxu0 0.0
    %3258 = vmatpush1.msra.mxu0 0.0
    %3259 = vmatprep.subr.mxu0 0.0
    %3260 = vmatpush1.msra.mxu0 0.0
    %3261 = vmatprep.subr.mxu0 0.0
    %3262 = vmatpush1.msra.mxu0 0.0
    %3263 = vmatprep.subr.mxu0 0.0
    %3264 = vmatpush1.msra.mxu0 0.0
    %3265 = vmatprep.subr.mxu0 0.0
    %3266 = vmatpush1.msra.mxu0 0.0
    %3267 = vmatprep.subr.mxu0 0.0
    %3268 = vmatpush1.msra.mxu0 0.0
    %3269 = vmatprep.subr.mxu0 0.0
    %3270 = vmatpush1.msra.mxu0 0.0
    %3271 = vmatprep.subr.mxu0 0.0
    %3272 = vmatpush1.msra.mxu0 0.0
    %3273 = vmatprep.subr.mxu0 0.0
    %3274 = vmatpush1.msra.mxu0 0.0
    %3275 = vmatprep.subr.mxu0 0.0
    %3276 = vmatpush1.msra.mxu0 0.0
    %3277 = vmatprep.subr.mxu0 0.0
    %3278 = vmatpush1.msra.mxu0 0.0
    %3279 = vmatprep.mubr.f32.mxu0 0.0
    %3280 = vmatmul.mubr.f32.gmra.mrb[0].mxu0 %v3210
    %v3281 = vpop.f32.mrb[0].mxu0
    %v3282 = vadd.f32 %v3206, %v3281
    %v3283 = vpop.f32.mrb[0].mxu0
    %3284 = vmatprep.mubr.f32.mxu0 0.0
    %3285 = vmatmul.mubr.f32.gmra.mrb[0].mxu0 %v3213
    %v3286 = vpop.f32.mrb[0].mxu0
    %v3287 = vadd.f32 %v3206, %v3286
    %v3288 = vpop.f32.mrb[0].mxu0
    %3289 = vdwg.mxu0
    %3290 = vst.msk [vmem:[#allocation3] sm:$0xff] %vm62, %v3282
    %3291 = vst.msk [vmem:[#allocation3 + $0x8] sm:$0xff] %vm62, %v3287
    // Predicated region
    $region54: #{tpu_custom_call.1} parent=1 // pred_check
      _
    $region55: #{tpu_custom_call.1} parent=1 // pred_check_branch
      %3293 = sbr.rel (0) target = $region57
    $region56: #{tpu_custom_call.1} parent=1 // pred_region
      %s3295 = ssub.s32 256, 256
      %3296 = vsyncadd [#allocation4], %s3295
      %s3297 = sshll.u32 [#allocation3], 4
      %s3298 = int_to_ptr.vmem [resolvable:$true] %s3297
      %3303 = dma.vmem_to_hbm [thread:$0]  %s3298, 256, %s13, [#allocation4], 128, 128, 8
    $region57: #{tpu_custom_call.1} parent=1 // pred_fallthru
      _
    // Predicated region
    $region58: #{tpu_custom_call.1} parent=1 // pred_check
      _
    $region59: #{tpu_custom_call.1} parent=1 // pred_check_branch
      %3305 = sbr.rel (0) target = $region61
    $region60: #{tpu_custom_call.1} parent=1 // pred_region
      %3306 = dma.done [#allocation4], 256
    $region61: #{tpu_custom_call.1} parent=1 // pred_fallthru
      _
    %3307 = vsyncpa [#allocation4], 1

</llo_original>
